<compile_context>
chip_gen: v7x
topology: tpu7x:2x2x1
jax: 0.10.0
libtpu: 0.0.40
codegen_flags: <defaults>
</compile_context>

<pallas_src>
import jax
import jax.numpy as jnp
from jax.experimental import pallas as pl
from jax.experimental.pallas import tpu as pltpu

EPS = 1e-5
LANE = 128


# ----------------------------------------------------------------- helpers --
def _round_up(x, m):
    return (x + m - 1) // m * m


def _vmem_budget():
    """~70% of this generation's physical VMEM per TensorCore (bytes)."""
    cap = 64 << 20                      # safe default (v7x: 64 MiB / TC)
    try:
        info = pltpu.get_tpu_info()
        c = int(getattr(info, "vmem_capacity_bytes", 0))
        if c > 0:
            cap = c
    except Exception:
        pass
    return int(cap * 0.70)


def _pick_flat_tile(m, bytes_per_row, budget, cap=8192):
    """Largest multiple-of-8 row tile whose working set fits in `budget`."""
    t = budget // max(1, bytes_per_row)
    t = min(t, cap, _round_up(m, 8))
    t -= t % 8
    return max(t, 8)


def _pick_h_tile(h, in_row, out_row, acc_row, fixed, budget):
    """Largest divisor of `h` whose double-buffered working set fits."""
    best = 1
    for th in range(1, h + 1):
        if h % th:
            continue
        cost = 2 * ((th + 2) * in_row + th * out_row) + 2 * th * acc_row + fixed
        if cost <= budget:
            best = th
    return best


def _bn_scale_shift(sum_c, sq_c, n, gamma, beta):
    # Training-mode BatchNorm folded to a per-channel affine.  Variance via
    # E[x^2]-E[x]^2 (clamped at 0); f32 sums are ample at these magnitudes.
    mean = sum_c / n
    var = jnp.maximum(sq_c / n - mean * mean, 0.0)
    scale = gamma * jax.lax.rsqrt(var + EPS)
    return scale, beta - mean * scale


# ----------------------------------------------------------------- kernels --
def _matmul_stats_kernel(x_ref, w_ref, y_ref, sum_ref, sq_ref):
    # y = x @ w (bf16 operands, f32 MXU accumulation); per-tile BN partial
    # sums are emitted as per-step outputs so the grid stays fully "parallel".
    y = jnp.dot(x_ref[...], w_ref[...], preferred_element_type=jnp.float32)
    sum_ref[...] = jnp.sum(y, axis=0).reshape(sum_ref.shape)
    sq_ref[...] = jnp.sum(y * y, axis=0).reshape(sq_ref.shape)
    y_ref[...] = y.astype(y_ref.dtype)


def _conv3_rows_kernel(x_ref, w_ref, y_ref, sum_ref, sq_ref):
    # 3x3 conv on one row tile (2-row halo) + per-tile BN partial sums.
    #   x_ref : (1, th+2, Wo, K3) bf16  W-im2col'ed input (K3 = 3 * Cin)
    #   w_ref : (3, K3, Cp)       bf16  per-dy weight slabs
    #   y_ref : (1, th, Wo, Cp)         raw (pre-BN) conv output
    # The dy slices move only along the untiled H axis -> no relayout copies.
    _, th, wo, cp = y_ref.shape
    k3 = x_ref.shape[3]
    m = th * wo
    acc = jnp.zeros((m, cp), jnp.float32)
    for dy in range(3):                        # unrolled: 3 MXU dots per tile
        xt = x_ref[:, dy:dy + th, :, :].reshape(m, k3)
        acc = acc + jnp.dot(xt, w_ref[dy], preferred_element_type=jnp.float32)
    sum_ref[...] = jnp.sum(acc, axis=0).reshape(sum_ref.shape)
    sq_ref[...] = jnp.sum(acc * acc, axis=0).reshape(sq_ref.shape)
    y_ref[...] = acc.reshape(1, th, wo, cp).astype(y_ref.dtype)


def _bn_relu_kernel(y_ref, scale_ref, shift_ref, o_ref):
    # Per-channel affine (training-mode BN, precomputed scale/shift) + ReLU.
    z = y_ref[...].astype(jnp.float32) * scale_ref[...] + shift_ref[...]
    o_ref[...] = jnp.maximum(z, 0.0).astype(o_ref.dtype)


# ------------------------------------------------------------ conv wrapper --
def _conv3x3_bn_relu(x_act, w3, gamma, beta, cp, budget, out_dtype):
    """3x3 conv (pad=1) + training-mode BN + ReLU, tiled over H row blocks."""
    B, Ho, Wo, C = x_act.shape
    K3 = 3 * C
    bf16 = jnp.bfloat16

    # -- XLA layout glue: W-pad + W-only im2col (dx-major), H-pad, H halos ---
    # TODO(synk): fold this pad/im2col/halo glue into the kernel's index_map
    # (element-offset windows + in-kernel boundary masking) to drop the extra
    # HBM round trip of the conv input.
    xw = jnp.pad(x_act, ((0, 0), (0, 0), (1, 1), (0, 0)))
    xw = jnp.concatenate(
        [xw[:, :, 0:Wo], xw[:, :, 1:Wo + 1], xw[:, :, 2:Wo + 2]], axis=-1)
    xh = jnp.pad(xw, ((0, 0), (1, 1), (0, 0), (0, 0)))      # (B, Ho+2, Wo, K3)

    in_row = Wo * K3 * 2
    out_row = Wo * cp * 2
    acc_row = Wo * cp * 4
    w_bytes = 3 * K3 * cp * 2
    th = _pick_h_tile(Ho, in_row, out_row, acc_row, 2 * w_bytes, budget)
    nh = Ho // th
    nt = B * nh
    tiles = jnp.stack([xh[:, j * th:j * th + th + 2] for j in range(nh)], axis=1)
    tiles = tiles.reshape(nt, th + 2, Wo, K3).astype(bf16)

    # -- pass A: row-tiled conv matmuls + per-tile BN partial statistics -----
    y_raw, s, q = pl.pallas_call(
        _conv3_rows_kernel,
        grid=(nt,),
        in_specs=[
            pl.BlockSpec((1, th + 2, Wo, K3), lambda i: (i, 0, 0, 0)),
            pl.BlockSpec((3, K3, cp), lambda i: (0, 0, 0)),
        ],
        out_specs=[
            pl.BlockSpec((1, th, Wo, cp), lambda i: (i, 0, 0, 0)),
            pl.BlockSpec((1, 1, cp), lambda i: (i, 0, 0)),
            pl.BlockSpec((1, 1, cp), lambda i: (i, 0, 0)),
        ],
        out_shape=[
            jax.ShapeDtypeStruct((nt, th, Wo, cp), bf16),
            jax.ShapeDtypeStruct((nt, 1, cp), jnp.float32),
            jax.ShapeDtypeStruct((nt, 1, cp), jnp.float32),
        ],
        compiler_params=pltpu.CompilerParams(
            dimension_semantics=("parallel",),
            vmem_limit_bytes=budget),
    )(tiles, w3)

    n = float(B * Ho * Wo)
    scale, shift = _bn_scale_shift(s.sum(axis=(0, 1)), q.sum(axis=(0, 1)),
                                   n, gamma, beta)

    # -- pass B: normalize + ReLU --------------------------------------------
    out = pl.pallas_call(
        _bn_relu_kernel,
        grid=(nt,),
        in_specs=[
            pl.BlockSpec((1, th, Wo, cp), lambda i: (i, 0, 0, 0)),
            pl.BlockSpec((1, cp), lambda i: (0, 0)),
            pl.BlockSpec((1, cp), lambda i: (0, 0)),
        ],
        out_specs=pl.BlockSpec((1, th, Wo, cp), lambda i: (i, 0, 0, 0)),
        out_shape=jax.ShapeDtypeStruct((nt, th, Wo, cp), out_dtype),
        compiler_params=pltpu.CompilerParams(
            dimension_semantics=("parallel",),
            vmem_limit_bytes=budget),
    )(y_raw, scale[None, :], shift[None, :])

    return out.reshape(B, Ho, Wo, cp)


# ----------------------------------------------------------------- wrapper --
@jax.jit
def unet_up_block_forward(x_nchw, bridge_nchw, params):
    B, Cin, H, W = x_nchw.shape
    Cout = params['wup'].shape[1]
    Ho, Wo = 2 * H, 2 * W
    f32, bf16 = jnp.float32, jnp.bfloat16

    Cinp = _round_up(max(Cin, 1), LANE)
    Cp = _round_up(max(Cout, 1), LANE)
    budget = _vmem_budget()

    # -------- stage 1a: ConvTranspose2d(k=2, s=2) as a tiled matmul ---------
    # One output row per input pixel; the 4 deconv taps sit on the N axis.
    M1 = B * H * W
    row1 = 2 * (Cinp * 2 + 4 * Cp * 2) + 2 * (4 * Cp * 4)
    wup_bytes = Cinp * 4 * Cp * 2
    tm1 = _pick_flat_tile(M1, row1, budget - 2 * wup_bytes)
    M1p = _round_up(M1, tm1)
    steps1 = M1p // tm1

    x2d = jnp.transpose(x_nchw, (0, 2, 3, 1)).reshape(M1, Cin)
    x2d = jnp.pad(x2d, ((0, M1p - M1), (0, Cinp - Cin))).astype(bf16)

    wup = jnp.zeros((Cinp, 2, 2, Cp), f32)
    wup = wup.at[:Cin, :, :, :Cout].set(jnp.transpose(params['wup'], (0, 2, 3, 1)))
    wup2d = wup.reshape(Cinp, 4 * Cp).astype(bf16)
    # Conv/deconv biases are dropped: training-mode BatchNorm subtracts the
    # batch mean, so they cancel exactly.

    up4_raw, s1, q1 = pl.pallas_call(
        _matmul_stats_kernel,
        grid=(steps1,),
        in_specs=[
            pl.BlockSpec((tm1, Cinp), lambda i: (i, 0)),
            pl.BlockSpec((Cinp, 4 * Cp), lambda i: (0, 0)),
        ],
        out_specs=[
            pl.BlockSpec((tm1, 4 * Cp), lambda i: (i, 0)),
            pl.BlockSpec((1, 1, 4 * Cp), lambda i: (i, 0, 0)),
            pl.BlockSpec((1, 1, 4 * Cp), lambda i: (i, 0, 0)),
        ],
        out_shape=[
            jax.ShapeDtypeStruct((M1p, 4 * Cp), bf16),
            jax.ShapeDtypeStruct((steps1, 1, 4 * Cp), f32),
            jax.ShapeDtypeStruct((steps1, 1, 4 * Cp), f32),
        ],
        compiler_params=pltpu.CompilerParams(
            dimension_semantics=("parallel",),
            vmem_limit_bytes=budget),
    )(x2d, wup2d)

    # BN-up scale/shift: tap-resolved partial sums collapse onto channels.
    n_up = float(B * Ho * Wo)
    s_tot = s1.sum(axis=(0, 1)).reshape(4, Cp).sum(axis=0)
    q_tot = q1.sum(axis=(0, 1)).reshape(4, Cp).sum(axis=0)
    gamma_up = jnp.pad(params['g_up'], (0, Cp - Cout))
    beta_up = jnp.pad(params['b_up'], (0, Cp - Cout))
    scale_up, shift_up = _bn_scale_shift(s_tot, q_tot, n_up, gamma_up, beta_up)

    # -------- stage 1b: BN + ReLU on the deconv output ----------------------
    up_act4 = pl.pallas_call(
        _bn_relu_kernel,
        grid=(steps1,),
        in_specs=[
            pl.BlockSpec((tm1, 4 * Cp), lambda i: (i, 0)),
            pl.BlockSpec((1, 4 * Cp), lambda i: (0, 0)),
            pl.BlockSpec((1, 4 * Cp), lambda i: (0, 0)),
        ],
        out_specs=pl.BlockSpec((tm1, 4 * Cp), lambda i: (i, 0)),
        out_shape=jax.ShapeDtypeStruct((M1p, 4 * Cp), bf16),
        compiler_params=pltpu.CompilerParams(
            dimension_semantics=("parallel",),
            vmem_limit_bytes=budget),
    )(up4_raw, jnp.tile(scale_up, 4)[None, :], jnp.tile(shift_up, 4)[None, :])

    # XLA layout glue: 2x2 tap interleave, bridge center-crop, channel concat.
    # TODO(synk): emit the interleave / concat directly from kernel I/O
    # (strided output index_map + aliased channel halves) to cut these
    # full-tensor HBM round trips.
    up_act = (up_act4[:M1].reshape(B, H, W, 2, 2, Cp)
              .transpose(0, 1, 3, 2, 4, 5).reshape(B, Ho, Wo, Cp))
    r0 = (bridge_nchw.shape[2] - Ho) // 2
    c0 = (bridge_nchw.shape[3] - Wo) // 2
    crop = jnp.transpose(bridge_nchw[:, :, r0:r0 + Ho, c0:c0 + Wo], (0, 2, 3, 1))
    crop = jnp.pad(crop, ((0, 0), (0, 0), (0, 0), (0, Cp - Cout))).astype(bf16)
    cat = jnp.concatenate([crop, up_act], axis=-1)           # (B, Ho, Wo, 2*Cp)

    # -------- conv3x3 + BN + ReLU (x2), row-tiled two-pass kernels ----------
    wc1_t = jnp.transpose(params['wc1'], (2, 3, 1, 0))       # (3,3,2*Cout,Cout)
    w1 = jnp.zeros((3, 3, 2 * Cp, Cp), f32)
    w1 = w1.at[:, :, :Cout, :Cout].set(wc1_t[:, :, :Cout, :])         # bridge
    w1 = w1.at[:, :, Cp:Cp + Cout, :Cout].set(wc1_t[:, :, Cout:, :])  # up
    w1 = w1.reshape(3, 3 * 2 * Cp, Cp).astype(bf16)          # dx-major K blocks

    wc2_t = jnp.transpose(params['wc2'], (2, 3, 1, 0))       # (3,3,Cout,Cout)
    w2 = jnp.zeros((3, 3, Cp, Cp), f32)
    w2 = w2.at[:, :, :Cout, :Cout].set(wc2_t)
    w2 = w2.reshape(3, 3 * Cp, Cp).astype(bf16)

    gamma1 = jnp.pad(params['g1'], (0, Cp - Cout))
    beta1 = jnp.pad(params['be1'], (0, Cp - Cout))
    gamma2 = jnp.pad(params['g2'], (0, Cp - Cout))
    beta2 = jnp.pad(params['be2'], (0, Cp - Cout))

    mid = _conv3x3_bn_relu(cat, w1, gamma1, beta1, Cp, budget, out_dtype=bf16)
    out = _conv3x3_bn_relu(mid, w2, gamma2, beta2, Cp, budget, out_dtype=f32)

    return jnp.transpose(out[..., :Cout], (0, 3, 1, 2))      # NCHW, f32


# ----------------------------------------------------------- pure-JAX ref --
def _bn_train(x_nchw, gamma, beta):
    mean = jnp.mean(x_nchw, axis=(0, 2, 3), keepdims=True)
    var = jnp.var(x_nchw, axis=(0, 2, 3), keepdims=True)
    xh = (x_nchw - mean) / jnp.sqrt(var + EPS)
    return xh * gamma[None, :, None, None] + beta[None, :, None, None]


def reference_forward(x, bridge, p):
    B, Cin, H, W = x.shape
    Cout = p['wup'].shape[1]
    up = jnp.einsum('bchw,cdij->bdhiwj', x, p['wup'],
                    precision=jax.lax.Precision.HIGHEST)
    up = up.reshape(B, Cout, 2 * H, 2 * W) + p['bup'][None, :, None, None]
    up = jax.nn.relu(_bn_train(up, p['g_up'], p['b_up']))
    Ho, Wo = 2 * H, 2 * W
    r0 = (bridge.shape[2] - Ho) // 2
    c0 = (bridge.shape[3] - Wo) // 2
    crop = bridge[:, :, r0:r0 + Ho, c0:c0 + Wo]
    cat = jnp.concatenate([crop, up], axis=1)

    def conv3(inp, w, b):
        o = jax.lax.conv_general_dilated(
            inp, w, window_strides=(1, 1), padding=((1, 1), (1, 1)),
            dimension_numbers=('NCHW', 'OIHW', 'NCHW'),
            precision=jax.lax.Precision.HIGHEST)
        return o + b[None, :, None, None]

    out = jax.nn.relu(_bn_train(conv3(cat, p['wc1'], p['bc1']), p['g1'], p['be1']))
    out = jax.nn.relu(_bn_train(conv3(out, p['wc2'], p['bc2']), p['g2'], p['be2']))
    return out


if __name__ == "__main__":
    # UNetUpBlock(in_size=8, out_size=8, kernel_size=3, activation=ReLU)
    B, Cin, Cout, H, W = 2, 8, 8, 8, 8
    Hb = Wb = 2 * H + 4          # bridge larger than the upsampled map -> crop

    key = jax.random.PRNGKey(0)
    ks = jax.random.split(key, 14)
    p = {
        'wup': 0.1 * jax.random.normal(ks[0], (Cin, Cout, 2, 2), jnp.float32),
        'bup': 0.1 * jax.random.normal(ks[1], (Cout,), jnp.float32),
        'g_up': 1.0 + 0.1 * jax.random.normal(ks[2], (Cout,), jnp.float32),
        'b_up': 0.1 * jax.random.normal(ks[3], (Cout,), jnp.float32),
        'wc1': 0.1 * jax.random.normal(ks[4], (Cout, 2 * Cout, 3, 3), jnp.float32),
        'bc1': 0.1 * jax.random.normal(ks[5], (Cout,), jnp.float32),
        'g1': 1.0 + 0.1 * jax.random.normal(ks[6], (Cout,), jnp.float32),
        'be1': 0.1 * jax.random.normal(ks[7], (Cout,), jnp.float32),
        'wc2': 0.1 * jax.random.normal(ks[8], (Cout, Cout, 3, 3), jnp.float32),
        'bc2': 0.1 * jax.random.normal(ks[9], (Cout,), jnp.float32),
        'g2': 1.0 + 0.1 * jax.random.normal(ks[10], (Cout,), jnp.float32),
        'be2': 0.1 * jax.random.normal(ks[11], (Cout,), jnp.float32),
    }
    x = jax.random.normal(ks[12], (B, Cin, H, W), jnp.float32)
    bridge = jax.random.normal(ks[13], (B, Cout, Hb, Wb), jnp.float32)

    out = unet_up_block_forward(x, bridge, p)
    out = jax.block_until_ready(out)

    ref = reference_forward(x, bridge, p)
    assert out.shape == (B, Cout, 2 * H, 2 * W), out.shape
    err = float(jnp.max(jnp.abs(out - ref)))
    assert err < 5e-2, f"max abs err vs reference = {err}"
    print("KERNEL_OK")
</pallas_src>

<mosaic_0001>
module attributes {stable_mosaic.version = 11 : i64} {
  func.func @_matmul_stats_kernel(%arg0: i32, %arg1: memref<128x128xbf16, #tpu.memory_space<vmem>>, %arg2: memref<128x512xbf16, #tpu.memory_space<vmem>>, %arg3: memref<128x512xbf16, #tpu.memory_space<vmem>>, %arg4: memref<1x1x512xf32, #tpu.memory_space<vmem>>, %arg5: memref<1x1x512xf32, #tpu.memory_space<vmem>>) attributes {dimension_semantics = [#tpu.dimension_semantics<parallel>], iteration_bounds = array<i64: 1>, scalar_prefetch = 0 : i64, scratch_operands = 0 : i64, tpu.core_type = #tpu.core_type<tc>, window_params = [{transform_indices = @transform_0, window_bounds = array<i64: 128, 128>}, {pipeline_mode = #tpu.pipeline_mode<synchronous>, transform_indices = @transform_1, window_bounds = array<i64: 128, 512>}, {transform_indices = @transform_2, window_bounds = array<i64: 128, 512>}, {transform_indices = @transform_3, window_bounds = array<i64: 1, 1, 512>}, {transform_indices = @transform_4, window_bounds = array<i64: 1, 1, 512>}]} {
    %c0 = arith.constant 0 : index
    %c0_0 = arith.constant 0 : index
    %0 = vector.load %arg1[%c0, %c0_0] : memref<128x128xbf16, #tpu.memory_space<vmem>>, vector<128x128xbf16>
    %c0_1 = arith.constant 0 : index
    %c0_2 = arith.constant 0 : index
    %1 = vector.load %arg2[%c0_1, %c0_2] : memref<128x512xbf16, #tpu.memory_space<vmem>>, vector<128x512xbf16>
    %cst = arith.constant dense<0.000000e+00> : vector<128x512xf32>
    %2 = tpu.matmul %0, %1, %cst {dimension_numbers = #tpu.dot_dimension_numbers<[1], [0], [0], [1], [0, 0, 1, 1], [], []>} : vector<128x128xbf16>, vector<128x512xbf16>, vector<128x512xf32> -> vector<128x512xf32>
    %cst_3 = arith.constant dense<0.000000e+00> : vector<512xf32>
    %3 = vector.multi_reduction <add>, %2, %cst_3 [0] : vector<128x512xf32> to vector<512xf32>
    %4 = vector.shape_cast %3 : vector<512xf32> to vector<1x1x512xf32>
    %c0_4 = arith.constant 0 : index
    %c0_5 = arith.constant 0 : index
    %c0_6 = arith.constant 0 : index
    %5 = vector.load %arg4[%c0_4, %c0_5, %c0_6] : memref<1x1x512xf32, #tpu.memory_space<vmem>>, vector<1x1x512xf32>
    tpu.vector_store %arg4[%c0_4, %c0_5, %c0_6], %4 {strides = array<i32>} : memref<1x1x512xf32, #tpu.memory_space<vmem>>, vector<1x1x512xf32>,
    %6 = arith.mulf %2, %2 : vector<128x512xf32>
    %cst_7 = arith.constant dense<0.000000e+00> : vector<512xf32>
    %7 = vector.multi_reduction <add>, %6, %cst_7 [0] : vector<128x512xf32> to vector<512xf32>
    %8 = vector.shape_cast %7 : vector<512xf32> to vector<1x1x512xf32>
    %c0_8 = arith.constant 0 : index
    %c0_9 = arith.constant 0 : index
    %c0_10 = arith.constant 0 : index
    %9 = vector.load %arg5[%c0_8, %c0_9, %c0_10] : memref<1x1x512xf32, #tpu.memory_space<vmem>>, vector<1x1x512xf32>
    tpu.vector_store %arg5[%c0_8, %c0_9, %c0_10], %8 {strides = array<i32>} : memref<1x1x512xf32, #tpu.memory_space<vmem>>, vector<1x1x512xf32>,
    %10 = arith.truncf %2 : vector<128x512xf32> to vector<128x512xbf16>
    %c0_11 = arith.constant 0 : index
    %c0_12 = arith.constant 0 : index
    %11 = vector.load %arg3[%c0_11, %c0_12] : memref<128x512xbf16, #tpu.memory_space<vmem>>, vector<128x512xbf16>
    tpu.vector_store %arg3[%c0_11, %c0_12], %10 {strides = array<i32>} : memref<128x512xbf16, #tpu.memory_space<vmem>>, vector<128x512xbf16>,
    return
  }
  func.func @transform_0(%arg0: i32) -> (i32, i32) {
    %c0_i32 = arith.constant 0 : i32
    %c0_i32_0 = arith.constant 0 : i32
    return %arg0, %c0_i32 : i32, i32
  }
  func.func @transform_1(%arg0: i32) -> (i32, i32) {
    %c0_i32 = arith.constant 0 : i32
    %c0_i32_0 = arith.constant 0 : i32
    %c0_i32_1 = arith.constant 0 : i32
    return %c0_i32, %c0_i32_0 : i32, i32
  }
  func.func @transform_2(%arg0: i32) -> (i32, i32) {
    %c0_i32 = arith.constant 0 : i32
    %c0_i32_0 = arith.constant 0 : i32
    return %arg0, %c0_i32 : i32, i32
  }
  func.func @transform_3(%arg0: i32) -> (i32, i32, i32) {
    %c0_i32 = arith.constant 0 : i32
    %c0_i32_0 = arith.constant 0 : i32
    %c0_i32_1 = arith.constant 0 : i32
    return %arg0, %c0_i32, %c0_i32_0 : i32, i32, i32
  }
  func.func @transform_4(%arg0: i32) -> (i32, i32, i32) {
    %c0_i32 = arith.constant 0 : i32
    %c0_i32_0 = arith.constant 0 : i32
    %c0_i32_1 = arith.constant 0 : i32
    return %arg0, %c0_i32, %c0_i32_0 : i32, i32, i32
  }
}

module attributes {stable_mosaic.version = 11 : i64} {
  func.func @_bn_relu_kernel(%arg0: i32, %arg1: memref<128x512xbf16, #tpu.memory_space<vmem>>, %arg2: memref<1x512xf32, #tpu.memory_space<vmem>>, %arg3: memref<1x512xf32, #tpu.memory_space<vmem>>, %arg4: memref<128x512xbf16, #tpu.memory_space<vmem>>) attributes {dimension_semantics = [#tpu.dimension_semantics<parallel>], iteration_bounds = array<i64: 1>, scalar_prefetch = 0 : i64, scratch_operands = 0 : i64, tpu.core_type = #tpu.core_type<tc>, window_params = [{transform_indices = @transform_0, window_bounds = array<i64: 128, 512>}, {pipeline_mode = #tpu.pipeline_mode<synchronous>, transform_indices = @transform_1, window_bounds = array<i64: 1, 512>}, {pipeline_mode = #tpu.pipeline_mode<synchronous>, transform_indices = @transform_2, window_bounds = array<i64: 1, 512>}, {transform_indices = @transform_3, window_bounds = array<i64: 128, 512>}]} {
    %c0 = arith.constant 0 : index
    %c0_0 = arith.constant 0 : index
    %0 = vector.load %arg1[%c0, %c0_0] : memref<128x512xbf16, #tpu.memory_space<vmem>>, vector<128x512xbf16>
    %1 = arith.extf %0 : vector<128x512xbf16> to vector<128x512xf32>
    %c0_1 = arith.constant 0 : index
    %c0_2 = arith.constant 0 : index
    %2 = vector.load %arg2[%c0_1, %c0_2] : memref<1x512xf32, #tpu.memory_space<vmem>>, vector<1x512xf32>
    %3 = vector.broadcast %2 : vector<1x512xf32> to vector<128x512xf32>
    %4 = arith.mulf %1, %3 : vector<128x512xf32>
    %c0_3 = arith.constant 0 : index
    %c0_4 = arith.constant 0 : index
    %5 = vector.load %arg3[%c0_3, %c0_4] : memref<1x512xf32, #tpu.memory_space<vmem>>, vector<1x512xf32>
    %6 = vector.broadcast %5 : vector<1x512xf32> to vector<128x512xf32>
    %7 = arith.addf %4, %6 : vector<128x512xf32>
    %cst = arith.constant 0.000000e+00 : f32
    %8 = vector.broadcast %cst : f32 to vector<128x512xf32>
    %9 = arith.maximumf %7, %8 : vector<128x512xf32>
    %10 = arith.truncf %9 : vector<128x512xf32> to vector<128x512xbf16>
    %c0_5 = arith.constant 0 : index
    %c0_6 = arith.constant 0 : index
    %11 = vector.load %arg4[%c0_5, %c0_6] : memref<128x512xbf16, #tpu.memory_space<vmem>>, vector<128x512xbf16>
    tpu.vector_store %arg4[%c0_5, %c0_6], %10 {strides = array<i32>} : memref<128x512xbf16, #tpu.memory_space<vmem>>, vector<128x512xbf16>,
    return
  }
  func.func @transform_0(%arg0: i32) -> (i32, i32) {
    %c0_i32 = arith.constant 0 : i32
    %c0_i32_0 = arith.constant 0 : i32
    return %arg0, %c0_i32 : i32, i32
  }
  func.func @transform_1(%arg0: i32) -> (i32, i32) {
    %c0_i32 = arith.constant 0 : i32
    %c0_i32_0 = arith.constant 0 : i32
    %c0_i32_1 = arith.constant 0 : i32
    return %c0_i32, %c0_i32_0 : i32, i32
  }
  func.func @transform_2(%arg0: i32) -> (i32, i32) {
    %c0_i32 = arith.constant 0 : i32
    %c0_i32_0 = arith.constant 0 : i32
    %c0_i32_1 = arith.constant 0 : i32
    return %c0_i32, %c0_i32_0 : i32, i32
  }
  func.func @transform_3(%arg0: i32) -> (i32, i32) {
    %c0_i32 = arith.constant 0 : i32
    %c0_i32_0 = arith.constant 0 : i32
    return %arg0, %c0_i32 : i32, i32
  }
}

module attributes {stable_mosaic.version = 11 : i64} {
  func.func @_conv3_rows_kernel(%arg0: i32, %arg1: memref<1x18x16x768xbf16, #tpu.memory_space<vmem>>, %arg2: memref<3x768x128xbf16, #tpu.memory_space<vmem>>, %arg3: memref<1x16x16x128xbf16, #tpu.memory_space<vmem>>, %arg4: memref<1x1x128xf32, #tpu.memory_space<vmem>>, %arg5: memref<1x1x128xf32, #tpu.memory_space<vmem>>) attributes {dimension_semantics = [#tpu.dimension_semantics<parallel>], iteration_bounds = array<i64: 2>, scalar_prefetch = 0 : i64, scratch_operands = 0 : i64, tpu.core_type = #tpu.core_type<tc>, window_params = [{transform_indices = @transform_0, window_bounds = array<i64: 1, 18, 16, 768>}, {pipeline_mode = #tpu.pipeline_mode<synchronous>, transform_indices = @transform_1, window_bounds = array<i64: 3, 768, 128>}, {transform_indices = @transform_2, window_bounds = array<i64: 1, 16, 16, 128>}, {transform_indices = @transform_3, window_bounds = array<i64: 1, 1, 128>}, {transform_indices = @transform_4, window_bounds = array<i64: 1, 1, 128>}]} {
    %cst = arith.constant 0.000000e+00 : f32
    %0 = vector.broadcast %cst : f32 to vector<256x128xf32>
    %c0 = arith.constant 0 : index
    %c0_0 = arith.constant 0 : index
    %c0_1 = arith.constant 0 : index
    %c0_2 = arith.constant 0 : index
    %1 = vector.load %arg1[%c0, %c0_0, %c0_1, %c0_2] : memref<1x18x16x768xbf16, #tpu.memory_space<vmem>>, vector<1x16x16x768xbf16>
    %2 = vector.shape_cast %1 : vector<1x16x16x768xbf16> to vector<256x768xbf16>
    %c0_3 = arith.constant 0 : index
    %c0_4 = arith.constant 0 : index
    %c0_5 = arith.constant 0 : index
    %3 = vector.load %arg2[%c0_3, %c0_4, %c0_5] : memref<3x768x128xbf16, #tpu.memory_space<vmem>>, vector<1x768x128xbf16>
    %4 = vector.shape_cast %3 : vector<1x768x128xbf16> to vector<768x128xbf16>
    %cst_6 = arith.constant dense<0.000000e+00> : vector<256x128xf32>
    %5 = tpu.matmul %2, %4, %cst_6 {dimension_numbers = #tpu.dot_dimension_numbers<[1], [0], [0], [1], [0, 0, 1, 1], [], []>} : vector<256x768xbf16>, vector<768x128xbf16>, vector<256x128xf32> -> vector<256x128xf32>
    %6 = arith.addf %0, %5 : vector<256x128xf32>
    %c0_7 = arith.constant 0 : index
    %c1 = arith.constant 1 : index
    %c0_8 = arith.constant 0 : index
    %c0_9 = arith.constant 0 : index
    %7 = vector.load %arg1[%c0_7, %c1, %c0_8, %c0_9] : memref<1x18x16x768xbf16, #tpu.memory_space<vmem>>, vector<1x16x16x768xbf16>
    %8 = vector.shape_cast %7 : vector<1x16x16x768xbf16> to vector<256x768xbf16>
    %c1_10 = arith.constant 1 : index
    %c0_11 = arith.constant 0 : index
    %c0_12 = arith.constant 0 : index
    %9 = vector.load %arg2[%c1_10, %c0_11, %c0_12] : memref<3x768x128xbf16, #tpu.memory_space<vmem>>, vector<1x768x128xbf16>
    %10 = vector.shape_cast %9 : vector<1x768x128xbf16> to vector<768x128xbf16>
    %cst_13 = arith.constant dense<0.000000e+00> : vector<256x128xf32>
    %11 = tpu.matmul %8, %10, %cst_13 {dimension_numbers = #tpu.dot_dimension_numbers<[1], [0], [0], [1], [0, 0, 1, 1], [], []>} : vector<256x768xbf16>, vector<768x128xbf16>, vector<256x128xf32> -> vector<256x128xf32>
    %12 = arith.addf %6, %11 : vector<256x128xf32>
    %c0_14 = arith.constant 0 : index
    %c2 = arith.constant 2 : index
    %c0_15 = arith.constant 0 : index
    %c0_16 = arith.constant 0 : index
    %13 = vector.load %arg1[%c0_14, %c2, %c0_15, %c0_16] : memref<1x18x16x768xbf16, #tpu.memory_space<vmem>>, vector<1x16x16x768xbf16>
    %14 = vector.shape_cast %13 : vector<1x16x16x768xbf16> to vector<256x768xbf16>
    %c2_17 = arith.constant 2 : index
    %c0_18 = arith.constant 0 : index
    %c0_19 = arith.constant 0 : index
    %15 = vector.load %arg2[%c2_17, %c0_18, %c0_19] : memref<3x768x128xbf16, #tpu.memory_space<vmem>>, vector<1x768x128xbf16>
    %16 = vector.shape_cast %15 : vector<1x768x128xbf16> to vector<768x128xbf16>
    %cst_20 = arith.constant dense<0.000000e+00> : vector<256x128xf32>
    %17 = tpu.matmul %14, %16, %cst_20 {dimension_numbers = #tpu.dot_dimension_numbers<[1], [0], [0], [1], [0, 0, 1, 1], [], []>} : vector<256x768xbf16>, vector<768x128xbf16>, vector<256x128xf32> -> vector<256x128xf32>
    %18 = arith.addf %12, %17 : vector<256x128xf32>
    %cst_21 = arith.constant dense<0.000000e+00> : vector<128xf32>
    %19 = vector.multi_reduction <add>, %18, %cst_21 [0] : vector<256x128xf32> to vector<128xf32>
    %20 = vector.shape_cast %19 : vector<128xf32> to vector<1x1x128xf32>
    %c0_22 = arith.constant 0 : index
    %c0_23 = arith.constant 0 : index
    %c0_24 = arith.constant 0 : index
    %21 = vector.load %arg4[%c0_22, %c0_23, %c0_24] : memref<1x1x128xf32, #tpu.memory_space<vmem>>, vector<1x1x128xf32>
    tpu.vector_store %arg4[%c0_22, %c0_23, %c0_24], %20 {strides = array<i32>} : memref<1x1x128xf32, #tpu.memory_space<vmem>>, vector<1x1x128xf32>,
    %22 = arith.mulf %18, %18 : vector<256x128xf32>
    %cst_25 = arith.constant dense<0.000000e+00> : vector<128xf32>
    %23 = vector.multi_reduction <add>, %22, %cst_25 [0] : vector<256x128xf32> to vector<128xf32>
    %24 = vector.shape_cast %23 : vector<128xf32> to vector<1x1x128xf32>
    %c0_26 = arith.constant 0 : index
    %c0_27 = arith.constant 0 : index
    %c0_28 = arith.constant 0 : index
    %25 = vector.load %arg5[%c0_26, %c0_27, %c0_28] : memref<1x1x128xf32, #tpu.memory_space<vmem>>, vector<1x1x128xf32>
    tpu.vector_store %arg5[%c0_26, %c0_27, %c0_28], %24 {strides = array<i32>} : memref<1x1x128xf32, #tpu.memory_space<vmem>>, vector<1x1x128xf32>,
    %26 = vector.shape_cast %18 : vector<256x128xf32> to vector<1x16x16x128xf32>
    %27 = arith.truncf %26 : vector<1x16x16x128xf32> to vector<1x16x16x128xbf16>
    %c0_29 = arith.constant 0 : index
    %c0_30 = arith.constant 0 : index
    %c0_31 = arith.constant 0 : index
    %c0_32 = arith.constant 0 : index
    %28 = vector.load %arg3[%c0_29, %c0_30, %c0_31, %c0_32] : memref<1x16x16x128xbf16, #tpu.memory_space<vmem>>, vector<1x16x16x128xbf16>
    tpu.vector_store %arg3[%c0_29, %c0_30, %c0_31, %c0_32], %27 {strides = array<i32>} : memref<1x16x16x128xbf16, #tpu.memory_space<vmem>>, vector<1x16x16x128xbf16>,
    return
  }
  func.func @transform_0(%arg0: i32) -> (i32, i32, i32, i32) {
    %c0_i32 = arith.constant 0 : i32
    %c0_i32_0 = arith.constant 0 : i32
    %c0_i32_1 = arith.constant 0 : i32
    %c0_i32_2 = arith.constant 0 : i32
    return %arg0, %c0_i32, %c0_i32_0, %c0_i32_1 : i32, i32, i32, i32
  }
  func.func @transform_1(%arg0: i32) -> (i32, i32, i32) {
    %c0_i32 = arith.constant 0 : i32
    %c0_i32_0 = arith.constant 0 : i32
    %c0_i32_1 = arith.constant 0 : i32
    %c0_i32_2 = arith.constant 0 : i32
    return %c0_i32, %c0_i32_0, %c0_i32_1 : i32, i32, i32
  }
  func.func @transform_2(%arg0: i32) -> (i32, i32, i32, i32) {
    %c0_i32 = arith.constant 0 : i32
    %c0_i32_0 = arith.constant 0 : i32
    %c0_i32_1 = arith.constant 0 : i32
    %c0_i32_2 = arith.constant 0 : i32
    return %arg0, %c0_i32, %c0_i32_0, %c0_i32_1 : i32, i32, i32, i32
  }
  func.func @transform_3(%arg0: i32) -> (i32, i32, i32) {
    %c0_i32 = arith.constant 0 : i32
    %c0_i32_0 = arith.constant 0 : i32
    %c0_i32_1 = arith.constant 0 : i32
    return %arg0, %c0_i32, %c0_i32_0 : i32, i32, i32
  }
  func.func @transform_4(%arg0: i32) -> (i32, i32, i32) {
    %c0_i32 = arith.constant 0 : i32
    %c0_i32_0 = arith.constant 0 : i32
    %c0_i32_1 = arith.constant 0 : i32
    return %arg0, %c0_i32, %c0_i32_0 : i32, i32, i32
  }
}

module attributes {stable_mosaic.version = 11 : i64} {
  func.func @_bn_relu_kernel(%arg0: i32, %arg1: memref<1x16x16x128xbf16, #tpu.memory_space<vmem>>, %arg2: memref<1x128xf32, #tpu.memory_space<vmem>>, %arg3: memref<1x128xf32, #tpu.memory_space<vmem>>, %arg4: memref<1x16x16x128xbf16, #tpu.memory_space<vmem>>) attributes {dimension_semantics = [#tpu.dimension_semantics<parallel>], iteration_bounds = array<i64: 2>, scalar_prefetch = 0 : i64, scratch_operands = 0 : i64, tpu.core_type = #tpu.core_type<tc>, window_params = [{transform_indices = @transform_0, window_bounds = array<i64: 1, 16, 16, 128>}, {pipeline_mode = #tpu.pipeline_mode<synchronous>, transform_indices = @transform_1, window_bounds = array<i64: 1, 128>}, {pipeline_mode = #tpu.pipeline_mode<synchronous>, transform_indices = @transform_2, window_bounds = array<i64: 1, 128>}, {transform_indices = @transform_3, window_bounds = array<i64: 1, 16, 16, 128>}]} {
    %c0 = arith.constant 0 : index
    %c0_0 = arith.constant 0 : index
    %c0_1 = arith.constant 0 : index
    %c0_2 = arith.constant 0 : index
    %0 = vector.load %arg1[%c0, %c0_0, %c0_1, %c0_2] : memref<1x16x16x128xbf16, #tpu.memory_space<vmem>>, vector<1x16x16x128xbf16>
    %1 = arith.extf %0 : vector<1x16x16x128xbf16> to vector<1x16x16x128xf32>
    %c0_3 = arith.constant 0 : index
    %c0_4 = arith.constant 0 : index
    %2 = vector.load %arg2[%c0_3, %c0_4] : memref<1x128xf32, #tpu.memory_space<vmem>>, vector<1x128xf32>
    %3 = vector.shape_cast %2 : vector<1x128xf32> to vector<1x1x1x128xf32>
    %4 = vector.broadcast %3 : vector<1x1x1x128xf32> to vector<1x16x16x128xf32>
    %5 = arith.mulf %1, %4 : vector<1x16x16x128xf32>
    %c0_5 = arith.constant 0 : index
    %c0_6 = arith.constant 0 : index
    %6 = vector.load %arg3[%c0_5, %c0_6] : memref<1x128xf32, #tpu.memory_space<vmem>>, vector<1x128xf32>
    %7 = vector.shape_cast %6 : vector<1x128xf32> to vector<1x1x1x128xf32>
    %8 = vector.broadcast %7 : vector<1x1x1x128xf32> to vector<1x16x16x128xf32>
    %9 = arith.addf %5, %8 : vector<1x16x16x128xf32>
    %cst = arith.constant 0.000000e+00 : f32
    %10 = vector.broadcast %cst : f32 to vector<1x16x16x128xf32>
    %11 = arith.maximumf %9, %10 : vector<1x16x16x128xf32>
    %12 = arith.truncf %11 : vector<1x16x16x128xf32> to vector<1x16x16x128xbf16>
    %c0_7 = arith.constant 0 : index
    %c0_8 = arith.constant 0 : index
    %c0_9 = arith.constant 0 : index
    %c0_10 = arith.constant 0 : index
    %13 = vector.load %arg4[%c0_7, %c0_8, %c0_9, %c0_10] : memref<1x16x16x128xbf16, #tpu.memory_space<vmem>>, vector<1x16x16x128xbf16>
    tpu.vector_store %arg4[%c0_7, %c0_8, %c0_9, %c0_10], %12 {strides = array<i32>} : memref<1x16x16x128xbf16, #tpu.memory_space<vmem>>, vector<1x16x16x128xbf16>,
    return
  }
  func.func @transform_0(%arg0: i32) -> (i32, i32, i32, i32) {
    %c0_i32 = arith.constant 0 : i32
    %c0_i32_0 = arith.constant 0 : i32
    %c0_i32_1 = arith.constant 0 : i32
    %c0_i32_2 = arith.constant 0 : i32
    return %arg0, %c0_i32, %c0_i32_0, %c0_i32_1 : i32, i32, i32, i32
  }
  func.func @transform_1(%arg0: i32) -> (i32, i32) {
    %c0_i32 = arith.constant 0 : i32
    %c0_i32_0 = arith.constant 0 : i32
    %c0_i32_1 = arith.constant 0 : i32
    return %c0_i32, %c0_i32_0 : i32, i32
  }
  func.func @transform_2(%arg0: i32) -> (i32, i32) {
    %c0_i32 = arith.constant 0 : i32
    %c0_i32_0 = arith.constant 0 : i32
    %c0_i32_1 = arith.constant 0 : i32
    return %c0_i32, %c0_i32_0 : i32, i32
  }
  func.func @transform_3(%arg0: i32) -> (i32, i32, i32, i32) {
    %c0_i32 = arith.constant 0 : i32
    %c0_i32_0 = arith.constant 0 : i32
    %c0_i32_1 = arith.constant 0 : i32
    %c0_i32_2 = arith.constant 0 : i32
    return %arg0, %c0_i32, %c0_i32_0, %c0_i32_1 : i32, i32, i32, i32
  }
}

module attributes {stable_mosaic.version = 11 : i64} {
  func.func @_conv3_rows_kernel(%arg0: i32, %arg1: memref<1x18x16x384xbf16, #tpu.memory_space<vmem>>, %arg2: memref<3x384x128xbf16, #tpu.memory_space<vmem>>, %arg3: memref<1x16x16x128xbf16, #tpu.memory_space<vmem>>, %arg4: memref<1x1x128xf32, #tpu.memory_space<vmem>>, %arg5: memref<1x1x128xf32, #tpu.memory_space<vmem>>) attributes {dimension_semantics = [#tpu.dimension_semantics<parallel>], iteration_bounds = array<i64: 2>, scalar_prefetch = 0 : i64, scratch_operands = 0 : i64, tpu.core_type = #tpu.core_type<tc>, window_params = [{transform_indices = @transform_0, window_bounds = array<i64: 1, 18, 16, 384>}, {pipeline_mode = #tpu.pipeline_mode<synchronous>, transform_indices = @transform_1, window_bounds = array<i64: 3, 384, 128>}, {transform_indices = @transform_2, window_bounds = array<i64: 1, 16, 16, 128>}, {transform_indices = @transform_3, window_bounds = array<i64: 1, 1, 128>}, {transform_indices = @transform_4, window_bounds = array<i64: 1, 1, 128>}]} {
    %cst = arith.constant 0.000000e+00 : f32
    %0 = vector.broadcast %cst : f32 to vector<256x128xf32>
    %c0 = arith.constant 0 : index
    %c0_0 = arith.constant 0 : index
    %c0_1 = arith.constant 0 : index
    %c0_2 = arith.constant 0 : index
    %1 = vector.load %arg1[%c0, %c0_0, %c0_1, %c0_2] : memref<1x18x16x384xbf16, #tpu.memory_space<vmem>>, vector<1x16x16x384xbf16>
    %2 = vector.shape_cast %1 : vector<1x16x16x384xbf16> to vector<256x384xbf16>
    %c0_3 = arith.constant 0 : index
    %c0_4 = arith.constant 0 : index
    %c0_5 = arith.constant 0 : index
    %3 = vector.load %arg2[%c0_3, %c0_4, %c0_5] : memref<3x384x128xbf16, #tpu.memory_space<vmem>>, vector<1x384x128xbf16>
    %4 = vector.shape_cast %3 : vector<1x384x128xbf16> to vector<384x128xbf16>
    %cst_6 = arith.constant dense<0.000000e+00> : vector<256x128xf32>
    %5 = tpu.matmul %2, %4, %cst_6 {dimension_numbers = #tpu.dot_dimension_numbers<[1], [0], [0], [1], [0, 0, 1, 1], [], []>} : vector<256x384xbf16>, vector<384x128xbf16>, vector<256x128xf32> -> vector<256x128xf32>
    %6 = arith.addf %0, %5 : vector<256x128xf32>
    %c0_7 = arith.constant 0 : index
    %c1 = arith.constant 1 : index
    %c0_8 = arith.constant 0 : index
    %c0_9 = arith.constant 0 : index
    %7 = vector.load %arg1[%c0_7, %c1, %c0_8, %c0_9] : memref<1x18x16x384xbf16, #tpu.memory_space<vmem>>, vector<1x16x16x384xbf16>
    %8 = vector.shape_cast %7 : vector<1x16x16x384xbf16> to vector<256x384xbf16>
    %c1_10 = arith.constant 1 : index
    %c0_11 = arith.constant 0 : index
    %c0_12 = arith.constant 0 : index
    %9 = vector.load %arg2[%c1_10, %c0_11, %c0_12] : memref<3x384x128xbf16, #tpu.memory_space<vmem>>, vector<1x384x128xbf16>
    %10 = vector.shape_cast %9 : vector<1x384x128xbf16> to vector<384x128xbf16>
    %cst_13 = arith.constant dense<0.000000e+00> : vector<256x128xf32>
    %11 = tpu.matmul %8, %10, %cst_13 {dimension_numbers = #tpu.dot_dimension_numbers<[1], [0], [0], [1], [0, 0, 1, 1], [], []>} : vector<256x384xbf16>, vector<384x128xbf16>, vector<256x128xf32> -> vector<256x128xf32>
    %12 = arith.addf %6, %11 : vector<256x128xf32>
    %c0_14 = arith.constant 0 : index
    %c2 = arith.constant 2 : index
    %c0_15 = arith.constant 0 : index
    %c0_16 = arith.constant 0 : index
    %13 = vector.load %arg1[%c0_14, %c2, %c0_15, %c0_16] : memref<1x18x16x384xbf16, #tpu.memory_space<vmem>>, vector<1x16x16x384xbf16>
    %14 = vector.shape_cast %13 : vector<1x16x16x384xbf16> to vector<256x384xbf16>
    %c2_17 = arith.constant 2 : index
    %c0_18 = arith.constant 0 : index
    %c0_19 = arith.constant 0 : index
    %15 = vector.load %arg2[%c2_17, %c0_18, %c0_19] : memref<3x384x128xbf16, #tpu.memory_space<vmem>>, vector<1x384x128xbf16>
    %16 = vector.shape_cast %15 : vector<1x384x128xbf16> to vector<384x128xbf16>
    %cst_20 = arith.constant dense<0.000000e+00> : vector<256x128xf32>
    %17 = tpu.matmul %14, %16, %cst_20 {dimension_numbers = #tpu.dot_dimension_numbers<[1], [0], [0], [1], [0, 0, 1, 1], [], []>} : vector<256x384xbf16>, vector<384x128xbf16>, vector<256x128xf32> -> vector<256x128xf32>
    %18 = arith.addf %12, %17 : vector<256x128xf32>
    %cst_21 = arith.constant dense<0.000000e+00> : vector<128xf32>
    %19 = vector.multi_reduction <add>, %18, %cst_21 [0] : vector<256x128xf32> to vector<128xf32>
    %20 = vector.shape_cast %19 : vector<128xf32> to vector<1x1x128xf32>
    %c0_22 = arith.constant 0 : index
    %c0_23 = arith.constant 0 : index
    %c0_24 = arith.constant 0 : index
    %21 = vector.load %arg4[%c0_22, %c0_23, %c0_24] : memref<1x1x128xf32, #tpu.memory_space<vmem>>, vector<1x1x128xf32>
    tpu.vector_store %arg4[%c0_22, %c0_23, %c0_24], %20 {strides = array<i32>} : memref<1x1x128xf32, #tpu.memory_space<vmem>>, vector<1x1x128xf32>,
    %22 = arith.mulf %18, %18 : vector<256x128xf32>
    %cst_25 = arith.constant dense<0.000000e+00> : vector<128xf32>
    %23 = vector.multi_reduction <add>, %22, %cst_25 [0] : vector<256x128xf32> to vector<128xf32>
    %24 = vector.shape_cast %23 : vector<128xf32> to vector<1x1x128xf32>
    %c0_26 = arith.constant 0 : index
    %c0_27 = arith.constant 0 : index
    %c0_28 = arith.constant 0 : index
    %25 = vector.load %arg5[%c0_26, %c0_27, %c0_28] : memref<1x1x128xf32, #tpu.memory_space<vmem>>, vector<1x1x128xf32>
    tpu.vector_store %arg5[%c0_26, %c0_27, %c0_28], %24 {strides = array<i32>} : memref<1x1x128xf32, #tpu.memory_space<vmem>>, vector<1x1x128xf32>,
    %26 = vector.shape_cast %18 : vector<256x128xf32> to vector<1x16x16x128xf32>
    %27 = arith.truncf %26 : vector<1x16x16x128xf32> to vector<1x16x16x128xbf16>
    %c0_29 = arith.constant 0 : index
    %c0_30 = arith.constant 0 : index
    %c0_31 = arith.constant 0 : index
    %c0_32 = arith.constant 0 : index
    %28 = vector.load %arg3[%c0_29, %c0_30, %c0_31, %c0_32] : memref<1x16x16x128xbf16, #tpu.memory_space<vmem>>, vector<1x16x16x128xbf16>
    tpu.vector_store %arg3[%c0_29, %c0_30, %c0_31, %c0_32], %27 {strides = array<i32>} : memref<1x16x16x128xbf16, #tpu.memory_space<vmem>>, vector<1x16x16x128xbf16>,
    return
  }
  func.func @transform_0(%arg0: i32) -> (i32, i32, i32, i32) {
    %c0_i32 = arith.constant 0 : i32
    %c0_i32_0 = arith.constant 0 : i32
    %c0_i32_1 = arith.constant 0 : i32
    %c0_i32_2 = arith.constant 0 : i32
    return %arg0, %c0_i32, %c0_i32_0, %c0_i32_1 : i32, i32, i32, i32
  }
  func.func @transform_1(%arg0: i32) -> (i32, i32, i32) {
    %c0_i32 = arith.constant 0 : i32
    %c0_i32_0 = arith.constant 0 : i32
    %c0_i32_1 = arith.constant 0 : i32
    %c0_i32_2 = arith.constant 0 : i32
    return %c0_i32, %c0_i32_0, %c0_i32_1 : i32, i32, i32
  }
  func.func @transform_2(%arg0: i32) -> (i32, i32, i32, i32) {
    %c0_i32 = arith.constant 0 : i32
    %c0_i32_0 = arith.constant 0 : i32
    %c0_i32_1 = arith.constant 0 : i32
    %c0_i32_2 = arith.constant 0 : i32
    return %arg0, %c0_i32, %c0_i32_0, %c0_i32_1 : i32, i32, i32, i32
  }
  func.func @transform_3(%arg0: i32) -> (i32, i32, i32) {
    %c0_i32 = arith.constant 0 : i32
    %c0_i32_0 = arith.constant 0 : i32
    %c0_i32_1 = arith.constant 0 : i32
    return %arg0, %c0_i32, %c0_i32_0 : i32, i32, i32
  }
  func.func @transform_4(%arg0: i32) -> (i32, i32, i32) {
    %c0_i32 = arith.constant 0 : i32
    %c0_i32_0 = arith.constant 0 : i32
    %c0_i32_1 = arith.constant 0 : i32
    return %arg0, %c0_i32, %c0_i32_0 : i32, i32, i32
  }
}

module attributes {stable_mosaic.version = 11 : i64} {
  func.func @_bn_relu_kernel(%arg0: i32, %arg1: memref<1x16x16x128xbf16, #tpu.memory_space<vmem>>, %arg2: memref<1x128xf32, #tpu.memory_space<vmem>>, %arg3: memref<1x128xf32, #tpu.memory_space<vmem>>, %arg4: memref<1x16x16x128xf32, #tpu.memory_space<vmem>>) attributes {dimension_semantics = [#tpu.dimension_semantics<parallel>], iteration_bounds = array<i64: 2>, scalar_prefetch = 0 : i64, scratch_operands = 0 : i64, tpu.core_type = #tpu.core_type<tc>, window_params = [{transform_indices = @transform_0, window_bounds = array<i64: 1, 16, 16, 128>}, {pipeline_mode = #tpu.pipeline_mode<synchronous>, transform_indices = @transform_1, window_bounds = array<i64: 1, 128>}, {pipeline_mode = #tpu.pipeline_mode<synchronous>, transform_indices = @transform_2, window_bounds = array<i64: 1, 128>}, {transform_indices = @transform_3, window_bounds = array<i64: 1, 16, 16, 128>}]} {
    %c0 = arith.constant 0 : index
    %c0_0 = arith.constant 0 : index
    %c0_1 = arith.constant 0 : index
    %c0_2 = arith.constant 0 : index
    %0 = vector.load %arg1[%c0, %c0_0, %c0_1, %c0_2] : memref<1x16x16x128xbf16, #tpu.memory_space<vmem>>, vector<1x16x16x128xbf16>
    %1 = arith.extf %0 : vector<1x16x16x128xbf16> to vector<1x16x16x128xf32>
    %c0_3 = arith.constant 0 : index
    %c0_4 = arith.constant 0 : index
    %2 = vector.load %arg2[%c0_3, %c0_4] : memref<1x128xf32, #tpu.memory_space<vmem>>, vector<1x128xf32>
    %3 = vector.shape_cast %2 : vector<1x128xf32> to vector<1x1x1x128xf32>
    %4 = vector.broadcast %3 : vector<1x1x1x128xf32> to vector<1x16x16x128xf32>
    %5 = arith.mulf %1, %4 : vector<1x16x16x128xf32>
    %c0_5 = arith.constant 0 : index
    %c0_6 = arith.constant 0 : index
    %6 = vector.load %arg3[%c0_5, %c0_6] : memref<1x128xf32, #tpu.memory_space<vmem>>, vector<1x128xf32>
    %7 = vector.shape_cast %6 : vector<1x128xf32> to vector<1x1x1x128xf32>
    %8 = vector.broadcast %7 : vector<1x1x1x128xf32> to vector<1x16x16x128xf32>
    %9 = arith.addf %5, %8 : vector<1x16x16x128xf32>
    %cst = arith.constant 0.000000e+00 : f32
    %10 = vector.broadcast %cst : f32 to vector<1x16x16x128xf32>
    %11 = arith.maximumf %9, %10 : vector<1x16x16x128xf32>
    %c0_7 = arith.constant 0 : index
    %c0_8 = arith.constant 0 : index
    %c0_9 = arith.constant 0 : index
    %c0_10 = arith.constant 0 : index
    %12 = vector.load %arg4[%c0_7, %c0_8, %c0_9, %c0_10] : memref<1x16x16x128xf32, #tpu.memory_space<vmem>>, vector<1x16x16x128xf32>
    tpu.vector_store %arg4[%c0_7, %c0_8, %c0_9, %c0_10], %11 {strides = array<i32>} : memref<1x16x16x128xf32, #tpu.memory_space<vmem>>, vector<1x16x16x128xf32>,
    return
  }
  func.func @transform_0(%arg0: i32) -> (i32, i32, i32, i32) {
    %c0_i32 = arith.constant 0 : i32
    %c0_i32_0 = arith.constant 0 : i32
    %c0_i32_1 = arith.constant 0 : i32
    %c0_i32_2 = arith.constant 0 : i32
    return %arg0, %c0_i32, %c0_i32_0, %c0_i32_1 : i32, i32, i32, i32
  }
  func.func @transform_1(%arg0: i32) -> (i32, i32) {
    %c0_i32 = arith.constant 0 : i32
    %c0_i32_0 = arith.constant 0 : i32
    %c0_i32_1 = arith.constant 0 : i32
    return %c0_i32, %c0_i32_0 : i32, i32
  }
  func.func @transform_2(%arg0: i32) -> (i32, i32) {
    %c0_i32 = arith.constant 0 : i32
    %c0_i32_0 = arith.constant 0 : i32
    %c0_i32_1 = arith.constant 0 : i32
    return %c0_i32, %c0_i32_0 : i32, i32
  }
  func.func @transform_3(%arg0: i32) -> (i32, i32, i32, i32) {
    %c0_i32 = arith.constant 0 : i32
    %c0_i32_0 = arith.constant 0 : i32
    %c0_i32_1 = arith.constant 0 : i32
    %c0_i32_2 = arith.constant 0 : i32
    return %arg0, %c0_i32, %c0_i32_0, %c0_i32_1 : i32, i32, i32, i32
  }
}

</mosaic_0001>

<llo_original>
// kernel: tile.13
$region0: #{tile.13}
  #allocation0 [shape = 's32[1]{0}', space=sflag, size = 0x4, scoped, tag = 'scoped memory for tile.13']
  %s0 = inlined_call_operand.vmem [shape: f32[128], index: 0, kind: input, shape index: {}]
  %s1 = inlined_call_operand.vmem [shape: f32[4,128], index: 1, kind: output, shape index: {}]
  // Predicated region
  $region2: #{tile.13} parent=0 // pred_check
    _
  $region3: #{tile.13} parent=0 // pred_check_branch
    %3 = sbr.rel (0) target = $region5
  $region4: #{tile.13} parent=0 // pred_region
    _
  $region5: #{tile.13} parent=0 // pred_fallthru
    _
  %v4 = vld [vmem:[%s0] ss:$0 sm:$0xff]
  %5 = vst [vmem:[%s1] sm:$0xf] %v4

// kernel: unet_up_block_forward.7
$region0: #{unet_up_block_forward.7}
  #allocation0 [shape = 'u32[]', space=smem, size = 0x4, offset = 0x4, fixed_abs, tag = 'smem constant byte address 0x4 - core index']
  #allocation1 [shape = 'u32[144,128]{1,0:T(1,128)}', space=vmem, size = 0x12000, scoped, tag = 'internal scratch']
  %s0 = inlined_call_operand.vmem [shape: bf16[128,512], index: 0, kind: input, shape index: {}]
  %s1 = inlined_call_operand.vmem [shape: f32[1,512], index: 1, kind: input, shape index: {}]
  %s2 = inlined_call_operand.vmem [shape: f32[1,512], index: 2, kind: input, shape index: {}]
  %s3 = inlined_call_operand.vmem [shape: bf16[128,512], index: 3, kind: output, shape index: {}]
  %s4 = sld [smem:[#allocation0]]
  $region22: #{unet_up_block_forward.7} parent=0
    _
  %s6 = ssub.s32 1, %s4
  %s7 = scalar_select 0, %s6, %s4
  // Predicated region
  $region2: #{unet_up_block_forward.7} parent=0 // pred_check
    _
  $region3: #{unet_up_block_forward.7} parent=0 // pred_check_branch
    %9 = sbr.rel (0) target = $region5
  $region4: #{unet_up_block_forward.7} parent=0 // pred_region
    _
  $region5: #{unet_up_block_forward.7} parent=0 // pred_fallthru
    _
  // Predicated region
  $region6: #{unet_up_block_forward.7} parent=0 // pred_check
    _
  $region7: #{unet_up_block_forward.7} parent=0 // pred_check_branch
    %11 = sbr.rel (0) target = $region9
  $region8: #{unet_up_block_forward.7} parent=0 // pred_region
    _
  $region9: #{unet_up_block_forward.7} parent=0 // pred_fallthru
    _
  // Predicated region
  $region10: #{unet_up_block_forward.7} parent=0 // pred_check
    _
  $region11: #{unet_up_block_forward.7} parent=0 // pred_check_branch
    %13 = sbr.rel (0) target = $region13
  $region12: #{unet_up_block_forward.7} parent=0 // pred_region
    _
  $region13: #{unet_up_block_forward.7} parent=0 // pred_fallthru
    _
  %v14 = vld [vmem:[%s0] sm:$0xff]
  %v15 = vld [vmem:[%s0 + $0x8] sm:$0xff]
  %v16 = vld [vmem:[%s0 + $0x10] sm:$0xff]
  %v17 = vld [vmem:[%s0 + $0x18] sm:$0xff]
  %v18 = vld [vmem:[%s0 + $0x20] sm:$0xff]
  %v19 = vld [vmem:[%s0 + $0x28] sm:$0xff]
  %v20 = vld [vmem:[%s0 + $0x30] sm:$0xff]
  %v21 = vld [vmem:[%s0 + $0x38] sm:$0xff]
  %v22 = vld [vmem:[%s0 + $0x40] sm:$0xff]
  %v23 = vld [vmem:[%s0 + $0x48] sm:$0xff]
  %v24 = vld [vmem:[%s0 + $0x50] sm:$0xff]
  %v25 = vld [vmem:[%s0 + $0x58] sm:$0xff]
  %v26 = vld [vmem:[%s0 + $0x60] sm:$0xff]
  %v27 = vld [vmem:[%s0 + $0x68] sm:$0xff]
  %v28 = vld [vmem:[%s0 + $0x70] sm:$0xff]
  %v29 = vld [vmem:[%s0 + $0x78] sm:$0xff]
  %v30 = vld [vmem:[%s0 + $0x80] sm:$0xff]
  %v31 = vld [vmem:[%s0 + $0x88] sm:$0xff]
  %v32 = vld [vmem:[%s0 + $0x90] sm:$0xff]
  %v33 = vld [vmem:[%s0 + $0x98] sm:$0xff]
  %v34 = vld [vmem:[%s0 + $0xa0] sm:$0xff]
  %v35 = vld [vmem:[%s0 + $0xa8] sm:$0xff]
  %v36 = vld [vmem:[%s0 + $0xb0] sm:$0xff]
  %v37 = vld [vmem:[%s0 + $0xb8] sm:$0xff]
  %v38 = vld [vmem:[%s0 + $0xc0] sm:$0xff]
  %v39 = vld [vmem:[%s0 + $0xc8] sm:$0xff]
  %v40 = vld [vmem:[%s0 + $0xd0] sm:$0xff]
  %v41 = vld [vmem:[%s0 + $0xd8] sm:$0xff]
  %v42 = vld [vmem:[%s0 + $0xe0] sm:$0xff]
  %v43 = vld [vmem:[%s0 + $0xe8] sm:$0xff]
  %v44 = vld [vmem:[%s0 + $0xf0] sm:$0xff]
  %v45 = vld [vmem:[%s0 + $0xf8] sm:$0xff]
  %v46 = vunpack.c.l.bf16 %v14
  %v47 = vunpack.c.h.bf16 %v14
  %v48 = vunpack.c.l.bf16 %v15
  %v49 = vunpack.c.h.bf16 %v15
  %v50 = vunpack.c.l.bf16 %v16
  %v51 = vunpack.c.h.bf16 %v16
  %v52 = vunpack.c.l.bf16 %v17
  %v53 = vunpack.c.h.bf16 %v17
  %v54 = vunpack.c.l.bf16 %v18
  %v55 = vunpack.c.h.bf16 %v18
  %v56 = vunpack.c.l.bf16 %v19
  %v57 = vunpack.c.h.bf16 %v19
  %v58 = vunpack.c.l.bf16 %v20
  %v59 = vunpack.c.h.bf16 %v20
  %v60 = vunpack.c.l.bf16 %v21
  %v61 = vunpack.c.h.bf16 %v21
  %v62 = vunpack.c.l.bf16 %v22
  %v63 = vunpack.c.h.bf16 %v22
  %v64 = vunpack.c.l.bf16 %v23
  %v65 = vunpack.c.h.bf16 %v23
  %v66 = vunpack.c.l.bf16 %v24
  %v67 = vunpack.c.h.bf16 %v24
  %v68 = vunpack.c.l.bf16 %v25
  %v69 = vunpack.c.h.bf16 %v25
  %v70 = vunpack.c.l.bf16 %v26
  %v71 = vunpack.c.h.bf16 %v26
  %v72 = vunpack.c.l.bf16 %v27
  %v73 = vunpack.c.h.bf16 %v27
  %v74 = vunpack.c.l.bf16 %v28
  %v75 = vunpack.c.h.bf16 %v28
  %v76 = vunpack.c.l.bf16 %v29
  %v77 = vunpack.c.h.bf16 %v29
  %v78 = vunpack.c.l.bf16 %v30
  %v79 = vunpack.c.h.bf16 %v30
  %v80 = vunpack.c.l.bf16 %v31
  %v81 = vunpack.c.h.bf16 %v31
  %v82 = vunpack.c.l.bf16 %v32
  %v83 = vunpack.c.h.bf16 %v32
  %v84 = vunpack.c.l.bf16 %v33
  %v85 = vunpack.c.h.bf16 %v33
  %v86 = vunpack.c.l.bf16 %v34
  %v87 = vunpack.c.h.bf16 %v34
  %v88 = vunpack.c.l.bf16 %v35
  %v89 = vunpack.c.h.bf16 %v35
  %v90 = vunpack.c.l.bf16 %v36
  %v91 = vunpack.c.h.bf16 %v36
  %v92 = vunpack.c.l.bf16 %v37
  %v93 = vunpack.c.h.bf16 %v37
  %v94 = vunpack.c.l.bf16 %v38
  %v95 = vunpack.c.h.bf16 %v38
  %v96 = vunpack.c.l.bf16 %v39
  %v97 = vunpack.c.h.bf16 %v39
  %v98 = vunpack.c.l.bf16 %v40
  %v99 = vunpack.c.h.bf16 %v40
  %v100 = vunpack.c.l.bf16 %v41
  %v101 = vunpack.c.h.bf16 %v41
  %v102 = vunpack.c.l.bf16 %v42
  %v103 = vunpack.c.h.bf16 %v42
  %v104 = vunpack.c.l.bf16 %v43
  %v105 = vunpack.c.h.bf16 %v43
  %v106 = vunpack.c.l.bf16 %v44
  %v107 = vunpack.c.h.bf16 %v44
  %v108 = vunpack.c.l.bf16 %v45
  %v109 = vunpack.c.h.bf16 %v45
  %v110 = vld [vmem:[%s1] sm:$0xf]
  %v112 = vlaneseq
  %v113 = vshrl.u32 %v112, 7
  %v114 = vsub.s32 0, %v113
  %v115 = vrot.slane %v110, %v114
  %v116 = vlaneseq
  %v117 = vshrl.u32 %v116, 7
  %v118 = vsub.s32 1, %v117
  %v119 = vrot.slane %v110, %v118
  %v120 = vlaneseq
  %v121 = vshrl.u32 %v120, 7
  %v122 = vsub.s32 2, %v121
  %v123 = vrot.slane %v110, %v122
  %v124 = vlaneseq
  %v125 = vshrl.u32 %v124, 7
  %v126 = vsub.s32 3, %v125
  %v127 = vrot.slane %v110, %v126
  %v132 = vmul.f32 %v46, %v115
  %v133 = vmul.f32 %v47, %v119
  %v134 = vmul.f32 %v48, %v123
  %v135 = vmul.f32 %v49, %v127
  %v136 = vmul.f32 %v50, %v115
  %v137 = vmul.f32 %v51, %v119
  %v138 = vmul.f32 %v52, %v123
  %v139 = vmul.f32 %v53, %v127
  %v140 = vmul.f32 %v54, %v115
  %v141 = vmul.f32 %v55, %v119
  %v142 = vmul.f32 %v56, %v123
  %v143 = vmul.f32 %v57, %v127
  %v144 = vmul.f32 %v58, %v115
  %v145 = vmul.f32 %v59, %v119
  %v146 = vmul.f32 %v60, %v123
  %v147 = vmul.f32 %v61, %v127
  %v148 = vmul.f32 %v62, %v115
  %v149 = vmul.f32 %v63, %v119
  %v150 = vmul.f32 %v64, %v123
  %v151 = vmul.f32 %v65, %v127
  %v152 = vmul.f32 %v66, %v115
  %v153 = vmul.f32 %v67, %v119
  %v154 = vmul.f32 %v68, %v123
  %v155 = vmul.f32 %v69, %v127
  %v156 = vmul.f32 %v70, %v115
  %v157 = vmul.f32 %v71, %v119
  %v158 = vmul.f32 %v72, %v123
  %v159 = vmul.f32 %v73, %v127
  %v160 = vmul.f32 %v74, %v115
  %v161 = vmul.f32 %v75, %v119
  %v162 = vmul.f32 %v76, %v123
  %v163 = vmul.f32 %v77, %v127
  %v164 = vmul.f32 %v78, %v115
  %v165 = vmul.f32 %v79, %v119
  %v166 = vmul.f32 %v80, %v123
  %v167 = vmul.f32 %v81, %v127
  %v168 = vmul.f32 %v82, %v115
  %v169 = vmul.f32 %v83, %v119
  %v170 = vmul.f32 %v84, %v123
  %v171 = vmul.f32 %v85, %v127
  %v172 = vmul.f32 %v86, %v115
  %v173 = vmul.f32 %v87, %v119
  %v174 = vmul.f32 %v88, %v123
  %v175 = vmul.f32 %v89, %v127
  %v176 = vmul.f32 %v90, %v115
  %v177 = vmul.f32 %v91, %v119
  %v178 = vmul.f32 %v92, %v123
  %v179 = vmul.f32 %v93, %v127
  %v180 = vmul.f32 %v94, %v115
  %v181 = vmul.f32 %v95, %v119
  %v182 = vmul.f32 %v96, %v123
  %v183 = vmul.f32 %v97, %v127
  %v184 = vmul.f32 %v98, %v115
  %v185 = vmul.f32 %v99, %v119
  %v186 = vmul.f32 %v100, %v123
  %v187 = vmul.f32 %v101, %v127
  %v188 = vmul.f32 %v102, %v115
  %v189 = vmul.f32 %v103, %v119
  %v190 = vmul.f32 %v104, %v123
  %v191 = vmul.f32 %v105, %v127
  %v192 = vmul.f32 %v106, %v115
  %v193 = vmul.f32 %v107, %v119
  %v194 = vmul.f32 %v108, %v123
  %v195 = vmul.f32 %v109, %v127
  %v196 = vld [vmem:[%s2] sm:$0xf]
  %v198 = vlaneseq
  %v199 = vshrl.u32 %v198, 7
  %v200 = vsub.s32 0, %v199
  %v201 = vrot.slane %v196, %v200
  %v202 = vlaneseq
  %v203 = vshrl.u32 %v202, 7
  %v204 = vsub.s32 1, %v203
  %v205 = vrot.slane %v196, %v204
  %v206 = vlaneseq
  %v207 = vshrl.u32 %v206, 7
  %v208 = vsub.s32 2, %v207
  %v209 = vrot.slane %v196, %v208
  %v210 = vlaneseq
  %v211 = vshrl.u32 %v210, 7
  %v212 = vsub.s32 3, %v211
  %v213 = vrot.slane %v196, %v212
  %v218 = vadd.f32 %v132, %v201
  %v219 = vadd.f32 %v133, %v205
  %v220 = vadd.f32 %v134, %v209
  %v221 = vadd.f32 %v135, %v213
  %v222 = vadd.f32 %v136, %v201
  %v223 = vadd.f32 %v137, %v205
  %v224 = vadd.f32 %v138, %v209
  %v225 = vadd.f32 %v139, %v213
  %v226 = vadd.f32 %v140, %v201
  %v227 = vadd.f32 %v141, %v205
  %v228 = vadd.f32 %v142, %v209
  %v229 = vadd.f32 %v143, %v213
  %v230 = vadd.f32 %v144, %v201
  %v231 = vadd.f32 %v145, %v205
  %v232 = vadd.f32 %v146, %v209
  %v233 = vadd.f32 %v147, %v213
  %v234 = vadd.f32 %v148, %v201
  %v235 = vadd.f32 %v149, %v205
  %v236 = vadd.f32 %v150, %v209
  %v237 = vadd.f32 %v151, %v213
  %v238 = vadd.f32 %v152, %v201
  %v239 = vadd.f32 %v153, %v205
  %v240 = vadd.f32 %v154, %v209
  %v241 = vadd.f32 %v155, %v213
  %v242 = vadd.f32 %v156, %v201
  %v243 = vadd.f32 %v157, %v205
  %v244 = vadd.f32 %v158, %v209
  %v245 = vadd.f32 %v159, %v213
  %v246 = vadd.f32 %v160, %v201
  %v247 = vadd.f32 %v161, %v205
  %v248 = vadd.f32 %v162, %v209
  %v249 = vadd.f32 %v163, %v213
  %v250 = vadd.f32 %v164, %v201
  %v251 = vadd.f32 %v165, %v205
  %v252 = vadd.f32 %v166, %v209
  %v253 = vadd.f32 %v167, %v213
  %v254 = vadd.f32 %v168, %v201
  %v255 = vadd.f32 %v169, %v205
  %v256 = vadd.f32 %v170, %v209
  %v257 = vadd.f32 %v171, %v213
  %v258 = vadd.f32 %v172, %v201
  %v259 = vadd.f32 %v173, %v205
  %v260 = vadd.f32 %v174, %v209
  %v261 = vadd.f32 %v175, %v213
  %v262 = vadd.f32 %v176, %v201
  %v263 = vadd.f32 %v177, %v205
  %v264 = vadd.f32 %v178, %v209
  %v265 = vadd.f32 %v179, %v213
  %v266 = vadd.f32 %v180, %v201
  %v267 = vadd.f32 %v181, %v205
  %v268 = vadd.f32 %v182, %v209
  %v269 = vadd.f32 %v183, %v213
  %v270 = vadd.f32 %v184, %v201
  %v271 = vadd.f32 %v185, %v205
  %v272 = vadd.f32 %v186, %v209
  %v273 = vadd.f32 %v187, %v213
  %v274 = vadd.f32 %v188, %v201
  %v275 = vadd.f32 %v189, %v205
  %v276 = vadd.f32 %v190, %v209
  %v277 = vadd.f32 %v191, %v213
  %v278 = vadd.f32 %v192, %v201
  %v279 = vadd.f32 %v193, %v205
  %v280 = vadd.f32 %v194, %v209
  %v281 = vadd.f32 %v195, %v213
  %v282 = vmax.f32 %v218, 0.0
  %v283 = vmax.f32 %v219, 0.0
  %v284 = vmax.f32 %v220, 0.0
  %v285 = vmax.f32 %v221, 0.0
  %v286 = vmax.f32 %v222, 0.0
  %v287 = vmax.f32 %v223, 0.0
  %v288 = vmax.f32 %v224, 0.0
  %v289 = vmax.f32 %v225, 0.0
  %v290 = vmax.f32 %v226, 0.0
  %v291 = vmax.f32 %v227, 0.0
  %v292 = vmax.f32 %v228, 0.0
  %v293 = vmax.f32 %v229, 0.0
  %v294 = vmax.f32 %v230, 0.0
  %v295 = vmax.f32 %v231, 0.0
  %v296 = vmax.f32 %v232, 0.0
  %v297 = vmax.f32 %v233, 0.0
  %v298 = vmax.f32 %v234, 0.0
  %v299 = vmax.f32 %v235, 0.0
  %v300 = vmax.f32 %v236, 0.0
  %v301 = vmax.f32 %v237, 0.0
  %v302 = vmax.f32 %v238, 0.0
  %v303 = vmax.f32 %v239, 0.0
  %v304 = vmax.f32 %v240, 0.0
  %v305 = vmax.f32 %v241, 0.0
  %v306 = vmax.f32 %v242, 0.0
  %v307 = vmax.f32 %v243, 0.0
  %v308 = vmax.f32 %v244, 0.0
  %v309 = vmax.f32 %v245, 0.0
  %v310 = vmax.f32 %v246, 0.0
  %v311 = vmax.f32 %v247, 0.0
  %v312 = vmax.f32 %v248, 0.0
  %v313 = vmax.f32 %v249, 0.0
  %v314 = vmax.f32 %v250, 0.0
  %v315 = vmax.f32 %v251, 0.0
  %v316 = vmax.f32 %v252, 0.0
  %v317 = vmax.f32 %v253, 0.0
  %v318 = vmax.f32 %v254, 0.0
  %v319 = vmax.f32 %v255, 0.0
  %v320 = vmax.f32 %v256, 0.0
  %v321 = vmax.f32 %v257, 0.0
  %v322 = vmax.f32 %v258, 0.0
  %v323 = vmax.f32 %v259, 0.0
  %v324 = vmax.f32 %v260, 0.0
  %v325 = vmax.f32 %v261, 0.0
  %v326 = vmax.f32 %v262, 0.0
  %v327 = vmax.f32 %v263, 0.0
  %v328 = vmax.f32 %v264, 0.0
  %v329 = vmax.f32 %v265, 0.0
  %v330 = vmax.f32 %v266, 0.0
  %v331 = vmax.f32 %v267, 0.0
  %v332 = vmax.f32 %v268, 0.0
  %v333 = vmax.f32 %v269, 0.0
  %v334 = vmax.f32 %v270, 0.0
  %v335 = vmax.f32 %v271, 0.0
  %v336 = vmax.f32 %v272, 0.0
  %v337 = vmax.f32 %v273, 0.0
  %v338 = vmax.f32 %v274, 0.0
  %v339 = vmax.f32 %v275, 0.0
  %v340 = vmax.f32 %v276, 0.0
  %v341 = vmax.f32 %v277, 0.0
  %v342 = vmax.f32 %v278, 0.0
  %v343 = vmax.f32 %v279, 0.0
  %v344 = vmax.f32 %v280, 0.0
  %v345 = vmax.f32 %v281, 0.0
  %v346 = vpack.c.bf16 %v286, %v282
  %v347 = vpack.c.bf16 %v287, %v283
  %v348 = vpack.c.bf16 %v288, %v284
  %v349 = vpack.c.bf16 %v289, %v285
  %v350 = vpack.c.bf16 %v294, %v290
  %v351 = vpack.c.bf16 %v295, %v291
  %v352 = vpack.c.bf16 %v296, %v292
  %v353 = vpack.c.bf16 %v297, %v293
  %v354 = vpack.c.bf16 %v302, %v298
  %v355 = vpack.c.bf16 %v303, %v299
  %v356 = vpack.c.bf16 %v304, %v300
  %v357 = vpack.c.bf16 %v305, %v301
  %v358 = vpack.c.bf16 %v310, %v306
  %v359 = vpack.c.bf16 %v311, %v307
  %v360 = vpack.c.bf16 %v312, %v308
  %v361 = vpack.c.bf16 %v313, %v309
  %v362 = vpack.c.bf16 %v318, %v314
  %v363 = vpack.c.bf16 %v319, %v315
  %v364 = vpack.c.bf16 %v320, %v316
  %v365 = vpack.c.bf16 %v321, %v317
  %v366 = vpack.c.bf16 %v326, %v322
  %v367 = vpack.c.bf16 %v327, %v323
  %v368 = vpack.c.bf16 %v328, %v324
  %v369 = vpack.c.bf16 %v329, %v325
  %v370 = vpack.c.bf16 %v334, %v330
  %v371 = vpack.c.bf16 %v335, %v331
  %v372 = vpack.c.bf16 %v336, %v332
  %v373 = vpack.c.bf16 %v337, %v333
  %v374 = vpack.c.bf16 %v342, %v338
  %v375 = vpack.c.bf16 %v343, %v339
  %v376 = vpack.c.bf16 %v344, %v340
  %v377 = vpack.c.bf16 %v345, %v341
  %v410 = vunpack.c.l.b16 %v346
  %v411 = vunpack.c.l.b16 %v347
  %v412 = vunpack.c.l.b16 %v348
  %v413 = vunpack.c.l.b16 %v349
  %v414 = vunpack.c.h.b16 %v346
  %v415 = vunpack.c.h.b16 %v347
  %v416 = vunpack.c.h.b16 %v348
  %v417 = vunpack.c.h.b16 %v349
  %v418 = vunpack.c.l.b16 %v350
  %v419 = vunpack.c.l.b16 %v351
  %v420 = vunpack.c.l.b16 %v352
  %v421 = vunpack.c.l.b16 %v353
  %v422 = vunpack.c.h.b16 %v350
  %v423 = vunpack.c.h.b16 %v351
  %v424 = vunpack.c.h.b16 %v352
  %v425 = vunpack.c.h.b16 %v353
  %v426 = vunpack.c.l.b16 %v354
  %v427 = vunpack.c.l.b16 %v355
  %v428 = vunpack.c.l.b16 %v356
  %v429 = vunpack.c.l.b16 %v357
  %v430 = vunpack.c.h.b16 %v354
  %v431 = vunpack.c.h.b16 %v355
  %v432 = vunpack.c.h.b16 %v356
  %v433 = vunpack.c.h.b16 %v357
  %v434 = vunpack.c.l.b16 %v358
  %v435 = vunpack.c.l.b16 %v359
  %v436 = vunpack.c.l.b16 %v360
  %v437 = vunpack.c.l.b16 %v361
  %v438 = vunpack.c.h.b16 %v358
  %v439 = vunpack.c.h.b16 %v359
  %v440 = vunpack.c.h.b16 %v360
  %v441 = vunpack.c.h.b16 %v361
  %v442 = vunpack.c.l.b16 %v362
  %v443 = vunpack.c.l.b16 %v363
  %v444 = vunpack.c.l.b16 %v364
  %v445 = vunpack.c.l.b16 %v365
  %v446 = vunpack.c.h.b16 %v362
  %v447 = vunpack.c.h.b16 %v363
  %v448 = vunpack.c.h.b16 %v364
  %v449 = vunpack.c.h.b16 %v365
  %v450 = vunpack.c.l.b16 %v366
  %v451 = vunpack.c.l.b16 %v367
  %v452 = vunpack.c.l.b16 %v368
  %v453 = vunpack.c.l.b16 %v369
  %v454 = vunpack.c.h.b16 %v366
  %v455 = vunpack.c.h.b16 %v367
  %v456 = vunpack.c.h.b16 %v368
  %v457 = vunpack.c.h.b16 %v369
  %v458 = vunpack.c.l.b16 %v370
  %v459 = vunpack.c.l.b16 %v371
  %v460 = vunpack.c.l.b16 %v372
  %v461 = vunpack.c.l.b16 %v373
  %v462 = vunpack.c.h.b16 %v370
  %v463 = vunpack.c.h.b16 %v371
  %v464 = vunpack.c.h.b16 %v372
  %v465 = vunpack.c.h.b16 %v373
  %v466 = vunpack.c.l.b16 %v374
  %v467 = vunpack.c.l.b16 %v375
  %v468 = vunpack.c.l.b16 %v376
  %v469 = vunpack.c.l.b16 %v377
  %v470 = vunpack.c.h.b16 %v374
  %v471 = vunpack.c.h.b16 %v375
  %v472 = vunpack.c.h.b16 %v376
  %v473 = vunpack.c.h.b16 %v377
  %v474 = vpack.c.b16 %v411, %v410
  %v475 = vpack.c.b16 %v413, %v412
  %v476 = vpack.c.b16 %v415, %v414
  %v477 = vpack.c.b16 %v417, %v416
  %v478 = vpack.c.b16 %v419, %v418
  %v479 = vpack.c.b16 %v421, %v420
  %v480 = vpack.c.b16 %v423, %v422
  %v481 = vpack.c.b16 %v425, %v424
  %v482 = vpack.c.b16 %v427, %v426
  %v483 = vpack.c.b16 %v429, %v428
  %v484 = vpack.c.b16 %v431, %v430
  %v485 = vpack.c.b16 %v433, %v432
  %v486 = vpack.c.b16 %v435, %v434
  %v487 = vpack.c.b16 %v437, %v436
  %v488 = vpack.c.b16 %v439, %v438
  %v489 = vpack.c.b16 %v441, %v440
  %v490 = vpack.c.b16 %v443, %v442
  %v491 = vpack.c.b16 %v445, %v444
  %v492 = vpack.c.b16 %v447, %v446
  %v493 = vpack.c.b16 %v449, %v448
  %v494 = vpack.c.b16 %v451, %v450
  %v495 = vpack.c.b16 %v453, %v452
  %v496 = vpack.c.b16 %v455, %v454
  %v497 = vpack.c.b16 %v457, %v456
  %v498 = vpack.c.b16 %v459, %v458
  %v499 = vpack.c.b16 %v461, %v460
  %v500 = vpack.c.b16 %v463, %v462
  %v501 = vpack.c.b16 %v465, %v464
  %v502 = vpack.c.b16 %v467, %v466
  %v503 = vpack.c.b16 %v469, %v468
  %v504 = vpack.c.b16 %v471, %v470
  %v505 = vpack.c.b16 %v473, %v472
  %538 = vst [vmem:[%s3] sm:$0xff] %v474
  %539 = vst [vmem:[%s3 + $0x8] sm:$0xff] %v475
  %540 = vst [vmem:[%s3 + $0x10] sm:$0xff] %v476
  %541 = vst [vmem:[%s3 + $0x18] sm:$0xff] %v477
  %542 = vst [vmem:[%s3 + $0x20] sm:$0xff] %v478
  %543 = vst [vmem:[%s3 + $0x28] sm:$0xff] %v479
  %544 = vst [vmem:[%s3 + $0x30] sm:$0xff] %v480
  %545 = vst [vmem:[%s3 + $0x38] sm:$0xff] %v481
  %546 = vst [vmem:[%s3 + $0x40] sm:$0xff] %v482
  %547 = vst [vmem:[%s3 + $0x48] sm:$0xff] %v483
  %548 = vst [vmem:[%s3 + $0x50] sm:$0xff] %v484
  %549 = vst [vmem:[%s3 + $0x58] sm:$0xff] %v485
  %550 = vst [vmem:[%s3 + $0x60] sm:$0xff] %v486
  %551 = vst [vmem:[%s3 + $0x68] sm:$0xff] %v487
  %552 = vst [vmem:[%s3 + $0x70] sm:$0xff] %v488
  %553 = vst [vmem:[%s3 + $0x78] sm:$0xff] %v489
  %554 = vst [vmem:[%s3 + $0x80] sm:$0xff] %v490
  %555 = vst [vmem:[%s3 + $0x88] sm:$0xff] %v491
  %556 = vst [vmem:[%s3 + $0x90] sm:$0xff] %v492
  %557 = vst [vmem:[%s3 + $0x98] sm:$0xff] %v493
  %558 = vst [vmem:[%s3 + $0xa0] sm:$0xff] %v494
  %559 = vst [vmem:[%s3 + $0xa8] sm:$0xff] %v495
  %560 = vst [vmem:[%s3 + $0xb0] sm:$0xff] %v496
  %561 = vst [vmem:[%s3 + $0xb8] sm:$0xff] %v497
  %562 = vst [vmem:[%s3 + $0xc0] sm:$0xff] %v498
  %563 = vst [vmem:[%s3 + $0xc8] sm:$0xff] %v499
  %564 = vst [vmem:[%s3 + $0xd0] sm:$0xff] %v500
  %565 = vst [vmem:[%s3 + $0xd8] sm:$0xff] %v501
  %566 = vst [vmem:[%s3 + $0xe0] sm:$0xff] %v502
  %567 = vst [vmem:[%s3 + $0xe8] sm:$0xff] %v503
  %568 = vst [vmem:[%s3 + $0xf0] sm:$0xff] %v504
  %569 = vst [vmem:[%s3 + $0xf8] sm:$0xff] %v505
  // Predicated region
  $region14: #{unet_up_block_forward.7} parent=0 // pred_check
    _
  $region15: #{unet_up_block_forward.7} parent=0 // pred_check_branch
    %571 = sbr.rel (0) target = $region17
  $region16: #{unet_up_block_forward.7} parent=0 // pred_region
    _
  $region17: #{unet_up_block_forward.7} parent=0 // pred_fallthru
    _
  // Predicated region
  $region18: #{unet_up_block_forward.7} parent=0 // pred_check
    _
  $region19: #{unet_up_block_forward.7} parent=0 // pred_check_branch
    %573 = sbr.rel (0) target = $region21
  $region20: #{unet_up_block_forward.7} parent=0 // pred_region
    _
  $region21: #{unet_up_block_forward.7} parent=0 // pred_fallthru
    _

// kernel: unet_up_block_forward.6
$region0: #{unet_up_block_forward.6}
  #allocation0 [shape = 'u32[]', space=smem, size = 0x4, offset = 0x4, fixed_abs, tag = 'smem constant byte address 0x4 - core index']
  #allocation1 [shape = 'u32[144,128]{1,0:T(1,128)}', space=vmem, size = 0x12000, scoped, tag = 'internal scratch']
  %s0 = inlined_call_operand.vmem [shape: bf16[128,128], index: 0, kind: input, shape index: {}]
  %s1 = inlined_call_operand.vmem [shape: bf16[128,512], index: 1, kind: input, shape index: {}]
  %s2 = inlined_call_operand.vmem [shape: bf16[128,512], index: 2, kind: output, shape index: {0}]
  %s3 = inlined_call_operand.vmem [shape: f32[1,1,512], index: 3, kind: output, shape index: {1}]
  %s4 = inlined_call_operand.vmem [shape: f32[1,1,512], index: 4, kind: output, shape index: {2}]
  %5 = xla_tuple %s2, %s3, %s4
  %s6 = sld [smem:[#allocation0]]
  $region34: #{unet_up_block_forward.6} parent=0
    _
  %s8 = ssub.s32 1, %s6
  %s9 = scalar_select 0, %s8, %s6
  // Predicated region
  $region2: #{unet_up_block_forward.6} parent=0 // pred_check
    _
  $region3: #{unet_up_block_forward.6} parent=0 // pred_check_branch
    %11 = sbr.rel (0) target = $region5
  $region4: #{unet_up_block_forward.6} parent=0 // pred_region
    _
  $region5: #{unet_up_block_forward.6} parent=0 // pred_fallthru
    _
  // Predicated region
  $region6: #{unet_up_block_forward.6} parent=0 // pred_check
    _
  $region7: #{unet_up_block_forward.6} parent=0 // pred_check_branch
    %13 = sbr.rel (0) target = $region9
  $region8: #{unet_up_block_forward.6} parent=0 // pred_region
    _
  $region9: #{unet_up_block_forward.6} parent=0 // pred_fallthru
    _
  %v15 = vld [vmem:[%s0] sm:$0xf]
  %v16 = vld [vmem:[%s0 + $0x4] sm:$0xf]
  %v17 = vld [vmem:[%s0 + $0x8] sm:$0xf]
  %v18 = vld [vmem:[%s0 + $0xc] sm:$0xf]
  %v19 = vld [vmem:[%s0 + $0x10] sm:$0xf]
  %v20 = vld [vmem:[%s0 + $0x14] sm:$0xf]
  %v21 = vld [vmem:[%s0 + $0x18] sm:$0xf]
  %v22 = vld [vmem:[%s0 + $0x1c] sm:$0xf]
  %v23 = vld [vmem:[%s0 + $0x20] sm:$0xf]
  %v24 = vld [vmem:[%s0 + $0x24] sm:$0xf]
  %v25 = vld [vmem:[%s0 + $0x28] sm:$0xf]
  %v26 = vld [vmem:[%s0 + $0x2c] sm:$0xf]
  %v27 = vld [vmem:[%s0 + $0x30] sm:$0xf]
  %v28 = vld [vmem:[%s0 + $0x34] sm:$0xf]
  %v29 = vld [vmem:[%s0 + $0x38] sm:$0xf]
  %v30 = vld [vmem:[%s0 + $0x3c] sm:$0xf]
  %v31 = vld [vmem:[%s1] sm:$0xff]
  %v32 = vld [vmem:[%s1 + $0x8] sm:$0xff]
  %v33 = vld [vmem:[%s1 + $0x10] sm:$0xff]
  %v34 = vld [vmem:[%s1 + $0x18] sm:$0xff]
  %v35 = vld [vmem:[%s1 + $0x20] sm:$0xff]
  %v36 = vld [vmem:[%s1 + $0x28] sm:$0xff]
  %v37 = vld [vmem:[%s1 + $0x30] sm:$0xff]
  %v38 = vld [vmem:[%s1 + $0x38] sm:$0xff]
  %v39 = vld [vmem:[%s1 + $0x40] sm:$0xff]
  %v40 = vld [vmem:[%s1 + $0x48] sm:$0xff]
  %v41 = vld [vmem:[%s1 + $0x50] sm:$0xff]
  %v42 = vld [vmem:[%s1 + $0x58] sm:$0xff]
  %v43 = vld [vmem:[%s1 + $0x60] sm:$0xff]
  %v44 = vld [vmem:[%s1 + $0x68] sm:$0xff]
  %v45 = vld [vmem:[%s1 + $0x70] sm:$0xff]
  %v46 = vld [vmem:[%s1 + $0x78] sm:$0xff]
  %v47 = vld [vmem:[%s1 + $0x80] sm:$0xff]
  %v48 = vld [vmem:[%s1 + $0x88] sm:$0xff]
  %v49 = vld [vmem:[%s1 + $0x90] sm:$0xff]
  %v50 = vld [vmem:[%s1 + $0x98] sm:$0xff]
  %v51 = vld [vmem:[%s1 + $0xa0] sm:$0xff]
  %v52 = vld [vmem:[%s1 + $0xa8] sm:$0xff]
  %v53 = vld [vmem:[%s1 + $0xb0] sm:$0xff]
  %v54 = vld [vmem:[%s1 + $0xb8] sm:$0xff]
  %v55 = vld [vmem:[%s1 + $0xc0] sm:$0xff]
  %v56 = vld [vmem:[%s1 + $0xc8] sm:$0xff]
  %v57 = vld [vmem:[%s1 + $0xd0] sm:$0xff]
  %v58 = vld [vmem:[%s1 + $0xd8] sm:$0xff]
  %v59 = vld [vmem:[%s1 + $0xe0] sm:$0xff]
  %v60 = vld [vmem:[%s1 + $0xe8] sm:$0xff]
  %v61 = vld [vmem:[%s1 + $0xf0] sm:$0xff]
  %v62 = vld [vmem:[%s1 + $0xf8] sm:$0xff]
  %v79 = vunpack.c.l.b16 %v15
  %v80 = vunpack.c.l.b16 %v16
  %v81 = vunpack.c.l.b16 %v17
  %v82 = vunpack.c.l.b16 %v18
  %v83 = vunpack.c.l.b16 %v19
  %v84 = vunpack.c.l.b16 %v20
  %v85 = vunpack.c.l.b16 %v21
  %v86 = vunpack.c.l.b16 %v22
  %v87 = vunpack.c.l.b16 %v23
  %v88 = vunpack.c.l.b16 %v24
  %v89 = vunpack.c.l.b16 %v25
  %v90 = vunpack.c.l.b16 %v26
  %v91 = vunpack.c.l.b16 %v27
  %v92 = vunpack.c.l.b16 %v28
  %v93 = vunpack.c.l.b16 %v29
  %v94 = vunpack.c.l.b16 %v30
  %v95 = vpack.c.b16 %v80, %v79
  %v96 = vpack.c.b16 %v82, %v81
  %v97 = vpack.c.b16 %v84, %v83
  %v98 = vpack.c.b16 %v86, %v85
  %v99 = vpack.c.b16 %v88, %v87
  %v100 = vpack.c.b16 %v90, %v89
  %v101 = vpack.c.b16 %v92, %v91
  %v102 = vpack.c.b16 %v94, %v93
  %v143 = vunpack.c.l.b16 %v31
  %v144 = vunpack.c.h.b16 %v31
  %v145 = vunpack.c.l.b16 %v32
  %v146 = vunpack.c.h.b16 %v32
  %v147 = vunpack.c.l.b16 %v33
  %v148 = vunpack.c.h.b16 %v33
  %v149 = vunpack.c.l.b16 %v34
  %v150 = vunpack.c.h.b16 %v34
  %v151 = vunpack.c.l.b16 %v35
  %v152 = vunpack.c.h.b16 %v35
  %v153 = vunpack.c.l.b16 %v36
  %v154 = vunpack.c.h.b16 %v36
  %v155 = vunpack.c.l.b16 %v37
  %v156 = vunpack.c.h.b16 %v37
  %v157 = vunpack.c.l.b16 %v38
  %v158 = vunpack.c.h.b16 %v38
  %v159 = vunpack.c.l.b16 %v39
  %v160 = vunpack.c.h.b16 %v39
  %v161 = vunpack.c.l.b16 %v40
  %v162 = vunpack.c.h.b16 %v40
  %v163 = vunpack.c.l.b16 %v41
  %v164 = vunpack.c.h.b16 %v41
  %v165 = vunpack.c.l.b16 %v42
  %v166 = vunpack.c.h.b16 %v42
  %v167 = vunpack.c.l.b16 %v43
  %v168 = vunpack.c.h.b16 %v43
  %v169 = vunpack.c.l.b16 %v44
  %v170 = vunpack.c.h.b16 %v44
  %v171 = vunpack.c.l.b16 %v45
  %v172 = vunpack.c.h.b16 %v45
  %v173 = vunpack.c.l.b16 %v46
  %v174 = vunpack.c.h.b16 %v46
  %v175 = vunpack.c.l.b16 %v47
  %v176 = vunpack.c.h.b16 %v47
  %v177 = vunpack.c.l.b16 %v48
  %v178 = vunpack.c.h.b16 %v48
  %v179 = vunpack.c.l.b16 %v49
  %v180 = vunpack.c.h.b16 %v49
  %v181 = vunpack.c.l.b16 %v50
  %v182 = vunpack.c.h.b16 %v50
  %v183 = vunpack.c.l.b16 %v51
  %v184 = vunpack.c.h.b16 %v51
  %v185 = vunpack.c.l.b16 %v52
  %v186 = vunpack.c.h.b16 %v52
  %v187 = vunpack.c.l.b16 %v53
  %v188 = vunpack.c.h.b16 %v53
  %v189 = vunpack.c.l.b16 %v54
  %v190 = vunpack.c.h.b16 %v54
  %v191 = vunpack.c.l.b16 %v55
  %v192 = vunpack.c.h.b16 %v55
  %v193 = vunpack.c.l.b16 %v56
  %v194 = vunpack.c.h.b16 %v56
  %v195 = vunpack.c.l.b16 %v57
  %v196 = vunpack.c.h.b16 %v57
  %v197 = vunpack.c.l.b16 %v58
  %v198 = vunpack.c.h.b16 %v58
  %v199 = vunpack.c.l.b16 %v59
  %v200 = vunpack.c.h.b16 %v59
  %v201 = vunpack.c.l.b16 %v60
  %v202 = vunpack.c.h.b16 %v60
  %v203 = vunpack.c.l.b16 %v61
  %v204 = vunpack.c.h.b16 %v61
  %v205 = vunpack.c.l.b16 %v62
  %v206 = vunpack.c.h.b16 %v62
  %v207 = vpack.c.b16 %v147, %v143
  %v208 = vpack.c.b16 %v148, %v144
  %v209 = vpack.c.b16 %v149, %v145
  %v210 = vpack.c.b16 %v150, %v146
  %v211 = vpack.c.b16 %v155, %v151
  %v212 = vpack.c.b16 %v156, %v152
  %v213 = vpack.c.b16 %v157, %v153
  %v214 = vpack.c.b16 %v158, %v154
  %v215 = vpack.c.b16 %v163, %v159
  %v216 = vpack.c.b16 %v164, %v160
  %v217 = vpack.c.b16 %v165, %v161
  %v218 = vpack.c.b16 %v166, %v162
  %v219 = vpack.c.b16 %v171, %v167
  %v220 = vpack.c.b16 %v172, %v168
  %v221 = vpack.c.b16 %v173, %v169
  %v222 = vpack.c.b16 %v174, %v170
  %v223 = vpack.c.b16 %v179, %v175
  %v224 = vpack.c.b16 %v180, %v176
  %v225 = vpack.c.b16 %v181, %v177
  %v226 = vpack.c.b16 %v182, %v178
  %v227 = vpack.c.b16 %v187, %v183
  %v228 = vpack.c.b16 %v188, %v184
  %v229 = vpack.c.b16 %v189, %v185
  %v230 = vpack.c.b16 %v190, %v186
  %v231 = vpack.c.b16 %v195, %v191
  %v232 = vpack.c.b16 %v196, %v192
  %v233 = vpack.c.b16 %v197, %v193
  %v234 = vpack.c.b16 %v198, %v194
  %v235 = vpack.c.b16 %v203, %v199
  %v236 = vpack.c.b16 %v204, %v200
  %v237 = vpack.c.b16 %v205, %v201
  %v238 = vpack.c.b16 %v206, %v202
  %271 = vmatprep.subr.bf16.mxu0 %v208
  %272 = vmatpush1.bf16.msra.mxu0 %v207
  %273 = vmatprep.subr.bf16.mxu0 %v212
  %274 = vmatpush1.bf16.msra.mxu0 %v211
  %275 = vmatprep.subr.bf16.mxu0 %v216
  %276 = vmatpush1.bf16.msra.mxu0 %v215
  %277 = vmatprep.subr.bf16.mxu0 %v220
  %278 = vmatpush1.bf16.msra.mxu0 %v219
  %279 = vmatprep.subr.bf16.mxu0 %v224
  %280 = vmatpush1.bf16.msra.mxu0 %v223
  %281 = vmatprep.subr.bf16.mxu0 %v228
  %282 = vmatpush1.bf16.msra.mxu0 %v227
  %283 = vmatprep.subr.bf16.mxu0 %v232
  %284 = vmatpush1.bf16.msra.mxu0 %v231
  %285 = vmatprep.subr.bf16.mxu0 %v236
  %286 = vmatpush1.bf16.msra.mxu0 %v235
  %287 = vmatprep.subr.bf16.mxu0 0
  %288 = vmatpush1.bf16.msra.mxu0 0
  %289 = vmatprep.subr.bf16.mxu0 0
  %290 = vmatpush1.bf16.msra.mxu0 0
  %291 = vmatprep.subr.bf16.mxu0 0
  %292 = vmatpush1.bf16.msra.mxu0 0
  %293 = vmatprep.subr.bf16.mxu0 0
  %294 = vmatpush1.bf16.msra.mxu0 0
  %295 = vmatprep.subr.bf16.mxu0 0
  %296 = vmatpush1.bf16.msra.mxu0 0
  %297 = vmatprep.subr.bf16.mxu0 0
  %298 = vmatpush1.bf16.msra.mxu0 0
  %299 = vmatprep.subr.bf16.mxu0 0
  %300 = vmatpush1.bf16.msra.mxu0 0
  %301 = vmatprep.subr.bf16.mxu0 0
  %302 = vmatpush1.bf16.msra.mxu0 0
  %303 = vmatprep.mubr.bf16.mxu0 0
  %304 = vmatmul.mubr.bf16.gmra.mrb[0].mxu0 %v95
  %v305 = vpop.f32.mrb[0].mxu0
  %v306 = vadd.f32 0.0, %v305
  %v307 = vpop.f32.mrb[0].mxu0
  %v308 = vadd.f32 0.0, %v307
  %v309 = vpop.f32.mrb[0].mxu0
  %v310 = vadd.f32 0.0, %v309
  %v311 = vpop.f32.mrb[0].mxu0
  %v312 = vadd.f32 0.0, %v311
  %313 = vmatprep.mubr.bf16.mxu0 0
  %314 = vmatmul.mubr.bf16.gmra.mrb[0].mxu0 %v96
  %v315 = vpop.f32.mrb[0].mxu0
  %v316 = vadd.f32 0.0, %v315
  %v317 = vpop.f32.mrb[0].mxu0
  %v318 = vadd.f32 0.0, %v317
  %v319 = vpop.f32.mrb[0].mxu0
  %v320 = vadd.f32 0.0, %v319
  %v321 = vpop.f32.mrb[0].mxu0
  %v322 = vadd.f32 0.0, %v321
  %323 = vmatprep.mubr.bf16.mxu0 0
  %324 = vmatmul.mubr.bf16.gmra.mrb[0].mxu0 %v97
  %v325 = vpop.f32.mrb[0].mxu0
  %v326 = vadd.f32 0.0, %v325
  %v327 = vpop.f32.mrb[0].mxu0
  %v328 = vadd.f32 0.0, %v327
  %v329 = vpop.f32.mrb[0].mxu0
  %v330 = vadd.f32 0.0, %v329
  %v331 = vpop.f32.mrb[0].mxu0
  %v332 = vadd.f32 0.0, %v331
  %333 = vmatprep.mubr.bf16.mxu0 0
  %334 = vmatmul.mubr.bf16.gmra.mrb[0].mxu0 %v98
  %v335 = vpop.f32.mrb[0].mxu0
  %v336 = vadd.f32 0.0, %v335
  %v337 = vpop.f32.mrb[0].mxu0
  %v338 = vadd.f32 0.0, %v337
  %v339 = vpop.f32.mrb[0].mxu0
  %v340 = vadd.f32 0.0, %v339
  %v341 = vpop.f32.mrb[0].mxu0
  %v342 = vadd.f32 0.0, %v341
  %343 = vmatprep.mubr.bf16.mxu0 0
  %344 = vmatmul.mubr.bf16.gmra.mrb[0].mxu0 %v99
  %v345 = vpop.f32.mrb[0].mxu0
  %v346 = vadd.f32 0.0, %v345
  %v347 = vpop.f32.mrb[0].mxu0
  %v348 = vadd.f32 0.0, %v347
  %v349 = vpop.f32.mrb[0].mxu0
  %v350 = vadd.f32 0.0, %v349
  %v351 = vpop.f32.mrb[0].mxu0
  %v352 = vadd.f32 0.0, %v351
  %353 = vmatprep.mubr.bf16.mxu0 0
  %354 = vmatmul.mubr.bf16.gmra.mrb[0].mxu0 %v100
  %v355 = vpop.f32.mrb[0].mxu0
  %v356 = vadd.f32 0.0, %v355
  %v357 = vpop.f32.mrb[0].mxu0
  %v358 = vadd.f32 0.0, %v357
  %v359 = vpop.f32.mrb[0].mxu0
  %v360 = vadd.f32 0.0, %v359
  %v361 = vpop.f32.mrb[0].mxu0
  %v362 = vadd.f32 0.0, %v361
  %363 = vmatprep.mubr.bf16.mxu0 0
  %364 = vmatmul.mubr.bf16.gmra.mrb[0].mxu0 %v101
  %v365 = vpop.f32.mrb[0].mxu0
  %v366 = vadd.f32 0.0, %v365
  %v367 = vpop.f32.mrb[0].mxu0
  %v368 = vadd.f32 0.0, %v367
  %v369 = vpop.f32.mrb[0].mxu0
  %v370 = vadd.f32 0.0, %v369
  %v371 = vpop.f32.mrb[0].mxu0
  %v372 = vadd.f32 0.0, %v371
  %373 = vmatprep.mubr.bf16.mxu0 0
  %374 = vmatmul.mubr.bf16.gmra.mrb[0].mxu0 %v102
  %v375 = vpop.f32.mrb[0].mxu0
  %v376 = vadd.f32 0.0, %v375
  %v377 = vpop.f32.mrb[0].mxu0
  %v378 = vadd.f32 0.0, %v377
  %v379 = vpop.f32.mrb[0].mxu0
  %v380 = vadd.f32 0.0, %v379
  %v381 = vpop.f32.mrb[0].mxu0
  %v382 = vadd.f32 0.0, %v381
  %383 = vdwg.mxu0
  %384 = vmatprep.subr.bf16.mxu0 %v210
  %385 = vmatpush1.bf16.msra.mxu0 %v209
  %386 = vmatprep.subr.bf16.mxu0 %v214
  %387 = vmatpush1.bf16.msra.mxu0 %v213
  %388 = vmatprep.subr.bf16.mxu0 %v218
  %389 = vmatpush1.bf16.msra.mxu0 %v217
  %390 = vmatprep.subr.bf16.mxu0 %v222
  %391 = vmatpush1.bf16.msra.mxu0 %v221
  %392 = vmatprep.subr.bf16.mxu0 %v226
  %393 = vmatpush1.bf16.msra.mxu0 %v225
  %394 = vmatprep.subr.bf16.mxu0 %v230
  %395 = vmatpush1.bf16.msra.mxu0 %v229
  %396 = vmatprep.subr.bf16.mxu0 %v234
  %397 = vmatpush1.bf16.msra.mxu0 %v233
  %398 = vmatprep.subr.bf16.mxu0 %v238
  %399 = vmatpush1.bf16.msra.mxu0 %v237
  %400 = vmatprep.subr.bf16.mxu0 0
  %401 = vmatpush1.bf16.msra.mxu0 0
  %402 = vmatprep.subr.bf16.mxu0 0
  %403 = vmatpush1.bf16.msra.mxu0 0
  %404 = vmatprep.subr.bf16.mxu0 0
  %405 = vmatpush1.bf16.msra.mxu0 0
  %406 = vmatprep.subr.bf16.mxu0 0
  %407 = vmatpush1.bf16.msra.mxu0 0
  %408 = vmatprep.subr.bf16.mxu0 0
  %409 = vmatpush1.bf16.msra.mxu0 0
  %410 = vmatprep.subr.bf16.mxu0 0
  %411 = vmatpush1.bf16.msra.mxu0 0
  %412 = vmatprep.subr.bf16.mxu0 0
  %413 = vmatpush1.bf16.msra.mxu0 0
  %414 = vmatprep.subr.bf16.mxu0 0
  %415 = vmatpush1.bf16.msra.mxu0 0
  %416 = vmatprep.mubr.bf16.mxu0 0
  %417 = vmatmul.mubr.bf16.gmra.mrb[0].mxu0 %v95
  %v418 = vpop.f32.mrb[0].mxu0
  %v419 = vadd.f32 0.0, %v418
  %v420 = vpop.f32.mrb[0].mxu0
  %v421 = vadd.f32 0.0, %v420
  %v422 = vpop.f32.mrb[0].mxu0
  %v423 = vadd.f32 0.0, %v422
  %v424 = vpop.f32.mrb[0].mxu0
  %v425 = vadd.f32 0.0, %v424
  %426 = vmatprep.mubr.bf16.mxu0 0
  %427 = vmatmul.mubr.bf16.gmra.mrb[0].mxu0 %v96
  %v428 = vpop.f32.mrb[0].mxu0
  %v429 = vadd.f32 0.0, %v428
  %v430 = vpop.f32.mrb[0].mxu0
  %v431 = vadd.f32 0.0, %v430
  %v432 = vpop.f32.mrb[0].mxu0
  %v433 = vadd.f32 0.0, %v432
  %v434 = vpop.f32.mrb[0].mxu0
  %v435 = vadd.f32 0.0, %v434
  %436 = vmatprep.mubr.bf16.mxu0 0
  %437 = vmatmul.mubr.bf16.gmra.mrb[0].mxu0 %v97
  %v438 = vpop.f32.mrb[0].mxu0
  %v439 = vadd.f32 0.0, %v438
  %v440 = vpop.f32.mrb[0].mxu0
  %v441 = vadd.f32 0.0, %v440
  %v442 = vpop.f32.mrb[0].mxu0
  %v443 = vadd.f32 0.0, %v442
  %v444 = vpop.f32.mrb[0].mxu0
  %v445 = vadd.f32 0.0, %v444
  %446 = vmatprep.mubr.bf16.mxu0 0
  %447 = vmatmul.mubr.bf16.gmra.mrb[0].mxu0 %v98
  %v448 = vpop.f32.mrb[0].mxu0
  %v449 = vadd.f32 0.0, %v448
  %v450 = vpop.f32.mrb[0].mxu0
  %v451 = vadd.f32 0.0, %v450
  %v452 = vpop.f32.mrb[0].mxu0
  %v453 = vadd.f32 0.0, %v452
  %v454 = vpop.f32.mrb[0].mxu0
  %v455 = vadd.f32 0.0, %v454
  %456 = vmatprep.mubr.bf16.mxu0 0
  %457 = vmatmul.mubr.bf16.gmra.mrb[0].mxu0 %v99
  %v458 = vpop.f32.mrb[0].mxu0
  %v459 = vadd.f32 0.0, %v458
  %v460 = vpop.f32.mrb[0].mxu0
  %v461 = vadd.f32 0.0, %v460
  %v462 = vpop.f32.mrb[0].mxu0
  %v463 = vadd.f32 0.0, %v462
  %v464 = vpop.f32.mrb[0].mxu0
  %v465 = vadd.f32 0.0, %v464
  %466 = vmatprep.mubr.bf16.mxu0 0
  %467 = vmatmul.mubr.bf16.gmra.mrb[0].mxu0 %v100
  %v468 = vpop.f32.mrb[0].mxu0
  %v469 = vadd.f32 0.0, %v468
  %v470 = vpop.f32.mrb[0].mxu0
  %v471 = vadd.f32 0.0, %v470
  %v472 = vpop.f32.mrb[0].mxu0
  %v473 = vadd.f32 0.0, %v472
  %v474 = vpop.f32.mrb[0].mxu0
  %v475 = vadd.f32 0.0, %v474
  %476 = vmatprep.mubr.bf16.mxu0 0
  %477 = vmatmul.mubr.bf16.gmra.mrb[0].mxu0 %v101
  %v478 = vpop.f32.mrb[0].mxu0
  %v479 = vadd.f32 0.0, %v478
  %v480 = vpop.f32.mrb[0].mxu0
  %v481 = vadd.f32 0.0, %v480
  %v482 = vpop.f32.mrb[0].mxu0
  %v483 = vadd.f32 0.0, %v482
  %v484 = vpop.f32.mrb[0].mxu0
  %v485 = vadd.f32 0.0, %v484
  %486 = vmatprep.mubr.bf16.mxu0 0
  %487 = vmatmul.mubr.bf16.gmra.mrb[0].mxu0 %v102
  %v488 = vpop.f32.mrb[0].mxu0
  %v489 = vadd.f32 0.0, %v488
  %v490 = vpop.f32.mrb[0].mxu0
  %v491 = vadd.f32 0.0, %v490
  %v492 = vpop.f32.mrb[0].mxu0
  %v493 = vadd.f32 0.0, %v492
  %v494 = vpop.f32.mrb[0].mxu0
  %v495 = vadd.f32 0.0, %v494
  %496 = vdwg.mxu0
  %v497 = vadd.f32 %v306, %v310
  %v498 = vadd.f32 %v497, %v316
  %v499 = vadd.f32 %v498, %v320
  %v500 = vadd.f32 %v499, %v326
  %v501 = vadd.f32 %v500, %v330
  %v502 = vadd.f32 %v501, %v336
  %v503 = vadd.f32 %v502, %v340
  %v504 = vadd.f32 %v503, %v346
  %v505 = vadd.f32 %v504, %v350
  %v506 = vadd.f32 %v505, %v356
  %v507 = vadd.f32 %v506, %v360
  %v508 = vadd.f32 %v507, %v366
  %v509 = vadd.f32 %v508, %v370
  %v510 = vadd.f32 %v509, %v376
  %v511 = vadd.f32 %v510, %v380
  %v512 = vrot.slane %v511, 4
  %v513 = vadd.f32 %v511, %v512
  %v514 = vrot.slane %v513, 2
  %v515 = vadd.f32 %v513, %v514
  %v516 = vrot.slane %v515, 1
  %v517 = vadd.f32 %v515, %v516
  %v518 = vadd.f32 %v308, %v312
  %v519 = vadd.f32 %v518, %v318
  %v520 = vadd.f32 %v519, %v322
  %v521 = vadd.f32 %v520, %v328
  %v522 = vadd.f32 %v521, %v332
  %v523 = vadd.f32 %v522, %v338
  %v524 = vadd.f32 %v523, %v342
  %v525 = vadd.f32 %v524, %v348
  %v526 = vadd.f32 %v525, %v352
  %v527 = vadd.f32 %v526, %v358
  %v528 = vadd.f32 %v527, %v362
  %v529 = vadd.f32 %v528, %v368
  %v530 = vadd.f32 %v529, %v372
  %v531 = vadd.f32 %v530, %v378
  %v532 = vadd.f32 %v531, %v382
  %v533 = vrot.slane %v532, 4
  %v534 = vadd.f32 %v532, %v533
  %v535 = vrot.slane %v534, 2
  %v536 = vadd.f32 %v534, %v535
  %v537 = vrot.slane %v536, 1
  %v538 = vadd.f32 %v536, %v537
  %v539 = vadd.f32 %v419, %v423
  %v540 = vadd.f32 %v539, %v429
  %v541 = vadd.f32 %v540, %v433
  %v542 = vadd.f32 %v541, %v439
  %v543 = vadd.f32 %v542, %v443
  %v544 = vadd.f32 %v543, %v449
  %v545 = vadd.f32 %v544, %v453
  %v546 = vadd.f32 %v545, %v459
  %v547 = vadd.f32 %v546, %v463
  %v548 = vadd.f32 %v547, %v469
  %v549 = vadd.f32 %v548, %v473
  %v550 = vadd.f32 %v549, %v479
  %v551 = vadd.f32 %v550, %v483
  %v552 = vadd.f32 %v551, %v489
  %v553 = vadd.f32 %v552, %v493
  %v554 = vrot.slane %v553, 4
  %v555 = vadd.f32 %v553, %v554
  %v556 = vrot.slane %v555, 2
  %v557 = vadd.f32 %v555, %v556
  %v558 = vrot.slane %v557, 1
  %v559 = vadd.f32 %v557, %v558
  %v560 = vadd.f32 %v421, %v425
  %v561 = vadd.f32 %v560, %v431
  %v562 = vadd.f32 %v561, %v435
  %v563 = vadd.f32 %v562, %v441
  %v564 = vadd.f32 %v563, %v445
  %v565 = vadd.f32 %v564, %v451
  %v566 = vadd.f32 %v565, %v455
  %v567 = vadd.f32 %v566, %v461
  %v568 = vadd.f32 %v567, %v465
  %v569 = vadd.f32 %v568, %v471
  %v570 = vadd.f32 %v569, %v475
  %v571 = vadd.f32 %v570, %v481
  %v572 = vadd.f32 %v571, %v485
  %v573 = vadd.f32 %v572, %v491
  %v574 = vadd.f32 %v573, %v495
  %v575 = vrot.slane %v574, 4
  %v576 = vadd.f32 %v574, %v575
  %v577 = vrot.slane %v576, 2
  %v578 = vadd.f32 %v576, %v577
  %v579 = vrot.slane %v578, 1
  %v580 = vadd.f32 %v578, %v579
  %v585 = vcombine.low %v517, %v538
  %v586 = vcombine.low %v559, %v580
  %v588 = vunpack.c.l.s4 1966171168
  %v589 = vunpack.c.0.s8 %v588
  %v590 = vlaneseq
  %v591 = vshrl.u32 %v590, 7
  %v592 = vsub.s32 %v589, %v591
  %v593 = vrot.slane %v585, %v592
  %v595 = vunpack.c.l.s4 1966171168
  %v596 = vunpack.c.0.s8 %v595
  %v597 = vlaneseq
  %v598 = vshrl.u32 %v597, 7
  %v599 = vsub.s32 %v596, %v598
  %v600 = vrot.slane %v586, %v599
  %v601 = vcombine.low %v593, %v600
  %v603 = vunpack.c.l.s4 1966171168
  %v604 = vunpack.c.0.s8 %v603
  %v605 = vlaneseq
  %v606 = vshrl.u32 %v605, 7
  %v607 = vsub.s32 %v604, %v606
  %v608 = vrot.slane %v601, %v607
  %v610 = vlaneseq
  %vm611 = vcmp.ge.s32.totalorder %v610, 0
  %vm612 = vcmp.lt.s32.totalorder %v610, 512
  %vm613 = vmand %vm611, %vm612
  %614 = vst.msk [vmem:[%s3] sm:$0xf] %vm613, %v608
  %v615 = vmul.f32 %v306, %v306
  %v616 = vmul.f32 %v308, %v308
  %v617 = vmul.f32 %v419, %v419
  %v618 = vmul.f32 %v421, %v421
  %v619 = vmul.f32 %v310, %v310
  %v620 = vmul.f32 %v312, %v312
  %v621 = vmul.f32 %v423, %v423
  %v622 = vmul.f32 %v425, %v425
  %v623 = vmul.f32 %v316, %v316
  %v624 = vmul.f32 %v318, %v318
  %v625 = vmul.f32 %v429, %v429
  %v626 = vmul.f32 %v431, %v431
  %v627 = vmul.f32 %v320, %v320
  %v628 = vmul.f32 %v322, %v322
  %v629 = vmul.f32 %v433, %v433
  %v630 = vmul.f32 %v435, %v435
  %v631 = vmul.f32 %v326, %v326
  %v632 = vmul.f32 %v328, %v328
  %v633 = vmul.f32 %v439, %v439
  %v634 = vmul.f32 %v441, %v441
  %v635 = vmul.f32 %v330, %v330
  %v636 = vmul.f32 %v332, %v332
  %v637 = vmul.f32 %v443, %v443
  %v638 = vmul.f32 %v445, %v445
  %v639 = vmul.f32 %v336, %v336
  %v640 = vmul.f32 %v338, %v338
  %v641 = vmul.f32 %v449, %v449
  %v642 = vmul.f32 %v451, %v451
  %v643 = vmul.f32 %v340, %v340
  %v644 = vmul.f32 %v342, %v342
  %v645 = vmul.f32 %v453, %v453
  %v646 = vmul.f32 %v455, %v455
  %v647 = vmul.f32 %v346, %v346
  %v648 = vmul.f32 %v348, %v348
  %v649 = vmul.f32 %v459, %v459
  %v650 = vmul.f32 %v461, %v461
  %v651 = vmul.f32 %v350, %v350
  %v652 = vmul.f32 %v352, %v352
  %v653 = vmul.f32 %v463, %v463
  %v654 = vmul.f32 %v465, %v465
  %v655 = vmul.f32 %v356, %v356
  %v656 = vmul.f32 %v358, %v358
  %v657 = vmul.f32 %v469, %v469
  %v658 = vmul.f32 %v471, %v471
  %v659 = vmul.f32 %v360, %v360
  %v660 = vmul.f32 %v362, %v362
  %v661 = vmul.f32 %v473, %v473
  %v662 = vmul.f32 %v475, %v475
  %v663 = vmul.f32 %v366, %v366
  %v664 = vmul.f32 %v368, %v368
  %v665 = vmul.f32 %v479, %v479
  %v666 = vmul.f32 %v481, %v481
  %v667 = vmul.f32 %v370, %v370
  %v668 = vmul.f32 %v372, %v372
  %v669 = vmul.f32 %v483, %v483
  %v670 = vmul.f32 %v485, %v485
  %v671 = vmul.f32 %v376, %v376
  %v672 = vmul.f32 %v378, %v378
  %v673 = vmul.f32 %v489, %v489
  %v674 = vmul.f32 %v491, %v491
  %v675 = vmul.f32 %v380, %v380
  %v676 = vmul.f32 %v382, %v382
  %v677 = vmul.f32 %v493, %v493
  %v678 = vmul.f32 %v495, %v495
  %v679 = vadd.f32 %v615, %v619
  %v680 = vadd.f32 %v679, %v623
  %v681 = vadd.f32 %v680, %v627
  %v682 = vadd.f32 %v681, %v631
  %v683 = vadd.f32 %v682, %v635
  %v684 = vadd.f32 %v683, %v639
  %v685 = vadd.f32 %v684, %v643
  %v686 = vadd.f32 %v685, %v647
  %v687 = vadd.f32 %v686, %v651
  %v688 = vadd.f32 %v687, %v655
  %v689 = vadd.f32 %v688, %v659
  %v690 = vadd.f32 %v689, %v663
  %v691 = vadd.f32 %v690, %v667
  %v692 = vadd.f32 %v691, %v671
  %v693 = vadd.f32 %v692, %v675
  %v694 = vrot.slane %v693, 4
  %v695 = vadd.f32 %v693, %v694
  %v696 = vrot.slane %v695, 2
  %v697 = vadd.f32 %v695, %v696
  %v698 = vrot.slane %v697, 1
  %v699 = vadd.f32 %v697, %v698
  %v700 = vadd.f32 %v616, %v620
  %v701 = vadd.f32 %v700, %v624
  %v702 = vadd.f32 %v701, %v628
  %v703 = vadd.f32 %v702, %v632
  %v704 = vadd.f32 %v703, %v636
  %v705 = vadd.f32 %v704, %v640
  %v706 = vadd.f32 %v705, %v644
  %v707 = vadd.f32 %v706, %v648
  %v708 = vadd.f32 %v707, %v652
  %v709 = vadd.f32 %v708, %v656
  %v710 = vadd.f32 %v709, %v660
  %v711 = vadd.f32 %v710, %v664
  %v712 = vadd.f32 %v711, %v668
  %v713 = vadd.f32 %v712, %v672
  %v714 = vadd.f32 %v713, %v676
  %v715 = vrot.slane %v714, 4
  %v716 = vadd.f32 %v714, %v715
  %v717 = vrot.slane %v716, 2
  %v718 = vadd.f32 %v716, %v717
  %v719 = vrot.slane %v718, 1
  %v720 = vadd.f32 %v718, %v719
  %v721 = vadd.f32 %v617, %v621
  %v722 = vadd.f32 %v721, %v625
  %v723 = vadd.f32 %v722, %v629
  %v724 = vadd.f32 %v723, %v633
  %v725 = vadd.f32 %v724, %v637
  %v726 = vadd.f32 %v725, %v641
  %v727 = vadd.f32 %v726, %v645
  %v728 = vadd.f32 %v727, %v649
  %v729 = vadd.f32 %v728, %v653
  %v730 = vadd.f32 %v729, %v657
  %v731 = vadd.f32 %v730, %v661
  %v732 = vadd.f32 %v731, %v665
  %v733 = vadd.f32 %v732, %v669
  %v734 = vadd.f32 %v733, %v673
  %v735 = vadd.f32 %v734, %v677
  %v736 = vrot.slane %v735, 4
  %v737 = vadd.f32 %v735, %v736
  %v738 = vrot.slane %v737, 2
  %v739 = vadd.f32 %v737, %v738
  %v740 = vrot.slane %v739, 1
  %v741 = vadd.f32 %v739, %v740
  %v742 = vadd.f32 %v618, %v622
  %v743 = vadd.f32 %v742, %v626
  %v744 = vadd.f32 %v743, %v630
  %v745 = vadd.f32 %v744, %v634
  %v746 = vadd.f32 %v745, %v638
  %v747 = vadd.f32 %v746, %v642
  %v748 = vadd.f32 %v747, %v646
  %v749 = vadd.f32 %v748, %v650
  %v750 = vadd.f32 %v749, %v654
  %v751 = vadd.f32 %v750, %v658
  %v752 = vadd.f32 %v751, %v662
  %v753 = vadd.f32 %v752, %v666
  %v754 = vadd.f32 %v753, %v670
  %v755 = vadd.f32 %v754, %v674
  %v756 = vadd.f32 %v755, %v678
  %v757 = vrot.slane %v756, 4
  %v758 = vadd.f32 %v756, %v757
  %v759 = vrot.slane %v758, 2
  %v760 = vadd.f32 %v758, %v759
  %v761 = vrot.slane %v760, 1
  %v762 = vadd.f32 %v760, %v761
  %v767 = vcombine.low %v699, %v720
  %v768 = vcombine.low %v741, %v762
  %v770 = vunpack.c.l.s4 1966171168
  %v771 = vunpack.c.0.s8 %v770
  %v772 = vlaneseq
  %v773 = vshrl.u32 %v772, 7
  %v774 = vsub.s32 %v771, %v773
  %v775 = vrot.slane %v767, %v774
  %v777 = vunpack.c.l.s4 1966171168
  %v778 = vunpack.c.0.s8 %v777
  %v779 = vlaneseq
  %v780 = vshrl.u32 %v779, 7
  %v781 = vsub.s32 %v778, %v780
  %v782 = vrot.slane %v768, %v781
  %v783 = vcombine.low %v775, %v782
  %v785 = vunpack.c.l.s4 1966171168
  %v786 = vunpack.c.0.s8 %v785
  %v787 = vlaneseq
  %v788 = vshrl.u32 %v787, 7
  %v789 = vsub.s32 %v786, %v788
  %v790 = vrot.slane %v783, %v789
  %792 = vst.msk [vmem:[%s4] sm:$0xf] %vm613, %v790
  %v793 = vpack.c.bf16 %v310, %v306
  %v794 = vpack.c.bf16 %v312, %v308
  %v795 = vpack.c.bf16 %v423, %v419
  %v796 = vpack.c.bf16 %v425, %v421
  %v797 = vpack.c.bf16 %v320, %v316
  %v798 = vpack.c.bf16 %v322, %v318
  %v799 = vpack.c.bf16 %v433, %v429
  %v800 = vpack.c.bf16 %v435, %v431
  %v801 = vpack.c.bf16 %v330, %v326
  %v802 = vpack.c.bf16 %v332, %v328
  %v803 = vpack.c.bf16 %v443, %v439
  %v804 = vpack.c.bf16 %v445, %v441
  %v805 = vpack.c.bf16 %v340, %v336
  %v806 = vpack.c.bf16 %v342, %v338
  %v807 = vpack.c.bf16 %v453, %v449
  %v808 = vpack.c.bf16 %v455, %v451
  %v809 = vpack.c.bf16 %v350, %v346
  %v810 = vpack.c.bf16 %v352, %v348
  %v811 = vpack.c.bf16 %v463, %v459
  %v812 = vpack.c.bf16 %v465, %v461
  %v813 = vpack.c.bf16 %v360, %v356
  %v814 = vpack.c.bf16 %v362, %v358
  %v815 = vpack.c.bf16 %v473, %v469
  %v816 = vpack.c.bf16 %v475, %v471
  %v817 = vpack.c.bf16 %v370, %v366
  %v818 = vpack.c.bf16 %v372, %v368
  %v819 = vpack.c.bf16 %v483, %v479
  %v820 = vpack.c.bf16 %v485, %v481
  %v821 = vpack.c.bf16 %v380, %v376
  %v822 = vpack.c.bf16 %v382, %v378
  %v823 = vpack.c.bf16 %v493, %v489
  %v824 = vpack.c.bf16 %v495, %v491
  %v857 = vunpack.c.l.b16 %v793
  %v858 = vunpack.c.l.b16 %v794
  %v859 = vunpack.c.l.b16 %v795
  %v860 = vunpack.c.l.b16 %v796
  %v861 = vunpack.c.h.b16 %v793
  %v862 = vunpack.c.h.b16 %v794
  %v863 = vunpack.c.h.b16 %v795
  %v864 = vunpack.c.h.b16 %v796
  %v865 = vunpack.c.l.b16 %v797
  %v866 = vunpack.c.l.b16 %v798
  %v867 = vunpack.c.l.b16 %v799
  %v868 = vunpack.c.l.b16 %v800
  %v869 = vunpack.c.h.b16 %v797
  %v870 = vunpack.c.h.b16 %v798
  %v871 = vunpack.c.h.b16 %v799
  %v872 = vunpack.c.h.b16 %v800
  %v873 = vunpack.c.l.b16 %v801
  %v874 = vunpack.c.l.b16 %v802
  %v875 = vunpack.c.l.b16 %v803
  %v876 = vunpack.c.l.b16 %v804
  %v877 = vunpack.c.h.b16 %v801
  %v878 = vunpack.c.h.b16 %v802
  %v879 = vunpack.c.h.b16 %v803
  %v880 = vunpack.c.h.b16 %v804
  %v881 = vunpack.c.l.b16 %v805
  %v882 = vunpack.c.l.b16 %v806
  %v883 = vunpack.c.l.b16 %v807
  %v884 = vunpack.c.l.b16 %v808
  %v885 = vunpack.c.h.b16 %v805
  %v886 = vunpack.c.h.b16 %v806
  %v887 = vunpack.c.h.b16 %v807
  %v888 = vunpack.c.h.b16 %v808
  %v889 = vunpack.c.l.b16 %v809
  %v890 = vunpack.c.l.b16 %v810
  %v891 = vunpack.c.l.b16 %v811
  %v892 = vunpack.c.l.b16 %v812
  %v893 = vunpack.c.h.b16 %v809
  %v894 = vunpack.c.h.b16 %v810
  %v895 = vunpack.c.h.b16 %v811
  %v896 = vunpack.c.h.b16 %v812
  %v897 = vunpack.c.l.b16 %v813
  %v898 = vunpack.c.l.b16 %v814
  %v899 = vunpack.c.l.b16 %v815
  %v900 = vunpack.c.l.b16 %v816
  %v901 = vunpack.c.h.b16 %v813
  %v902 = vunpack.c.h.b16 %v814
  %v903 = vunpack.c.h.b16 %v815
  %v904 = vunpack.c.h.b16 %v816
  %v905 = vunpack.c.l.b16 %v817
  %v906 = vunpack.c.l.b16 %v818
  %v907 = vunpack.c.l.b16 %v819
  %v908 = vunpack.c.l.b16 %v820
  %v909 = vunpack.c.h.b16 %v817
  %v910 = vunpack.c.h.b16 %v818
  %v911 = vunpack.c.h.b16 %v819
  %v912 = vunpack.c.h.b16 %v820
  %v913 = vunpack.c.l.b16 %v821
  %v914 = vunpack.c.l.b16 %v822
  %v915 = vunpack.c.l.b16 %v823
  %v916 = vunpack.c.l.b16 %v824
  %v917 = vunpack.c.h.b16 %v821
  %v918 = vunpack.c.h.b16 %v822
  %v919 = vunpack.c.h.b16 %v823
  %v920 = vunpack.c.h.b16 %v824
  %v921 = vpack.c.b16 %v858, %v857
  %v922 = vpack.c.b16 %v860, %v859
  %v923 = vpack.c.b16 %v862, %v861
  %v924 = vpack.c.b16 %v864, %v863
  %v925 = vpack.c.b16 %v866, %v865
  %v926 = vpack.c.b16 %v868, %v867
  %v927 = vpack.c.b16 %v870, %v869
  %v928 = vpack.c.b16 %v872, %v871
  %v929 = vpack.c.b16 %v874, %v873
  %v930 = vpack.c.b16 %v876, %v875
  %v931 = vpack.c.b16 %v878, %v877
  %v932 = vpack.c.b16 %v880, %v879
  %v933 = vpack.c.b16 %v882, %v881
  %v934 = vpack.c.b16 %v884, %v883
  %v935 = vpack.c.b16 %v886, %v885
  %v936 = vpack.c.b16 %v888, %v887
  %v937 = vpack.c.b16 %v890, %v889
  %v938 = vpack.c.b16 %v892, %v891
  %v939 = vpack.c.b16 %v894, %v893
  %v940 = vpack.c.b16 %v896, %v895
  %v941 = vpack.c.b16 %v898, %v897
  %v942 = vpack.c.b16 %v900, %v899
  %v943 = vpack.c.b16 %v902, %v901
  %v944 = vpack.c.b16 %v904, %v903
  %v945 = vpack.c.b16 %v906, %v905
  %v946 = vpack.c.b16 %v908, %v907
  %v947 = vpack.c.b16 %v910, %v909
  %v948 = vpack.c.b16 %v912, %v911
  %v949 = vpack.c.b16 %v914, %v913
  %v950 = vpack.c.b16 %v916, %v915
  %v951 = vpack.c.b16 %v918, %v917
  %v952 = vpack.c.b16 %v920, %v919
  %985 = vst [vmem:[%s2] sm:$0xff] %v921
  %986 = vst [vmem:[%s2 + $0x8] sm:$0xff] %v922
  %987 = vst [vmem:[%s2 + $0x10] sm:$0xff] %v923
  %988 = vst [vmem:[%s2 + $0x18] sm:$0xff] %v924
  %989 = vst [vmem:[%s2 + $0x20] sm:$0xff] %v925
  %990 = vst [vmem:[%s2 + $0x28] sm:$0xff] %v926
  %991 = vst [vmem:[%s2 + $0x30] sm:$0xff] %v927
  %992 = vst [vmem:[%s2 + $0x38] sm:$0xff] %v928
  %993 = vst [vmem:[%s2 + $0x40] sm:$0xff] %v929
  %994 = vst [vmem:[%s2 + $0x48] sm:$0xff] %v930
  %995 = vst [vmem:[%s2 + $0x50] sm:$0xff] %v931
  %996 = vst [vmem:[%s2 + $0x58] sm:$0xff] %v932
  %997 = vst [vmem:[%s2 + $0x60] sm:$0xff] %v933
  %998 = vst [vmem:[%s2 + $0x68] sm:$0xff] %v934
  %999 = vst [vmem:[%s2 + $0x70] sm:$0xff] %v935
  %1000 = vst [vmem:[%s2 + $0x78] sm:$0xff] %v936
  %1001 = vst [vmem:[%s2 + $0x80] sm:$0xff] %v937
  %1002 = vst [vmem:[%s2 + $0x88] sm:$0xff] %v938
  %1003 = vst [vmem:[%s2 + $0x90] sm:$0xff] %v939
  %1004 = vst [vmem:[%s2 + $0x98] sm:$0xff] %v940
  %1005 = vst [vmem:[%s2 + $0xa0] sm:$0xff] %v941
  %1006 = vst [vmem:[%s2 + $0xa8] sm:$0xff] %v942
  %1007 = vst [vmem:[%s2 + $0xb0] sm:$0xff] %v943
  %1008 = vst [vmem:[%s2 + $0xb8] sm:$0xff] %v944
  %1009 = vst [vmem:[%s2 + $0xc0] sm:$0xff] %v945
  %1010 = vst [vmem:[%s2 + $0xc8] sm:$0xff] %v946
  %1011 = vst [vmem:[%s2 + $0xd0] sm:$0xff] %v947
  %1012 = vst [vmem:[%s2 + $0xd8] sm:$0xff] %v948
  %1013 = vst [vmem:[%s2 + $0xe0] sm:$0xff] %v949
  %1014 = vst [vmem:[%s2 + $0xe8] sm:$0xff] %v950
  %1015 = vst [vmem:[%s2 + $0xf0] sm:$0xff] %v951
  %1016 = vst [vmem:[%s2 + $0xf8] sm:$0xff] %v952
  // Predicated region
  $region10: #{unet_up_block_forward.6} parent=0 // pred_check
    _
  $region11: #{unet_up_block_forward.6} parent=0 // pred_check_branch
    %1018 = sbr.rel (0) target = $region13
  $region12: #{unet_up_block_forward.6} parent=0 // pred_region
    _
  $region13: #{unet_up_block_forward.6} parent=0 // pred_fallthru
    _
  // Predicated region
  $region14: #{unet_up_block_forward.6} parent=0 // pred_check
    _
  $region15: #{unet_up_block_forward.6} parent=0 // pred_check_branch
    %1020 = sbr.rel (0) target = $region17
  $region16: #{unet_up_block_forward.6} parent=0 // pred_region
    _
  $region17: #{unet_up_block_forward.6} parent=0 // pred_fallthru
    _
  // Predicated region
  $region18: #{unet_up_block_forward.6} parent=0 // pred_check
    _
  $region19: #{unet_up_block_forward.6} parent=0 // pred_check_branch
    %1022 = sbr.rel (0) target = $region21
  $region20: #{unet_up_block_forward.6} parent=0 // pred_region
    _
  $region21: #{unet_up_block_forward.6} parent=0 // pred_fallthru
    _
  // Predicated region
  $region22: #{unet_up_block_forward.6} parent=0 // pred_check
    _
  $region23: #{unet_up_block_forward.6} parent=0 // pred_check_branch
    %1024 = sbr.rel (0) target = $region25
  $region24: #{unet_up_block_forward.6} parent=0 // pred_region
    _
  $region25: #{unet_up_block_forward.6} parent=0 // pred_fallthru
    _
  // Predicated region
  $region26: #{unet_up_block_forward.6} parent=0 // pred_check
    _
  $region27: #{unet_up_block_forward.6} parent=0 // pred_check_branch
    %1026 = sbr.rel (0) target = $region29
  $region28: #{unet_up_block_forward.6} parent=0 // pred_region
    _
  $region29: #{unet_up_block_forward.6} parent=0 // pred_fallthru
    _
  // Predicated region
  $region30: #{unet_up_block_forward.6} parent=0 // pred_check
    _
  $region31: #{unet_up_block_forward.6} parent=0 // pred_check_branch
    %1028 = sbr.rel (0) target = $region33
  $region32: #{unet_up_block_forward.6} parent=0 // pred_region
    _
  $region33: #{unet_up_block_forward.6} parent=0 // pred_fallthru
    _

// kernel: unet_up_block_forward.9
$region0: #{unet_up_block_forward.9}
  #allocation0 [shape = 'u32[]', space=smem, size = 0x4, offset = 0x4, fixed_abs, tag = 'smem constant byte address 0x4 - core index']
  #allocation1 [shape = 'u32[144,128]{1,0:T(1,128)}', space=vmem, size = 0x12000, scoped, tag = 'internal scratch']
  %s0 = inlined_call_operand.vmem [shape: bf16[2,16,16,128], index: 0, kind: input, shape index: {}]
  %s1 = inlined_call_operand.vmem [shape: f32[1,128], index: 1, kind: input, shape index: {}]
  %s2 = inlined_call_operand.vmem [shape: f32[1,128], index: 2, kind: input, shape index: {}]
  %s3 = inlined_call_operand.vmem [shape: bf16[2,16,16,128], index: 3, kind: output, shape index: {}]
  %s4 = sld [smem:[#allocation0]]
  $region45: #{unet_up_block_forward.9} parent=0
    _
  %s6 = ssub.s32 1, %s4
  %s7 = scalar_select 0, %s6, %s4
  loop: start=0, step=1, limit=4
  $region2: #{unet_up_block_forward.9} parent=0 // loop_pre_header
    _
  $region3: #{unet_up_block_forward.9} parent=0 // loop_header
    %s9 = sphi 0, %s13
    %p10 = scmp.ge.s32.totalorder %s9, 4
    %s19 = sphi 0, %s21
    %s22 = sphi 0, %s19
    %s23 = sphi 0, %s22
    %s39 = sphi 0, %s23
    %s43 = sphi 0, %s43
    %s45 = sphi 0, %s43
    %s46 = sphi 0, %s45
    %s60 = sphi 0, %s46
    %s64 = sphi 0, %s64
    %s66 = sphi 0, %s64
    %s67 = sphi 0, %s66
    %s81 = sphi 0, %s67
    %s87 = sphi 0, %s89
    %s90 = sphi 0, %s87
    %s91 = sphi 0, %s90
    %s107 = sphi 0, %s91
  $region4: #{unet_up_block_forward.9} parent=0 // loop_header_branch
    %12 = sbr.rel (%p10) target = $region8
  $region5: #{unet_up_block_forward.9} parent=0 // loop_body
    %s14 = ssub.s32 %s9, 1
    %s15 = ssub.s32 %s9, 2
    %s16 = sadd.s32 %s9, 1
    %s17 = ssub.s32 %s9, %s16
    %p18 = scmp.eq.s32.totalorder %s17, 0
    %s20 = sadd.s32 %s19, 1
    %s21 = scalar_select %p18, %s19, %s20
    %p24 = pneg %p18
    %p25 = scmp.eq.s32.totalorder %s9, 1
    %p26 = por %p24, %p25
    %p27 = scmp.ne.s32.totalorder %s19, %s22
    %p28 = scmp.eq.s32.totalorder %s9, 0
    %p29 = por %p27, %p28
    %p30 = scmp.ne.s32.totalorder %s19, %s22
    %p31 = scmp.eq.s32.totalorder %s14, 1
    %p32 = por %p30, %p31
    %p33 = scmp.ne.s32.totalorder %s22, %s23
    %p34 = scmp.eq.s32.totalorder %s14, 0
    %p35 = por %p33, %p34
    %p36 = scmp.ne.s32.totalorder %s22, %s23
    %p37 = scmp.eq.s32.totalorder %s15, 1
    %p38 = por %p36, %p37
    %p40 = scmp.ne.s32.totalorder %s23, %s39
    %p41 = scmp.eq.s32.totalorder %s15, 0
    %p42 = por %p40, %p41
    %s44 = sadd.s32 %s43, 1
    %p47 = scmp.eq.s32.totalorder %s9, 1
    %p48 = scmp.ne.s32.totalorder %s43, %s45
    %p49 = scmp.eq.s32.totalorder %s9, 0
    %p50 = por %p48, %p49
    %p51 = scmp.ne.s32.totalorder %s43, %s45
    %p52 = scmp.eq.s32.totalorder %s14, 1
    %p53 = por %p51, %p52
    %p54 = scmp.ne.s32.totalorder %s45, %s46
    %p55 = scmp.eq.s32.totalorder %s14, 0
    %p56 = por %p54, %p55
    %p57 = scmp.ne.s32.totalorder %s45, %s46
    %p58 = scmp.eq.s32.totalorder %s15, 1
    %p59 = por %p57, %p58
    %p61 = scmp.ne.s32.totalorder %s46, %s60
    %p62 = scmp.eq.s32.totalorder %s15, 0
    %p63 = por %p61, %p62
    %s65 = sadd.s32 %s64, 1
    %p68 = scmp.eq.s32.totalorder %s9, 1
    %p69 = scmp.ne.s32.totalorder %s64, %s66
    %p70 = scmp.eq.s32.totalorder %s9, 0
    %p71 = por %p69, %p70
    %p72 = scmp.ne.s32.totalorder %s64, %s66
    %p73 = scmp.eq.s32.totalorder %s14, 1
    %p74 = por %p72, %p73
    %p75 = scmp.ne.s32.totalorder %s66, %s67
    %p76 = scmp.eq.s32.totalorder %s14, 0
    %p77 = por %p75, %p76
    %p78 = scmp.ne.s32.totalorder %s66, %s67
    %p79 = scmp.eq.s32.totalorder %s15, 1
    %p80 = por %p78, %p79
    %p82 = scmp.ne.s32.totalorder %s67, %s81
    %p83 = scmp.eq.s32.totalorder %s15, 0
    %p84 = por %p82, %p83
    %s85 = ssub.s32 %s9, %s16
    %p86 = scmp.eq.s32.totalorder %s85, 0
    %s88 = sadd.s32 %s87, 1
    %s89 = scalar_select %p86, %s87, %s88
    %p92 = pneg %p86
    %p93 = scmp.eq.s32.totalorder %s9, 1
    %p94 = por %p92, %p93
    %p95 = scmp.ne.s32.totalorder %s87, %s90
    %p96 = scmp.eq.s32.totalorder %s9, 0
    %p97 = por %p95, %p96
    %p98 = scmp.ne.s32.totalorder %s87, %s90
    %p99 = scmp.eq.s32.totalorder %s14, 1
    %p100 = por %p98, %p99
    %p101 = scmp.ne.s32.totalorder %s90, %s91
    %p102 = scmp.eq.s32.totalorder %s14, 0
    %p103 = por %p101, %p102
    %p104 = scmp.ne.s32.totalorder %s90, %s91
    %p105 = scmp.eq.s32.totalorder %s15, 1
    %p106 = por %p104, %p105
    %p108 = scmp.ne.s32.totalorder %s91, %s107
    %p109 = scmp.eq.s32.totalorder %s15, 0
    %p110 = por %p108, %p109
    %p111 = scmp.le.s32.totalorder 1, %s9
    %p112 = scmp.lt.s32.totalorder %s9, 3
    %p113 = pnand %p111, %p112
    %p114 = pneg %p113
    // Predicated region
    $region9: #{unet_up_block_forward.9} parent=5 // pred_check
      _
    $region10: #{unet_up_block_forward.9} parent=5 // pred_check_branch
      %116 = sbr.rel (%p113) target = $region12
    $region11: #{unet_up_block_forward.9} parent=5 // pred_region
      %s117 = ssub.s32 %s9, 1
      // Predicated region
      $region13: #{unet_up_block_forward.9} parent=11 // pred_check
        %p118 = pneg %p56
      $region14: #{unet_up_block_forward.9} parent=11 // pred_check_branch
        %120 = sbr.rel (%p118) target = $region16
      $region15: #{unet_up_block_forward.9} parent=11 // pred_region
        _
      $region16: #{unet_up_block_forward.9} parent=11 // pred_fallthru
        _
      // Predicated region
      $region17: #{unet_up_block_forward.9} parent=11 // pred_check
        %p121 = pneg %p77
      $region18: #{unet_up_block_forward.9} parent=11 // pred_check_branch
        %123 = sbr.rel (%p121) target = $region20
      $region19: #{unet_up_block_forward.9} parent=11 // pred_region
        _
      $region20: #{unet_up_block_forward.9} parent=11 // pred_fallthru
        _
    $region12: #{unet_up_block_forward.9} parent=5 // pred_fallthru
      _
    %p124 = scmp.lt.s32.totalorder %s9, 2
    // Predicated region
    $region21: #{unet_up_block_forward.9} parent=5 // pred_check
      %p125 = pneg %p124
    $region22: #{unet_up_block_forward.9} parent=5 // pred_check_branch
      %127 = sbr.rel (%p125) target = $region24
    $region23: #{unet_up_block_forward.9} parent=5 // pred_region
      // Predicated region
      $region25: #{unet_up_block_forward.9} parent=23 // pred_check
        %p128 = pneg %p29
      $region26: #{unet_up_block_forward.9} parent=23 // pred_check_branch
        %130 = sbr.rel (%p128) target = $region28
      $region27: #{unet_up_block_forward.9} parent=23 // pred_region
        %p131 = scmp.lt.s32.totalorder %s9, 1
        %s132 = scalar_select %p131, %s9, 1
        %s133 = smul.addr %s132, 32
        %s134 = smul.addr %s133, 4
        %s135 = scalar_lea.vmem %s0, %s134
      $region28: #{unet_up_block_forward.9} parent=23 // pred_fallthru
        _
    $region24: #{unet_up_block_forward.9} parent=5 // pred_fallthru
      _
    %p136 = scmp.le.s32.totalorder 1, %s9
    %p137 = scmp.lt.s32.totalorder %s9, 3
    %p138 = pnand %p136, %p137
    %p139 = pneg %p138
    // Predicated region
    $region29: #{unet_up_block_forward.9} parent=5 // pred_check
      _
    $region30: #{unet_up_block_forward.9} parent=5 // pred_check_branch
      %141 = sbr.rel (%p138) target = $region32
    $region31: #{unet_up_block_forward.9} parent=5 // pred_region
      %s142 = ssub.s32 %s9, 1
      %p143 = scmp.lt.s32.totalorder %s14, 1
      %s144 = scalar_select %p143, %s14, 1
      %s145 = smul.addr %s144, 32
      %s146 = smul.addr %s145, 4
      %s147 = scalar_lea.vmem %s0, %s146
      %p148 = pneg %p35
      %p149 = pneg %p32
      %p150 = pneg %p56
      %p151 = pneg %p53
      %p152 = pneg %p77
      %p153 = pneg %p74
      %p154 = pneg %p103
      %p155 = pneg %p100
      %p156 = scmp.lt.s32.totalorder %s14, 1
      %s157 = scalar_select %p156, %s14, 1
      %s158 = smul.addr %s157, 32
      %s159 = smul.addr %s158, 4
      %s160 = scalar_lea.vmem %s3, %s159
      %p161 = scmp.lt.s32.totalorder %s14, 1
      %s162 = scalar_select %p161, %s14, 1
      %s163 = smul.addr %s162, 32
      %s164 = smul.addr %s163, 4
      %s165 = scalar_lea.vmem %s0, %s164
      %p166 = scmp.lt.s32.totalorder %s14, 1
      %s167 = scalar_select %p166, %s14, 1
      %s168 = smul.addr %s167, 32
      %s169 = smul.addr %s168, 4
      %s170 = scalar_lea.vmem %s3, %s169
      %v171 = vld [vmem:[%s165] sm:$0xf]
      %v172 = vld [vmem:[%s165 + $0x4] sm:$0xf]
      %v173 = vld [vmem:[%s165 + $0x8] sm:$0xf]
      %v174 = vld [vmem:[%s165 + $0xc] sm:$0xf]
      %v175 = vld [vmem:[%s165 + $0x10] sm:$0xf]
      %v176 = vld [vmem:[%s165 + $0x14] sm:$0xf]
      %v177 = vld [vmem:[%s165 + $0x18] sm:$0xf]
      %v178 = vld [vmem:[%s165 + $0x1c] sm:$0xf]
      %v179 = vld [vmem:[%s165 + $0x20] sm:$0xf]
      %v180 = vld [vmem:[%s165 + $0x24] sm:$0xf]
      %v181 = vld [vmem:[%s165 + $0x28] sm:$0xf]
      %v182 = vld [vmem:[%s165 + $0x2c] sm:$0xf]
      %v183 = vld [vmem:[%s165 + $0x30] sm:$0xf]
      %v184 = vld [vmem:[%s165 + $0x34] sm:$0xf]
      %v185 = vld [vmem:[%s165 + $0x38] sm:$0xf]
      %v186 = vld [vmem:[%s165 + $0x3c] sm:$0xf]
      %v187 = vld [vmem:[%s165 + $0x40] sm:$0xf]
      %v188 = vld [vmem:[%s165 + $0x44] sm:$0xf]
      %v189 = vld [vmem:[%s165 + $0x48] sm:$0xf]
      %v190 = vld [vmem:[%s165 + $0x4c] sm:$0xf]
      %v191 = vld [vmem:[%s165 + $0x50] sm:$0xf]
      %v192 = vld [vmem:[%s165 + $0x54] sm:$0xf]
      %v193 = vld [vmem:[%s165 + $0x58] sm:$0xf]
      %v194 = vld [vmem:[%s165 + $0x5c] sm:$0xf]
      %v195 = vld [vmem:[%s165 + $0x60] sm:$0xf]
      %v196 = vld [vmem:[%s165 + $0x64] sm:$0xf]
      %v197 = vld [vmem:[%s165 + $0x68] sm:$0xf]
      %v198 = vld [vmem:[%s165 + $0x6c] sm:$0xf]
      %v199 = vld [vmem:[%s165 + $0x70] sm:$0xf]
      %v200 = vld [vmem:[%s165 + $0x74] sm:$0xf]
      %v201 = vld [vmem:[%s165 + $0x78] sm:$0xf]
      %v202 = vld [vmem:[%s165 + $0x7c] sm:$0xf]
      %v203 = vunpack.c.l.bf16 %v171
      %v204 = vunpack.c.l.bf16 %v172
      %v205 = vunpack.c.l.bf16 %v173
      %v206 = vunpack.c.l.bf16 %v174
      %v207 = vunpack.c.l.bf16 %v175
      %v208 = vunpack.c.l.bf16 %v176
      %v209 = vunpack.c.l.bf16 %v177
      %v210 = vunpack.c.l.bf16 %v178
      %v211 = vunpack.c.l.bf16 %v179
      %v212 = vunpack.c.l.bf16 %v180
      %v213 = vunpack.c.l.bf16 %v181
      %v214 = vunpack.c.l.bf16 %v182
      %v215 = vunpack.c.l.bf16 %v183
      %v216 = vunpack.c.l.bf16 %v184
      %v217 = vunpack.c.l.bf16 %v185
      %v218 = vunpack.c.l.bf16 %v186
      %v219 = vunpack.c.l.bf16 %v187
      %v220 = vunpack.c.l.bf16 %v188
      %v221 = vunpack.c.l.bf16 %v189
      %v222 = vunpack.c.l.bf16 %v190
      %v223 = vunpack.c.l.bf16 %v191
      %v224 = vunpack.c.l.bf16 %v192
      %v225 = vunpack.c.l.bf16 %v193
      %v226 = vunpack.c.l.bf16 %v194
      %v227 = vunpack.c.l.bf16 %v195
      %v228 = vunpack.c.l.bf16 %v196
      %v229 = vunpack.c.l.bf16 %v197
      %v230 = vunpack.c.l.bf16 %v198
      %v231 = vunpack.c.l.bf16 %v199
      %v232 = vunpack.c.l.bf16 %v200
      %v233 = vunpack.c.l.bf16 %v201
      %v234 = vunpack.c.l.bf16 %v202
      %v235 = vld [vmem:[%s1] sm:$0x1]
      %v237 = vlaneseq
      %v238 = vshrl.u32 %v237, 7
      %v239 = vsub.s32 0, %v238
      %v240 = vrot.slane %v235, %v239
      %v242 = vmul.f32 %v203, %v240
      %v243 = vmul.f32 %v204, %v240
      %v244 = vmul.f32 %v205, %v240
      %v245 = vmul.f32 %v206, %v240
      %v246 = vmul.f32 %v207, %v240
      %v247 = vmul.f32 %v208, %v240
      %v248 = vmul.f32 %v209, %v240
      %v249 = vmul.f32 %v210, %v240
      %v250 = vmul.f32 %v211, %v240
      %v251 = vmul.f32 %v212, %v240
      %v252 = vmul.f32 %v213, %v240
      %v253 = vmul.f32 %v214, %v240
      %v254 = vmul.f32 %v215, %v240
      %v255 = vmul.f32 %v216, %v240
      %v256 = vmul.f32 %v217, %v240
      %v257 = vmul.f32 %v218, %v240
      %v258 = vmul.f32 %v219, %v240
      %v259 = vmul.f32 %v220, %v240
      %v260 = vmul.f32 %v221, %v240
      %v261 = vmul.f32 %v222, %v240
      %v262 = vmul.f32 %v223, %v240
      %v263 = vmul.f32 %v224, %v240
      %v264 = vmul.f32 %v225, %v240
      %v265 = vmul.f32 %v226, %v240
      %v266 = vmul.f32 %v227, %v240
      %v267 = vmul.f32 %v228, %v240
      %v268 = vmul.f32 %v229, %v240
      %v269 = vmul.f32 %v230, %v240
      %v270 = vmul.f32 %v231, %v240
      %v271 = vmul.f32 %v232, %v240
      %v272 = vmul.f32 %v233, %v240
      %v273 = vmul.f32 %v234, %v240
      %v274 = vld [vmem:[%s2] sm:$0x1]
      %v276 = vlaneseq
      %v277 = vshrl.u32 %v276, 7
      %v278 = vsub.s32 0, %v277
      %v279 = vrot.slane %v274, %v278
      %v281 = vadd.f32 %v242, %v279
      %v282 = vadd.f32 %v243, %v279
      %v283 = vadd.f32 %v244, %v279
      %v284 = vadd.f32 %v245, %v279
      %v285 = vadd.f32 %v246, %v279
      %v286 = vadd.f32 %v247, %v279
      %v287 = vadd.f32 %v248, %v279
      %v288 = vadd.f32 %v249, %v279
      %v289 = vadd.f32 %v250, %v279
      %v290 = vadd.f32 %v251, %v279
      %v291 = vadd.f32 %v252, %v279
      %v292 = vadd.f32 %v253, %v279
      %v293 = vadd.f32 %v254, %v279
      %v294 = vadd.f32 %v255, %v279
      %v295 = vadd.f32 %v256, %v279
      %v296 = vadd.f32 %v257, %v279
      %v297 = vadd.f32 %v258, %v279
      %v298 = vadd.f32 %v259, %v279
      %v299 = vadd.f32 %v260, %v279
      %v300 = vadd.f32 %v261, %v279
      %v301 = vadd.f32 %v262, %v279
      %v302 = vadd.f32 %v263, %v279
      %v303 = vadd.f32 %v264, %v279
      %v304 = vadd.f32 %v265, %v279
      %v305 = vadd.f32 %v266, %v279
      %v306 = vadd.f32 %v267, %v279
      %v307 = vadd.f32 %v268, %v279
      %v308 = vadd.f32 %v269, %v279
      %v309 = vadd.f32 %v270, %v279
      %v310 = vadd.f32 %v271, %v279
      %v311 = vadd.f32 %v272, %v279
      %v312 = vadd.f32 %v273, %v279
      %v313 = vmax.f32 %v281, 0.0
      %v314 = vmax.f32 %v282, 0.0
      %v315 = vmax.f32 %v283, 0.0
      %v316 = vmax.f32 %v284, 0.0
      %v317 = vmax.f32 %v285, 0.0
      %v318 = vmax.f32 %v286, 0.0
      %v319 = vmax.f32 %v287, 0.0
      %v320 = vmax.f32 %v288, 0.0
      %v321 = vmax.f32 %v289, 0.0
      %v322 = vmax.f32 %v290, 0.0
      %v323 = vmax.f32 %v291, 0.0
      %v324 = vmax.f32 %v292, 0.0
      %v325 = vmax.f32 %v293, 0.0
      %v326 = vmax.f32 %v294, 0.0
      %v327 = vmax.f32 %v295, 0.0
      %v328 = vmax.f32 %v296, 0.0
      %v329 = vmax.f32 %v297, 0.0
      %v330 = vmax.f32 %v298, 0.0
      %v331 = vmax.f32 %v299, 0.0
      %v332 = vmax.f32 %v300, 0.0
      %v333 = vmax.f32 %v301, 0.0
      %v334 = vmax.f32 %v302, 0.0
      %v335 = vmax.f32 %v303, 0.0
      %v336 = vmax.f32 %v304, 0.0
      %v337 = vmax.f32 %v305, 0.0
      %v338 = vmax.f32 %v306, 0.0
      %v339 = vmax.f32 %v307, 0.0
      %v340 = vmax.f32 %v308, 0.0
      %v341 = vmax.f32 %v309, 0.0
      %v342 = vmax.f32 %v310, 0.0
      %v343 = vmax.f32 %v311, 0.0
      %v344 = vmax.f32 %v312, 0.0
      %v345 = vpack.c.bf16 %v314, %v313
      %v346 = vpack.c.bf16 %v316, %v315
      %v347 = vpack.c.bf16 %v318, %v317
      %v348 = vpack.c.bf16 %v320, %v319
      %v349 = vpack.c.bf16 %v322, %v321
      %v350 = vpack.c.bf16 %v324, %v323
      %v351 = vpack.c.bf16 %v326, %v325
      %v352 = vpack.c.bf16 %v328, %v327
      %v353 = vpack.c.bf16 %v330, %v329
      %v354 = vpack.c.bf16 %v332, %v331
      %v355 = vpack.c.bf16 %v334, %v333
      %v356 = vpack.c.bf16 %v336, %v335
      %v357 = vpack.c.bf16 %v338, %v337
      %v358 = vpack.c.bf16 %v340, %v339
      %v359 = vpack.c.bf16 %v342, %v341
      %v360 = vpack.c.bf16 %v344, %v343
      %v377 = vunpack.c.l.b16 %v345
      %v378 = vunpack.c.h.b16 %v345
      %v379 = vunpack.c.l.b16 %v346
      %v380 = vunpack.c.h.b16 %v346
      %v381 = vunpack.c.l.b16 %v347
      %v382 = vunpack.c.h.b16 %v347
      %v383 = vunpack.c.l.b16 %v348
      %v384 = vunpack.c.h.b16 %v348
      %v385 = vunpack.c.l.b16 %v349
      %v386 = vunpack.c.h.b16 %v349
      %v387 = vunpack.c.l.b16 %v350
      %v388 = vunpack.c.h.b16 %v350
      %v389 = vunpack.c.l.b16 %v351
      %v390 = vunpack.c.h.b16 %v351
      %v391 = vunpack.c.l.b16 %v352
      %v392 = vunpack.c.h.b16 %v352
      %v393 = vunpack.c.l.b16 %v353
      %v394 = vunpack.c.h.b16 %v353
      %v395 = vunpack.c.l.b16 %v354
      %v396 = vunpack.c.h.b16 %v354
      %v397 = vunpack.c.l.b16 %v355
      %v398 = vunpack.c.h.b16 %v355
      %v399 = vunpack.c.l.b16 %v356
      %v400 = vunpack.c.h.b16 %v356
      %v401 = vunpack.c.l.b16 %v357
      %v402 = vunpack.c.h.b16 %v357
      %v403 = vunpack.c.l.b16 %v358
      %v404 = vunpack.c.h.b16 %v358
      %v405 = vunpack.c.l.b16 %v359
      %v406 = vunpack.c.h.b16 %v359
      %v407 = vunpack.c.l.b16 %v360
      %v408 = vunpack.c.h.b16 %v360
      %v409 = vpack.c.b16 %v377, %v377
      %v410 = vpack.c.b16 %v378, %v378
      %v411 = vpack.c.b16 %v379, %v379
      %v412 = vpack.c.b16 %v380, %v380
      %v413 = vpack.c.b16 %v381, %v381
      %v414 = vpack.c.b16 %v382, %v382
      %v415 = vpack.c.b16 %v383, %v383
      %v416 = vpack.c.b16 %v384, %v384
      %v417 = vpack.c.b16 %v385, %v385
      %v418 = vpack.c.b16 %v386, %v386
      %v419 = vpack.c.b16 %v387, %v387
      %v420 = vpack.c.b16 %v388, %v388
      %v421 = vpack.c.b16 %v389, %v389
      %v422 = vpack.c.b16 %v390, %v390
      %v423 = vpack.c.b16 %v391, %v391
      %v424 = vpack.c.b16 %v392, %v392
      %v425 = vpack.c.b16 %v393, %v393
      %v426 = vpack.c.b16 %v394, %v394
      %v427 = vpack.c.b16 %v395, %v395
      %v428 = vpack.c.b16 %v396, %v396
      %v429 = vpack.c.b16 %v397, %v397
      %v430 = vpack.c.b16 %v398, %v398
      %v431 = vpack.c.b16 %v399, %v399
      %v432 = vpack.c.b16 %v400, %v400
      %v433 = vpack.c.b16 %v401, %v401
      %v434 = vpack.c.b16 %v402, %v402
      %v435 = vpack.c.b16 %v403, %v403
      %v436 = vpack.c.b16 %v404, %v404
      %v437 = vpack.c.b16 %v405, %v405
      %v438 = vpack.c.b16 %v406, %v406
      %v439 = vpack.c.b16 %v407, %v407
      %v440 = vpack.c.b16 %v408, %v408
      %473 = vst [vmem:[%s170] sm:$0xf] %v409
      %474 = vst [vmem:[%s170 + $0x4] sm:$0xf] %v410
      %475 = vst [vmem:[%s170 + $0x8] sm:$0xf] %v411
      %476 = vst [vmem:[%s170 + $0xc] sm:$0xf] %v412
      %477 = vst [vmem:[%s170 + $0x10] sm:$0xf] %v413
      %478 = vst [vmem:[%s170 + $0x14] sm:$0xf] %v414
      %479 = vst [vmem:[%s170 + $0x18] sm:$0xf] %v415
      %480 = vst [vmem:[%s170 + $0x1c] sm:$0xf] %v416
      %481 = vst [vmem:[%s170 + $0x20] sm:$0xf] %v417
      %482 = vst [vmem:[%s170 + $0x24] sm:$0xf] %v418
      %483 = vst [vmem:[%s170 + $0x28] sm:$0xf] %v419
      %484 = vst [vmem:[%s170 + $0x2c] sm:$0xf] %v420
      %485 = vst [vmem:[%s170 + $0x30] sm:$0xf] %v421
      %486 = vst [vmem:[%s170 + $0x34] sm:$0xf] %v422
      %487 = vst [vmem:[%s170 + $0x38] sm:$0xf] %v423
      %488 = vst [vmem:[%s170 + $0x3c] sm:$0xf] %v424
      %489 = vst [vmem:[%s170 + $0x40] sm:$0xf] %v425
      %490 = vst [vmem:[%s170 + $0x44] sm:$0xf] %v426
      %491 = vst [vmem:[%s170 + $0x48] sm:$0xf] %v427
      %492 = vst [vmem:[%s170 + $0x4c] sm:$0xf] %v428
      %493 = vst [vmem:[%s170 + $0x50] sm:$0xf] %v429
      %494 = vst [vmem:[%s170 + $0x54] sm:$0xf] %v430
      %495 = vst [vmem:[%s170 + $0x58] sm:$0xf] %v431
      %496 = vst [vmem:[%s170 + $0x5c] sm:$0xf] %v432
      %497 = vst [vmem:[%s170 + $0x60] sm:$0xf] %v433
      %498 = vst [vmem:[%s170 + $0x64] sm:$0xf] %v434
      %499 = vst [vmem:[%s170 + $0x68] sm:$0xf] %v435
      %500 = vst [vmem:[%s170 + $0x6c] sm:$0xf] %v436
      %501 = vst [vmem:[%s170 + $0x70] sm:$0xf] %v437
      %502 = vst [vmem:[%s170 + $0x74] sm:$0xf] %v438
      %503 = vst [vmem:[%s170 + $0x78] sm:$0xf] %v439
      %504 = vst [vmem:[%s170 + $0x7c] sm:$0xf] %v440
      %p505 = scmp.lt.s32.totalorder %s14, 1
      %s506 = scalar_select %p505, %s14, 1
      %s507 = smul.addr %s506, 32
      %s508 = smul.addr %s507, 4
      %s509 = scalar_lea.vmem %s3, %s508
      // Predicated region
      $region33: #{unet_up_block_forward.9} parent=31 // pred_check
        %p510 = pneg %p100
      $region34: #{unet_up_block_forward.9} parent=31 // pred_check_branch
        %512 = sbr.rel (%p510) target = $region36
      $region35: #{unet_up_block_forward.9} parent=31 // pred_region
        _
      $region36: #{unet_up_block_forward.9} parent=31 // pred_fallthru
        _
    $region32: #{unet_up_block_forward.9} parent=5 // pred_fallthru
      _
    %p513 = scmp.le.s32.totalorder 2, %s9
    // Predicated region
    $region37: #{unet_up_block_forward.9} parent=5 // pred_check
      %p514 = pneg %p513
    $region38: #{unet_up_block_forward.9} parent=5 // pred_check_branch
      %516 = sbr.rel (%p514) target = $region40
    $region39: #{unet_up_block_forward.9} parent=5 // pred_region
      %s517 = ssub.s32 %s9, 2
      // Predicated region
      $region41: #{unet_up_block_forward.9} parent=39 // pred_check
        %p518 = pneg %p106
      $region42: #{unet_up_block_forward.9} parent=39 // pred_check_branch
        %520 = sbr.rel (%p518) target = $region44
      $region43: #{unet_up_block_forward.9} parent=39 // pred_region
        %p521 = scmp.lt.s32.totalorder %s15, 1
        %s522 = scalar_select %p521, %s15, 1
        %s523 = smul.addr %s522, 32
        %s524 = smul.addr %s523, 4
        %s525 = scalar_lea.vmem %s3, %s524
      $region44: #{unet_up_block_forward.9} parent=39 // pred_fallthru
        _
    $region40: #{unet_up_block_forward.9} parent=5 // pred_fallthru
      _
  $region6: #{unet_up_block_forward.9} parent=0 // loop_footer
    %s13 = sadd.s32 1, %s9
  $region7: #{unet_up_block_forward.9} parent=0 // loop_footer_branch
    %8 = sbr.rel target = $region3
  $region8: #{unet_up_block_forward.9} parent=0 // loop_exit
    _

// kernel: unet_up_block_forward.11
$region0: #{unet_up_block_forward.11}
  #allocation0 [shape = 'u32[]', space=smem, size = 0x4, offset = 0x4, fixed_abs, tag = 'smem constant byte address 0x4 - core index']
  #allocation1 [shape = 'u32[144,128]{1,0:T(1,128)}', space=vmem, size = 0x12000, scoped, tag = 'internal scratch']
  %s0 = inlined_call_operand.vmem [shape: bf16[2,16,16,128], index: 0, kind: input, shape index: {}]
  %s1 = inlined_call_operand.vmem [shape: f32[1,128], index: 1, kind: input, shape index: {}]
  %s2 = inlined_call_operand.vmem [shape: f32[1,128], index: 2, kind: input, shape index: {}]
  %s3 = inlined_call_operand.vmem [shape: f32[2,16,16,128], index: 3, kind: output, shape index: {}]
  %s4 = sld [smem:[#allocation0]]
  $region45: #{unet_up_block_forward.11} parent=0
    _
  %s6 = ssub.s32 1, %s4
  %s7 = scalar_select 0, %s6, %s4
  loop: start=0, step=1, limit=4
  $region2: #{unet_up_block_forward.11} parent=0 // loop_pre_header
    _
  $region3: #{unet_up_block_forward.11} parent=0 // loop_header
    %s9 = sphi 0, %s13
    %p10 = scmp.ge.s32.totalorder %s9, 4
    %s19 = sphi 0, %s21
    %s22 = sphi 0, %s19
    %s23 = sphi 0, %s22
    %s39 = sphi 0, %s23
    %s43 = sphi 0, %s43
    %s45 = sphi 0, %s43
    %s46 = sphi 0, %s45
    %s60 = sphi 0, %s46
    %s64 = sphi 0, %s64
    %s66 = sphi 0, %s64
    %s67 = sphi 0, %s66
    %s81 = sphi 0, %s67
    %s87 = sphi 0, %s89
    %s90 = sphi 0, %s87
    %s91 = sphi 0, %s90
    %s107 = sphi 0, %s91
  $region4: #{unet_up_block_forward.11} parent=0 // loop_header_branch
    %12 = sbr.rel (%p10) target = $region8
  $region5: #{unet_up_block_forward.11} parent=0 // loop_body
    %s14 = ssub.s32 %s9, 1
    %s15 = ssub.s32 %s9, 2
    %s16 = sadd.s32 %s9, 1
    %s17 = ssub.s32 %s9, %s16
    %p18 = scmp.eq.s32.totalorder %s17, 0
    %s20 = sadd.s32 %s19, 1
    %s21 = scalar_select %p18, %s19, %s20
    %p24 = pneg %p18
    %p25 = scmp.eq.s32.totalorder %s9, 1
    %p26 = por %p24, %p25
    %p27 = scmp.ne.s32.totalorder %s19, %s22
    %p28 = scmp.eq.s32.totalorder %s9, 0
    %p29 = por %p27, %p28
    %p30 = scmp.ne.s32.totalorder %s19, %s22
    %p31 = scmp.eq.s32.totalorder %s14, 1
    %p32 = por %p30, %p31
    %p33 = scmp.ne.s32.totalorder %s22, %s23
    %p34 = scmp.eq.s32.totalorder %s14, 0
    %p35 = por %p33, %p34
    %p36 = scmp.ne.s32.totalorder %s22, %s23
    %p37 = scmp.eq.s32.totalorder %s15, 1
    %p38 = por %p36, %p37
    %p40 = scmp.ne.s32.totalorder %s23, %s39
    %p41 = scmp.eq.s32.totalorder %s15, 0
    %p42 = por %p40, %p41
    %s44 = sadd.s32 %s43, 1
    %p47 = scmp.eq.s32.totalorder %s9, 1
    %p48 = scmp.ne.s32.totalorder %s43, %s45
    %p49 = scmp.eq.s32.totalorder %s9, 0
    %p50 = por %p48, %p49
    %p51 = scmp.ne.s32.totalorder %s43, %s45
    %p52 = scmp.eq.s32.totalorder %s14, 1
    %p53 = por %p51, %p52
    %p54 = scmp.ne.s32.totalorder %s45, %s46
    %p55 = scmp.eq.s32.totalorder %s14, 0
    %p56 = por %p54, %p55
    %p57 = scmp.ne.s32.totalorder %s45, %s46
    %p58 = scmp.eq.s32.totalorder %s15, 1
    %p59 = por %p57, %p58
    %p61 = scmp.ne.s32.totalorder %s46, %s60
    %p62 = scmp.eq.s32.totalorder %s15, 0
    %p63 = por %p61, %p62
    %s65 = sadd.s32 %s64, 1
    %p68 = scmp.eq.s32.totalorder %s9, 1
    %p69 = scmp.ne.s32.totalorder %s64, %s66
    %p70 = scmp.eq.s32.totalorder %s9, 0
    %p71 = por %p69, %p70
    %p72 = scmp.ne.s32.totalorder %s64, %s66
    %p73 = scmp.eq.s32.totalorder %s14, 1
    %p74 = por %p72, %p73
    %p75 = scmp.ne.s32.totalorder %s66, %s67
    %p76 = scmp.eq.s32.totalorder %s14, 0
    %p77 = por %p75, %p76
    %p78 = scmp.ne.s32.totalorder %s66, %s67
    %p79 = scmp.eq.s32.totalorder %s15, 1
    %p80 = por %p78, %p79
    %p82 = scmp.ne.s32.totalorder %s67, %s81
    %p83 = scmp.eq.s32.totalorder %s15, 0
    %p84 = por %p82, %p83
    %s85 = ssub.s32 %s9, %s16
    %p86 = scmp.eq.s32.totalorder %s85, 0
    %s88 = sadd.s32 %s87, 1
    %s89 = scalar_select %p86, %s87, %s88
    %p92 = pneg %p86
    %p93 = scmp.eq.s32.totalorder %s9, 1
    %p94 = por %p92, %p93
    %p95 = scmp.ne.s32.totalorder %s87, %s90
    %p96 = scmp.eq.s32.totalorder %s9, 0
    %p97 = por %p95, %p96
    %p98 = scmp.ne.s32.totalorder %s87, %s90
    %p99 = scmp.eq.s32.totalorder %s14, 1
    %p100 = por %p98, %p99
    %p101 = scmp.ne.s32.totalorder %s90, %s91
    %p102 = scmp.eq.s32.totalorder %s14, 0
    %p103 = por %p101, %p102
    %p104 = scmp.ne.s32.totalorder %s90, %s91
    %p105 = scmp.eq.s32.totalorder %s15, 1
    %p106 = por %p104, %p105
    %p108 = scmp.ne.s32.totalorder %s91, %s107
    %p109 = scmp.eq.s32.totalorder %s15, 0
    %p110 = por %p108, %p109
    %p111 = scmp.le.s32.totalorder 1, %s9
    %p112 = scmp.lt.s32.totalorder %s9, 3
    %p113 = pnand %p111, %p112
    %p114 = pneg %p113
    // Predicated region
    $region9: #{unet_up_block_forward.11} parent=5 // pred_check
      _
    $region10: #{unet_up_block_forward.11} parent=5 // pred_check_branch
      %116 = sbr.rel (%p113) target = $region12
    $region11: #{unet_up_block_forward.11} parent=5 // pred_region
      %s117 = ssub.s32 %s9, 1
      // Predicated region
      $region13: #{unet_up_block_forward.11} parent=11 // pred_check
        %p118 = pneg %p56
      $region14: #{unet_up_block_forward.11} parent=11 // pred_check_branch
        %120 = sbr.rel (%p118) target = $region16
      $region15: #{unet_up_block_forward.11} parent=11 // pred_region
        _
      $region16: #{unet_up_block_forward.11} parent=11 // pred_fallthru
        _
      // Predicated region
      $region17: #{unet_up_block_forward.11} parent=11 // pred_check
        %p121 = pneg %p77
      $region18: #{unet_up_block_forward.11} parent=11 // pred_check_branch
        %123 = sbr.rel (%p121) target = $region20
      $region19: #{unet_up_block_forward.11} parent=11 // pred_region
        _
      $region20: #{unet_up_block_forward.11} parent=11 // pred_fallthru
        _
    $region12: #{unet_up_block_forward.11} parent=5 // pred_fallthru
      _
    %p124 = scmp.lt.s32.totalorder %s9, 2
    // Predicated region
    $region21: #{unet_up_block_forward.11} parent=5 // pred_check
      %p125 = pneg %p124
    $region22: #{unet_up_block_forward.11} parent=5 // pred_check_branch
      %127 = sbr.rel (%p125) target = $region24
    $region23: #{unet_up_block_forward.11} parent=5 // pred_region
      // Predicated region
      $region25: #{unet_up_block_forward.11} parent=23 // pred_check
        %p128 = pneg %p29
      $region26: #{unet_up_block_forward.11} parent=23 // pred_check_branch
        %130 = sbr.rel (%p128) target = $region28
      $region27: #{unet_up_block_forward.11} parent=23 // pred_region
        %p131 = scmp.lt.s32.totalorder %s9, 1
        %s132 = scalar_select %p131, %s9, 1
        %s133 = smul.addr %s132, 32
        %s134 = smul.addr %s133, 4
        %s135 = scalar_lea.vmem %s0, %s134
      $region28: #{unet_up_block_forward.11} parent=23 // pred_fallthru
        _
    $region24: #{unet_up_block_forward.11} parent=5 // pred_fallthru
      _
    %p136 = scmp.le.s32.totalorder 1, %s9
    %p137 = scmp.lt.s32.totalorder %s9, 3
    %p138 = pnand %p136, %p137
    %p139 = pneg %p138
    // Predicated region
    $region29: #{unet_up_block_forward.11} parent=5 // pred_check
      _
    $region30: #{unet_up_block_forward.11} parent=5 // pred_check_branch
      %141 = sbr.rel (%p138) target = $region32
    $region31: #{unet_up_block_forward.11} parent=5 // pred_region
      %s142 = ssub.s32 %s9, 1
      %p143 = scmp.lt.s32.totalorder %s14, 1
      %s144 = scalar_select %p143, %s14, 1
      %s145 = smul.addr %s144, 32
      %s146 = smul.addr %s145, 4
      %s147 = scalar_lea.vmem %s0, %s146
      %p148 = pneg %p35
      %p149 = pneg %p32
      %p150 = pneg %p56
      %p151 = pneg %p53
      %p152 = pneg %p77
      %p153 = pneg %p74
      %p154 = pneg %p103
      %p155 = pneg %p100
      %p156 = scmp.lt.s32.totalorder %s14, 1
      %s157 = scalar_select %p156, %s14, 1
      %s158 = smul.addr %s157, 32
      %s159 = smul.addr %s158, 8
      %s160 = scalar_lea.vmem %s3, %s159
      %p161 = scmp.lt.s32.totalorder %s14, 1
      %s162 = scalar_select %p161, %s14, 1
      %s163 = smul.addr %s162, 32
      %s164 = smul.addr %s163, 4
      %s165 = scalar_lea.vmem %s0, %s164
      %p166 = scmp.lt.s32.totalorder %s14, 1
      %s167 = scalar_select %p166, %s14, 1
      %s168 = smul.addr %s167, 32
      %s169 = smul.addr %s168, 8
      %s170 = scalar_lea.vmem %s3, %s169
      %v171 = vld [vmem:[%s165] sm:$0xf]
      %v172 = vld [vmem:[%s165 + $0x4] sm:$0xf]
      %v173 = vld [vmem:[%s165 + $0x8] sm:$0xf]
      %v174 = vld [vmem:[%s165 + $0xc] sm:$0xf]
      %v175 = vld [vmem:[%s165 + $0x10] sm:$0xf]
      %v176 = vld [vmem:[%s165 + $0x14] sm:$0xf]
      %v177 = vld [vmem:[%s165 + $0x18] sm:$0xf]
      %v178 = vld [vmem:[%s165 + $0x1c] sm:$0xf]
      %v179 = vld [vmem:[%s165 + $0x20] sm:$0xf]
      %v180 = vld [vmem:[%s165 + $0x24] sm:$0xf]
      %v181 = vld [vmem:[%s165 + $0x28] sm:$0xf]
      %v182 = vld [vmem:[%s165 + $0x2c] sm:$0xf]
      %v183 = vld [vmem:[%s165 + $0x30] sm:$0xf]
      %v184 = vld [vmem:[%s165 + $0x34] sm:$0xf]
      %v185 = vld [vmem:[%s165 + $0x38] sm:$0xf]
      %v186 = vld [vmem:[%s165 + $0x3c] sm:$0xf]
      %v187 = vld [vmem:[%s165 + $0x40] sm:$0xf]
      %v188 = vld [vmem:[%s165 + $0x44] sm:$0xf]
      %v189 = vld [vmem:[%s165 + $0x48] sm:$0xf]
      %v190 = vld [vmem:[%s165 + $0x4c] sm:$0xf]
      %v191 = vld [vmem:[%s165 + $0x50] sm:$0xf]
      %v192 = vld [vmem:[%s165 + $0x54] sm:$0xf]
      %v193 = vld [vmem:[%s165 + $0x58] sm:$0xf]
      %v194 = vld [vmem:[%s165 + $0x5c] sm:$0xf]
      %v195 = vld [vmem:[%s165 + $0x60] sm:$0xf]
      %v196 = vld [vmem:[%s165 + $0x64] sm:$0xf]
      %v197 = vld [vmem:[%s165 + $0x68] sm:$0xf]
      %v198 = vld [vmem:[%s165 + $0x6c] sm:$0xf]
      %v199 = vld [vmem:[%s165 + $0x70] sm:$0xf]
      %v200 = vld [vmem:[%s165 + $0x74] sm:$0xf]
      %v201 = vld [vmem:[%s165 + $0x78] sm:$0xf]
      %v202 = vld [vmem:[%s165 + $0x7c] sm:$0xf]
      %v203 = vunpack.c.l.bf16 %v171
      %v204 = vunpack.c.l.bf16 %v172
      %v205 = vunpack.c.l.bf16 %v173
      %v206 = vunpack.c.l.bf16 %v174
      %v207 = vunpack.c.l.bf16 %v175
      %v208 = vunpack.c.l.bf16 %v176
      %v209 = vunpack.c.l.bf16 %v177
      %v210 = vunpack.c.l.bf16 %v178
      %v211 = vunpack.c.l.bf16 %v179
      %v212 = vunpack.c.l.bf16 %v180
      %v213 = vunpack.c.l.bf16 %v181
      %v214 = vunpack.c.l.bf16 %v182
      %v215 = vunpack.c.l.bf16 %v183
      %v216 = vunpack.c.l.bf16 %v184
      %v217 = vunpack.c.l.bf16 %v185
      %v218 = vunpack.c.l.bf16 %v186
      %v219 = vunpack.c.l.bf16 %v187
      %v220 = vunpack.c.l.bf16 %v188
      %v221 = vunpack.c.l.bf16 %v189
      %v222 = vunpack.c.l.bf16 %v190
      %v223 = vunpack.c.l.bf16 %v191
      %v224 = vunpack.c.l.bf16 %v192
      %v225 = vunpack.c.l.bf16 %v193
      %v226 = vunpack.c.l.bf16 %v194
      %v227 = vunpack.c.l.bf16 %v195
      %v228 = vunpack.c.l.bf16 %v196
      %v229 = vunpack.c.l.bf16 %v197
      %v230 = vunpack.c.l.bf16 %v198
      %v231 = vunpack.c.l.bf16 %v199
      %v232 = vunpack.c.l.bf16 %v200
      %v233 = vunpack.c.l.bf16 %v201
      %v234 = vunpack.c.l.bf16 %v202
      %v235 = vld [vmem:[%s1] sm:$0x1]
      %v237 = vlaneseq
      %v238 = vshrl.u32 %v237, 7
      %v239 = vsub.s32 0, %v238
      %v240 = vrot.slane %v235, %v239
      %v242 = vmul.f32 %v203, %v240
      %v243 = vmul.f32 %v204, %v240
      %v244 = vmul.f32 %v205, %v240
      %v245 = vmul.f32 %v206, %v240
      %v246 = vmul.f32 %v207, %v240
      %v247 = vmul.f32 %v208, %v240
      %v248 = vmul.f32 %v209, %v240
      %v249 = vmul.f32 %v210, %v240
      %v250 = vmul.f32 %v211, %v240
      %v251 = vmul.f32 %v212, %v240
      %v252 = vmul.f32 %v213, %v240
      %v253 = vmul.f32 %v214, %v240
      %v254 = vmul.f32 %v215, %v240
      %v255 = vmul.f32 %v216, %v240
      %v256 = vmul.f32 %v217, %v240
      %v257 = vmul.f32 %v218, %v240
      %v258 = vmul.f32 %v219, %v240
      %v259 = vmul.f32 %v220, %v240
      %v260 = vmul.f32 %v221, %v240
      %v261 = vmul.f32 %v222, %v240
      %v262 = vmul.f32 %v223, %v240
      %v263 = vmul.f32 %v224, %v240
      %v264 = vmul.f32 %v225, %v240
      %v265 = vmul.f32 %v226, %v240
      %v266 = vmul.f32 %v227, %v240
      %v267 = vmul.f32 %v228, %v240
      %v268 = vmul.f32 %v229, %v240
      %v269 = vmul.f32 %v230, %v240
      %v270 = vmul.f32 %v231, %v240
      %v271 = vmul.f32 %v232, %v240
      %v272 = vmul.f32 %v233, %v240
      %v273 = vmul.f32 %v234, %v240
      %v274 = vld [vmem:[%s2] sm:$0x1]
      %v276 = vlaneseq
      %v277 = vshrl.u32 %v276, 7
      %v278 = vsub.s32 0, %v277
      %v279 = vrot.slane %v274, %v278
      %v281 = vadd.f32 %v242, %v279
      %v282 = vadd.f32 %v243, %v279
      %v283 = vadd.f32 %v244, %v279
      %v284 = vadd.f32 %v245, %v279
      %v285 = vadd.f32 %v246, %v279
      %v286 = vadd.f32 %v247, %v279
      %v287 = vadd.f32 %v248, %v279
      %v288 = vadd.f32 %v249, %v279
      %v289 = vadd.f32 %v250, %v279
      %v290 = vadd.f32 %v251, %v279
      %v291 = vadd.f32 %v252, %v279
      %v292 = vadd.f32 %v253, %v279
      %v293 = vadd.f32 %v254, %v279
      %v294 = vadd.f32 %v255, %v279
      %v295 = vadd.f32 %v256, %v279
      %v296 = vadd.f32 %v257, %v279
      %v297 = vadd.f32 %v258, %v279
      %v298 = vadd.f32 %v259, %v279
      %v299 = vadd.f32 %v260, %v279
      %v300 = vadd.f32 %v261, %v279
      %v301 = vadd.f32 %v262, %v279
      %v302 = vadd.f32 %v263, %v279
      %v303 = vadd.f32 %v264, %v279
      %v304 = vadd.f32 %v265, %v279
      %v305 = vadd.f32 %v266, %v279
      %v306 = vadd.f32 %v267, %v279
      %v307 = vadd.f32 %v268, %v279
      %v308 = vadd.f32 %v269, %v279
      %v309 = vadd.f32 %v270, %v279
      %v310 = vadd.f32 %v271, %v279
      %v311 = vadd.f32 %v272, %v279
      %v312 = vadd.f32 %v273, %v279
      %v313 = vmax.f32 %v281, 0.0
      %v314 = vmax.f32 %v282, 0.0
      %v315 = vmax.f32 %v283, 0.0
      %v316 = vmax.f32 %v284, 0.0
      %v317 = vmax.f32 %v285, 0.0
      %v318 = vmax.f32 %v286, 0.0
      %v319 = vmax.f32 %v287, 0.0
      %v320 = vmax.f32 %v288, 0.0
      %v321 = vmax.f32 %v289, 0.0
      %v322 = vmax.f32 %v290, 0.0
      %v323 = vmax.f32 %v291, 0.0
      %v324 = vmax.f32 %v292, 0.0
      %v325 = vmax.f32 %v293, 0.0
      %v326 = vmax.f32 %v294, 0.0
      %v327 = vmax.f32 %v295, 0.0
      %v328 = vmax.f32 %v296, 0.0
      %v329 = vmax.f32 %v297, 0.0
      %v330 = vmax.f32 %v298, 0.0
      %v331 = vmax.f32 %v299, 0.0
      %v332 = vmax.f32 %v300, 0.0
      %v333 = vmax.f32 %v301, 0.0
      %v334 = vmax.f32 %v302, 0.0
      %v335 = vmax.f32 %v303, 0.0
      %v336 = vmax.f32 %v304, 0.0
      %v337 = vmax.f32 %v305, 0.0
      %v338 = vmax.f32 %v306, 0.0
      %v339 = vmax.f32 %v307, 0.0
      %v340 = vmax.f32 %v308, 0.0
      %v341 = vmax.f32 %v309, 0.0
      %v342 = vmax.f32 %v310, 0.0
      %v343 = vmax.f32 %v311, 0.0
      %v344 = vmax.f32 %v312, 0.0
      %345 = vst [vmem:[%s170] sm:$0xff] %v313
      %346 = vst [vmem:[%s170 + $0x8] sm:$0xff] %v314
      %347 = vst [vmem:[%s170 + $0x10] sm:$0xff] %v315
      %348 = vst [vmem:[%s170 + $0x18] sm:$0xff] %v316
      %349 = vst [vmem:[%s170 + $0x20] sm:$0xff] %v317
      %350 = vst [vmem:[%s170 + $0x28] sm:$0xff] %v318
      %351 = vst [vmem:[%s170 + $0x30] sm:$0xff] %v319
      %352 = vst [vmem:[%s170 + $0x38] sm:$0xff] %v320
      %353 = vst [vmem:[%s170 + $0x40] sm:$0xff] %v321
      %354 = vst [vmem:[%s170 + $0x48] sm:$0xff] %v322
      %355 = vst [vmem:[%s170 + $0x50] sm:$0xff] %v323
      %356 = vst [vmem:[%s170 + $0x58] sm:$0xff] %v324
      %357 = vst [vmem:[%s170 + $0x60] sm:$0xff] %v325
      %358 = vst [vmem:[%s170 + $0x68] sm:$0xff] %v326
      %359 = vst [vmem:[%s170 + $0x70] sm:$0xff] %v327
      %360 = vst [vmem:[%s170 + $0x78] sm:$0xff] %v328
      %361 = vst [vmem:[%s170 + $0x80] sm:$0xff] %v329
      %362 = vst [vmem:[%s170 + $0x88] sm:$0xff] %v330
      %363 = vst [vmem:[%s170 + $0x90] sm:$0xff] %v331
      %364 = vst [vmem:[%s170 + $0x98] sm:$0xff] %v332
      %365 = vst [vmem:[%s170 + $0xa0] sm:$0xff] %v333
      %366 = vst [vmem:[%s170 + $0xa8] sm:$0xff] %v334
      %367 = vst [vmem:[%s170 + $0xb0] sm:$0xff] %v335
      %368 = vst [vmem:[%s170 + $0xb8] sm:$0xff] %v336
      %369 = vst [vmem:[%s170 + $0xc0] sm:$0xff] %v337
      %370 = vst [vmem:[%s170 + $0xc8] sm:$0xff] %v338
      %371 = vst [vmem:[%s170 + $0xd0] sm:$0xff] %v339
      %372 = vst [vmem:[%s170 + $0xd8] sm:$0xff] %v340
      %373 = vst [vmem:[%s170 + $0xe0] sm:$0xff] %v341
      %374 = vst [vmem:[%s170 + $0xe8] sm:$0xff] %v342
      %375 = vst [vmem:[%s170 + $0xf0] sm:$0xff] %v343
      %376 = vst [vmem:[%s170 + $0xf8] sm:$0xff] %v344
      %p377 = scmp.lt.s32.totalorder %s14, 1
      %s378 = scalar_select %p377, %s14, 1
      %s379 = smul.addr %s378, 32
      %s380 = smul.addr %s379, 8
      %s381 = scalar_lea.vmem %s3, %s380
      // Predicated region
      $region33: #{unet_up_block_forward.11} parent=31 // pred_check
        %p382 = pneg %p100
      $region34: #{unet_up_block_forward.11} parent=31 // pred_check_branch
        %384 = sbr.rel (%p382) target = $region36
      $region35: #{unet_up_block_forward.11} parent=31 // pred_region
        _
      $region36: #{unet_up_block_forward.11} parent=31 // pred_fallthru
        _
    $region32: #{unet_up_block_forward.11} parent=5 // pred_fallthru
      _
    %p385 = scmp.le.s32.totalorder 2, %s9
    // Predicated region
    $region37: #{unet_up_block_forward.11} parent=5 // pred_check
      %p386 = pneg %p385
    $region38: #{unet_up_block_forward.11} parent=5 // pred_check_branch
      %388 = sbr.rel (%p386) target = $region40
    $region39: #{unet_up_block_forward.11} parent=5 // pred_region
      %s389 = ssub.s32 %s9, 2
      // Predicated region
      $region41: #{unet_up_block_forward.11} parent=39 // pred_check
        %p390 = pneg %p106
      $region42: #{unet_up_block_forward.11} parent=39 // pred_check_branch
        %392 = sbr.rel (%p390) target = $region44
      $region43: #{unet_up_block_forward.11} parent=39 // pred_region
        %p393 = scmp.lt.s32.totalorder %s15, 1
        %s394 = scalar_select %p393, %s15, 1
        %s395 = smul.addr %s394, 32
        %s396 = smul.addr %s395, 8
        %s397 = scalar_lea.vmem %s3, %s396
      $region44: #{unet_up_block_forward.11} parent=39 // pred_fallthru
        _
    $region40: #{unet_up_block_forward.11} parent=5 // pred_fallthru
      _
  $region6: #{unet_up_block_forward.11} parent=0 // loop_footer
    %s13 = sadd.s32 1, %s9
  $region7: #{unet_up_block_forward.11} parent=0 // loop_footer_branch
    %8 = sbr.rel target = $region3
  $region8: #{unet_up_block_forward.11} parent=0 // loop_exit
    _

// kernel: unet_up_block_forward.8
$region0: #{unet_up_block_forward.8}
  #allocation0 [shape = 'u32[]', space=smem, size = 0x4, offset = 0x4, fixed_abs, tag = 'smem constant byte address 0x4 - core index']
  #allocation1 [shape = 'u32[144,128]{1,0:T(1,128)}', space=vmem, size = 0x12000, scoped, tag = 'internal scratch']
  %s0 = inlined_call_operand.vmem [shape: bf16[2,18,16,768], index: 0, kind: input, shape index: {}]
  %s1 = inlined_call_operand.vmem [shape: bf16[3,768,128], index: 1, kind: input, shape index: {}]
  %s2 = inlined_call_operand.vmem [shape: bf16[2,16,16,128], index: 2, kind: output, shape index: {0}]
  %s3 = inlined_call_operand.vmem [shape: f32[2,1,128], index: 3, kind: output, shape index: {1}]
  %s4 = inlined_call_operand.vmem [shape: f32[2,1,128], index: 4, kind: output, shape index: {2}]
  %5 = xla_tuple %s2, %s3, %s4
  %s6 = sld [smem:[#allocation0]]
  $region57: #{unet_up_block_forward.8} parent=0
    _
  %s8 = ssub.s32 1, %s6
  %s9 = scalar_select 0, %s8, %s6
  loop: start=0, step=1, limit=4
  $region2: #{unet_up_block_forward.8} parent=0 // loop_pre_header
    _
  $region3: #{unet_up_block_forward.8} parent=0 // loop_header
    %s11 = sphi 0, %s15
    %p12 = scmp.ge.s32.totalorder %s11, 4
    %s21 = sphi 0, %s23
    %s24 = sphi 0, %s21
    %s25 = sphi 0, %s24
    %s41 = sphi 0, %s25
    %s45 = sphi 0, %s45
    %s47 = sphi 0, %s45
    %s48 = sphi 0, %s47
    %s62 = sphi 0, %s48
    %s68 = sphi 0, %s70
    %s71 = sphi 0, %s68
    %s72 = sphi 0, %s71
    %s88 = sphi 0, %s72
    %s94 = sphi 0, %s96
    %s97 = sphi 0, %s94
    %s98 = sphi 0, %s97
    %s114 = sphi 0, %s98
    %s120 = sphi 0, %s122
    %s123 = sphi 0, %s120
    %s124 = sphi 0, %s123
    %s140 = sphi 0, %s124
  $region4: #{unet_up_block_forward.8} parent=0 // loop_header_branch
    %14 = sbr.rel (%p12) target = $region8
  $region5: #{unet_up_block_forward.8} parent=0 // loop_body
    %s16 = ssub.s32 %s11, 1
    %s17 = ssub.s32 %s11, 2
    %s18 = sadd.s32 %s11, 1
    %s19 = ssub.s32 %s11, %s18
    %p20 = scmp.eq.s32.totalorder %s19, 0
    %s22 = sadd.s32 %s21, 1
    %s23 = scalar_select %p20, %s21, %s22
    %p26 = pneg %p20
    %p27 = scmp.eq.s32.totalorder %s11, 1
    %p28 = por %p26, %p27
    %p29 = scmp.ne.s32.totalorder %s21, %s24
    %p30 = scmp.eq.s32.totalorder %s11, 0
    %p31 = por %p29, %p30
    %p32 = scmp.ne.s32.totalorder %s21, %s24
    %p33 = scmp.eq.s32.totalorder %s16, 1
    %p34 = por %p32, %p33
    %p35 = scmp.ne.s32.totalorder %s24, %s25
    %p36 = scmp.eq.s32.totalorder %s16, 0
    %p37 = por %p35, %p36
    %p38 = scmp.ne.s32.totalorder %s24, %s25
    %p39 = scmp.eq.s32.totalorder %s17, 1
    %p40 = por %p38, %p39
    %p42 = scmp.ne.s32.totalorder %s25, %s41
    %p43 = scmp.eq.s32.totalorder %s17, 0
    %p44 = por %p42, %p43
    %s46 = sadd.s32 %s45, 1
    %p49 = scmp.eq.s32.totalorder %s11, 1
    %p50 = scmp.ne.s32.totalorder %s45, %s47
    %p51 = scmp.eq.s32.totalorder %s11, 0
    %p52 = por %p50, %p51
    %p53 = scmp.ne.s32.totalorder %s45, %s47
    %p54 = scmp.eq.s32.totalorder %s16, 1
    %p55 = por %p53, %p54
    %p56 = scmp.ne.s32.totalorder %s47, %s48
    %p57 = scmp.eq.s32.totalorder %s16, 0
    %p58 = por %p56, %p57
    %p59 = scmp.ne.s32.totalorder %s47, %s48
    %p60 = scmp.eq.s32.totalorder %s17, 1
    %p61 = por %p59, %p60
    %p63 = scmp.ne.s32.totalorder %s48, %s62
    %p64 = scmp.eq.s32.totalorder %s17, 0
    %p65 = por %p63, %p64
    %s66 = ssub.s32 %s11, %s18
    %p67 = scmp.eq.s32.totalorder %s66, 0
    %s69 = sadd.s32 %s68, 1
    %s70 = scalar_select %p67, %s68, %s69
    %p73 = pneg %p67
    %p74 = scmp.eq.s32.totalorder %s11, 1
    %p75 = por %p73, %p74
    %p76 = scmp.ne.s32.totalorder %s68, %s71
    %p77 = scmp.eq.s32.totalorder %s11, 0
    %p78 = por %p76, %p77
    %p79 = scmp.ne.s32.totalorder %s68, %s71
    %p80 = scmp.eq.s32.totalorder %s16, 1
    %p81 = por %p79, %p80
    %p82 = scmp.ne.s32.totalorder %s71, %s72
    %p83 = scmp.eq.s32.totalorder %s16, 0
    %p84 = por %p82, %p83
    %p85 = scmp.ne.s32.totalorder %s71, %s72
    %p86 = scmp.eq.s32.totalorder %s17, 1
    %p87 = por %p85, %p86
    %p89 = scmp.ne.s32.totalorder %s72, %s88
    %p90 = scmp.eq.s32.totalorder %s17, 0
    %p91 = por %p89, %p90
    %s92 = ssub.s32 %s11, %s18
    %p93 = scmp.eq.s32.totalorder %s92, 0
    %s95 = sadd.s32 %s94, 1
    %s96 = scalar_select %p93, %s94, %s95
    %p99 = pneg %p93
    %p100 = scmp.eq.s32.totalorder %s11, 1
    %p101 = por %p99, %p100
    %p102 = scmp.ne.s32.totalorder %s94, %s97
    %p103 = scmp.eq.s32.totalorder %s11, 0
    %p104 = por %p102, %p103
    %p105 = scmp.ne.s32.totalorder %s94, %s97
    %p106 = scmp.eq.s32.totalorder %s16, 1
    %p107 = por %p105, %p106
    %p108 = scmp.ne.s32.totalorder %s97, %s98
    %p109 = scmp.eq.s32.totalorder %s16, 0
    %p110 = por %p108, %p109
    %p111 = scmp.ne.s32.totalorder %s97, %s98
    %p112 = scmp.eq.s32.totalorder %s17, 1
    %p113 = por %p111, %p112
    %p115 = scmp.ne.s32.totalorder %s98, %s114
    %p116 = scmp.eq.s32.totalorder %s17, 0
    %p117 = por %p115, %p116
    %s118 = ssub.s32 %s11, %s18
    %p119 = scmp.eq.s32.totalorder %s118, 0
    %s121 = sadd.s32 %s120, 1
    %s122 = scalar_select %p119, %s120, %s121
    %p125 = pneg %p119
    %p126 = scmp.eq.s32.totalorder %s11, 1
    %p127 = por %p125, %p126
    %p128 = scmp.ne.s32.totalorder %s120, %s123
    %p129 = scmp.eq.s32.totalorder %s11, 0
    %p130 = por %p128, %p129
    %p131 = scmp.ne.s32.totalorder %s120, %s123
    %p132 = scmp.eq.s32.totalorder %s16, 1
    %p133 = por %p131, %p132
    %p134 = scmp.ne.s32.totalorder %s123, %s124
    %p135 = scmp.eq.s32.totalorder %s16, 0
    %p136 = por %p134, %p135
    %p137 = scmp.ne.s32.totalorder %s123, %s124
    %p138 = scmp.eq.s32.totalorder %s17, 1
    %p139 = por %p137, %p138
    %p141 = scmp.ne.s32.totalorder %s124, %s140
    %p142 = scmp.eq.s32.totalorder %s17, 0
    %p143 = por %p141, %p142
    %p144 = scmp.le.s32.totalorder 1, %s11
    %p145 = scmp.lt.s32.totalorder %s11, 3
    %p146 = pnand %p144, %p145
    %p147 = pneg %p146
    // Predicated region
    $region9: #{unet_up_block_forward.8} parent=5 // pred_check
      _
    $region10: #{unet_up_block_forward.8} parent=5 // pred_check_branch
      %149 = sbr.rel (%p146) target = $region12
    $region11: #{unet_up_block_forward.8} parent=5 // pred_region
      %s150 = ssub.s32 %s11, 1
      // Predicated region
      $region13: #{unet_up_block_forward.8} parent=11 // pred_check
        %p151 = pneg %p58
      $region14: #{unet_up_block_forward.8} parent=11 // pred_check_branch
        %153 = sbr.rel (%p151) target = $region16
      $region15: #{unet_up_block_forward.8} parent=11 // pred_region
        _
      $region16: #{unet_up_block_forward.8} parent=11 // pred_fallthru
        _
    $region12: #{unet_up_block_forward.8} parent=5 // pred_fallthru
      _
    %p154 = scmp.lt.s32.totalorder %s11, 2
    // Predicated region
    $region17: #{unet_up_block_forward.8} parent=5 // pred_check
      %p155 = pneg %p154
    $region18: #{unet_up_block_forward.8} parent=5 // pred_check_branch
      %157 = sbr.rel (%p155) target = $region20
    $region19: #{unet_up_block_forward.8} parent=5 // pred_region
      // Predicated region
      $region21: #{unet_up_block_forward.8} parent=19 // pred_check
        %p158 = pneg %p31
      $region22: #{unet_up_block_forward.8} parent=19 // pred_check_branch
        %160 = sbr.rel (%p158) target = $region24
      $region23: #{unet_up_block_forward.8} parent=19 // pred_region
        %p161 = scmp.lt.s32.totalorder %s11, 1
        %s162 = scalar_select %p161, %s11, 1
        %s163 = smul.addr %s162, 216
        %s164 = smul.addr %s163, 4
        %s165 = scalar_lea.vmem %s0, %s164
      $region24: #{unet_up_block_forward.8} parent=19 // pred_fallthru
        _
    $region20: #{unet_up_block_forward.8} parent=5 // pred_fallthru
      _
    %p166 = scmp.le.s32.totalorder 1, %s11
    %p167 = scmp.lt.s32.totalorder %s11, 3
    %p168 = pnand %p166, %p167
    %p169 = pneg %p168
    // Predicated region
    $region25: #{unet_up_block_forward.8} parent=5 // pred_check
      _
    $region26: #{unet_up_block_forward.8} parent=5 // pred_check_branch
      %171 = sbr.rel (%p168) target = $region28
    $region27: #{unet_up_block_forward.8} parent=5 // pred_region
      %s172 = ssub.s32 %s11, 1
      %p173 = scmp.lt.s32.totalorder %s16, 1
      %s174 = scalar_select %p173, %s16, 1
      %s175 = smul.addr %s174, 216
      %s176 = smul.addr %s175, 4
      %s177 = scalar_lea.vmem %s0, %s176
      %p178 = pneg %p37
      %p179 = pneg %p34
      %p180 = pneg %p58
      %p181 = pneg %p55
      %p182 = pneg %p84
      %p183 = pneg %p81
      %p184 = scmp.lt.s32.totalorder %s16, 1
      %s185 = scalar_select %p184, %s16, 1
      %s186 = smul.addr %s185, 32
      %s187 = smul.addr %s186, 4
      %s188 = scalar_lea.vmem %s2, %s187
      %p189 = pneg %p110
      %p190 = pneg %p107
      %p191 = scmp.lt.s32.totalorder %s16, 1
      %s192 = scalar_select %p191, %s16, 1
      %s193 = scalar_lea.vmem %s3, %s192
      %p194 = pneg %p136
      %p195 = pneg %p133
      %p196 = scmp.lt.s32.totalorder %s16, 1
      %s197 = scalar_select %p196, %s16, 1
      %s198 = scalar_lea.vmem %s4, %s197
      %p199 = scmp.lt.s32.totalorder %s16, 1
      %s200 = scalar_select %p199, %s16, 1
      %s201 = smul.addr %s200, 216
      %s202 = smul.addr %s201, 4
      %s203 = scalar_lea.vmem %s0, %s202
      %p204 = scmp.lt.s32.totalorder %s16, 1
      %s205 = scalar_select %p204, %s16, 1
      %s206 = smul.addr %s205, 32
      %s207 = smul.addr %s206, 4
      %s208 = scalar_lea.vmem %s2, %s207
      %p209 = scmp.lt.s32.totalorder %s16, 1
      %s210 = scalar_select %p209, %s16, 1
      %s211 = scalar_lea.vmem %s3, %s210
      %p212 = scmp.lt.s32.totalorder %s16, 1
      %s213 = scalar_select %p212, %s16, 1
      %s214 = scalar_lea.vmem %s4, %s213
      %v216 = vld [vmem:[%s203] sm:$0xff]
      %v217 = vld [vmem:[%s203 + $0x8] sm:$0xff]
      %v218 = vld [vmem:[%s203 + $0x10] sm:$0xff]
      %v219 = vld [vmem:[%s203 + $0x18] sm:$0xff]
      %v220 = vld [vmem:[%s203 + $0x20] sm:$0xff]
      %v221 = vld [vmem:[%s203 + $0x28] sm:$0xff]
      %v222 = vld [vmem:[%s203 + $0x30] sm:$0xff]
      %v223 = vld [vmem:[%s203 + $0x38] sm:$0xff]
      %v224 = vld [vmem:[%s203 + $0x40] sm:$0xff]
      %v225 = vld [vmem:[%s203 + $0x48] sm:$0xff]
      %v226 = vld [vmem:[%s203 + $0x50] sm:$0xff]
      %v227 = vld [vmem:[%s203 + $0x58] sm:$0xff]
      %v228 = vld [vmem:[%s203 + $0x60] sm:$0xff]
      %v229 = vld [vmem:[%s203 + $0x68] sm:$0xff]
      %v230 = vld [vmem:[%s203 + $0x70] sm:$0xff]
      %v231 = vld [vmem:[%s203 + $0x78] sm:$0xff]
      %v232 = vld [vmem:[%s203 + $0x80] sm:$0xff]
      %v233 = vld [vmem:[%s203 + $0x88] sm:$0xff]
      %v234 = vld [vmem:[%s203 + $0x90] sm:$0xff]
      %v235 = vld [vmem:[%s203 + $0x98] sm:$0xff]
      %v236 = vld [vmem:[%s203 + $0xa0] sm:$0xff]
      %v237 = vld [vmem:[%s203 + $0xa8] sm:$0xff]
      %v238 = vld [vmem:[%s203 + $0xb0] sm:$0xff]
      %v239 = vld [vmem:[%s203 + $0xb8] sm:$0xff]
      %v240 = vld [vmem:[%s203 + $0xc0] sm:$0xff]
      %v241 = vld [vmem:[%s203 + $0xc8] sm:$0xff]
      %v242 = vld [vmem:[%s203 + $0xd0] sm:$0xff]
      %v243 = vld [vmem:[%s203 + $0xd8] sm:$0xff]
      %v244 = vld [vmem:[%s203 + $0xe0] sm:$0xff]
      %v245 = vld [vmem:[%s203 + $0xe8] sm:$0xff]
      %v246 = vld [vmem:[%s203 + $0xf0] sm:$0xff]
      %v247 = vld [vmem:[%s203 + $0xf8] sm:$0xff]
      %v248 = vld [vmem:[%s203 + $0x100] sm:$0xff]
      %v249 = vld [vmem:[%s203 + $0x108] sm:$0xff]
      %v250 = vld [vmem:[%s203 + $0x110] sm:$0xff]
      %v251 = vld [vmem:[%s203 + $0x118] sm:$0xff]
      %v252 = vld [vmem:[%s203 + $0x120] sm:$0xff]
      %v253 = vld [vmem:[%s203 + $0x128] sm:$0xff]
      %v254 = vld [vmem:[%s203 + $0x130] sm:$0xff]
      %v255 = vld [vmem:[%s203 + $0x138] sm:$0xff]
      %v256 = vld [vmem:[%s203 + $0x140] sm:$0xff]
      %v257 = vld [vmem:[%s203 + $0x148] sm:$0xff]
      %v258 = vld [vmem:[%s203 + $0x150] sm:$0xff]
      %v259 = vld [vmem:[%s203 + $0x158] sm:$0xff]
      %v260 = vld [vmem:[%s203 + $0x160] sm:$0xff]
      %v261 = vld [vmem:[%s203 + $0x168] sm:$0xff]
      %v262 = vld [vmem:[%s203 + $0x170] sm:$0xff]
      %v263 = vld [vmem:[%s203 + $0x178] sm:$0xff]
      %v264 = vld [vmem:[%s203 + $0x180] sm:$0xff]
      %v265 = vld [vmem:[%s203 + $0x188] sm:$0xff]
      %v266 = vld [vmem:[%s203 + $0x190] sm:$0xff]
      %v267 = vld [vmem:[%s203 + $0x198] sm:$0xff]
      %v268 = vld [vmem:[%s203 + $0x1a0] sm:$0xff]
      %v269 = vld [vmem:[%s203 + $0x1a8] sm:$0xff]
      %v270 = vld [vmem:[%s203 + $0x1b0] sm:$0xff]
      %v271 = vld [vmem:[%s203 + $0x1b8] sm:$0xff]
      %v272 = vld [vmem:[%s203 + $0x1c0] sm:$0xff]
      %v273 = vld [vmem:[%s203 + $0x1c8] sm:$0xff]
      %v274 = vld [vmem:[%s203 + $0x1d0] sm:$0xff]
      %v275 = vld [vmem:[%s203 + $0x1d8] sm:$0xff]
      %v276 = vld [vmem:[%s203 + $0x1e0] sm:$0xff]
      %v277 = vld [vmem:[%s203 + $0x1e8] sm:$0xff]
      %v278 = vld [vmem:[%s203 + $0x1f0] sm:$0xff]
      %v279 = vld [vmem:[%s203 + $0x1f8] sm:$0xff]
      %v280 = vld [vmem:[%s203 + $0x200] sm:$0xff]
      %v281 = vld [vmem:[%s203 + $0x208] sm:$0xff]
      %v282 = vld [vmem:[%s203 + $0x210] sm:$0xff]
      %v283 = vld [vmem:[%s203 + $0x218] sm:$0xff]
      %v284 = vld [vmem:[%s203 + $0x220] sm:$0xff]
      %v285 = vld [vmem:[%s203 + $0x228] sm:$0xff]
      %v286 = vld [vmem:[%s203 + $0x230] sm:$0xff]
      %v287 = vld [vmem:[%s203 + $0x238] sm:$0xff]
      %v288 = vld [vmem:[%s203 + $0x240] sm:$0xff]
      %v289 = vld [vmem:[%s203 + $0x248] sm:$0xff]
      %v290 = vld [vmem:[%s203 + $0x250] sm:$0xff]
      %v291 = vld [vmem:[%s203 + $0x258] sm:$0xff]
      %v292 = vld [vmem:[%s203 + $0x260] sm:$0xff]
      %v293 = vld [vmem:[%s203 + $0x268] sm:$0xff]
      %v294 = vld [vmem:[%s203 + $0x270] sm:$0xff]
      %v295 = vld [vmem:[%s203 + $0x278] sm:$0xff]
      %v296 = vld [vmem:[%s203 + $0x280] sm:$0xff]
      %v297 = vld [vmem:[%s203 + $0x288] sm:$0xff]
      %v298 = vld [vmem:[%s203 + $0x290] sm:$0xff]
      %v299 = vld [vmem:[%s203 + $0x298] sm:$0xff]
      %v300 = vld [vmem:[%s203 + $0x2a0] sm:$0xff]
      %v301 = vld [vmem:[%s203 + $0x2a8] sm:$0xff]
      %v302 = vld [vmem:[%s203 + $0x2b0] sm:$0xff]
      %v303 = vld [vmem:[%s203 + $0x2b8] sm:$0xff]
      %v304 = vld [vmem:[%s203 + $0x2c0] sm:$0xff]
      %v305 = vld [vmem:[%s203 + $0x2c8] sm:$0xff]
      %v306 = vld [vmem:[%s203 + $0x2d0] sm:$0xff]
      %v307 = vld [vmem:[%s203 + $0x2d8] sm:$0xff]
      %v308 = vld [vmem:[%s203 + $0x2e0] sm:$0xff]
      %v309 = vld [vmem:[%s203 + $0x2e8] sm:$0xff]
      %v310 = vld [vmem:[%s203 + $0x2f0] sm:$0xff]
      %v311 = vld [vmem:[%s203 + $0x2f8] sm:$0xff]
      %v312 = vld [vmem:[%s1] sm:$0xf]
      %v313 = vld [vmem:[%s1 + $0x4] sm:$0xf]
      %v314 = vld [vmem:[%s1 + $0x8] sm:$0xf]
      %v315 = vld [vmem:[%s1 + $0xc] sm:$0xf]
      %v316 = vld [vmem:[%s1 + $0x10] sm:$0xf]
      %v317 = vld [vmem:[%s1 + $0x14] sm:$0xf]
      %v318 = vld [vmem:[%s1 + $0x18] sm:$0xf]
      %v319 = vld [vmem:[%s1 + $0x1c] sm:$0xf]
      %v320 = vld [vmem:[%s1 + $0x20] sm:$0xf]
      %v321 = vld [vmem:[%s1 + $0x24] sm:$0xf]
      %v322 = vld [vmem:[%s1 + $0x28] sm:$0xf]
      %v323 = vld [vmem:[%s1 + $0x2c] sm:$0xf]
      %v324 = vld [vmem:[%s1 + $0x30] sm:$0xf]
      %v325 = vld [vmem:[%s1 + $0x34] sm:$0xf]
      %v326 = vld [vmem:[%s1 + $0x38] sm:$0xf]
      %v327 = vld [vmem:[%s1 + $0x3c] sm:$0xf]
      %v328 = vld [vmem:[%s1 + $0x40] sm:$0xf]
      %v329 = vld [vmem:[%s1 + $0x44] sm:$0xf]
      %v330 = vld [vmem:[%s1 + $0x48] sm:$0xf]
      %v331 = vld [vmem:[%s1 + $0x4c] sm:$0xf]
      %v332 = vld [vmem:[%s1 + $0x50] sm:$0xf]
      %v333 = vld [vmem:[%s1 + $0x54] sm:$0xf]
      %v334 = vld [vmem:[%s1 + $0x58] sm:$0xf]
      %v335 = vld [vmem:[%s1 + $0x5c] sm:$0xf]
      %v336 = vld [vmem:[%s1 + $0x60] sm:$0xf]
      %v337 = vld [vmem:[%s1 + $0x64] sm:$0xf]
      %v338 = vld [vmem:[%s1 + $0x68] sm:$0xf]
      %v339 = vld [vmem:[%s1 + $0x6c] sm:$0xf]
      %v340 = vld [vmem:[%s1 + $0x70] sm:$0xf]
      %v341 = vld [vmem:[%s1 + $0x74] sm:$0xf]
      %v342 = vld [vmem:[%s1 + $0x78] sm:$0xf]
      %v343 = vld [vmem:[%s1 + $0x7c] sm:$0xf]
      %v344 = vld [vmem:[%s1 + $0x80] sm:$0xf]
      %v345 = vld [vmem:[%s1 + $0x84] sm:$0xf]
      %v346 = vld [vmem:[%s1 + $0x88] sm:$0xf]
      %v347 = vld [vmem:[%s1 + $0x8c] sm:$0xf]
      %v348 = vld [vmem:[%s1 + $0x90] sm:$0xf]
      %v349 = vld [vmem:[%s1 + $0x94] sm:$0xf]
      %v350 = vld [vmem:[%s1 + $0x98] sm:$0xf]
      %v351 = vld [vmem:[%s1 + $0x9c] sm:$0xf]
      %v352 = vld [vmem:[%s1 + $0xa0] sm:$0xf]
      %v353 = vld [vmem:[%s1 + $0xa4] sm:$0xf]
      %v354 = vld [vmem:[%s1 + $0xa8] sm:$0xf]
      %v355 = vld [vmem:[%s1 + $0xac] sm:$0xf]
      %v356 = vld [vmem:[%s1 + $0xb0] sm:$0xf]
      %v357 = vld [vmem:[%s1 + $0xb4] sm:$0xf]
      %v358 = vld [vmem:[%s1 + $0xb8] sm:$0xf]
      %v359 = vld [vmem:[%s1 + $0xbc] sm:$0xf]
      %v360 = vld [vmem:[%s1 + $0xc0] sm:$0xf]
      %v361 = vld [vmem:[%s1 + $0xc4] sm:$0xf]
      %v362 = vld [vmem:[%s1 + $0xc8] sm:$0xf]
      %v363 = vld [vmem:[%s1 + $0xcc] sm:$0xf]
      %v364 = vld [vmem:[%s1 + $0xd0] sm:$0xf]
      %v365 = vld [vmem:[%s1 + $0xd4] sm:$0xf]
      %v366 = vld [vmem:[%s1 + $0xd8] sm:$0xf]
      %v367 = vld [vmem:[%s1 + $0xdc] sm:$0xf]
      %v368 = vld [vmem:[%s1 + $0xe0] sm:$0xf]
      %v369 = vld [vmem:[%s1 + $0xe4] sm:$0xf]
      %v370 = vld [vmem:[%s1 + $0xe8] sm:$0xf]
      %v371 = vld [vmem:[%s1 + $0xec] sm:$0xf]
      %v372 = vld [vmem:[%s1 + $0xf0] sm:$0xf]
      %v373 = vld [vmem:[%s1 + $0xf4] sm:$0xf]
      %v374 = vld [vmem:[%s1 + $0xf8] sm:$0xf]
      %v375 = vld [vmem:[%s1 + $0xfc] sm:$0xf]
      %v376 = vld [vmem:[%s1 + $0x100] sm:$0xf]
      %v377 = vld [vmem:[%s1 + $0x104] sm:$0xf]
      %v378 = vld [vmem:[%s1 + $0x108] sm:$0xf]
      %v379 = vld [vmem:[%s1 + $0x10c] sm:$0xf]
      %v380 = vld [vmem:[%s1 + $0x110] sm:$0xf]
      %v381 = vld [vmem:[%s1 + $0x114] sm:$0xf]
      %v382 = vld [vmem:[%s1 + $0x118] sm:$0xf]
      %v383 = vld [vmem:[%s1 + $0x11c] sm:$0xf]
      %v384 = vld [vmem:[%s1 + $0x120] sm:$0xf]
      %v385 = vld [vmem:[%s1 + $0x124] sm:$0xf]
      %v386 = vld [vmem:[%s1 + $0x128] sm:$0xf]
      %v387 = vld [vmem:[%s1 + $0x12c] sm:$0xf]
      %v388 = vld [vmem:[%s1 + $0x130] sm:$0xf]
      %v389 = vld [vmem:[%s1 + $0x134] sm:$0xf]
      %v390 = vld [vmem:[%s1 + $0x138] sm:$0xf]
      %v391 = vld [vmem:[%s1 + $0x13c] sm:$0xf]
      %v392 = vld [vmem:[%s1 + $0x140] sm:$0xf]
      %v393 = vld [vmem:[%s1 + $0x144] sm:$0xf]
      %v394 = vld [vmem:[%s1 + $0x148] sm:$0xf]
      %v395 = vld [vmem:[%s1 + $0x14c] sm:$0xf]
      %v396 = vld [vmem:[%s1 + $0x150] sm:$0xf]
      %v397 = vld [vmem:[%s1 + $0x154] sm:$0xf]
      %v398 = vld [vmem:[%s1 + $0x158] sm:$0xf]
      %v399 = vld [vmem:[%s1 + $0x15c] sm:$0xf]
      %v400 = vld [vmem:[%s1 + $0x160] sm:$0xf]
      %v401 = vld [vmem:[%s1 + $0x164] sm:$0xf]
      %v402 = vld [vmem:[%s1 + $0x168] sm:$0xf]
      %v403 = vld [vmem:[%s1 + $0x16c] sm:$0xf]
      %v404 = vld [vmem:[%s1 + $0x170] sm:$0xf]
      %v405 = vld [vmem:[%s1 + $0x174] sm:$0xf]
      %v406 = vld [vmem:[%s1 + $0x178] sm:$0xf]
      %v407 = vld [vmem:[%s1 + $0x17c] sm:$0xf]
      %s408 = scalar_lea.vmem %s203, 48
      %v409 = vld [vmem:[%s408] sm:$0xff]
      %v410 = vld [vmem:[%s408 + $0x8] sm:$0xff]
      %v411 = vld [vmem:[%s408 + $0x10] sm:$0xff]
      %v412 = vld [vmem:[%s408 + $0x18] sm:$0xff]
      %v413 = vld [vmem:[%s408 + $0x20] sm:$0xff]
      %v414 = vld [vmem:[%s408 + $0x28] sm:$0xff]
      %v415 = vld [vmem:[%s408 + $0x30] sm:$0xff]
      %v416 = vld [vmem:[%s408 + $0x38] sm:$0xff]
      %v417 = vld [vmem:[%s408 + $0x40] sm:$0xff]
      %v418 = vld [vmem:[%s408 + $0x48] sm:$0xff]
      %v419 = vld [vmem:[%s408 + $0x50] sm:$0xff]
      %v420 = vld [vmem:[%s408 + $0x58] sm:$0xff]
      %v421 = vld [vmem:[%s408 + $0x60] sm:$0xff]
      %v422 = vld [vmem:[%s408 + $0x68] sm:$0xff]
      %v423 = vld [vmem:[%s408 + $0x70] sm:$0xff]
      %v424 = vld [vmem:[%s408 + $0x78] sm:$0xff]
      %v425 = vld [vmem:[%s408 + $0x80] sm:$0xff]
      %v426 = vld [vmem:[%s408 + $0x88] sm:$0xff]
      %v427 = vld [vmem:[%s408 + $0x90] sm:$0xff]
      %v428 = vld [vmem:[%s408 + $0x98] sm:$0xff]
      %v429 = vld [vmem:[%s408 + $0xa0] sm:$0xff]
      %v430 = vld [vmem:[%s408 + $0xa8] sm:$0xff]
      %v431 = vld [vmem:[%s408 + $0xb0] sm:$0xff]
      %v432 = vld [vmem:[%s408 + $0xb8] sm:$0xff]
      %v433 = vld [vmem:[%s408 + $0xc0] sm:$0xff]
      %v434 = vld [vmem:[%s408 + $0xc8] sm:$0xff]
      %v435 = vld [vmem:[%s408 + $0xd0] sm:$0xff]
      %v436 = vld [vmem:[%s408 + $0xd8] sm:$0xff]
      %v437 = vld [vmem:[%s408 + $0xe0] sm:$0xff]
      %v438 = vld [vmem:[%s408 + $0xe8] sm:$0xff]
      %v439 = vld [vmem:[%s408 + $0xf0] sm:$0xff]
      %v440 = vld [vmem:[%s408 + $0xf8] sm:$0xff]
      %v441 = vld [vmem:[%s408 + $0x100] sm:$0xff]
      %v442 = vld [vmem:[%s408 + $0x108] sm:$0xff]
      %v443 = vld [vmem:[%s408 + $0x110] sm:$0xff]
      %v444 = vld [vmem:[%s408 + $0x118] sm:$0xff]
      %v445 = vld [vmem:[%s408 + $0x120] sm:$0xff]
      %v446 = vld [vmem:[%s408 + $0x128] sm:$0xff]
      %v447 = vld [vmem:[%s408 + $0x130] sm:$0xff]
      %v448 = vld [vmem:[%s408 + $0x138] sm:$0xff]
      %v449 = vld [vmem:[%s408 + $0x140] sm:$0xff]
      %v450 = vld [vmem:[%s408 + $0x148] sm:$0xff]
      %v451 = vld [vmem:[%s408 + $0x150] sm:$0xff]
      %v452 = vld [vmem:[%s408 + $0x158] sm:$0xff]
      %v453 = vld [vmem:[%s408 + $0x160] sm:$0xff]
      %v454 = vld [vmem:[%s408 + $0x168] sm:$0xff]
      %v455 = vld [vmem:[%s408 + $0x170] sm:$0xff]
      %v456 = vld [vmem:[%s408 + $0x178] sm:$0xff]
      %v457 = vld [vmem:[%s408 + $0x180] sm:$0xff]
      %v458 = vld [vmem:[%s408 + $0x188] sm:$0xff]
      %v459 = vld [vmem:[%s408 + $0x190] sm:$0xff]
      %v460 = vld [vmem:[%s408 + $0x198] sm:$0xff]
      %v461 = vld [vmem:[%s408 + $0x1a0] sm:$0xff]
      %v462 = vld [vmem:[%s408 + $0x1a8] sm:$0xff]
      %v463 = vld [vmem:[%s408 + $0x1b0] sm:$0xff]
      %v464 = vld [vmem:[%s408 + $0x1b8] sm:$0xff]
      %v465 = vld [vmem:[%s408 + $0x1c0] sm:$0xff]
      %v466 = vld [vmem:[%s408 + $0x1c8] sm:$0xff]
      %v467 = vld [vmem:[%s408 + $0x1d0] sm:$0xff]
      %v468 = vld [vmem:[%s408 + $0x1d8] sm:$0xff]
      %v469 = vld [vmem:[%s408 + $0x1e0] sm:$0xff]
      %v470 = vld [vmem:[%s408 + $0x1e8] sm:$0xff]
      %v471 = vld [vmem:[%s408 + $0x1f0] sm:$0xff]
      %v472 = vld [vmem:[%s408 + $0x1f8] sm:$0xff]
      %v473 = vld [vmem:[%s408 + $0x200] sm:$0xff]
      %v474 = vld [vmem:[%s408 + $0x208] sm:$0xff]
      %v475 = vld [vmem:[%s408 + $0x210] sm:$0xff]
      %v476 = vld [vmem:[%s408 + $0x218] sm:$0xff]
      %v477 = vld [vmem:[%s408 + $0x220] sm:$0xff]
      %v478 = vld [vmem:[%s408 + $0x228] sm:$0xff]
      %v479 = vld [vmem:[%s408 + $0x230] sm:$0xff]
      %v480 = vld [vmem:[%s408 + $0x238] sm:$0xff]
      %v481 = vld [vmem:[%s408 + $0x240] sm:$0xff]
      %v482 = vld [vmem:[%s408 + $0x248] sm:$0xff]
      %v483 = vld [vmem:[%s408 + $0x250] sm:$0xff]
      %v484 = vld [vmem:[%s408 + $0x258] sm:$0xff]
      %v485 = vld [vmem:[%s408 + $0x260] sm:$0xff]
      %v486 = vld [vmem:[%s408 + $0x268] sm:$0xff]
      %v487 = vld [vmem:[%s408 + $0x270] sm:$0xff]
      %v488 = vld [vmem:[%s408 + $0x278] sm:$0xff]
      %v489 = vld [vmem:[%s408 + $0x280] sm:$0xff]
      %v490 = vld [vmem:[%s408 + $0x288] sm:$0xff]
      %v491 = vld [vmem:[%s408 + $0x290] sm:$0xff]
      %v492 = vld [vmem:[%s408 + $0x298] sm:$0xff]
      %v493 = vld [vmem:[%s408 + $0x2a0] sm:$0xff]
      %v494 = vld [vmem:[%s408 + $0x2a8] sm:$0xff]
      %v495 = vld [vmem:[%s408 + $0x2b0] sm:$0xff]
      %v496 = vld [vmem:[%s408 + $0x2b8] sm:$0xff]
      %v497 = vld [vmem:[%s408 + $0x2c0] sm:$0xff]
      %v498 = vld [vmem:[%s408 + $0x2c8] sm:$0xff]
      %v499 = vld [vmem:[%s408 + $0x2d0] sm:$0xff]
      %v500 = vld [vmem:[%s408 + $0x2d8] sm:$0xff]
      %v501 = vld [vmem:[%s408 + $0x2e0] sm:$0xff]
      %v502 = vld [vmem:[%s408 + $0x2e8] sm:$0xff]
      %v503 = vld [vmem:[%s408 + $0x2f0] sm:$0xff]
      %v504 = vld [vmem:[%s408 + $0x2f8] sm:$0xff]
      %s505 = scalar_lea.vmem %s1, 384
      %v506 = vld [vmem:[%s505] sm:$0xf]
      %v507 = vld [vmem:[%s505 + $0x4] sm:$0xf]
      %v508 = vld [vmem:[%s505 + $0x8] sm:$0xf]
      %v509 = vld [vmem:[%s505 + $0xc] sm:$0xf]
      %v510 = vld [vmem:[%s505 + $0x10] sm:$0xf]
      %v511 = vld [vmem:[%s505 + $0x14] sm:$0xf]
      %v512 = vld [vmem:[%s505 + $0x18] sm:$0xf]
      %v513 = vld [vmem:[%s505 + $0x1c] sm:$0xf]
      %v514 = vld [vmem:[%s505 + $0x20] sm:$0xf]
      %v515 = vld [vmem:[%s505 + $0x24] sm:$0xf]
      %v516 = vld [vmem:[%s505 + $0x28] sm:$0xf]
      %v517 = vld [vmem:[%s505 + $0x2c] sm:$0xf]
      %v518 = vld [vmem:[%s505 + $0x30] sm:$0xf]
      %v519 = vld [vmem:[%s505 + $0x34] sm:$0xf]
      %v520 = vld [vmem:[%s505 + $0x38] sm:$0xf]
      %v521 = vld [vmem:[%s505 + $0x3c] sm:$0xf]
      %v522 = vld [vmem:[%s505 + $0x40] sm:$0xf]
      %v523 = vld [vmem:[%s505 + $0x44] sm:$0xf]
      %v524 = vld [vmem:[%s505 + $0x48] sm:$0xf]
      %v525 = vld [vmem:[%s505 + $0x4c] sm:$0xf]
      %v526 = vld [vmem:[%s505 + $0x50] sm:$0xf]
      %v527 = vld [vmem:[%s505 + $0x54] sm:$0xf]
      %v528 = vld [vmem:[%s505 + $0x58] sm:$0xf]
      %v529 = vld [vmem:[%s505 + $0x5c] sm:$0xf]
      %v530 = vld [vmem:[%s505 + $0x60] sm:$0xf]
      %v531 = vld [vmem:[%s505 + $0x64] sm:$0xf]
      %v532 = vld [vmem:[%s505 + $0x68] sm:$0xf]
      %v533 = vld [vmem:[%s505 + $0x6c] sm:$0xf]
      %v534 = vld [vmem:[%s505 + $0x70] sm:$0xf]
      %v535 = vld [vmem:[%s505 + $0x74] sm:$0xf]
      %v536 = vld [vmem:[%s505 + $0x78] sm:$0xf]
      %v537 = vld [vmem:[%s505 + $0x7c] sm:$0xf]
      %v538 = vld [vmem:[%s505 + $0x80] sm:$0xf]
      %v539 = vld [vmem:[%s505 + $0x84] sm:$0xf]
      %v540 = vld [vmem:[%s505 + $0x88] sm:$0xf]
      %v541 = vld [vmem:[%s505 + $0x8c] sm:$0xf]
      %v542 = vld [vmem:[%s505 + $0x90] sm:$0xf]
      %v543 = vld [vmem:[%s505 + $0x94] sm:$0xf]
      %v544 = vld [vmem:[%s505 + $0x98] sm:$0xf]
      %v545 = vld [vmem:[%s505 + $0x9c] sm:$0xf]
      %v546 = vld [vmem:[%s505 + $0xa0] sm:$0xf]
      %v547 = vld [vmem:[%s505 + $0xa4] sm:$0xf]
      %v548 = vld [vmem:[%s505 + $0xa8] sm:$0xf]
      %v549 = vld [vmem:[%s505 + $0xac] sm:$0xf]
      %v550 = vld [vmem:[%s505 + $0xb0] sm:$0xf]
      %v551 = vld [vmem:[%s505 + $0xb4] sm:$0xf]
      %v552 = vld [vmem:[%s505 + $0xb8] sm:$0xf]
      %v553 = vld [vmem:[%s505 + $0xbc] sm:$0xf]
      %v554 = vld [vmem:[%s505 + $0xc0] sm:$0xf]
      %v555 = vld [vmem:[%s505 + $0xc4] sm:$0xf]
      %v556 = vld [vmem:[%s505 + $0xc8] sm:$0xf]
      %v557 = vld [vmem:[%s505 + $0xcc] sm:$0xf]
      %v558 = vld [vmem:[%s505 + $0xd0] sm:$0xf]
      %v559 = vld [vmem:[%s505 + $0xd4] sm:$0xf]
      %v560 = vld [vmem:[%s505 + $0xd8] sm:$0xf]
      %v561 = vld [vmem:[%s505 + $0xdc] sm:$0xf]
      %v562 = vld [vmem:[%s505 + $0xe0] sm:$0xf]
      %v563 = vld [vmem:[%s505 + $0xe4] sm:$0xf]
      %v564 = vld [vmem:[%s505 + $0xe8] sm:$0xf]
      %v565 = vld [vmem:[%s505 + $0xec] sm:$0xf]
      %v566 = vld [vmem:[%s505 + $0xf0] sm:$0xf]
      %v567 = vld [vmem:[%s505 + $0xf4] sm:$0xf]
      %v568 = vld [vmem:[%s505 + $0xf8] sm:$0xf]
      %v569 = vld [vmem:[%s505 + $0xfc] sm:$0xf]
      %v570 = vld [vmem:[%s505 + $0x100] sm:$0xf]
      %v571 = vld [vmem:[%s505 + $0x104] sm:$0xf]
      %v572 = vld [vmem:[%s505 + $0x108] sm:$0xf]
      %v573 = vld [vmem:[%s505 + $0x10c] sm:$0xf]
      %v574 = vld [vmem:[%s505 + $0x110] sm:$0xf]
      %v575 = vld [vmem:[%s505 + $0x114] sm:$0xf]
      %v576 = vld [vmem:[%s505 + $0x118] sm:$0xf]
      %v577 = vld [vmem:[%s505 + $0x11c] sm:$0xf]
      %v578 = vld [vmem:[%s505 + $0x120] sm:$0xf]
      %v579 = vld [vmem:[%s505 + $0x124] sm:$0xf]
      %v580 = vld [vmem:[%s505 + $0x128] sm:$0xf]
      %v581 = vld [vmem:[%s505 + $0x12c] sm:$0xf]
      %v582 = vld [vmem:[%s505 + $0x130] sm:$0xf]
      %v583 = vld [vmem:[%s505 + $0x134] sm:$0xf]
      %v584 = vld [vmem:[%s505 + $0x138] sm:$0xf]
      %v585 = vld [vmem:[%s505 + $0x13c] sm:$0xf]
      %v586 = vld [vmem:[%s505 + $0x140] sm:$0xf]
      %v587 = vld [vmem:[%s505 + $0x144] sm:$0xf]
      %v588 = vld [vmem:[%s505 + $0x148] sm:$0xf]
      %v589 = vld [vmem:[%s505 + $0x14c] sm:$0xf]
      %v590 = vld [vmem:[%s505 + $0x150] sm:$0xf]
      %v591 = vld [vmem:[%s505 + $0x154] sm:$0xf]
      %v592 = vld [vmem:[%s505 + $0x158] sm:$0xf]
      %v593 = vld [vmem:[%s505 + $0x15c] sm:$0xf]
      %v594 = vld [vmem:[%s505 + $0x160] sm:$0xf]
      %v595 = vld [vmem:[%s505 + $0x164] sm:$0xf]
      %v596 = vld [vmem:[%s505 + $0x168] sm:$0xf]
      %v597 = vld [vmem:[%s505 + $0x16c] sm:$0xf]
      %v598 = vld [vmem:[%s505 + $0x170] sm:$0xf]
      %v599 = vld [vmem:[%s505 + $0x174] sm:$0xf]
      %v600 = vld [vmem:[%s505 + $0x178] sm:$0xf]
      %v601 = vld [vmem:[%s505 + $0x17c] sm:$0xf]
      %v698 = vunpack.c.l.b16 %v409
      %v699 = vunpack.c.h.b16 %v409
      %v700 = vunpack.c.l.b16 %v410
      %v701 = vunpack.c.h.b16 %v410
      %v702 = vunpack.c.l.b16 %v411
      %v703 = vunpack.c.h.b16 %v411
      %v704 = vunpack.c.l.b16 %v412
      %v705 = vunpack.c.h.b16 %v412
      %v706 = vunpack.c.l.b16 %v413
      %v707 = vunpack.c.h.b16 %v413
      %v708 = vunpack.c.l.b16 %v414
      %v709 = vunpack.c.h.b16 %v414
      %v710 = vunpack.c.l.b16 %v415
      %v711 = vunpack.c.h.b16 %v415
      %v712 = vunpack.c.l.b16 %v416
      %v713 = vunpack.c.h.b16 %v416
      %v714 = vunpack.c.l.b16 %v417
      %v715 = vunpack.c.h.b16 %v417
      %v716 = vunpack.c.l.b16 %v418
      %v717 = vunpack.c.h.b16 %v418
      %v718 = vunpack.c.l.b16 %v419
      %v719 = vunpack.c.h.b16 %v419
      %v720 = vunpack.c.l.b16 %v420
      %v721 = vunpack.c.h.b16 %v420
      %v722 = vunpack.c.l.b16 %v421
      %v723 = vunpack.c.h.b16 %v421
      %v724 = vunpack.c.l.b16 %v422
      %v725 = vunpack.c.h.b16 %v422
      %v726 = vunpack.c.l.b16 %v423
      %v727 = vunpack.c.h.b16 %v423
      %v728 = vunpack.c.l.b16 %v424
      %v729 = vunpack.c.h.b16 %v424
      %v730 = vunpack.c.l.b16 %v425
      %v731 = vunpack.c.h.b16 %v425
      %v732 = vunpack.c.l.b16 %v426
      %v733 = vunpack.c.h.b16 %v426
      %v734 = vunpack.c.l.b16 %v427
      %v735 = vunpack.c.h.b16 %v427
      %v736 = vunpack.c.l.b16 %v428
      %v737 = vunpack.c.h.b16 %v428
      %v738 = vunpack.c.l.b16 %v429
      %v739 = vunpack.c.h.b16 %v429
      %v740 = vunpack.c.l.b16 %v430
      %v741 = vunpack.c.h.b16 %v430
      %v742 = vunpack.c.l.b16 %v431
      %v743 = vunpack.c.h.b16 %v431
      %v744 = vunpack.c.l.b16 %v432
      %v745 = vunpack.c.h.b16 %v432
      %v746 = vunpack.c.l.b16 %v433
      %v747 = vunpack.c.h.b16 %v433
      %v748 = vunpack.c.l.b16 %v434
      %v749 = vunpack.c.h.b16 %v434
      %v750 = vunpack.c.l.b16 %v435
      %v751 = vunpack.c.h.b16 %v435
      %v752 = vunpack.c.l.b16 %v436
      %v753 = vunpack.c.h.b16 %v436
      %v754 = vunpack.c.l.b16 %v437
      %v755 = vunpack.c.h.b16 %v437
      %v756 = vunpack.c.l.b16 %v438
      %v757 = vunpack.c.h.b16 %v438
      %v758 = vunpack.c.l.b16 %v439
      %v759 = vunpack.c.h.b16 %v439
      %v760 = vunpack.c.l.b16 %v440
      %v761 = vunpack.c.h.b16 %v440
      %v762 = vunpack.c.l.b16 %v441
      %v763 = vunpack.c.h.b16 %v441
      %v764 = vunpack.c.l.b16 %v442
      %v765 = vunpack.c.h.b16 %v442
      %v766 = vunpack.c.l.b16 %v443
      %v767 = vunpack.c.h.b16 %v443
      %v768 = vunpack.c.l.b16 %v444
      %v769 = vunpack.c.h.b16 %v444
      %v770 = vunpack.c.l.b16 %v445
      %v771 = vunpack.c.h.b16 %v445
      %v772 = vunpack.c.l.b16 %v446
      %v773 = vunpack.c.h.b16 %v446
      %v774 = vunpack.c.l.b16 %v447
      %v775 = vunpack.c.h.b16 %v447
      %v776 = vunpack.c.l.b16 %v448
      %v777 = vunpack.c.h.b16 %v448
      %v778 = vunpack.c.l.b16 %v449
      %v779 = vunpack.c.h.b16 %v449
      %v780 = vunpack.c.l.b16 %v450
      %v781 = vunpack.c.h.b16 %v450
      %v782 = vunpack.c.l.b16 %v451
      %v783 = vunpack.c.h.b16 %v451
      %v784 = vunpack.c.l.b16 %v452
      %v785 = vunpack.c.h.b16 %v452
      %v786 = vunpack.c.l.b16 %v453
      %v787 = vunpack.c.h.b16 %v453
      %v788 = vunpack.c.l.b16 %v454
      %v789 = vunpack.c.h.b16 %v454
      %v790 = vunpack.c.l.b16 %v455
      %v791 = vunpack.c.h.b16 %v455
      %v792 = vunpack.c.l.b16 %v456
      %v793 = vunpack.c.h.b16 %v456
      %v794 = vunpack.c.l.b16 %v457
      %v795 = vunpack.c.h.b16 %v457
      %v796 = vunpack.c.l.b16 %v458
      %v797 = vunpack.c.h.b16 %v458
      %v798 = vunpack.c.l.b16 %v459
      %v799 = vunpack.c.h.b16 %v459
      %v800 = vunpack.c.l.b16 %v460
      %v801 = vunpack.c.h.b16 %v460
      %v802 = vunpack.c.l.b16 %v461
      %v803 = vunpack.c.h.b16 %v461
      %v804 = vunpack.c.l.b16 %v462
      %v805 = vunpack.c.h.b16 %v462
      %v806 = vunpack.c.l.b16 %v463
      %v807 = vunpack.c.h.b16 %v463
      %v808 = vunpack.c.l.b16 %v464
      %v809 = vunpack.c.h.b16 %v464
      %v810 = vunpack.c.l.b16 %v465
      %v811 = vunpack.c.h.b16 %v465
      %v812 = vunpack.c.l.b16 %v466
      %v813 = vunpack.c.h.b16 %v466
      %v814 = vunpack.c.l.b16 %v467
      %v815 = vunpack.c.h.b16 %v467
      %v816 = vunpack.c.l.b16 %v468
      %v817 = vunpack.c.h.b16 %v468
      %v818 = vunpack.c.l.b16 %v469
      %v819 = vunpack.c.h.b16 %v469
      %v820 = vunpack.c.l.b16 %v470
      %v821 = vunpack.c.h.b16 %v470
      %v822 = vunpack.c.l.b16 %v471
      %v823 = vunpack.c.h.b16 %v471
      %v824 = vunpack.c.l.b16 %v472
      %v825 = vunpack.c.h.b16 %v472
      %v826 = vunpack.c.l.b16 %v473
      %v827 = vunpack.c.h.b16 %v473
      %v828 = vunpack.c.l.b16 %v474
      %v829 = vunpack.c.h.b16 %v474
      %v830 = vunpack.c.l.b16 %v475
      %v831 = vunpack.c.h.b16 %v475
      %v832 = vunpack.c.l.b16 %v476
      %v833 = vunpack.c.h.b16 %v476
      %v834 = vunpack.c.l.b16 %v477
      %v835 = vunpack.c.h.b16 %v477
      %v836 = vunpack.c.l.b16 %v478
      %v837 = vunpack.c.h.b16 %v478
      %v838 = vunpack.c.l.b16 %v479
      %v839 = vunpack.c.h.b16 %v479
      %v840 = vunpack.c.l.b16 %v480
      %v841 = vunpack.c.h.b16 %v480
      %v842 = vunpack.c.l.b16 %v481
      %v843 = vunpack.c.h.b16 %v481
      %v844 = vunpack.c.l.b16 %v482
      %v845 = vunpack.c.h.b16 %v482
      %v846 = vunpack.c.l.b16 %v483
      %v847 = vunpack.c.h.b16 %v483
      %v848 = vunpack.c.l.b16 %v484
      %v849 = vunpack.c.h.b16 %v484
      %v850 = vunpack.c.l.b16 %v485
      %v851 = vunpack.c.h.b16 %v485
      %v852 = vunpack.c.l.b16 %v486
      %v853 = vunpack.c.h.b16 %v486
      %v854 = vunpack.c.l.b16 %v487
      %v855 = vunpack.c.h.b16 %v487
      %v856 = vunpack.c.l.b16 %v488
      %v857 = vunpack.c.h.b16 %v488
      %v858 = vunpack.c.l.b16 %v489
      %v859 = vunpack.c.h.b16 %v489
      %v860 = vunpack.c.l.b16 %v490
      %v861 = vunpack.c.h.b16 %v490
      %v862 = vunpack.c.l.b16 %v491
      %v863 = vunpack.c.h.b16 %v491
      %v864 = vunpack.c.l.b16 %v492
      %v865 = vunpack.c.h.b16 %v492
      %v866 = vunpack.c.l.b16 %v493
      %v867 = vunpack.c.h.b16 %v493
      %v868 = vunpack.c.l.b16 %v494
      %v869 = vunpack.c.h.b16 %v494
      %v870 = vunpack.c.l.b16 %v495
      %v871 = vunpack.c.h.b16 %v495
      %v872 = vunpack.c.l.b16 %v496
      %v873 = vunpack.c.h.b16 %v496
      %v874 = vunpack.c.l.b16 %v497
      %v875 = vunpack.c.h.b16 %v497
      %v876 = vunpack.c.l.b16 %v498
      %v877 = vunpack.c.h.b16 %v498
      %v878 = vunpack.c.l.b16 %v499
      %v879 = vunpack.c.h.b16 %v499
      %v880 = vunpack.c.l.b16 %v500
      %v881 = vunpack.c.h.b16 %v500
      %v882 = vunpack.c.l.b16 %v501
      %v883 = vunpack.c.h.b16 %v501
      %v884 = vunpack.c.l.b16 %v502
      %v885 = vunpack.c.h.b16 %v502
      %v886 = vunpack.c.l.b16 %v503
      %v887 = vunpack.c.h.b16 %v503
      %v888 = vunpack.c.l.b16 %v504
      %v889 = vunpack.c.h.b16 %v504
      %v890 = vpack.c.b16 %v704, %v698
      %v891 = vpack.c.b16 %v705, %v699
      %v892 = vpack.c.b16 %v706, %v700
      %v893 = vpack.c.b16 %v707, %v701
      %v894 = vpack.c.b16 %v708, %v702
      %v895 = vpack.c.b16 %v709, %v703
      %v896 = vpack.c.b16 %v716, %v710
      %v897 = vpack.c.b16 %v717, %v711
      %v898 = vpack.c.b16 %v718, %v712
      %v899 = vpack.c.b16 %v719, %v713
      %v900 = vpack.c.b16 %v720, %v714
      %v901 = vpack.c.b16 %v721, %v715
      %v902 = vpack.c.b16 %v728, %v722
      %v903 = vpack.c.b16 %v729, %v723
      %v904 = vpack.c.b16 %v730, %v724
      %v905 = vpack.c.b16 %v731, %v725
      %v906 = vpack.c.b16 %v732, %v726
      %v907 = vpack.c.b16 %v733, %v727
      %v908 = vpack.c.b16 %v740, %v734
      %v909 = vpack.c.b16 %v741, %v735
      %v910 = vpack.c.b16 %v742, %v736
      %v911 = vpack.c.b16 %v743, %v737
      %v912 = vpack.c.b16 %v744, %v738
      %v913 = vpack.c.b16 %v745, %v739
      %v914 = vpack.c.b16 %v752, %v746
      %v915 = vpack.c.b16 %v753, %v747
      %v916 = vpack.c.b16 %v754, %v748
      %v917 = vpack.c.b16 %v755, %v749
      %v918 = vpack.c.b16 %v756, %v750
      %v919 = vpack.c.b16 %v757, %v751
      %v920 = vpack.c.b16 %v764, %v758
      %v921 = vpack.c.b16 %v765, %v759
      %v922 = vpack.c.b16 %v766, %v760
      %v923 = vpack.c.b16 %v767, %v761
      %v924 = vpack.c.b16 %v768, %v762
      %v925 = vpack.c.b16 %v769, %v763
      %v926 = vpack.c.b16 %v776, %v770
      %v927 = vpack.c.b16 %v777, %v771
      %v928 = vpack.c.b16 %v778, %v772
      %v929 = vpack.c.b16 %v779, %v773
      %v930 = vpack.c.b16 %v780, %v774
      %v931 = vpack.c.b16 %v781, %v775
      %v932 = vpack.c.b16 %v788, %v782
      %v933 = vpack.c.b16 %v789, %v783
      %v934 = vpack.c.b16 %v790, %v784
      %v935 = vpack.c.b16 %v791, %v785
      %v936 = vpack.c.b16 %v792, %v786
      %v937 = vpack.c.b16 %v793, %v787
      %v938 = vpack.c.b16 %v800, %v794
      %v939 = vpack.c.b16 %v801, %v795
      %v940 = vpack.c.b16 %v802, %v796
      %v941 = vpack.c.b16 %v803, %v797
      %v942 = vpack.c.b16 %v804, %v798
      %v943 = vpack.c.b16 %v805, %v799
      %v944 = vpack.c.b16 %v812, %v806
      %v945 = vpack.c.b16 %v813, %v807
      %v946 = vpack.c.b16 %v814, %v808
      %v947 = vpack.c.b16 %v815, %v809
      %v948 = vpack.c.b16 %v816, %v810
      %v949 = vpack.c.b16 %v817, %v811
      %v950 = vpack.c.b16 %v824, %v818
      %v951 = vpack.c.b16 %v825, %v819
      %v952 = vpack.c.b16 %v826, %v820
      %v953 = vpack.c.b16 %v827, %v821
      %v954 = vpack.c.b16 %v828, %v822
      %v955 = vpack.c.b16 %v829, %v823
      %v956 = vpack.c.b16 %v836, %v830
      %v957 = vpack.c.b16 %v837, %v831
      %v958 = vpack.c.b16 %v838, %v832
      %v959 = vpack.c.b16 %v839, %v833
      %v960 = vpack.c.b16 %v840, %v834
      %v961 = vpack.c.b16 %v841, %v835
      %v962 = vpack.c.b16 %v848, %v842
      %v963 = vpack.c.b16 %v849, %v843
      %v964 = vpack.c.b16 %v850, %v844
      %v965 = vpack.c.b16 %v851, %v845
      %v966 = vpack.c.b16 %v852, %v846
      %v967 = vpack.c.b16 %v853, %v847
      %v968 = vpack.c.b16 %v860, %v854
      %v969 = vpack.c.b16 %v861, %v855
      %v970 = vpack.c.b16 %v862, %v856
      %v971 = vpack.c.b16 %v863, %v857
      %v972 = vpack.c.b16 %v864, %v858
      %v973 = vpack.c.b16 %v865, %v859
      %v974 = vpack.c.b16 %v872, %v866
      %v975 = vpack.c.b16 %v873, %v867
      %v976 = vpack.c.b16 %v874, %v868
      %v977 = vpack.c.b16 %v875, %v869
      %v978 = vpack.c.b16 %v876, %v870
      %v979 = vpack.c.b16 %v877, %v871
      %v980 = vpack.c.b16 %v884, %v878
      %v981 = vpack.c.b16 %v885, %v879
      %v982 = vpack.c.b16 %v886, %v880
      %v983 = vpack.c.b16 %v887, %v881
      %v984 = vpack.c.b16 %v888, %v882
      %v985 = vpack.c.b16 %v889, %v883
      %v1178 = vunpack.c.l.b16 %v506
      %v1179 = vunpack.c.l.b16 %v507
      %v1180 = vunpack.c.l.b16 %v508
      %v1181 = vunpack.c.l.b16 %v509
      %v1182 = vunpack.c.l.b16 %v510
      %v1183 = vunpack.c.l.b16 %v511
      %v1184 = vunpack.c.l.b16 %v512
      %v1185 = vunpack.c.l.b16 %v513
      %v1186 = vunpack.c.l.b16 %v514
      %v1187 = vunpack.c.l.b16 %v515
      %v1188 = vunpack.c.l.b16 %v516
      %v1189 = vunpack.c.l.b16 %v517
      %v1190 = vunpack.c.l.b16 %v518
      %v1191 = vunpack.c.l.b16 %v519
      %v1192 = vunpack.c.l.b16 %v520
      %v1193 = vunpack.c.l.b16 %v521
      %v1194 = vunpack.c.l.b16 %v522
      %v1195 = vunpack.c.l.b16 %v523
      %v1196 = vunpack.c.l.b16 %v524
      %v1197 = vunpack.c.l.b16 %v525
      %v1198 = vunpack.c.l.b16 %v526
      %v1199 = vunpack.c.l.b16 %v527
      %v1200 = vunpack.c.l.b16 %v528
      %v1201 = vunpack.c.l.b16 %v529
      %v1202 = vunpack.c.l.b16 %v530
      %v1203 = vunpack.c.l.b16 %v531
      %v1204 = vunpack.c.l.b16 %v532
      %v1205 = vunpack.c.l.b16 %v533
      %v1206 = vunpack.c.l.b16 %v534
      %v1207 = vunpack.c.l.b16 %v535
      %v1208 = vunpack.c.l.b16 %v536
      %v1209 = vunpack.c.l.b16 %v537
      %v1210 = vunpack.c.l.b16 %v538
      %v1211 = vunpack.c.l.b16 %v539
      %v1212 = vunpack.c.l.b16 %v540
      %v1213 = vunpack.c.l.b16 %v541
      %v1214 = vunpack.c.l.b16 %v542
      %v1215 = vunpack.c.l.b16 %v543
      %v1216 = vunpack.c.l.b16 %v544
      %v1217 = vunpack.c.l.b16 %v545
      %v1218 = vunpack.c.l.b16 %v546
      %v1219 = vunpack.c.l.b16 %v547
      %v1220 = vunpack.c.l.b16 %v548
      %v1221 = vunpack.c.l.b16 %v549
      %v1222 = vunpack.c.l.b16 %v550
      %v1223 = vunpack.c.l.b16 %v551
      %v1224 = vunpack.c.l.b16 %v552
      %v1225 = vunpack.c.l.b16 %v553
      %v1226 = vunpack.c.l.b16 %v554
      %v1227 = vunpack.c.l.b16 %v555
      %v1228 = vunpack.c.l.b16 %v556
      %v1229 = vunpack.c.l.b16 %v557
      %v1230 = vunpack.c.l.b16 %v558
      %v1231 = vunpack.c.l.b16 %v559
      %v1232 = vunpack.c.l.b16 %v560
      %v1233 = vunpack.c.l.b16 %v561
      %v1234 = vunpack.c.l.b16 %v562
      %v1235 = vunpack.c.l.b16 %v563
      %v1236 = vunpack.c.l.b16 %v564
      %v1237 = vunpack.c.l.b16 %v565
      %v1238 = vunpack.c.l.b16 %v566
      %v1239 = vunpack.c.l.b16 %v567
      %v1240 = vunpack.c.l.b16 %v568
      %v1241 = vunpack.c.l.b16 %v569
      %v1242 = vunpack.c.l.b16 %v570
      %v1243 = vunpack.c.l.b16 %v571
      %v1244 = vunpack.c.l.b16 %v572
      %v1245 = vunpack.c.l.b16 %v573
      %v1246 = vunpack.c.l.b16 %v574
      %v1247 = vunpack.c.l.b16 %v575
      %v1248 = vunpack.c.l.b16 %v576
      %v1249 = vunpack.c.l.b16 %v577
      %v1250 = vunpack.c.l.b16 %v578
      %v1251 = vunpack.c.l.b16 %v579
      %v1252 = vunpack.c.l.b16 %v580
      %v1253 = vunpack.c.l.b16 %v581
      %v1254 = vunpack.c.l.b16 %v582
      %v1255 = vunpack.c.l.b16 %v583
      %v1256 = vunpack.c.l.b16 %v584
      %v1257 = vunpack.c.l.b16 %v585
      %v1258 = vunpack.c.l.b16 %v586
      %v1259 = vunpack.c.l.b16 %v587
      %v1260 = vunpack.c.l.b16 %v588
      %v1261 = vunpack.c.l.b16 %v589
      %v1262 = vunpack.c.l.b16 %v590
      %v1263 = vunpack.c.l.b16 %v591
      %v1264 = vunpack.c.l.b16 %v592
      %v1265 = vunpack.c.l.b16 %v593
      %v1266 = vunpack.c.l.b16 %v594
      %v1267 = vunpack.c.l.b16 %v595
      %v1268 = vunpack.c.l.b16 %v596
      %v1269 = vunpack.c.l.b16 %v597
      %v1270 = vunpack.c.l.b16 %v598
      %v1271 = vunpack.c.l.b16 %v599
      %v1272 = vunpack.c.l.b16 %v600
      %v1273 = vunpack.c.l.b16 %v601
      %v1274 = vpack.c.b16 %v1179, %v1178
      %v1275 = vpack.c.b16 %v1181, %v1180
      %v1276 = vpack.c.b16 %v1183, %v1182
      %v1277 = vpack.c.b16 %v1185, %v1184
      %v1278 = vpack.c.b16 %v1187, %v1186
      %v1279 = vpack.c.b16 %v1189, %v1188
      %v1280 = vpack.c.b16 %v1191, %v1190
      %v1281 = vpack.c.b16 %v1193, %v1192
      %v1282 = vpack.c.b16 %v1195, %v1194
      %v1283 = vpack.c.b16 %v1197, %v1196
      %v1284 = vpack.c.b16 %v1199, %v1198
      %v1285 = vpack.c.b16 %v1201, %v1200
      %v1286 = vpack.c.b16 %v1203, %v1202
      %v1287 = vpack.c.b16 %v1205, %v1204
      %v1288 = vpack.c.b16 %v1207, %v1206
      %v1289 = vpack.c.b16 %v1209, %v1208
      %v1290 = vpack.c.b16 %v1211, %v1210
      %v1291 = vpack.c.b16 %v1213, %v1212
      %v1292 = vpack.c.b16 %v1215, %v1214
      %v1293 = vpack.c.b16 %v1217, %v1216
      %v1294 = vpack.c.b16 %v1219, %v1218
      %v1295 = vpack.c.b16 %v1221, %v1220
      %v1296 = vpack.c.b16 %v1223, %v1222
      %v1297 = vpack.c.b16 %v1225, %v1224
      %v1298 = vpack.c.b16 %v1227, %v1226
      %v1299 = vpack.c.b16 %v1229, %v1228
      %v1300 = vpack.c.b16 %v1231, %v1230
      %v1301 = vpack.c.b16 %v1233, %v1232
      %v1302 = vpack.c.b16 %v1235, %v1234
      %v1303 = vpack.c.b16 %v1237, %v1236
      %v1304 = vpack.c.b16 %v1239, %v1238
      %v1305 = vpack.c.b16 %v1241, %v1240
      %v1306 = vpack.c.b16 %v1243, %v1242
      %v1307 = vpack.c.b16 %v1245, %v1244
      %v1308 = vpack.c.b16 %v1247, %v1246
      %v1309 = vpack.c.b16 %v1249, %v1248
      %v1310 = vpack.c.b16 %v1251, %v1250
      %v1311 = vpack.c.b16 %v1253, %v1252
      %v1312 = vpack.c.b16 %v1255, %v1254
      %v1313 = vpack.c.b16 %v1257, %v1256
      %v1314 = vpack.c.b16 %v1259, %v1258
      %v1315 = vpack.c.b16 %v1261, %v1260
      %v1316 = vpack.c.b16 %v1263, %v1262
      %v1317 = vpack.c.b16 %v1265, %v1264
      %v1318 = vpack.c.b16 %v1267, %v1266
      %v1319 = vpack.c.b16 %v1269, %v1268
      %v1320 = vpack.c.b16 %v1271, %v1270
      %v1321 = vpack.c.b16 %v1273, %v1272
      %1370 = vmatprep.subr.bf16.mxu0 0
      %1371 = vmatpush1.bf16.msra.mxu0 %v1274
      %1372 = vmatprep.subr.bf16.mxu0 0
      %1373 = vmatpush1.bf16.msra.mxu0 %v1275
      %1374 = vmatprep.subr.bf16.mxu0 0
      %1375 = vmatpush1.bf16.msra.mxu0 %v1276
      %1376 = vmatprep.subr.bf16.mxu0 0
      %1377 = vmatpush1.bf16.msra.mxu0 %v1277
      %1378 = vmatprep.subr.bf16.mxu0 0
      %1379 = vmatpush1.bf16.msra.mxu0 %v1278
      %1380 = vmatprep.subr.bf16.mxu0 0
      %1381 = vmatpush1.bf16.msra.mxu0 %v1279
      %1382 = vmatprep.subr.bf16.mxu0 0
      %1383 = vmatpush1.bf16.msra.mxu0 %v1280
      %1384 = vmatprep.subr.bf16.mxu0 0
      %1385 = vmatpush1.bf16.msra.mxu0 %v1281
      %1386 = vmatprep.subr.bf16.mxu0 0
      %1387 = vmatpush1.bf16.msra.mxu0 %v1282
      %1388 = vmatprep.subr.bf16.mxu0 0
      %1389 = vmatpush1.bf16.msra.mxu0 %v1283
      %1390 = vmatprep.subr.bf16.mxu0 0
      %1391 = vmatpush1.bf16.msra.mxu0 %v1284
      %1392 = vmatprep.subr.bf16.mxu0 0
      %1393 = vmatpush1.bf16.msra.mxu0 %v1285
      %1394 = vmatprep.subr.bf16.mxu0 0
      %1395 = vmatpush1.bf16.msra.mxu0 %v1286
      %1396 = vmatprep.subr.bf16.mxu0 0
      %1397 = vmatpush1.bf16.msra.mxu0 %v1287
      %1398 = vmatprep.subr.bf16.mxu0 0
      %1399 = vmatpush1.bf16.msra.mxu0 %v1288
      %1400 = vmatprep.subr.bf16.mxu0 0
      %1401 = vmatpush1.bf16.msra.mxu0 %v1289
      %1402 = vmatprep.mubr.bf16.mxu0 %v891
      %1403 = vmatmul.mubr.bf16.gmra.mrb[0].mxu0 %v890
      %v1404 = vpop.f32.mrb[0].mxu0
      %v1405 = vadd.f32 0.0, %v1404
      %v1406 = vpop.f32.mrb[0].mxu0
      %v1407 = vpop.f32.mrb[0].mxu0
      %v1408 = vadd.f32 0.0, %v1407
      %v1409 = vpop.f32.mrb[0].mxu0
      %1410 = vmatprep.mubr.bf16.mxu0 %v897
      %1411 = vmatmul.mubr.bf16.gmra.mrb[0].mxu0 %v896
      %v1412 = vpop.f32.mrb[0].mxu0
      %v1413 = vadd.f32 0.0, %v1412
      %v1414 = vpop.f32.mrb[0].mxu0
      %v1415 = vpop.f32.mrb[0].mxu0
      %v1416 = vadd.f32 0.0, %v1415
      %v1417 = vpop.f32.mrb[0].mxu0
      %1418 = vmatprep.mubr.bf16.mxu0 %v903
      %1419 = vmatmul.mubr.bf16.gmra.mrb[0].mxu0 %v902
      %v1420 = vpop.f32.mrb[0].mxu0
      %v1421 = vadd.f32 0.0, %v1420
      %v1422 = vpop.f32.mrb[0].mxu0
      %v1423 = vpop.f32.mrb[0].mxu0
      %v1424 = vadd.f32 0.0, %v1423
      %v1425 = vpop.f32.mrb[0].mxu0
      %1426 = vmatprep.mubr.bf16.mxu0 %v909
      %1427 = vmatmul.mubr.bf16.gmra.mrb[0].mxu0 %v908
      %v1428 = vpop.f32.mrb[0].mxu0
      %v1429 = vadd.f32 0.0, %v1428
      %v1430 = vpop.f32.mrb[0].mxu0
      %v1431 = vpop.f32.mrb[0].mxu0
      %v1432 = vadd.f32 0.0, %v1431
      %v1433 = vpop.f32.mrb[0].mxu0
      %1434 = vmatprep.mubr.bf16.mxu0 %v915
      %1435 = vmatmul.mubr.bf16.gmra.mrb[0].mxu0 %v914
      %v1436 = vpop.f32.mrb[0].mxu0
      %v1437 = vadd.f32 0.0, %v1436
      %v1438 = vpop.f32.mrb[0].mxu0
      %v1439 = vpop.f32.mrb[0].mxu0
      %v1440 = vadd.f32 0.0, %v1439
      %v1441 = vpop.f32.mrb[0].mxu0
      %1442 = vmatprep.mubr.bf16.mxu0 %v921
      %1443 = vmatmul.mubr.bf16.gmra.mrb[0].mxu0 %v920
      %v1444 = vpop.f32.mrb[0].mxu0
      %v1445 = vadd.f32 0.0, %v1444
      %v1446 = vpop.f32.mrb[0].mxu0
      %v1447 = vpop.f32.mrb[0].mxu0
      %v1448 = vadd.f32 0.0, %v1447
      %v1449 = vpop.f32.mrb[0].mxu0
      %1450 = vmatprep.mubr.bf16.mxu0 %v927
      %1451 = vmatmul.mubr.bf16.gmra.mrb[0].mxu0 %v926
      %v1452 = vpop.f32.mrb[0].mxu0
      %v1453 = vadd.f32 0.0, %v1452
      %v1454 = vpop.f32.mrb[0].mxu0
      %v1455 = vpop.f32.mrb[0].mxu0
      %v1456 = vadd.f32 0.0, %v1455
      %v1457 = vpop.f32.mrb[0].mxu0
      %1458 = vmatprep.mubr.bf16.mxu0 %v933
      %1459 = vmatmul.mubr.bf16.gmra.mrb[0].mxu0 %v932
      %v1460 = vpop.f32.mrb[0].mxu0
      %v1461 = vadd.f32 0.0, %v1460
      %v1462 = vpop.f32.mrb[0].mxu0
      %v1463 = vpop.f32.mrb[0].mxu0
      %v1464 = vadd.f32 0.0, %v1463
      %v1465 = vpop.f32.mrb[0].mxu0
      %1466 = vmatprep.mubr.bf16.mxu0 %v939
      %1467 = vmatmul.mubr.bf16.gmra.mrb[0].mxu0 %v938
      %v1468 = vpop.f32.mrb[0].mxu0
      %v1469 = vadd.f32 0.0, %v1468
      %v1470 = vpop.f32.mrb[0].mxu0
      %v1471 = vpop.f32.mrb[0].mxu0
      %v1472 = vadd.f32 0.0, %v1471
      %v1473 = vpop.f32.mrb[0].mxu0
      %1474 = vmatprep.mubr.bf16.mxu0 %v945
      %1475 = vmatmul.mubr.bf16.gmra.mrb[0].mxu0 %v944
      %v1476 = vpop.f32.mrb[0].mxu0
      %v1477 = vadd.f32 0.0, %v1476
      %v1478 = vpop.f32.mrb[0].mxu0
      %v1479 = vpop.f32.mrb[0].mxu0
      %v1480 = vadd.f32 0.0, %v1479
      %v1481 = vpop.f32.mrb[0].mxu0
      %1482 = vmatprep.mubr.bf16.mxu0 %v951
      %1483 = vmatmul.mubr.bf16.gmra.mrb[0].mxu0 %v950
      %v1484 = vpop.f32.mrb[0].mxu0
      %v1485 = vadd.f32 0.0, %v1484
      %v1486 = vpop.f32.mrb[0].mxu0
      %v1487 = vpop.f32.mrb[0].mxu0
      %v1488 = vadd.f32 0.0, %v1487
      %v1489 = vpop.f32.mrb[0].mxu0
      %1490 = vmatprep.mubr.bf16.mxu0 %v957
      %1491 = vmatmul.mubr.bf16.gmra.mrb[0].mxu0 %v956
      %v1492 = vpop.f32.mrb[0].mxu0
      %v1493 = vadd.f32 0.0, %v1492
      %v1494 = vpop.f32.mrb[0].mxu0
      %v1495 = vpop.f32.mrb[0].mxu0
      %v1496 = vadd.f32 0.0, %v1495
      %v1497 = vpop.f32.mrb[0].mxu0
      %1498 = vmatprep.mubr.bf16.mxu0 %v963
      %1499 = vmatmul.mubr.bf16.gmra.mrb[0].mxu0 %v962
      %v1500 = vpop.f32.mrb[0].mxu0
      %v1501 = vadd.f32 0.0, %v1500
      %v1502 = vpop.f32.mrb[0].mxu0
      %v1503 = vpop.f32.mrb[0].mxu0
      %v1504 = vadd.f32 0.0, %v1503
      %v1505 = vpop.f32.mrb[0].mxu0
      %1506 = vmatprep.mubr.bf16.mxu0 %v969
      %1507 = vmatmul.mubr.bf16.gmra.mrb[0].mxu0 %v968
      %v1508 = vpop.f32.mrb[0].mxu0
      %v1509 = vadd.f32 0.0, %v1508
      %v1510 = vpop.f32.mrb[0].mxu0
      %v1511 = vpop.f32.mrb[0].mxu0
      %v1512 = vadd.f32 0.0, %v1511
      %v1513 = vpop.f32.mrb[0].mxu0
      %1514 = vmatprep.mubr.bf16.mxu0 %v975
      %1515 = vmatmul.mubr.bf16.gmra.mrb[0].mxu0 %v974
      %v1516 = vpop.f32.mrb[0].mxu0
      %v1517 = vadd.f32 0.0, %v1516
      %v1518 = vpop.f32.mrb[0].mxu0
      %v1519 = vpop.f32.mrb[0].mxu0
      %v1520 = vadd.f32 0.0, %v1519
      %v1521 = vpop.f32.mrb[0].mxu0
      %1522 = vmatprep.mubr.bf16.mxu0 %v981
      %1523 = vmatmul.mubr.bf16.gmra.mrb[0].mxu0 %v980
      %v1524 = vpop.f32.mrb[0].mxu0
      %v1525 = vadd.f32 0.0, %v1524
      %v1526 = vpop.f32.mrb[0].mxu0
      %v1527 = vpop.f32.mrb[0].mxu0
      %v1528 = vadd.f32 0.0, %v1527
      %v1529 = vpop.f32.mrb[0].mxu0
      %1530 = vdwg.mxu0
      %1531 = vmatprep.subr.bf16.mxu0 0
      %1532 = vmatpush1.bf16.msra.mxu0 %v1290
      %1533 = vmatprep.subr.bf16.mxu0 0
      %1534 = vmatpush1.bf16.msra.mxu0 %v1291
      %1535 = vmatprep.subr.bf16.mxu0 0
      %1536 = vmatpush1.bf16.msra.mxu0 %v1292
      %1537 = vmatprep.subr.bf16.mxu0 0
      %1538 = vmatpush1.bf16.msra.mxu0 %v1293
      %1539 = vmatprep.subr.bf16.mxu0 0
      %1540 = vmatpush1.bf16.msra.mxu0 %v1294
      %1541 = vmatprep.subr.bf16.mxu0 0
      %1542 = vmatpush1.bf16.msra.mxu0 %v1295
      %1543 = vmatprep.subr.bf16.mxu0 0
      %1544 = vmatpush1.bf16.msra.mxu0 %v1296
      %1545 = vmatprep.subr.bf16.mxu0 0
      %1546 = vmatpush1.bf16.msra.mxu0 %v1297
      %1547 = vmatprep.subr.bf16.mxu0 0
      %1548 = vmatpush1.bf16.msra.mxu0 %v1298
      %1549 = vmatprep.subr.bf16.mxu0 0
      %1550 = vmatpush1.bf16.msra.mxu0 %v1299
      %1551 = vmatprep.subr.bf16.mxu0 0
      %1552 = vmatpush1.bf16.msra.mxu0 %v1300
      %1553 = vmatprep.subr.bf16.mxu0 0
      %1554 = vmatpush1.bf16.msra.mxu0 %v1301
      %1555 = vmatprep.subr.bf16.mxu0 0
      %1556 = vmatpush1.bf16.msra.mxu0 %v1302
      %1557 = vmatprep.subr.bf16.mxu0 0
      %1558 = vmatpush1.bf16.msra.mxu0 %v1303
      %1559 = vmatprep.subr.bf16.mxu0 0
      %1560 = vmatpush1.bf16.msra.mxu0 %v1304
      %1561 = vmatprep.subr.bf16.mxu0 0
      %1562 = vmatpush1.bf16.msra.mxu0 %v1305
      %1563 = vmatprep.mubr.bf16.mxu0 %v893
      %1564 = vmatmul.mubr.bf16.gmra.mrb[0].mxu0 %v892
      %v1565 = vpop.f32.mrb[0].mxu0
      %v1566 = vadd.f32 %v1405, %v1565
      %v1567 = vpop.f32.mrb[0].mxu0
      %v1568 = vpop.f32.mrb[0].mxu0
      %v1569 = vadd.f32 %v1408, %v1568
      %v1570 = vpop.f32.mrb[0].mxu0
      %1571 = vmatprep.mubr.bf16.mxu0 %v899
      %1572 = vmatmul.mubr.bf16.gmra.mrb[0].mxu0 %v898
      %v1573 = vpop.f32.mrb[0].mxu0
      %v1574 = vadd.f32 %v1413, %v1573
      %v1575 = vpop.f32.mrb[0].mxu0
      %v1576 = vpop.f32.mrb[0].mxu0
      %v1577 = vadd.f32 %v1416, %v1576
      %v1578 = vpop.f32.mrb[0].mxu0
      %1579 = vmatprep.mubr.bf16.mxu0 %v905
      %1580 = vmatmul.mubr.bf16.gmra.mrb[0].mxu0 %v904
      %v1581 = vpop.f32.mrb[0].mxu0
      %v1582 = vadd.f32 %v1421, %v1581
      %v1583 = vpop.f32.mrb[0].mxu0
      %v1584 = vpop.f32.mrb[0].mxu0
      %v1585 = vadd.f32 %v1424, %v1584
      %v1586 = vpop.f32.mrb[0].mxu0
      %1587 = vmatprep.mubr.bf16.mxu0 %v911
      %1588 = vmatmul.mubr.bf16.gmra.mrb[0].mxu0 %v910
      %v1589 = vpop.f32.mrb[0].mxu0
      %v1590 = vadd.f32 %v1429, %v1589
      %v1591 = vpop.f32.mrb[0].mxu0
      %v1592 = vpop.f32.mrb[0].mxu0
      %v1593 = vadd.f32 %v1432, %v1592
      %v1594 = vpop.f32.mrb[0].mxu0
      %1595 = vmatprep.mubr.bf16.mxu0 %v917
      %1596 = vmatmul.mubr.bf16.gmra.mrb[0].mxu0 %v916
      %v1597 = vpop.f32.mrb[0].mxu0
      %v1598 = vadd.f32 %v1437, %v1597
      %v1599 = vpop.f32.mrb[0].mxu0
      %v1600 = vpop.f32.mrb[0].mxu0
      %v1601 = vadd.f32 %v1440, %v1600
      %v1602 = vpop.f32.mrb[0].mxu0
      %1603 = vmatprep.mubr.bf16.mxu0 %v923
      %1604 = vmatmul.mubr.bf16.gmra.mrb[0].mxu0 %v922
      %v1605 = vpop.f32.mrb[0].mxu0
      %v1606 = vadd.f32 %v1445, %v1605
      %v1607 = vpop.f32.mrb[0].mxu0
      %v1608 = vpop.f32.mrb[0].mxu0
      %v1609 = vadd.f32 %v1448, %v1608
      %v1610 = vpop.f32.mrb[0].mxu0
      %1611 = vmatprep.mubr.bf16.mxu0 %v929
      %1612 = vmatmul.mubr.bf16.gmra.mrb[0].mxu0 %v928
      %v1613 = vpop.f32.mrb[0].mxu0
      %v1614 = vadd.f32 %v1453, %v1613
      %v1615 = vpop.f32.mrb[0].mxu0
      %v1616 = vpop.f32.mrb[0].mxu0
      %v1617 = vadd.f32 %v1456, %v1616
      %v1618 = vpop.f32.mrb[0].mxu0
      %1619 = vmatprep.mubr.bf16.mxu0 %v935
      %1620 = vmatmul.mubr.bf16.gmra.mrb[0].mxu0 %v934
      %v1621 = vpop.f32.mrb[0].mxu0
      %v1622 = vadd.f32 %v1461, %v1621
      %v1623 = vpop.f32.mrb[0].mxu0
      %v1624 = vpop.f32.mrb[0].mxu0
      %v1625 = vadd.f32 %v1464, %v1624
      %v1626 = vpop.f32.mrb[0].mxu0
      %1627 = vmatprep.mubr.bf16.mxu0 %v941
      %1628 = vmatmul.mubr.bf16.gmra.mrb[0].mxu0 %v940
      %v1629 = vpop.f32.mrb[0].mxu0
      %v1630 = vadd.f32 %v1469, %v1629
      %v1631 = vpop.f32.mrb[0].mxu0
      %v1632 = vpop.f32.mrb[0].mxu0
      %v1633 = vadd.f32 %v1472, %v1632
      %v1634 = vpop.f32.mrb[0].mxu0
      %1635 = vmatprep.mubr.bf16.mxu0 %v947
      %1636 = vmatmul.mubr.bf16.gmra.mrb[0].mxu0 %v946
      %v1637 = vpop.f32.mrb[0].mxu0
      %v1638 = vadd.f32 %v1477, %v1637
      %v1639 = vpop.f32.mrb[0].mxu0
      %v1640 = vpop.f32.mrb[0].mxu0
      %v1641 = vadd.f32 %v1480, %v1640
      %v1642 = vpop.f32.mrb[0].mxu0
      %1643 = vmatprep.mubr.bf16.mxu0 %v953
      %1644 = vmatmul.mubr.bf16.gmra.mrb[0].mxu0 %v952
      %v1645 = vpop.f32.mrb[0].mxu0
      %v1646 = vadd.f32 %v1485, %v1645
      %v1647 = vpop.f32.mrb[0].mxu0
      %v1648 = vpop.f32.mrb[0].mxu0
      %v1649 = vadd.f32 %v1488, %v1648
      %v1650 = vpop.f32.mrb[0].mxu0
      %1651 = vmatprep.mubr.bf16.mxu0 %v959
      %1652 = vmatmul.mubr.bf16.gmra.mrb[0].mxu0 %v958
      %v1653 = vpop.f32.mrb[0].mxu0
      %v1654 = vadd.f32 %v1493, %v1653
      %v1655 = vpop.f32.mrb[0].mxu0
      %v1656 = vpop.f32.mrb[0].mxu0
      %v1657 = vadd.f32 %v1496, %v1656
      %v1658 = vpop.f32.mrb[0].mxu0
      %1659 = vmatprep.mubr.bf16.mxu0 %v965
      %1660 = vmatmul.mubr.bf16.gmra.mrb[0].mxu0 %v964
      %v1661 = vpop.f32.mrb[0].mxu0
      %v1662 = vadd.f32 %v1501, %v1661
      %v1663 = vpop.f32.mrb[0].mxu0
      %v1664 = vpop.f32.mrb[0].mxu0
      %v1665 = vadd.f32 %v1504, %v1664
      %v1666 = vpop.f32.mrb[0].mxu0
      %1667 = vmatprep.mubr.bf16.mxu0 %v971
      %1668 = vmatmul.mubr.bf16.gmra.mrb[0].mxu0 %v970
      %v1669 = vpop.f32.mrb[0].mxu0
      %v1670 = vadd.f32 %v1509, %v1669
      %v1671 = vpop.f32.mrb[0].mxu0
      %v1672 = vpop.f32.mrb[0].mxu0
      %v1673 = vadd.f32 %v1512, %v1672
      %v1674 = vpop.f32.mrb[0].mxu0
      %1675 = vmatprep.mubr.bf16.mxu0 %v977
      %1676 = vmatmul.mubr.bf16.gmra.mrb[0].mxu0 %v976
      %v1677 = vpop.f32.mrb[0].mxu0
      %v1678 = vadd.f32 %v1517, %v1677
      %v1679 = vpop.f32.mrb[0].mxu0
      %v1680 = vpop.f32.mrb[0].mxu0
      %v1681 = vadd.f32 %v1520, %v1680
      %v1682 = vpop.f32.mrb[0].mxu0
      %1683 = vmatprep.mubr.bf16.mxu0 %v983
      %1684 = vmatmul.mubr.bf16.gmra.mrb[0].mxu0 %v982
      %v1685 = vpop.f32.mrb[0].mxu0
      %v1686 = vadd.f32 %v1525, %v1685
      %v1687 = vpop.f32.mrb[0].mxu0
      %v1688 = vpop.f32.mrb[0].mxu0
      %v1689 = vadd.f32 %v1528, %v1688
      %v1690 = vpop.f32.mrb[0].mxu0
      %1691 = vdwg.mxu0
      %1692 = vmatprep.subr.bf16.mxu0 0
      %1693 = vmatpush1.bf16.msra.mxu0 %v1306
      %1694 = vmatprep.subr.bf16.mxu0 0
      %1695 = vmatpush1.bf16.msra.mxu0 %v1307
      %1696 = vmatprep.subr.bf16.mxu0 0
      %1697 = vmatpush1.bf16.msra.mxu0 %v1308
      %1698 = vmatprep.subr.bf16.mxu0 0
      %1699 = vmatpush1.bf16.msra.mxu0 %v1309
      %1700 = vmatprep.subr.bf16.mxu0 0
      %1701 = vmatpush1.bf16.msra.mxu0 %v1310
      %1702 = vmatprep.subr.bf16.mxu0 0
      %1703 = vmatpush1.bf16.msra.mxu0 %v1311
      %1704 = vmatprep.subr.bf16.mxu0 0
      %1705 = vmatpush1.bf16.msra.mxu0 %v1312
      %1706 = vmatprep.subr.bf16.mxu0 0
      %1707 = vmatpush1.bf16.msra.mxu0 %v1313
      %1708 = vmatprep.subr.bf16.mxu0 0
      %1709 = vmatpush1.bf16.msra.mxu0 %v1314
      %1710 = vmatprep.subr.bf16.mxu0 0
      %1711 = vmatpush1.bf16.msra.mxu0 %v1315
      %1712 = vmatprep.subr.bf16.mxu0 0
      %1713 = vmatpush1.bf16.msra.mxu0 %v1316
      %1714 = vmatprep.subr.bf16.mxu0 0
      %1715 = vmatpush1.bf16.msra.mxu0 %v1317
      %1716 = vmatprep.subr.bf16.mxu0 0
      %1717 = vmatpush1.bf16.msra.mxu0 %v1318
      %1718 = vmatprep.subr.bf16.mxu0 0
      %1719 = vmatpush1.bf16.msra.mxu0 %v1319
      %1720 = vmatprep.subr.bf16.mxu0 0
      %1721 = vmatpush1.bf16.msra.mxu0 %v1320
      %1722 = vmatprep.subr.bf16.mxu0 0
      %1723 = vmatpush1.bf16.msra.mxu0 %v1321
      %1724 = vmatprep.mubr.bf16.mxu0 %v895
      %1725 = vmatmul.mubr.bf16.gmra.mrb[0].mxu0 %v894
      %v1726 = vpop.f32.mrb[0].mxu0
      %v1727 = vadd.f32 %v1566, %v1726
      %v1728 = vpop.f32.mrb[0].mxu0
      %v1729 = vpop.f32.mrb[0].mxu0
      %v1730 = vadd.f32 %v1569, %v1729
      %v1731 = vpop.f32.mrb[0].mxu0
      %1732 = vmatprep.mubr.bf16.mxu0 %v901
      %1733 = vmatmul.mubr.bf16.gmra.mrb[0].mxu0 %v900
      %v1734 = vpop.f32.mrb[0].mxu0
      %v1735 = vadd.f32 %v1574, %v1734
      %v1736 = vpop.f32.mrb[0].mxu0
      %v1737 = vpop.f32.mrb[0].mxu0
      %v1738 = vadd.f32 %v1577, %v1737
      %v1739 = vpop.f32.mrb[0].mxu0
      %1740 = vmatprep.mubr.bf16.mxu0 %v907
      %1741 = vmatmul.mubr.bf16.gmra.mrb[0].mxu0 %v906
      %v1742 = vpop.f32.mrb[0].mxu0
      %v1743 = vadd.f32 %v1582, %v1742
      %v1744 = vpop.f32.mrb[0].mxu0
      %v1745 = vpop.f32.mrb[0].mxu0
      %v1746 = vadd.f32 %v1585, %v1745
      %v1747 = vpop.f32.mrb[0].mxu0
      %1748 = vmatprep.mubr.bf16.mxu0 %v913
      %1749 = vmatmul.mubr.bf16.gmra.mrb[0].mxu0 %v912
      %v1750 = vpop.f32.mrb[0].mxu0
      %v1751 = vadd.f32 %v1590, %v1750
      %v1752 = vpop.f32.mrb[0].mxu0
      %v1753 = vpop.f32.mrb[0].mxu0
      %v1754 = vadd.f32 %v1593, %v1753
      %v1755 = vpop.f32.mrb[0].mxu0
      %1756 = vmatprep.mubr.bf16.mxu0 %v919
      %1757 = vmatmul.mubr.bf16.gmra.mrb[0].mxu0 %v918
      %v1758 = vpop.f32.mrb[0].mxu0
      %v1759 = vadd.f32 %v1598, %v1758
      %v1760 = vpop.f32.mrb[0].mxu0
      %v1761 = vpop.f32.mrb[0].mxu0
      %v1762 = vadd.f32 %v1601, %v1761
      %v1763 = vpop.f32.mrb[0].mxu0
      %1764 = vmatprep.mubr.bf16.mxu0 %v925
      %1765 = vmatmul.mubr.bf16.gmra.mrb[0].mxu0 %v924
      %v1766 = vpop.f32.mrb[0].mxu0
      %v1767 = vadd.f32 %v1606, %v1766
      %v1768 = vpop.f32.mrb[0].mxu0
      %v1769 = vpop.f32.mrb[0].mxu0
      %v1770 = vadd.f32 %v1609, %v1769
      %v1771 = vpop.f32.mrb[0].mxu0
      %1772 = vmatprep.mubr.bf16.mxu0 %v931
      %1773 = vmatmul.mubr.bf16.gmra.mrb[0].mxu0 %v930
      %v1774 = vpop.f32.mrb[0].mxu0
      %v1775 = vadd.f32 %v1614, %v1774
      %v1776 = vpop.f32.mrb[0].mxu0
      %v1777 = vpop.f32.mrb[0].mxu0
      %v1778 = vadd.f32 %v1617, %v1777
      %v1779 = vpop.f32.mrb[0].mxu0
      %1780 = vmatprep.mubr.bf16.mxu0 %v937
      %1781 = vmatmul.mubr.bf16.gmra.mrb[0].mxu0 %v936
      %v1782 = vpop.f32.mrb[0].mxu0
      %v1783 = vadd.f32 %v1622, %v1782
      %v1784 = vpop.f32.mrb[0].mxu0
      %v1785 = vpop.f32.mrb[0].mxu0
      %v1786 = vadd.f32 %v1625, %v1785
      %v1787 = vpop.f32.mrb[0].mxu0
      %1788 = vmatprep.mubr.bf16.mxu0 %v943
      %1789 = vmatmul.mubr.bf16.gmra.mrb[0].mxu0 %v942
      %v1790 = vpop.f32.mrb[0].mxu0
      %v1791 = vadd.f32 %v1630, %v1790
      %v1792 = vpop.f32.mrb[0].mxu0
      %v1793 = vpop.f32.mrb[0].mxu0
      %v1794 = vadd.f32 %v1633, %v1793
      %v1795 = vpop.f32.mrb[0].mxu0
      %1796 = vmatprep.mubr.bf16.mxu0 %v949
      %1797 = vmatmul.mubr.bf16.gmra.mrb[0].mxu0 %v948
      %v1798 = vpop.f32.mrb[0].mxu0
      %v1799 = vadd.f32 %v1638, %v1798
      %v1800 = vpop.f32.mrb[0].mxu0
      %v1801 = vpop.f32.mrb[0].mxu0
      %v1802 = vadd.f32 %v1641, %v1801
      %v1803 = vpop.f32.mrb[0].mxu0
      %1804 = vmatprep.mubr.bf16.mxu0 %v955
      %1805 = vmatmul.mubr.bf16.gmra.mrb[0].mxu0 %v954
      %v1806 = vpop.f32.mrb[0].mxu0
      %v1807 = vadd.f32 %v1646, %v1806
      %v1808 = vpop.f32.mrb[0].mxu0
      %v1809 = vpop.f32.mrb[0].mxu0
      %v1810 = vadd.f32 %v1649, %v1809
      %v1811 = vpop.f32.mrb[0].mxu0
      %1812 = vmatprep.mubr.bf16.mxu0 %v961
      %1813 = vmatmul.mubr.bf16.gmra.mrb[0].mxu0 %v960
      %v1814 = vpop.f32.mrb[0].mxu0
      %v1815 = vadd.f32 %v1654, %v1814
      %v1816 = vpop.f32.mrb[0].mxu0
      %v1817 = vpop.f32.mrb[0].mxu0
      %v1818 = vadd.f32 %v1657, %v1817
      %v1819 = vpop.f32.mrb[0].mxu0
      %1820 = vmatprep.mubr.bf16.mxu0 %v967
      %1821 = vmatmul.mubr.bf16.gmra.mrb[0].mxu0 %v966
      %v1822 = vpop.f32.mrb[0].mxu0
      %v1823 = vadd.f32 %v1662, %v1822
      %v1824 = vpop.f32.mrb[0].mxu0
      %v1825 = vpop.f32.mrb[0].mxu0
      %v1826 = vadd.f32 %v1665, %v1825
      %v1827 = vpop.f32.mrb[0].mxu0
      %1828 = vmatprep.mubr.bf16.mxu0 %v973
      %1829 = vmatmul.mubr.bf16.gmra.mrb[0].mxu0 %v972
      %v1830 = vpop.f32.mrb[0].mxu0
      %v1831 = vadd.f32 %v1670, %v1830
      %v1832 = vpop.f32.mrb[0].mxu0
      %v1833 = vpop.f32.mrb[0].mxu0
      %v1834 = vadd.f32 %v1673, %v1833
      %v1835 = vpop.f32.mrb[0].mxu0
      %1836 = vmatprep.mubr.bf16.mxu0 %v979
      %1837 = vmatmul.mubr.bf16.gmra.mrb[0].mxu0 %v978
      %v1838 = vpop.f32.mrb[0].mxu0
      %v1839 = vadd.f32 %v1678, %v1838
      %v1840 = vpop.f32.mrb[0].mxu0
      %v1841 = vpop.f32.mrb[0].mxu0
      %v1842 = vadd.f32 %v1681, %v1841
      %v1843 = vpop.f32.mrb[0].mxu0
      %1844 = vmatprep.mubr.bf16.mxu0 %v985
      %1845 = vmatmul.mubr.bf16.gmra.mrb[0].mxu0 %v984
      %v1846 = vpop.f32.mrb[0].mxu0
      %v1847 = vadd.f32 %v1686, %v1846
      %v1848 = vpop.f32.mrb[0].mxu0
      %v1849 = vpop.f32.mrb[0].mxu0
      %v1850 = vadd.f32 %v1689, %v1849
      %v1851 = vpop.f32.mrb[0].mxu0
      %1852 = vdwg.mxu0
      %v1949 = vunpack.c.l.b16 %v216
      %v1950 = vunpack.c.h.b16 %v216
      %v1951 = vunpack.c.l.b16 %v217
      %v1952 = vunpack.c.h.b16 %v217
      %v1953 = vunpack.c.l.b16 %v218
      %v1954 = vunpack.c.h.b16 %v218
      %v1955 = vunpack.c.l.b16 %v219
      %v1956 = vunpack.c.h.b16 %v219
      %v1957 = vunpack.c.l.b16 %v220
      %v1958 = vunpack.c.h.b16 %v220
      %v1959 = vunpack.c.l.b16 %v221
      %v1960 = vunpack.c.h.b16 %v221
      %v1961 = vunpack.c.l.b16 %v222
      %v1962 = vunpack.c.h.b16 %v222
      %v1963 = vunpack.c.l.b16 %v223
      %v1964 = vunpack.c.h.b16 %v223
      %v1965 = vunpack.c.l.b16 %v224
      %v1966 = vunpack.c.h.b16 %v224
      %v1967 = vunpack.c.l.b16 %v225
      %v1968 = vunpack.c.h.b16 %v225
      %v1969 = vunpack.c.l.b16 %v226
      %v1970 = vunpack.c.h.b16 %v226
      %v1971 = vunpack.c.l.b16 %v227
      %v1972 = vunpack.c.h.b16 %v227
      %v1973 = vunpack.c.l.b16 %v228
      %v1974 = vunpack.c.h.b16 %v228
      %v1975 = vunpack.c.l.b16 %v229
      %v1976 = vunpack.c.h.b16 %v229
      %v1977 = vunpack.c.l.b16 %v230
      %v1978 = vunpack.c.h.b16 %v230
      %v1979 = vunpack.c.l.b16 %v231
      %v1980 = vunpack.c.h.b16 %v231
      %v1981 = vunpack.c.l.b16 %v232
      %v1982 = vunpack.c.h.b16 %v232
      %v1983 = vunpack.c.l.b16 %v233
      %v1984 = vunpack.c.h.b16 %v233
      %v1985 = vunpack.c.l.b16 %v234
      %v1986 = vunpack.c.h.b16 %v234
      %v1987 = vunpack.c.l.b16 %v235
      %v1988 = vunpack.c.h.b16 %v235
      %v1989 = vunpack.c.l.b16 %v236
      %v1990 = vunpack.c.h.b16 %v236
      %v1991 = vunpack.c.l.b16 %v237
      %v1992 = vunpack.c.h.b16 %v237
      %v1993 = vunpack.c.l.b16 %v238
      %v1994 = vunpack.c.h.b16 %v238
      %v1995 = vunpack.c.l.b16 %v239
      %v1996 = vunpack.c.h.b16 %v239
      %v1997 = vunpack.c.l.b16 %v240
      %v1998 = vunpack.c.h.b16 %v240
      %v1999 = vunpack.c.l.b16 %v241
      %v2000 = vunpack.c.h.b16 %v241
      %v2001 = vunpack.c.l.b16 %v242
      %v2002 = vunpack.c.h.b16 %v242
      %v2003 = vunpack.c.l.b16 %v243
      %v2004 = vunpack.c.h.b16 %v243
      %v2005 = vunpack.c.l.b16 %v244
      %v2006 = vunpack.c.h.b16 %v244
      %v2007 = vunpack.c.l.b16 %v245
      %v2008 = vunpack.c.h.b16 %v245
      %v2009 = vunpack.c.l.b16 %v246
      %v2010 = vunpack.c.h.b16 %v246
      %v2011 = vunpack.c.l.b16 %v247
      %v2012 = vunpack.c.h.b16 %v247
      %v2013 = vunpack.c.l.b16 %v248
      %v2014 = vunpack.c.h.b16 %v248
      %v2015 = vunpack.c.l.b16 %v249
      %v2016 = vunpack.c.h.b16 %v249
      %v2017 = vunpack.c.l.b16 %v250
      %v2018 = vunpack.c.h.b16 %v250
      %v2019 = vunpack.c.l.b16 %v251
      %v2020 = vunpack.c.h.b16 %v251
      %v2021 = vunpack.c.l.b16 %v252
      %v2022 = vunpack.c.h.b16 %v252
      %v2023 = vunpack.c.l.b16 %v253
      %v2024 = vunpack.c.h.b16 %v253
      %v2025 = vunpack.c.l.b16 %v254
      %v2026 = vunpack.c.h.b16 %v254
      %v2027 = vunpack.c.l.b16 %v255
      %v2028 = vunpack.c.h.b16 %v255
      %v2029 = vunpack.c.l.b16 %v256
      %v2030 = vunpack.c.h.b16 %v256
      %v2031 = vunpack.c.l.b16 %v257
      %v2032 = vunpack.c.h.b16 %v257
      %v2033 = vunpack.c.l.b16 %v258
      %v2034 = vunpack.c.h.b16 %v258
      %v2035 = vunpack.c.l.b16 %v259
      %v2036 = vunpack.c.h.b16 %v259
      %v2037 = vunpack.c.l.b16 %v260
      %v2038 = vunpack.c.h.b16 %v260
      %v2039 = vunpack.c.l.b16 %v261
      %v2040 = vunpack.c.h.b16 %v261
      %v2041 = vunpack.c.l.b16 %v262
      %v2042 = vunpack.c.h.b16 %v262
      %v2043 = vunpack.c.l.b16 %v263
      %v2044 = vunpack.c.h.b16 %v263
      %v2045 = vunpack.c.l.b16 %v264
      %v2046 = vunpack.c.h.b16 %v264
      %v2047 = vunpack.c.l.b16 %v265
      %v2048 = vunpack.c.h.b16 %v265
      %v2049 = vunpack.c.l.b16 %v266
      %v2050 = vunpack.c.h.b16 %v266
      %v2051 = vunpack.c.l.b16 %v267
      %v2052 = vunpack.c.h.b16 %v267
      %v2053 = vunpack.c.l.b16 %v268
      %v2054 = vunpack.c.h.b16 %v268
      %v2055 = vunpack.c.l.b16 %v269
      %v2056 = vunpack.c.h.b16 %v269
      %v2057 = vunpack.c.l.b16 %v270
      %v2058 = vunpack.c.h.b16 %v270
      %v2059 = vunpack.c.l.b16 %v271
      %v2060 = vunpack.c.h.b16 %v271
      %v2061 = vunpack.c.l.b16 %v272
      %v2062 = vunpack.c.h.b16 %v272
      %v2063 = vunpack.c.l.b16 %v273
      %v2064 = vunpack.c.h.b16 %v273
      %v2065 = vunpack.c.l.b16 %v274
      %v2066 = vunpack.c.h.b16 %v274
      %v2067 = vunpack.c.l.b16 %v275
      %v2068 = vunpack.c.h.b16 %v275
      %v2069 = vunpack.c.l.b16 %v276
      %v2070 = vunpack.c.h.b16 %v276
      %v2071 = vunpack.c.l.b16 %v277
      %v2072 = vunpack.c.h.b16 %v277
      %v2073 = vunpack.c.l.b16 %v278
      %v2074 = vunpack.c.h.b16 %v278
      %v2075 = vunpack.c.l.b16 %v279
      %v2076 = vunpack.c.h.b16 %v279
      %v2077 = vunpack.c.l.b16 %v280
      %v2078 = vunpack.c.h.b16 %v280
      %v2079 = vunpack.c.l.b16 %v281
      %v2080 = vunpack.c.h.b16 %v281
      %v2081 = vunpack.c.l.b16 %v282
      %v2082 = vunpack.c.h.b16 %v282
      %v2083 = vunpack.c.l.b16 %v283
      %v2084 = vunpack.c.h.b16 %v283
      %v2085 = vunpack.c.l.b16 %v284
      %v2086 = vunpack.c.h.b16 %v284
      %v2087 = vunpack.c.l.b16 %v285
      %v2088 = vunpack.c.h.b16 %v285
      %v2089 = vunpack.c.l.b16 %v286
      %v2090 = vunpack.c.h.b16 %v286
      %v2091 = vunpack.c.l.b16 %v287
      %v2092 = vunpack.c.h.b16 %v287
      %v2093 = vunpack.c.l.b16 %v288
      %v2094 = vunpack.c.h.b16 %v288
      %v2095 = vunpack.c.l.b16 %v289
      %v2096 = vunpack.c.h.b16 %v289
      %v2097 = vunpack.c.l.b16 %v290
      %v2098 = vunpack.c.h.b16 %v290
      %v2099 = vunpack.c.l.b16 %v291
      %v2100 = vunpack.c.h.b16 %v291
      %v2101 = vunpack.c.l.b16 %v292
      %v2102 = vunpack.c.h.b16 %v292
      %v2103 = vunpack.c.l.b16 %v293
      %v2104 = vunpack.c.h.b16 %v293
      %v2105 = vunpack.c.l.b16 %v294
      %v2106 = vunpack.c.h.b16 %v294
      %v2107 = vunpack.c.l.b16 %v295
      %v2108 = vunpack.c.h.b16 %v295
      %v2109 = vunpack.c.l.b16 %v296
      %v2110 = vunpack.c.h.b16 %v296
      %v2111 = vunpack.c.l.b16 %v297
      %v2112 = vunpack.c.h.b16 %v297
      %v2113 = vunpack.c.l.b16 %v298
      %v2114 = vunpack.c.h.b16 %v298
      %v2115 = vunpack.c.l.b16 %v299
      %v2116 = vunpack.c.h.b16 %v299
      %v2117 = vunpack.c.l.b16 %v300
      %v2118 = vunpack.c.h.b16 %v300
      %v2119 = vunpack.c.l.b16 %v301
      %v2120 = vunpack.c.h.b16 %v301
      %v2121 = vunpack.c.l.b16 %v302
      %v2122 = vunpack.c.h.b16 %v302
      %v2123 = vunpack.c.l.b16 %v303
      %v2124 = vunpack.c.h.b16 %v303
      %v2125 = vunpack.c.l.b16 %v304
      %v2126 = vunpack.c.h.b16 %v304
      %v2127 = vunpack.c.l.b16 %v305
      %v2128 = vunpack.c.h.b16 %v305
      %v2129 = vunpack.c.l.b16 %v306
      %v2130 = vunpack.c.h.b16 %v306
      %v2131 = vunpack.c.l.b16 %v307
      %v2132 = vunpack.c.h.b16 %v307
      %v2133 = vunpack.c.l.b16 %v308
      %v2134 = vunpack.c.h.b16 %v308
      %v2135 = vunpack.c.l.b16 %v309
      %v2136 = vunpack.c.h.b16 %v309
      %v2137 = vunpack.c.l.b16 %v310
      %v2138 = vunpack.c.h.b16 %v310
      %v2139 = vunpack.c.l.b16 %v311
      %v2140 = vunpack.c.h.b16 %v311
      %v2141 = vpack.c.b16 %v1955, %v1949
      %v2142 = vpack.c.b16 %v1956, %v1950
      %v2143 = vpack.c.b16 %v1957, %v1951
      %v2144 = vpack.c.b16 %v1958, %v1952
      %v2145 = vpack.c.b16 %v1959, %v1953
      %v2146 = vpack.c.b16 %v1960, %v1954
      %v2147 = vpack.c.b16 %v1967, %v1961
      %v2148 = vpack.c.b16 %v1968, %v1962
      %v2149 = vpack.c.b16 %v1969, %v1963
      %v2150 = vpack.c.b16 %v1970, %v1964
      %v2151 = vpack.c.b16 %v1971, %v1965
      %v2152 = vpack.c.b16 %v1972, %v1966
      %v2153 = vpack.c.b16 %v1979, %v1973
      %v2154 = vpack.c.b16 %v1980, %v1974
      %v2155 = vpack.c.b16 %v1981, %v1975
      %v2156 = vpack.c.b16 %v1982, %v1976
      %v2157 = vpack.c.b16 %v1983, %v1977
      %v2158 = vpack.c.b16 %v1984, %v1978
      %v2159 = vpack.c.b16 %v1991, %v1985
      %v2160 = vpack.c.b16 %v1992, %v1986
      %v2161 = vpack.c.b16 %v1993, %v1987
      %v2162 = vpack.c.b16 %v1994, %v1988
      %v2163 = vpack.c.b16 %v1995, %v1989
      %v2164 = vpack.c.b16 %v1996, %v1990
      %v2165 = vpack.c.b16 %v2003, %v1997
      %v2166 = vpack.c.b16 %v2004, %v1998
      %v2167 = vpack.c.b16 %v2005, %v1999
      %v2168 = vpack.c.b16 %v2006, %v2000
      %v2169 = vpack.c.b16 %v2007, %v2001
      %v2170 = vpack.c.b16 %v2008, %v2002
      %v2171 = vpack.c.b16 %v2015, %v2009
      %v2172 = vpack.c.b16 %v2016, %v2010
      %v2173 = vpack.c.b16 %v2017, %v2011
      %v2174 = vpack.c.b16 %v2018, %v2012
      %v2175 = vpack.c.b16 %v2019, %v2013
      %v2176 = vpack.c.b16 %v2020, %v2014
      %v2177 = vpack.c.b16 %v2027, %v2021
      %v2178 = vpack.c.b16 %v2028, %v2022
      %v2179 = vpack.c.b16 %v2029, %v2023
      %v2180 = vpack.c.b16 %v2030, %v2024
      %v2181 = vpack.c.b16 %v2031, %v2025
      %v2182 = vpack.c.b16 %v2032, %v2026
      %v2183 = vpack.c.b16 %v2039, %v2033
      %v2184 = vpack.c.b16 %v2040, %v2034
      %v2185 = vpack.c.b16 %v2041, %v2035
      %v2186 = vpack.c.b16 %v2042, %v2036
      %v2187 = vpack.c.b16 %v2043, %v2037
      %v2188 = vpack.c.b16 %v2044, %v2038
      %v2189 = vpack.c.b16 %v2051, %v2045
      %v2190 = vpack.c.b16 %v2052, %v2046
      %v2191 = vpack.c.b16 %v2053, %v2047
      %v2192 = vpack.c.b16 %v2054, %v2048
      %v2193 = vpack.c.b16 %v2055, %v2049
      %v2194 = vpack.c.b16 %v2056, %v2050
      %v2195 = vpack.c.b16 %v2063, %v2057
      %v2196 = vpack.c.b16 %v2064, %v2058
      %v2197 = vpack.c.b16 %v2065, %v2059
      %v2198 = vpack.c.b16 %v2066, %v2060
      %v2199 = vpack.c.b16 %v2067, %v2061
      %v2200 = vpack.c.b16 %v2068, %v2062
      %v2201 = vpack.c.b16 %v2075, %v2069
      %v2202 = vpack.c.b16 %v2076, %v2070
      %v2203 = vpack.c.b16 %v2077, %v2071
      %v2204 = vpack.c.b16 %v2078, %v2072
      %v2205 = vpack.c.b16 %v2079, %v2073
      %v2206 = vpack.c.b16 %v2080, %v2074
      %v2207 = vpack.c.b16 %v2087, %v2081
      %v2208 = vpack.c.b16 %v2088, %v2082
      %v2209 = vpack.c.b16 %v2089, %v2083
      %v2210 = vpack.c.b16 %v2090, %v2084
      %v2211 = vpack.c.b16 %v2091, %v2085
      %v2212 = vpack.c.b16 %v2092, %v2086
      %v2213 = vpack.c.b16 %v2099, %v2093
      %v2214 = vpack.c.b16 %v2100, %v2094
      %v2215 = vpack.c.b16 %v2101, %v2095
      %v2216 = vpack.c.b16 %v2102, %v2096
      %v2217 = vpack.c.b16 %v2103, %v2097
      %v2218 = vpack.c.b16 %v2104, %v2098
      %v2219 = vpack.c.b16 %v2111, %v2105
      %v2220 = vpack.c.b16 %v2112, %v2106
      %v2221 = vpack.c.b16 %v2113, %v2107
      %v2222 = vpack.c.b16 %v2114, %v2108
      %v2223 = vpack.c.b16 %v2115, %v2109
      %v2224 = vpack.c.b16 %v2116, %v2110
      %v2225 = vpack.c.b16 %v2123, %v2117
      %v2226 = vpack.c.b16 %v2124, %v2118
      %v2227 = vpack.c.b16 %v2125, %v2119
      %v2228 = vpack.c.b16 %v2126, %v2120
      %v2229 = vpack.c.b16 %v2127, %v2121
      %v2230 = vpack.c.b16 %v2128, %v2122
      %v2231 = vpack.c.b16 %v2135, %v2129
      %v2232 = vpack.c.b16 %v2136, %v2130
      %v2233 = vpack.c.b16 %v2137, %v2131
      %v2234 = vpack.c.b16 %v2138, %v2132
      %v2235 = vpack.c.b16 %v2139, %v2133
      %v2236 = vpack.c.b16 %v2140, %v2134
      %v2429 = vunpack.c.l.b16 %v312
      %v2430 = vunpack.c.l.b16 %v313
      %v2431 = vunpack.c.l.b16 %v314
      %v2432 = vunpack.c.l.b16 %v315
      %v2433 = vunpack.c.l.b16 %v316
      %v2434 = vunpack.c.l.b16 %v317
      %v2435 = vunpack.c.l.b16 %v318
      %v2436 = vunpack.c.l.b16 %v319
      %v2437 = vunpack.c.l.b16 %v320
      %v2438 = vunpack.c.l.b16 %v321
      %v2439 = vunpack.c.l.b16 %v322
      %v2440 = vunpack.c.l.b16 %v323
      %v2441 = vunpack.c.l.b16 %v324
      %v2442 = vunpack.c.l.b16 %v325
      %v2443 = vunpack.c.l.b16 %v326
      %v2444 = vunpack.c.l.b16 %v327
      %v2445 = vunpack.c.l.b16 %v328
      %v2446 = vunpack.c.l.b16 %v329
      %v2447 = vunpack.c.l.b16 %v330
      %v2448 = vunpack.c.l.b16 %v331
      %v2449 = vunpack.c.l.b16 %v332
      %v2450 = vunpack.c.l.b16 %v333
      %v2451 = vunpack.c.l.b16 %v334
      %v2452 = vunpack.c.l.b16 %v335
      %v2453 = vunpack.c.l.b16 %v336
      %v2454 = vunpack.c.l.b16 %v337
      %v2455 = vunpack.c.l.b16 %v338
      %v2456 = vunpack.c.l.b16 %v339
      %v2457 = vunpack.c.l.b16 %v340
      %v2458 = vunpack.c.l.b16 %v341
      %v2459 = vunpack.c.l.b16 %v342
      %v2460 = vunpack.c.l.b16 %v343
      %v2461 = vunpack.c.l.b16 %v344
      %v2462 = vunpack.c.l.b16 %v345
      %v2463 = vunpack.c.l.b16 %v346
      %v2464 = vunpack.c.l.b16 %v347
      %v2465 = vunpack.c.l.b16 %v348
      %v2466 = vunpack.c.l.b16 %v349
      %v2467 = vunpack.c.l.b16 %v350
      %v2468 = vunpack.c.l.b16 %v351
      %v2469 = vunpack.c.l.b16 %v352
      %v2470 = vunpack.c.l.b16 %v353
      %v2471 = vunpack.c.l.b16 %v354
      %v2472 = vunpack.c.l.b16 %v355
      %v2473 = vunpack.c.l.b16 %v356
      %v2474 = vunpack.c.l.b16 %v357
      %v2475 = vunpack.c.l.b16 %v358
      %v2476 = vunpack.c.l.b16 %v359
      %v2477 = vunpack.c.l.b16 %v360
      %v2478 = vunpack.c.l.b16 %v361
      %v2479 = vunpack.c.l.b16 %v362
      %v2480 = vunpack.c.l.b16 %v363
      %v2481 = vunpack.c.l.b16 %v364
      %v2482 = vunpack.c.l.b16 %v365
      %v2483 = vunpack.c.l.b16 %v366
      %v2484 = vunpack.c.l.b16 %v367
      %v2485 = vunpack.c.l.b16 %v368
      %v2486 = vunpack.c.l.b16 %v369
      %v2487 = vunpack.c.l.b16 %v370
      %v2488 = vunpack.c.l.b16 %v371
      %v2489 = vunpack.c.l.b16 %v372
      %v2490 = vunpack.c.l.b16 %v373
      %v2491 = vunpack.c.l.b16 %v374
      %v2492 = vunpack.c.l.b16 %v375
      %v2493 = vunpack.c.l.b16 %v376
      %v2494 = vunpack.c.l.b16 %v377
      %v2495 = vunpack.c.l.b16 %v378
      %v2496 = vunpack.c.l.b16 %v379
      %v2497 = vunpack.c.l.b16 %v380
      %v2498 = vunpack.c.l.b16 %v381
      %v2499 = vunpack.c.l.b16 %v382
      %v2500 = vunpack.c.l.b16 %v383
      %v2501 = vunpack.c.l.b16 %v384
      %v2502 = vunpack.c.l.b16 %v385
      %v2503 = vunpack.c.l.b16 %v386
      %v2504 = vunpack.c.l.b16 %v387
      %v2505 = vunpack.c.l.b16 %v388
      %v2506 = vunpack.c.l.b16 %v389
      %v2507 = vunpack.c.l.b16 %v390
      %v2508 = vunpack.c.l.b16 %v391
      %v2509 = vunpack.c.l.b16 %v392
      %v2510 = vunpack.c.l.b16 %v393
      %v2511 = vunpack.c.l.b16 %v394
      %v2512 = vunpack.c.l.b16 %v395
      %v2513 = vunpack.c.l.b16 %v396
      %v2514 = vunpack.c.l.b16 %v397
      %v2515 = vunpack.c.l.b16 %v398
      %v2516 = vunpack.c.l.b16 %v399
      %v2517 = vunpack.c.l.b16 %v400
      %v2518 = vunpack.c.l.b16 %v401
      %v2519 = vunpack.c.l.b16 %v402
      %v2520 = vunpack.c.l.b16 %v403
      %v2521 = vunpack.c.l.b16 %v404
      %v2522 = vunpack.c.l.b16 %v405
      %v2523 = vunpack.c.l.b16 %v406
      %v2524 = vunpack.c.l.b16 %v407
      %v2525 = vpack.c.b16 %v2430, %v2429
      %v2526 = vpack.c.b16 %v2432, %v2431
      %v2527 = vpack.c.b16 %v2434, %v2433
      %v2528 = vpack.c.b16 %v2436, %v2435
      %v2529 = vpack.c.b16 %v2438, %v2437
      %v2530 = vpack.c.b16 %v2440, %v2439
      %v2531 = vpack.c.b16 %v2442, %v2441
      %v2532 = vpack.c.b16 %v2444, %v2443
      %v2533 = vpack.c.b16 %v2446, %v2445
      %v2534 = vpack.c.b16 %v2448, %v2447
      %v2535 = vpack.c.b16 %v2450, %v2449
      %v2536 = vpack.c.b16 %v2452, %v2451
      %v2537 = vpack.c.b16 %v2454, %v2453
      %v2538 = vpack.c.b16 %v2456, %v2455
      %v2539 = vpack.c.b16 %v2458, %v2457
      %v2540 = vpack.c.b16 %v2460, %v2459
      %v2541 = vpack.c.b16 %v2462, %v2461
      %v2542 = vpack.c.b16 %v2464, %v2463
      %v2543 = vpack.c.b16 %v2466, %v2465
      %v2544 = vpack.c.b16 %v2468, %v2467
      %v2545 = vpack.c.b16 %v2470, %v2469
      %v2546 = vpack.c.b16 %v2472, %v2471
      %v2547 = vpack.c.b16 %v2474, %v2473
      %v2548 = vpack.c.b16 %v2476, %v2475
      %v2549 = vpack.c.b16 %v2478, %v2477
      %v2550 = vpack.c.b16 %v2480, %v2479
      %v2551 = vpack.c.b16 %v2482, %v2481
      %v2552 = vpack.c.b16 %v2484, %v2483
      %v2553 = vpack.c.b16 %v2486, %v2485
      %v2554 = vpack.c.b16 %v2488, %v2487
      %v2555 = vpack.c.b16 %v2490, %v2489
      %v2556 = vpack.c.b16 %v2492, %v2491
      %v2557 = vpack.c.b16 %v2494, %v2493
      %v2558 = vpack.c.b16 %v2496, %v2495
      %v2559 = vpack.c.b16 %v2498, %v2497
      %v2560 = vpack.c.b16 %v2500, %v2499
      %v2561 = vpack.c.b16 %v2502, %v2501
      %v2562 = vpack.c.b16 %v2504, %v2503
      %v2563 = vpack.c.b16 %v2506, %v2505
      %v2564 = vpack.c.b16 %v2508, %v2507
      %v2565 = vpack.c.b16 %v2510, %v2509
      %v2566 = vpack.c.b16 %v2512, %v2511
      %v2567 = vpack.c.b16 %v2514, %v2513
      %v2568 = vpack.c.b16 %v2516, %v2515
      %v2569 = vpack.c.b16 %v2518, %v2517
      %v2570 = vpack.c.b16 %v2520, %v2519
      %v2571 = vpack.c.b16 %v2522, %v2521
      %v2572 = vpack.c.b16 %v2524, %v2523
      %2621 = vmatprep.subr.bf16.mxu0 0
      %2622 = vmatpush1.bf16.msra.mxu0 %v2525
      %2623 = vmatprep.subr.bf16.mxu0 0
      %2624 = vmatpush1.bf16.msra.mxu0 %v2526
      %2625 = vmatprep.subr.bf16.mxu0 0
      %2626 = vmatpush1.bf16.msra.mxu0 %v2527
      %2627 = vmatprep.subr.bf16.mxu0 0
      %2628 = vmatpush1.bf16.msra.mxu0 %v2528
      %2629 = vmatprep.subr.bf16.mxu0 0
      %2630 = vmatpush1.bf16.msra.mxu0 %v2529
      %2631 = vmatprep.subr.bf16.mxu0 0
      %2632 = vmatpush1.bf16.msra.mxu0 %v2530
      %2633 = vmatprep.subr.bf16.mxu0 0
      %2634 = vmatpush1.bf16.msra.mxu0 %v2531
      %2635 = vmatprep.subr.bf16.mxu0 0
      %2636 = vmatpush1.bf16.msra.mxu0 %v2532
      %2637 = vmatprep.subr.bf16.mxu0 0
      %2638 = vmatpush1.bf16.msra.mxu0 %v2533
      %2639 = vmatprep.subr.bf16.mxu0 0
      %2640 = vmatpush1.bf16.msra.mxu0 %v2534
      %2641 = vmatprep.subr.bf16.mxu0 0
      %2642 = vmatpush1.bf16.msra.mxu0 %v2535
      %2643 = vmatprep.subr.bf16.mxu0 0
      %2644 = vmatpush1.bf16.msra.mxu0 %v2536
      %2645 = vmatprep.subr.bf16.mxu0 0
      %2646 = vmatpush1.bf16.msra.mxu0 %v2537
      %2647 = vmatprep.subr.bf16.mxu0 0
      %2648 = vmatpush1.bf16.msra.mxu0 %v2538
      %2649 = vmatprep.subr.bf16.mxu0 0
      %2650 = vmatpush1.bf16.msra.mxu0 %v2539
      %2651 = vmatprep.subr.bf16.mxu0 0
      %2652 = vmatpush1.bf16.msra.mxu0 %v2540
      %2653 = vmatprep.mubr.bf16.mxu0 %v2142
      %2654 = vmatmul.mubr.bf16.gmra.mrb[0].mxu0 %v2141
      %v2655 = vpop.f32.mrb[0].mxu0
      %v2656 = vadd.f32 %v1727, %v2655
      %v2657 = vpop.f32.mrb[0].mxu0
      %v2658 = vpop.f32.mrb[0].mxu0
      %v2659 = vadd.f32 %v1730, %v2658
      %v2660 = vpop.f32.mrb[0].mxu0
      %2661 = vmatprep.mubr.bf16.mxu0 %v2148
      %2662 = vmatmul.mubr.bf16.gmra.mrb[0].mxu0 %v2147
      %v2663 = vpop.f32.mrb[0].mxu0
      %v2664 = vadd.f32 %v1735, %v2663
      %v2665 = vpop.f32.mrb[0].mxu0
      %v2666 = vpop.f32.mrb[0].mxu0
      %v2667 = vadd.f32 %v1738, %v2666
      %v2668 = vpop.f32.mrb[0].mxu0
      %2669 = vmatprep.mubr.bf16.mxu0 %v2154
      %2670 = vmatmul.mubr.bf16.gmra.mrb[0].mxu0 %v2153
      %v2671 = vpop.f32.mrb[0].mxu0
      %v2672 = vadd.f32 %v1743, %v2671
      %v2673 = vpop.f32.mrb[0].mxu0
      %v2674 = vpop.f32.mrb[0].mxu0
      %v2675 = vadd.f32 %v1746, %v2674
      %v2676 = vpop.f32.mrb[0].mxu0
      %2677 = vmatprep.mubr.bf16.mxu0 %v2160
      %2678 = vmatmul.mubr.bf16.gmra.mrb[0].mxu0 %v2159
      %v2679 = vpop.f32.mrb[0].mxu0
      %v2680 = vadd.f32 %v1751, %v2679
      %v2681 = vpop.f32.mrb[0].mxu0
      %v2682 = vpop.f32.mrb[0].mxu0
      %v2683 = vadd.f32 %v1754, %v2682
      %v2684 = vpop.f32.mrb[0].mxu0
      %2685 = vmatprep.mubr.bf16.mxu0 %v2166
      %2686 = vmatmul.mubr.bf16.gmra.mrb[0].mxu0 %v2165
      %v2687 = vpop.f32.mrb[0].mxu0
      %v2688 = vadd.f32 %v1759, %v2687
      %v2689 = vpop.f32.mrb[0].mxu0
      %v2690 = vpop.f32.mrb[0].mxu0
      %v2691 = vadd.f32 %v1762, %v2690
      %v2692 = vpop.f32.mrb[0].mxu0
      %2693 = vmatprep.mubr.bf16.mxu0 %v2172
      %2694 = vmatmul.mubr.bf16.gmra.mrb[0].mxu0 %v2171
      %v2695 = vpop.f32.mrb[0].mxu0
      %v2696 = vadd.f32 %v1767, %v2695
      %v2697 = vpop.f32.mrb[0].mxu0
      %v2698 = vpop.f32.mrb[0].mxu0
      %v2699 = vadd.f32 %v1770, %v2698
      %v2700 = vpop.f32.mrb[0].mxu0
      %2701 = vmatprep.mubr.bf16.mxu0 %v2178
      %2702 = vmatmul.mubr.bf16.gmra.mrb[0].mxu0 %v2177
      %v2703 = vpop.f32.mrb[0].mxu0
      %v2704 = vadd.f32 %v1775, %v2703
      %v2705 = vpop.f32.mrb[0].mxu0
      %v2706 = vpop.f32.mrb[0].mxu0
      %v2707 = vadd.f32 %v1778, %v2706
      %v2708 = vpop.f32.mrb[0].mxu0
      %2709 = vmatprep.mubr.bf16.mxu0 %v2184
      %2710 = vmatmul.mubr.bf16.gmra.mrb[0].mxu0 %v2183
      %v2711 = vpop.f32.mrb[0].mxu0
      %v2712 = vadd.f32 %v1783, %v2711
      %v2713 = vpop.f32.mrb[0].mxu0
      %v2714 = vpop.f32.mrb[0].mxu0
      %v2715 = vadd.f32 %v1786, %v2714
      %v2716 = vpop.f32.mrb[0].mxu0
      %2717 = vmatprep.mubr.bf16.mxu0 %v2190
      %2718 = vmatmul.mubr.bf16.gmra.mrb[0].mxu0 %v2189
      %v2719 = vpop.f32.mrb[0].mxu0
      %v2720 = vadd.f32 %v1791, %v2719
      %v2721 = vpop.f32.mrb[0].mxu0
      %v2722 = vpop.f32.mrb[0].mxu0
      %v2723 = vadd.f32 %v1794, %v2722
      %v2724 = vpop.f32.mrb[0].mxu0
      %2725 = vmatprep.mubr.bf16.mxu0 %v2196
      %2726 = vmatmul.mubr.bf16.gmra.mrb[0].mxu0 %v2195
      %v2727 = vpop.f32.mrb[0].mxu0
      %v2728 = vadd.f32 %v1799, %v2727
      %v2729 = vpop.f32.mrb[0].mxu0
      %v2730 = vpop.f32.mrb[0].mxu0
      %v2731 = vadd.f32 %v1802, %v2730
      %v2732 = vpop.f32.mrb[0].mxu0
      %2733 = vmatprep.mubr.bf16.mxu0 %v2202
      %2734 = vmatmul.mubr.bf16.gmra.mrb[0].mxu0 %v2201
      %v2735 = vpop.f32.mrb[0].mxu0
      %v2736 = vadd.f32 %v1807, %v2735
      %v2737 = vpop.f32.mrb[0].mxu0
      %v2738 = vpop.f32.mrb[0].mxu0
      %v2739 = vadd.f32 %v1810, %v2738
      %v2740 = vpop.f32.mrb[0].mxu0
      %2741 = vmatprep.mubr.bf16.mxu0 %v2208
      %2742 = vmatmul.mubr.bf16.gmra.mrb[0].mxu0 %v2207
      %v2743 = vpop.f32.mrb[0].mxu0
      %v2744 = vadd.f32 %v1815, %v2743
      %v2745 = vpop.f32.mrb[0].mxu0
      %v2746 = vpop.f32.mrb[0].mxu0
      %v2747 = vadd.f32 %v1818, %v2746
      %v2748 = vpop.f32.mrb[0].mxu0
      %2749 = vmatprep.mubr.bf16.mxu0 %v2214
      %2750 = vmatmul.mubr.bf16.gmra.mrb[0].mxu0 %v2213
      %v2751 = vpop.f32.mrb[0].mxu0
      %v2752 = vadd.f32 %v1823, %v2751
      %v2753 = vpop.f32.mrb[0].mxu0
      %v2754 = vpop.f32.mrb[0].mxu0
      %v2755 = vadd.f32 %v1826, %v2754
      %v2756 = vpop.f32.mrb[0].mxu0
      %2757 = vmatprep.mubr.bf16.mxu0 %v2220
      %2758 = vmatmul.mubr.bf16.gmra.mrb[0].mxu0 %v2219
      %v2759 = vpop.f32.mrb[0].mxu0
      %v2760 = vadd.f32 %v1831, %v2759
      %v2761 = vpop.f32.mrb[0].mxu0
      %v2762 = vpop.f32.mrb[0].mxu0
      %v2763 = vadd.f32 %v1834, %v2762
      %v2764 = vpop.f32.mrb[0].mxu0
      %2765 = vmatprep.mubr.bf16.mxu0 %v2226
      %2766 = vmatmul.mubr.bf16.gmra.mrb[0].mxu0 %v2225
      %v2767 = vpop.f32.mrb[0].mxu0
      %v2768 = vadd.f32 %v1839, %v2767
      %v2769 = vpop.f32.mrb[0].mxu0
      %v2770 = vpop.f32.mrb[0].mxu0
      %v2771 = vadd.f32 %v1842, %v2770
      %v2772 = vpop.f32.mrb[0].mxu0
      %2773 = vmatprep.mubr.bf16.mxu0 %v2232
      %2774 = vmatmul.mubr.bf16.gmra.mrb[0].mxu0 %v2231
      %v2775 = vpop.f32.mrb[0].mxu0
      %v2776 = vadd.f32 %v1847, %v2775
      %v2777 = vpop.f32.mrb[0].mxu0
      %v2778 = vpop.f32.mrb[0].mxu0
      %v2779 = vadd.f32 %v1850, %v2778
      %v2780 = vpop.f32.mrb[0].mxu0
      %2781 = vdwg.mxu0
      %2782 = vmatprep.subr.bf16.mxu0 0
      %2783 = vmatpush1.bf16.msra.mxu0 %v2541
      %2784 = vmatprep.subr.bf16.mxu0 0
      %2785 = vmatpush1.bf16.msra.mxu0 %v2542
      %2786 = vmatprep.subr.bf16.mxu0 0
      %2787 = vmatpush1.bf16.msra.mxu0 %v2543
      %2788 = vmatprep.subr.bf16.mxu0 0
      %2789 = vmatpush1.bf16.msra.mxu0 %v2544
      %2790 = vmatprep.subr.bf16.mxu0 0
      %2791 = vmatpush1.bf16.msra.mxu0 %v2545
      %2792 = vmatprep.subr.bf16.mxu0 0
      %2793 = vmatpush1.bf16.msra.mxu0 %v2546
      %2794 = vmatprep.subr.bf16.mxu0 0
      %2795 = vmatpush1.bf16.msra.mxu0 %v2547
      %2796 = vmatprep.subr.bf16.mxu0 0
      %2797 = vmatpush1.bf16.msra.mxu0 %v2548
      %2798 = vmatprep.subr.bf16.mxu0 0
      %2799 = vmatpush1.bf16.msra.mxu0 %v2549
      %2800 = vmatprep.subr.bf16.mxu0 0
      %2801 = vmatpush1.bf16.msra.mxu0 %v2550
      %2802 = vmatprep.subr.bf16.mxu0 0
      %2803 = vmatpush1.bf16.msra.mxu0 %v2551
      %2804 = vmatprep.subr.bf16.mxu0 0
      %2805 = vmatpush1.bf16.msra.mxu0 %v2552
      %2806 = vmatprep.subr.bf16.mxu0 0
      %2807 = vmatpush1.bf16.msra.mxu0 %v2553
      %2808 = vmatprep.subr.bf16.mxu0 0
      %2809 = vmatpush1.bf16.msra.mxu0 %v2554
      %2810 = vmatprep.subr.bf16.mxu0 0
      %2811 = vmatpush1.bf16.msra.mxu0 %v2555
      %2812 = vmatprep.subr.bf16.mxu0 0
      %2813 = vmatpush1.bf16.msra.mxu0 %v2556
      %2814 = vmatprep.mubr.bf16.mxu0 %v2144
      %2815 = vmatmul.mubr.bf16.gmra.mrb[0].mxu0 %v2143
      %v2816 = vpop.f32.mrb[0].mxu0
      %v2817 = vadd.f32 %v2656, %v2816
      %v2818 = vpop.f32.mrb[0].mxu0
      %v2819 = vpop.f32.mrb[0].mxu0
      %v2820 = vadd.f32 %v2659, %v2819
      %v2821 = vpop.f32.mrb[0].mxu0
      %2822 = vmatprep.mubr.bf16.mxu0 %v2150
      %2823 = vmatmul.mubr.bf16.gmra.mrb[0].mxu0 %v2149
      %v2824 = vpop.f32.mrb[0].mxu0
      %v2825 = vadd.f32 %v2664, %v2824
      %v2826 = vpop.f32.mrb[0].mxu0
      %v2827 = vpop.f32.mrb[0].mxu0
      %v2828 = vadd.f32 %v2667, %v2827
      %v2829 = vpop.f32.mrb[0].mxu0
      %2830 = vmatprep.mubr.bf16.mxu0 %v2156
      %2831 = vmatmul.mubr.bf16.gmra.mrb[0].mxu0 %v2155
      %v2832 = vpop.f32.mrb[0].mxu0
      %v2833 = vadd.f32 %v2672, %v2832
      %v2834 = vpop.f32.mrb[0].mxu0
      %v2835 = vpop.f32.mrb[0].mxu0
      %v2836 = vadd.f32 %v2675, %v2835
      %v2837 = vpop.f32.mrb[0].mxu0
      %2838 = vmatprep.mubr.bf16.mxu0 %v2162
      %2839 = vmatmul.mubr.bf16.gmra.mrb[0].mxu0 %v2161
      %v2840 = vpop.f32.mrb[0].mxu0
      %v2841 = vadd.f32 %v2680, %v2840
      %v2842 = vpop.f32.mrb[0].mxu0
      %v2843 = vpop.f32.mrb[0].mxu0
      %v2844 = vadd.f32 %v2683, %v2843
      %v2845 = vpop.f32.mrb[0].mxu0
      %2846 = vmatprep.mubr.bf16.mxu0 %v2168
      %2847 = vmatmul.mubr.bf16.gmra.mrb[0].mxu0 %v2167
      %v2848 = vpop.f32.mrb[0].mxu0
      %v2849 = vadd.f32 %v2688, %v2848
      %v2850 = vpop.f32.mrb[0].mxu0
      %v2851 = vpop.f32.mrb[0].mxu0
      %v2852 = vadd.f32 %v2691, %v2851
      %v2853 = vpop.f32.mrb[0].mxu0
      %2854 = vmatprep.mubr.bf16.mxu0 %v2174
      %2855 = vmatmul.mubr.bf16.gmra.mrb[0].mxu0 %v2173
      %v2856 = vpop.f32.mrb[0].mxu0
      %v2857 = vadd.f32 %v2696, %v2856
      %v2858 = vpop.f32.mrb[0].mxu0
      %v2859 = vpop.f32.mrb[0].mxu0
      %v2860 = vadd.f32 %v2699, %v2859
      %v2861 = vpop.f32.mrb[0].mxu0
      %2862 = vmatprep.mubr.bf16.mxu0 %v2180
      %2863 = vmatmul.mubr.bf16.gmra.mrb[0].mxu0 %v2179
      %v2864 = vpop.f32.mrb[0].mxu0
      %v2865 = vadd.f32 %v2704, %v2864
      %v2866 = vpop.f32.mrb[0].mxu0
      %v2867 = vpop.f32.mrb[0].mxu0
      %v2868 = vadd.f32 %v2707, %v2867
      %v2869 = vpop.f32.mrb[0].mxu0
      %2870 = vmatprep.mubr.bf16.mxu0 %v2186
      %2871 = vmatmul.mubr.bf16.gmra.mrb[0].mxu0 %v2185
      %v2872 = vpop.f32.mrb[0].mxu0
      %v2873 = vadd.f32 %v2712, %v2872
      %v2874 = vpop.f32.mrb[0].mxu0
      %v2875 = vpop.f32.mrb[0].mxu0
      %v2876 = vadd.f32 %v2715, %v2875
      %v2877 = vpop.f32.mrb[0].mxu0
      %2878 = vmatprep.mubr.bf16.mxu0 %v2192
      %2879 = vmatmul.mubr.bf16.gmra.mrb[0].mxu0 %v2191
      %v2880 = vpop.f32.mrb[0].mxu0
      %v2881 = vadd.f32 %v2720, %v2880
      %v2882 = vpop.f32.mrb[0].mxu0
      %v2883 = vpop.f32.mrb[0].mxu0
      %v2884 = vadd.f32 %v2723, %v2883
      %v2885 = vpop.f32.mrb[0].mxu0
      %2886 = vmatprep.mubr.bf16.mxu0 %v2198
      %2887 = vmatmul.mubr.bf16.gmra.mrb[0].mxu0 %v2197
      %v2888 = vpop.f32.mrb[0].mxu0
      %v2889 = vadd.f32 %v2728, %v2888
      %v2890 = vpop.f32.mrb[0].mxu0
      %v2891 = vpop.f32.mrb[0].mxu0
      %v2892 = vadd.f32 %v2731, %v2891
      %v2893 = vpop.f32.mrb[0].mxu0
      %2894 = vmatprep.mubr.bf16.mxu0 %v2204
      %2895 = vmatmul.mubr.bf16.gmra.mrb[0].mxu0 %v2203
      %v2896 = vpop.f32.mrb[0].mxu0
      %v2897 = vadd.f32 %v2736, %v2896
      %v2898 = vpop.f32.mrb[0].mxu0
      %v2899 = vpop.f32.mrb[0].mxu0
      %v2900 = vadd.f32 %v2739, %v2899
      %v2901 = vpop.f32.mrb[0].mxu0
      %2902 = vmatprep.mubr.bf16.mxu0 %v2210
      %2903 = vmatmul.mubr.bf16.gmra.mrb[0].mxu0 %v2209
      %v2904 = vpop.f32.mrb[0].mxu0
      %v2905 = vadd.f32 %v2744, %v2904
      %v2906 = vpop.f32.mrb[0].mxu0
      %v2907 = vpop.f32.mrb[0].mxu0
      %v2908 = vadd.f32 %v2747, %v2907
      %v2909 = vpop.f32.mrb[0].mxu0
      %2910 = vmatprep.mubr.bf16.mxu0 %v2216
      %2911 = vmatmul.mubr.bf16.gmra.mrb[0].mxu0 %v2215
      %v2912 = vpop.f32.mrb[0].mxu0
      %v2913 = vadd.f32 %v2752, %v2912
      %v2914 = vpop.f32.mrb[0].mxu0
      %v2915 = vpop.f32.mrb[0].mxu0
      %v2916 = vadd.f32 %v2755, %v2915
      %v2917 = vpop.f32.mrb[0].mxu0
      %2918 = vmatprep.mubr.bf16.mxu0 %v2222
      %2919 = vmatmul.mubr.bf16.gmra.mrb[0].mxu0 %v2221
      %v2920 = vpop.f32.mrb[0].mxu0
      %v2921 = vadd.f32 %v2760, %v2920
      %v2922 = vpop.f32.mrb[0].mxu0
      %v2923 = vpop.f32.mrb[0].mxu0
      %v2924 = vadd.f32 %v2763, %v2923
      %v2925 = vpop.f32.mrb[0].mxu0
      %2926 = vmatprep.mubr.bf16.mxu0 %v2228
      %2927 = vmatmul.mubr.bf16.gmra.mrb[0].mxu0 %v2227
      %v2928 = vpop.f32.mrb[0].mxu0
      %v2929 = vadd.f32 %v2768, %v2928
      %v2930 = vpop.f32.mrb[0].mxu0
      %v2931 = vpop.f32.mrb[0].mxu0
      %v2932 = vadd.f32 %v2771, %v2931
      %v2933 = vpop.f32.mrb[0].mxu0
      %2934 = vmatprep.mubr.bf16.mxu0 %v2234
      %2935 = vmatmul.mubr.bf16.gmra.mrb[0].mxu0 %v2233
      %v2936 = vpop.f32.mrb[0].mxu0
      %v2937 = vadd.f32 %v2776, %v2936
      %v2938 = vpop.f32.mrb[0].mxu0
      %v2939 = vpop.f32.mrb[0].mxu0
      %v2940 = vadd.f32 %v2779, %v2939
      %v2941 = vpop.f32.mrb[0].mxu0
      %2942 = vdwg.mxu0
      %2943 = vmatprep.subr.bf16.mxu0 0
      %2944 = vmatpush1.bf16.msra.mxu0 %v2557
      %2945 = vmatprep.subr.bf16.mxu0 0
      %2946 = vmatpush1.bf16.msra.mxu0 %v2558
      %2947 = vmatprep.subr.bf16.mxu0 0
      %2948 = vmatpush1.bf16.msra.mxu0 %v2559
      %2949 = vmatprep.subr.bf16.mxu0 0
      %2950 = vmatpush1.bf16.msra.mxu0 %v2560
      %2951 = vmatprep.subr.bf16.mxu0 0
      %2952 = vmatpush1.bf16.msra.mxu0 %v2561
      %2953 = vmatprep.subr.bf16.mxu0 0
      %2954 = vmatpush1.bf16.msra.mxu0 %v2562
      %2955 = vmatprep.subr.bf16.mxu0 0
      %2956 = vmatpush1.bf16.msra.mxu0 %v2563
      %2957 = vmatprep.subr.bf16.mxu0 0
      %2958 = vmatpush1.bf16.msra.mxu0 %v2564
      %2959 = vmatprep.subr.bf16.mxu0 0
      %2960 = vmatpush1.bf16.msra.mxu0 %v2565
      %2961 = vmatprep.subr.bf16.mxu0 0
      %2962 = vmatpush1.bf16.msra.mxu0 %v2566
      %2963 = vmatprep.subr.bf16.mxu0 0
      %2964 = vmatpush1.bf16.msra.mxu0 %v2567
      %2965 = vmatprep.subr.bf16.mxu0 0
      %2966 = vmatpush1.bf16.msra.mxu0 %v2568
      %2967 = vmatprep.subr.bf16.mxu0 0
      %2968 = vmatpush1.bf16.msra.mxu0 %v2569
      %2969 = vmatprep.subr.bf16.mxu0 0
      %2970 = vmatpush1.bf16.msra.mxu0 %v2570
      %2971 = vmatprep.subr.bf16.mxu0 0
      %2972 = vmatpush1.bf16.msra.mxu0 %v2571
      %2973 = vmatprep.subr.bf16.mxu0 0
      %2974 = vmatpush1.bf16.msra.mxu0 %v2572
      %2975 = vmatprep.mubr.bf16.mxu0 %v2146
      %2976 = vmatmul.mubr.bf16.gmra.mrb[0].mxu0 %v2145
      %v2977 = vpop.f32.mrb[0].mxu0
      %v2978 = vadd.f32 %v2817, %v2977
      %v2979 = vpop.f32.mrb[0].mxu0
      %v2980 = vpop.f32.mrb[0].mxu0
      %v2981 = vadd.f32 %v2820, %v2980
      %v2982 = vpop.f32.mrb[0].mxu0
      %2983 = vmatprep.mubr.bf16.mxu0 %v2152
      %2984 = vmatmul.mubr.bf16.gmra.mrb[0].mxu0 %v2151
      %v2985 = vpop.f32.mrb[0].mxu0
      %v2986 = vadd.f32 %v2825, %v2985
      %v2987 = vpop.f32.mrb[0].mxu0
      %v2988 = vpop.f32.mrb[0].mxu0
      %v2989 = vadd.f32 %v2828, %v2988
      %v2990 = vpop.f32.mrb[0].mxu0
      %2991 = vmatprep.mubr.bf16.mxu0 %v2158
      %2992 = vmatmul.mubr.bf16.gmra.mrb[0].mxu0 %v2157
      %v2993 = vpop.f32.mrb[0].mxu0
      %v2994 = vadd.f32 %v2833, %v2993
      %v2995 = vpop.f32.mrb[0].mxu0
      %v2996 = vpop.f32.mrb[0].mxu0
      %v2997 = vadd.f32 %v2836, %v2996
      %v2998 = vpop.f32.mrb[0].mxu0
      %2999 = vmatprep.mubr.bf16.mxu0 %v2164
      %3000 = vmatmul.mubr.bf16.gmra.mrb[0].mxu0 %v2163
      %v3001 = vpop.f32.mrb[0].mxu0
      %v3002 = vadd.f32 %v2841, %v3001
      %v3003 = vpop.f32.mrb[0].mxu0
      %v3004 = vpop.f32.mrb[0].mxu0
      %v3005 = vadd.f32 %v2844, %v3004
      %v3006 = vpop.f32.mrb[0].mxu0
      %3007 = vmatprep.mubr.bf16.mxu0 %v2170
      %3008 = vmatmul.mubr.bf16.gmra.mrb[0].mxu0 %v2169
      %v3009 = vpop.f32.mrb[0].mxu0
      %v3010 = vadd.f32 %v2849, %v3009
      %v3011 = vpop.f32.mrb[0].mxu0
      %v3012 = vpop.f32.mrb[0].mxu0
      %v3013 = vadd.f32 %v2852, %v3012
      %v3014 = vpop.f32.mrb[0].mxu0
      %3015 = vmatprep.mubr.bf16.mxu0 %v2176
      %3016 = vmatmul.mubr.bf16.gmra.mrb[0].mxu0 %v2175
      %v3017 = vpop.f32.mrb[0].mxu0
      %v3018 = vadd.f32 %v2857, %v3017
      %v3019 = vpop.f32.mrb[0].mxu0
      %v3020 = vpop.f32.mrb[0].mxu0
      %v3021 = vadd.f32 %v2860, %v3020
      %v3022 = vpop.f32.mrb[0].mxu0
      %3023 = vmatprep.mubr.bf16.mxu0 %v2182
      %3024 = vmatmul.mubr.bf16.gmra.mrb[0].mxu0 %v2181
      %v3025 = vpop.f32.mrb[0].mxu0
      %v3026 = vadd.f32 %v2865, %v3025
      %v3027 = vpop.f32.mrb[0].mxu0
      %v3028 = vpop.f32.mrb[0].mxu0
      %v3029 = vadd.f32 %v2868, %v3028
      %v3030 = vpop.f32.mrb[0].mxu0
      %3031 = vmatprep.mubr.bf16.mxu0 %v2188
      %3032 = vmatmul.mubr.bf16.gmra.mrb[0].mxu0 %v2187
      %v3033 = vpop.f32.mrb[0].mxu0
      %v3034 = vadd.f32 %v2873, %v3033
      %v3035 = vpop.f32.mrb[0].mxu0
      %v3036 = vpop.f32.mrb[0].mxu0
      %v3037 = vadd.f32 %v2876, %v3036
      %v3038 = vpop.f32.mrb[0].mxu0
      %3039 = vmatprep.mubr.bf16.mxu0 %v2194
      %3040 = vmatmul.mubr.bf16.gmra.mrb[0].mxu0 %v2193
      %v3041 = vpop.f32.mrb[0].mxu0
      %v3042 = vadd.f32 %v2881, %v3041
      %v3043 = vpop.f32.mrb[0].mxu0
      %v3044 = vpop.f32.mrb[0].mxu0
      %v3045 = vadd.f32 %v2884, %v3044
      %v3046 = vpop.f32.mrb[0].mxu0
      %3047 = vmatprep.mubr.bf16.mxu0 %v2200
      %3048 = vmatmul.mubr.bf16.gmra.mrb[0].mxu0 %v2199
      %v3049 = vpop.f32.mrb[0].mxu0
      %v3050 = vadd.f32 %v2889, %v3049
      %v3051 = vpop.f32.mrb[0].mxu0
      %v3052 = vpop.f32.mrb[0].mxu0
      %v3053 = vadd.f32 %v2892, %v3052
      %v3054 = vpop.f32.mrb[0].mxu0
      %3055 = vmatprep.mubr.bf16.mxu0 %v2206
      %3056 = vmatmul.mubr.bf16.gmra.mrb[0].mxu0 %v2205
      %v3057 = vpop.f32.mrb[0].mxu0
      %v3058 = vadd.f32 %v2897, %v3057
      %v3059 = vpop.f32.mrb[0].mxu0
      %v3060 = vpop.f32.mrb[0].mxu0
      %v3061 = vadd.f32 %v2900, %v3060
      %v3062 = vpop.f32.mrb[0].mxu0
      %3063 = vmatprep.mubr.bf16.mxu0 %v2212
      %3064 = vmatmul.mubr.bf16.gmra.mrb[0].mxu0 %v2211
      %v3065 = vpop.f32.mrb[0].mxu0
      %v3066 = vadd.f32 %v2905, %v3065
      %v3067 = vpop.f32.mrb[0].mxu0
      %v3068 = vpop.f32.mrb[0].mxu0
      %v3069 = vadd.f32 %v2908, %v3068
      %v3070 = vpop.f32.mrb[0].mxu0
      %3071 = vmatprep.mubr.bf16.mxu0 %v2218
      %3072 = vmatmul.mubr.bf16.gmra.mrb[0].mxu0 %v2217
      %v3073 = vpop.f32.mrb[0].mxu0
      %v3074 = vadd.f32 %v2913, %v3073
      %v3075 = vpop.f32.mrb[0].mxu0
      %v3076 = vpop.f32.mrb[0].mxu0
      %v3077 = vadd.f32 %v2916, %v3076
      %v3078 = vpop.f32.mrb[0].mxu0
      %3079 = vmatprep.mubr.bf16.mxu0 %v2224
      %3080 = vmatmul.mubr.bf16.gmra.mrb[0].mxu0 %v2223
      %v3081 = vpop.f32.mrb[0].mxu0
      %v3082 = vadd.f32 %v2921, %v3081
      %v3083 = vpop.f32.mrb[0].mxu0
      %v3084 = vpop.f32.mrb[0].mxu0
      %v3085 = vadd.f32 %v2924, %v3084
      %v3086 = vpop.f32.mrb[0].mxu0
      %3087 = vmatprep.mubr.bf16.mxu0 %v2230
      %3088 = vmatmul.mubr.bf16.gmra.mrb[0].mxu0 %v2229
      %v3089 = vpop.f32.mrb[0].mxu0
      %v3090 = vadd.f32 %v2929, %v3089
      %v3091 = vpop.f32.mrb[0].mxu0
      %v3092 = vpop.f32.mrb[0].mxu0
      %v3093 = vadd.f32 %v2932, %v3092
      %v3094 = vpop.f32.mrb[0].mxu0
      %3095 = vmatprep.mubr.bf16.mxu0 %v2236
      %3096 = vmatmul.mubr.bf16.gmra.mrb[0].mxu0 %v2235
      %v3097 = vpop.f32.mrb[0].mxu0
      %v3098 = vadd.f32 %v2937, %v3097
      %v3099 = vpop.f32.mrb[0].mxu0
      %v3100 = vpop.f32.mrb[0].mxu0
      %v3101 = vadd.f32 %v2940, %v3100
      %v3102 = vpop.f32.mrb[0].mxu0
      %3103 = vdwg.mxu0
      %s3104 = scalar_lea.vmem %s203, 96
      %v3105 = vld [vmem:[%s3104] sm:$0xff]
      %v3106 = vld [vmem:[%s3104 + $0x8] sm:$0xff]
      %v3107 = vld [vmem:[%s3104 + $0x10] sm:$0xff]
      %v3108 = vld [vmem:[%s3104 + $0x18] sm:$0xff]
      %v3109 = vld [vmem:[%s3104 + $0x20] sm:$0xff]
      %v3110 = vld [vmem:[%s3104 + $0x28] sm:$0xff]
      %v3111 = vld [vmem:[%s3104 + $0x30] sm:$0xff]
      %v3112 = vld [vmem:[%s3104 + $0x38] sm:$0xff]
      %v3113 = vld [vmem:[%s3104 + $0x40] sm:$0xff]
      %v3114 = vld [vmem:[%s3104 + $0x48] sm:$0xff]
      %v3115 = vld [vmem:[%s3104 + $0x50] sm:$0xff]
      %v3116 = vld [vmem:[%s3104 + $0x58] sm:$0xff]
      %v3117 = vld [vmem:[%s3104 + $0x60] sm:$0xff]
      %v3118 = vld [vmem:[%s3104 + $0x68] sm:$0xff]
      %v3119 = vld [vmem:[%s3104 + $0x70] sm:$0xff]
      %v3120 = vld [vmem:[%s3104 + $0x78] sm:$0xff]
      %v3121 = vld [vmem:[%s3104 + $0x80] sm:$0xff]
      %v3122 = vld [vmem:[%s3104 + $0x88] sm:$0xff]
      %v3123 = vld [vmem:[%s3104 + $0x90] sm:$0xff]
      %v3124 = vld [vmem:[%s3104 + $0x98] sm:$0xff]
      %v3125 = vld [vmem:[%s3104 + $0xa0] sm:$0xff]
      %v3126 = vld [vmem:[%s3104 + $0xa8] sm:$0xff]
      %v3127 = vld [vmem:[%s3104 + $0xb0] sm:$0xff]
      %v3128 = vld [vmem:[%s3104 + $0xb8] sm:$0xff]
      %v3129 = vld [vmem:[%s3104 + $0xc0] sm:$0xff]
      %v3130 = vld [vmem:[%s3104 + $0xc8] sm:$0xff]
      %v3131 = vld [vmem:[%s3104 + $0xd0] sm:$0xff]
      %v3132 = vld [vmem:[%s3104 + $0xd8] sm:$0xff]
      %v3133 = vld [vmem:[%s3104 + $0xe0] sm:$0xff]
      %v3134 = vld [vmem:[%s3104 + $0xe8] sm:$0xff]
      %v3135 = vld [vmem:[%s3104 + $0xf0] sm:$0xff]
      %v3136 = vld [vmem:[%s3104 + $0xf8] sm:$0xff]
      %v3137 = vld [vmem:[%s3104 + $0x100] sm:$0xff]
      %v3138 = vld [vmem:[%s3104 + $0x108] sm:$0xff]
      %v3139 = vld [vmem:[%s3104 + $0x110] sm:$0xff]
      %v3140 = vld [vmem:[%s3104 + $0x118] sm:$0xff]
      %v3141 = vld [vmem:[%s3104 + $0x120] sm:$0xff]
      %v3142 = vld [vmem:[%s3104 + $0x128] sm:$0xff]
      %v3143 = vld [vmem:[%s3104 + $0x130] sm:$0xff]
      %v3144 = vld [vmem:[%s3104 + $0x138] sm:$0xff]
      %v3145 = vld [vmem:[%s3104 + $0x140] sm:$0xff]
      %v3146 = vld [vmem:[%s3104 + $0x148] sm:$0xff]
      %v3147 = vld [vmem:[%s3104 + $0x150] sm:$0xff]
      %v3148 = vld [vmem:[%s3104 + $0x158] sm:$0xff]
      %v3149 = vld [vmem:[%s3104 + $0x160] sm:$0xff]
      %v3150 = vld [vmem:[%s3104 + $0x168] sm:$0xff]
      %v3151 = vld [vmem:[%s3104 + $0x170] sm:$0xff]
      %v3152 = vld [vmem:[%s3104 + $0x178] sm:$0xff]
      %v3153 = vld [vmem:[%s3104 + $0x180] sm:$0xff]
      %v3154 = vld [vmem:[%s3104 + $0x188] sm:$0xff]
      %v3155 = vld [vmem:[%s3104 + $0x190] sm:$0xff]
      %v3156 = vld [vmem:[%s3104 + $0x198] sm:$0xff]
      %v3157 = vld [vmem:[%s3104 + $0x1a0] sm:$0xff]
      %v3158 = vld [vmem:[%s3104 + $0x1a8] sm:$0xff]
      %v3159 = vld [vmem:[%s3104 + $0x1b0] sm:$0xff]
      %v3160 = vld [vmem:[%s3104 + $0x1b8] sm:$0xff]
      %v3161 = vld [vmem:[%s3104 + $0x1c0] sm:$0xff]
      %v3162 = vld [vmem:[%s3104 + $0x1c8] sm:$0xff]
      %v3163 = vld [vmem:[%s3104 + $0x1d0] sm:$0xff]
      %v3164 = vld [vmem:[%s3104 + $0x1d8] sm:$0xff]
      %v3165 = vld [vmem:[%s3104 + $0x1e0] sm:$0xff]
      %v3166 = vld [vmem:[%s3104 + $0x1e8] sm:$0xff]
      %v3167 = vld [vmem:[%s3104 + $0x1f0] sm:$0xff]
      %v3168 = vld [vmem:[%s3104 + $0x1f8] sm:$0xff]
      %v3169 = vld [vmem:[%s3104 + $0x200] sm:$0xff]
      %v3170 = vld [vmem:[%s3104 + $0x208] sm:$0xff]
      %v3171 = vld [vmem:[%s3104 + $0x210] sm:$0xff]
      %v3172 = vld [vmem:[%s3104 + $0x218] sm:$0xff]
      %v3173 = vld [vmem:[%s3104 + $0x220] sm:$0xff]
      %v3174 = vld [vmem:[%s3104 + $0x228] sm:$0xff]
      %v3175 = vld [vmem:[%s3104 + $0x230] sm:$0xff]
      %v3176 = vld [vmem:[%s3104 + $0x238] sm:$0xff]
      %v3177 = vld [vmem:[%s3104 + $0x240] sm:$0xff]
      %v3178 = vld [vmem:[%s3104 + $0x248] sm:$0xff]
      %v3179 = vld [vmem:[%s3104 + $0x250] sm:$0xff]
      %v3180 = vld [vmem:[%s3104 + $0x258] sm:$0xff]
      %v3181 = vld [vmem:[%s3104 + $0x260] sm:$0xff]
      %v3182 = vld [vmem:[%s3104 + $0x268] sm:$0xff]
      %v3183 = vld [vmem:[%s3104 + $0x270] sm:$0xff]
      %v3184 = vld [vmem:[%s3104 + $0x278] sm:$0xff]
      %v3185 = vld [vmem:[%s3104 + $0x280] sm:$0xff]
      %v3186 = vld [vmem:[%s3104 + $0x288] sm:$0xff]
      %v3187 = vld [vmem:[%s3104 + $0x290] sm:$0xff]
      %v3188 = vld [vmem:[%s3104 + $0x298] sm:$0xff]
      %v3189 = vld [vmem:[%s3104 + $0x2a0] sm:$0xff]
      %v3190 = vld [vmem:[%s3104 + $0x2a8] sm:$0xff]
      %v3191 = vld [vmem:[%s3104 + $0x2b0] sm:$0xff]
      %v3192 = vld [vmem:[%s3104 + $0x2b8] sm:$0xff]
      %v3193 = vld [vmem:[%s3104 + $0x2c0] sm:$0xff]
      %v3194 = vld [vmem:[%s3104 + $0x2c8] sm:$0xff]
      %v3195 = vld [vmem:[%s3104 + $0x2d0] sm:$0xff]
      %v3196 = vld [vmem:[%s3104 + $0x2d8] sm:$0xff]
      %v3197 = vld [vmem:[%s3104 + $0x2e0] sm:$0xff]
      %v3198 = vld [vmem:[%s3104 + $0x2e8] sm:$0xff]
      %v3199 = vld [vmem:[%s3104 + $0x2f0] sm:$0xff]
      %v3200 = vld [vmem:[%s3104 + $0x2f8] sm:$0xff]
      %s3201 = scalar_lea.vmem %s1, 768
      %v3202 = vld [vmem:[%s3201] sm:$0xf]
      %v3203 = vld [vmem:[%s3201 + $0x4] sm:$0xf]
      %v3204 = vld [vmem:[%s3201 + $0x8] sm:$0xf]
      %v3205 = vld [vmem:[%s3201 + $0xc] sm:$0xf]
      %v3206 = vld [vmem:[%s3201 + $0x10] sm:$0xf]
      %v3207 = vld [vmem:[%s3201 + $0x14] sm:$0xf]
      %v3208 = vld [vmem:[%s3201 + $0x18] sm:$0xf]
      %v3209 = vld [vmem:[%s3201 + $0x1c] sm:$0xf]
      %v3210 = vld [vmem:[%s3201 + $0x20] sm:$0xf]
      %v3211 = vld [vmem:[%s3201 + $0x24] sm:$0xf]
      %v3212 = vld [vmem:[%s3201 + $0x28] sm:$0xf]
      %v3213 = vld [vmem:[%s3201 + $0x2c] sm:$0xf]
      %v3214 = vld [vmem:[%s3201 + $0x30] sm:$0xf]
      %v3215 = vld [vmem:[%s3201 + $0x34] sm:$0xf]
      %v3216 = vld [vmem:[%s3201 + $0x38] sm:$0xf]
      %v3217 = vld [vmem:[%s3201 + $0x3c] sm:$0xf]
      %v3218 = vld [vmem:[%s3201 + $0x40] sm:$0xf]
      %v3219 = vld [vmem:[%s3201 + $0x44] sm:$0xf]
      %v3220 = vld [vmem:[%s3201 + $0x48] sm:$0xf]
      %v3221 = vld [vmem:[%s3201 + $0x4c] sm:$0xf]
      %v3222 = vld [vmem:[%s3201 + $0x50] sm:$0xf]
      %v3223 = vld [vmem:[%s3201 + $0x54] sm:$0xf]
      %v3224 = vld [vmem:[%s3201 + $0x58] sm:$0xf]
      %v3225 = vld [vmem:[%s3201 + $0x5c] sm:$0xf]
      %v3226 = vld [vmem:[%s3201 + $0x60] sm:$0xf]
      %v3227 = vld [vmem:[%s3201 + $0x64] sm:$0xf]
      %v3228 = vld [vmem:[%s3201 + $0x68] sm:$0xf]
      %v3229 = vld [vmem:[%s3201 + $0x6c] sm:$0xf]
      %v3230 = vld [vmem:[%s3201 + $0x70] sm:$0xf]
      %v3231 = vld [vmem:[%s3201 + $0x74] sm:$0xf]
      %v3232 = vld [vmem:[%s3201 + $0x78] sm:$0xf]
      %v3233 = vld [vmem:[%s3201 + $0x7c] sm:$0xf]
      %v3234 = vld [vmem:[%s3201 + $0x80] sm:$0xf]
      %v3235 = vld [vmem:[%s3201 + $0x84] sm:$0xf]
      %v3236 = vld [vmem:[%s3201 + $0x88] sm:$0xf]
      %v3237 = vld [vmem:[%s3201 + $0x8c] sm:$0xf]
      %v3238 = vld [vmem:[%s3201 + $0x90] sm:$0xf]
      %v3239 = vld [vmem:[%s3201 + $0x94] sm:$0xf]
      %v3240 = vld [vmem:[%s3201 + $0x98] sm:$0xf]
      %v3241 = vld [vmem:[%s3201 + $0x9c] sm:$0xf]
      %v3242 = vld [vmem:[%s3201 + $0xa0] sm:$0xf]
      %v3243 = vld [vmem:[%s3201 + $0xa4] sm:$0xf]
      %v3244 = vld [vmem:[%s3201 + $0xa8] sm:$0xf]
      %v3245 = vld [vmem:[%s3201 + $0xac] sm:$0xf]
      %v3246 = vld [vmem:[%s3201 + $0xb0] sm:$0xf]
      %v3247 = vld [vmem:[%s3201 + $0xb4] sm:$0xf]
      %v3248 = vld [vmem:[%s3201 + $0xb8] sm:$0xf]
      %v3249 = vld [vmem:[%s3201 + $0xbc] sm:$0xf]
      %v3250 = vld [vmem:[%s3201 + $0xc0] sm:$0xf]
      %v3251 = vld [vmem:[%s3201 + $0xc4] sm:$0xf]
      %v3252 = vld [vmem:[%s3201 + $0xc8] sm:$0xf]
      %v3253 = vld [vmem:[%s3201 + $0xcc] sm:$0xf]
      %v3254 = vld [vmem:[%s3201 + $0xd0] sm:$0xf]
      %v3255 = vld [vmem:[%s3201 + $0xd4] sm:$0xf]
      %v3256 = vld [vmem:[%s3201 + $0xd8] sm:$0xf]
      %v3257 = vld [vmem:[%s3201 + $0xdc] sm:$0xf]
      %v3258 = vld [vmem:[%s3201 + $0xe0] sm:$0xf]
      %v3259 = vld [vmem:[%s3201 + $0xe4] sm:$0xf]
      %v3260 = vld [vmem:[%s3201 + $0xe8] sm:$0xf]
      %v3261 = vld [vmem:[%s3201 + $0xec] sm:$0xf]
      %v3262 = vld [vmem:[%s3201 + $0xf0] sm:$0xf]
      %v3263 = vld [vmem:[%s3201 + $0xf4] sm:$0xf]
      %v3264 = vld [vmem:[%s3201 + $0xf8] sm:$0xf]
      %v3265 = vld [vmem:[%s3201 + $0xfc] sm:$0xf]
      %v3266 = vld [vmem:[%s3201 + $0x100] sm:$0xf]
      %v3267 = vld [vmem:[%s3201 + $0x104] sm:$0xf]
      %v3268 = vld [vmem:[%s3201 + $0x108] sm:$0xf]
      %v3269 = vld [vmem:[%s3201 + $0x10c] sm:$0xf]
      %v3270 = vld [vmem:[%s3201 + $0x110] sm:$0xf]
      %v3271 = vld [vmem:[%s3201 + $0x114] sm:$0xf]
      %v3272 = vld [vmem:[%s3201 + $0x118] sm:$0xf]
      %v3273 = vld [vmem:[%s3201 + $0x11c] sm:$0xf]
      %v3274 = vld [vmem:[%s3201 + $0x120] sm:$0xf]
      %v3275 = vld [vmem:[%s3201 + $0x124] sm:$0xf]
      %v3276 = vld [vmem:[%s3201 + $0x128] sm:$0xf]
      %v3277 = vld [vmem:[%s3201 + $0x12c] sm:$0xf]
      %v3278 = vld [vmem:[%s3201 + $0x130] sm:$0xf]
      %v3279 = vld [vmem:[%s3201 + $0x134] sm:$0xf]
      %v3280 = vld [vmem:[%s3201 + $0x138] sm:$0xf]
      %v3281 = vld [vmem:[%s3201 + $0x13c] sm:$0xf]
      %v3282 = vld [vmem:[%s3201 + $0x140] sm:$0xf]
      %v3283 = vld [vmem:[%s3201 + $0x144] sm:$0xf]
      %v3284 = vld [vmem:[%s3201 + $0x148] sm:$0xf]
      %v3285 = vld [vmem:[%s3201 + $0x14c] sm:$0xf]
      %v3286 = vld [vmem:[%s3201 + $0x150] sm:$0xf]
      %v3287 = vld [vmem:[%s3201 + $0x154] sm:$0xf]
      %v3288 = vld [vmem:[%s3201 + $0x158] sm:$0xf]
      %v3289 = vld [vmem:[%s3201 + $0x15c] sm:$0xf]
      %v3290 = vld [vmem:[%s3201 + $0x160] sm:$0xf]
      %v3291 = vld [vmem:[%s3201 + $0x164] sm:$0xf]
      %v3292 = vld [vmem:[%s3201 + $0x168] sm:$0xf]
      %v3293 = vld [vmem:[%s3201 + $0x16c] sm:$0xf]
      %v3294 = vld [vmem:[%s3201 + $0x170] sm:$0xf]
      %v3295 = vld [vmem:[%s3201 + $0x174] sm:$0xf]
      %v3296 = vld [vmem:[%s3201 + $0x178] sm:$0xf]
      %v3297 = vld [vmem:[%s3201 + $0x17c] sm:$0xf]
      %v3394 = vunpack.c.l.b16 %v3105
      %v3395 = vunpack.c.h.b16 %v3105
      %v3396 = vunpack.c.l.b16 %v3106
      %v3397 = vunpack.c.h.b16 %v3106
      %v3398 = vunpack.c.l.b16 %v3107
      %v3399 = vunpack.c.h.b16 %v3107
      %v3400 = vunpack.c.l.b16 %v3108
      %v3401 = vunpack.c.h.b16 %v3108
      %v3402 = vunpack.c.l.b16 %v3109
      %v3403 = vunpack.c.h.b16 %v3109
      %v3404 = vunpack.c.l.b16 %v3110
      %v3405 = vunpack.c.h.b16 %v3110
      %v3406 = vunpack.c.l.b16 %v3111
      %v3407 = vunpack.c.h.b16 %v3111
      %v3408 = vunpack.c.l.b16 %v3112
      %v3409 = vunpack.c.h.b16 %v3112
      %v3410 = vunpack.c.l.b16 %v3113
      %v3411 = vunpack.c.h.b16 %v3113
      %v3412 = vunpack.c.l.b16 %v3114
      %v3413 = vunpack.c.h.b16 %v3114
      %v3414 = vunpack.c.l.b16 %v3115
      %v3415 = vunpack.c.h.b16 %v3115
      %v3416 = vunpack.c.l.b16 %v3116
      %v3417 = vunpack.c.h.b16 %v3116
      %v3418 = vunpack.c.l.b16 %v3117
      %v3419 = vunpack.c.h.b16 %v3117
      %v3420 = vunpack.c.l.b16 %v3118
      %v3421 = vunpack.c.h.b16 %v3118
      %v3422 = vunpack.c.l.b16 %v3119
      %v3423 = vunpack.c.h.b16 %v3119
      %v3424 = vunpack.c.l.b16 %v3120
      %v3425 = vunpack.c.h.b16 %v3120
      %v3426 = vunpack.c.l.b16 %v3121
      %v3427 = vunpack.c.h.b16 %v3121
      %v3428 = vunpack.c.l.b16 %v3122
      %v3429 = vunpack.c.h.b16 %v3122
      %v3430 = vunpack.c.l.b16 %v3123
      %v3431 = vunpack.c.h.b16 %v3123
      %v3432 = vunpack.c.l.b16 %v3124
      %v3433 = vunpack.c.h.b16 %v3124
      %v3434 = vunpack.c.l.b16 %v3125
      %v3435 = vunpack.c.h.b16 %v3125
      %v3436 = vunpack.c.l.b16 %v3126
      %v3437 = vunpack.c.h.b16 %v3126
      %v3438 = vunpack.c.l.b16 %v3127
      %v3439 = vunpack.c.h.b16 %v3127
      %v3440 = vunpack.c.l.b16 %v3128
      %v3441 = vunpack.c.h.b16 %v3128
      %v3442 = vunpack.c.l.b16 %v3129
      %v3443 = vunpack.c.h.b16 %v3129
      %v3444 = vunpack.c.l.b16 %v3130
      %v3445 = vunpack.c.h.b16 %v3130
      %v3446 = vunpack.c.l.b16 %v3131
      %v3447 = vunpack.c.h.b16 %v3131
      %v3448 = vunpack.c.l.b16 %v3132
      %v3449 = vunpack.c.h.b16 %v3132
      %v3450 = vunpack.c.l.b16 %v3133
      %v3451 = vunpack.c.h.b16 %v3133
      %v3452 = vunpack.c.l.b16 %v3134
      %v3453 = vunpack.c.h.b16 %v3134
      %v3454 = vunpack.c.l.b16 %v3135
      %v3455 = vunpack.c.h.b16 %v3135
      %v3456 = vunpack.c.l.b16 %v3136
      %v3457 = vunpack.c.h.b16 %v3136
      %v3458 = vunpack.c.l.b16 %v3137
      %v3459 = vunpack.c.h.b16 %v3137
      %v3460 = vunpack.c.l.b16 %v3138
      %v3461 = vunpack.c.h.b16 %v3138
      %v3462 = vunpack.c.l.b16 %v3139
      %v3463 = vunpack.c.h.b16 %v3139
      %v3464 = vunpack.c.l.b16 %v3140
      %v3465 = vunpack.c.h.b16 %v3140
      %v3466 = vunpack.c.l.b16 %v3141
      %v3467 = vunpack.c.h.b16 %v3141
      %v3468 = vunpack.c.l.b16 %v3142
      %v3469 = vunpack.c.h.b16 %v3142
      %v3470 = vunpack.c.l.b16 %v3143
      %v3471 = vunpack.c.h.b16 %v3143
      %v3472 = vunpack.c.l.b16 %v3144
      %v3473 = vunpack.c.h.b16 %v3144
      %v3474 = vunpack.c.l.b16 %v3145
      %v3475 = vunpack.c.h.b16 %v3145
      %v3476 = vunpack.c.l.b16 %v3146
      %v3477 = vunpack.c.h.b16 %v3146
      %v3478 = vunpack.c.l.b16 %v3147
      %v3479 = vunpack.c.h.b16 %v3147
      %v3480 = vunpack.c.l.b16 %v3148
      %v3481 = vunpack.c.h.b16 %v3148
      %v3482 = vunpack.c.l.b16 %v3149
      %v3483 = vunpack.c.h.b16 %v3149
      %v3484 = vunpack.c.l.b16 %v3150
      %v3485 = vunpack.c.h.b16 %v3150
      %v3486 = vunpack.c.l.b16 %v3151
      %v3487 = vunpack.c.h.b16 %v3151
      %v3488 = vunpack.c.l.b16 %v3152
      %v3489 = vunpack.c.h.b16 %v3152
      %v3490 = vunpack.c.l.b16 %v3153
      %v3491 = vunpack.c.h.b16 %v3153
      %v3492 = vunpack.c.l.b16 %v3154
      %v3493 = vunpack.c.h.b16 %v3154
      %v3494 = vunpack.c.l.b16 %v3155
      %v3495 = vunpack.c.h.b16 %v3155
      %v3496 = vunpack.c.l.b16 %v3156
      %v3497 = vunpack.c.h.b16 %v3156
      %v3498 = vunpack.c.l.b16 %v3157
      %v3499 = vunpack.c.h.b16 %v3157
      %v3500 = vunpack.c.l.b16 %v3158
      %v3501 = vunpack.c.h.b16 %v3158
      %v3502 = vunpack.c.l.b16 %v3159
      %v3503 = vunpack.c.h.b16 %v3159
      %v3504 = vunpack.c.l.b16 %v3160
      %v3505 = vunpack.c.h.b16 %v3160
      %v3506 = vunpack.c.l.b16 %v3161
      %v3507 = vunpack.c.h.b16 %v3161
      %v3508 = vunpack.c.l.b16 %v3162
      %v3509 = vunpack.c.h.b16 %v3162
      %v3510 = vunpack.c.l.b16 %v3163
      %v3511 = vunpack.c.h.b16 %v3163
      %v3512 = vunpack.c.l.b16 %v3164
      %v3513 = vunpack.c.h.b16 %v3164
      %v3514 = vunpack.c.l.b16 %v3165
      %v3515 = vunpack.c.h.b16 %v3165
      %v3516 = vunpack.c.l.b16 %v3166
      %v3517 = vunpack.c.h.b16 %v3166
      %v3518 = vunpack.c.l.b16 %v3167
      %v3519 = vunpack.c.h.b16 %v3167
      %v3520 = vunpack.c.l.b16 %v3168
      %v3521 = vunpack.c.h.b16 %v3168
      %v3522 = vunpack.c.l.b16 %v3169
      %v3523 = vunpack.c.h.b16 %v3169
      %v3524 = vunpack.c.l.b16 %v3170
      %v3525 = vunpack.c.h.b16 %v3170
      %v3526 = vunpack.c.l.b16 %v3171
      %v3527 = vunpack.c.h.b16 %v3171
      %v3528 = vunpack.c.l.b16 %v3172
      %v3529 = vunpack.c.h.b16 %v3172
      %v3530 = vunpack.c.l.b16 %v3173
      %v3531 = vunpack.c.h.b16 %v3173
      %v3532 = vunpack.c.l.b16 %v3174
      %v3533 = vunpack.c.h.b16 %v3174
      %v3534 = vunpack.c.l.b16 %v3175
      %v3535 = vunpack.c.h.b16 %v3175
      %v3536 = vunpack.c.l.b16 %v3176
      %v3537 = vunpack.c.h.b16 %v3176
      %v3538 = vunpack.c.l.b16 %v3177
      %v3539 = vunpack.c.h.b16 %v3177
      %v3540 = vunpack.c.l.b16 %v3178
      %v3541 = vunpack.c.h.b16 %v3178
      %v3542 = vunpack.c.l.b16 %v3179
      %v3543 = vunpack.c.h.b16 %v3179
      %v3544 = vunpack.c.l.b16 %v3180
      %v3545 = vunpack.c.h.b16 %v3180
      %v3546 = vunpack.c.l.b16 %v3181
      %v3547 = vunpack.c.h.b16 %v3181
      %v3548 = vunpack.c.l.b16 %v3182
      %v3549 = vunpack.c.h.b16 %v3182
      %v3550 = vunpack.c.l.b16 %v3183
      %v3551 = vunpack.c.h.b16 %v3183
      %v3552 = vunpack.c.l.b16 %v3184
      %v3553 = vunpack.c.h.b16 %v3184
      %v3554 = vunpack.c.l.b16 %v3185
      %v3555 = vunpack.c.h.b16 %v3185
      %v3556 = vunpack.c.l.b16 %v3186
      %v3557 = vunpack.c.h.b16 %v3186
      %v3558 = vunpack.c.l.b16 %v3187
      %v3559 = vunpack.c.h.b16 %v3187
      %v3560 = vunpack.c.l.b16 %v3188
      %v3561 = vunpack.c.h.b16 %v3188
      %v3562 = vunpack.c.l.b16 %v3189
      %v3563 = vunpack.c.h.b16 %v3189
      %v3564 = vunpack.c.l.b16 %v3190
      %v3565 = vunpack.c.h.b16 %v3190
      %v3566 = vunpack.c.l.b16 %v3191
      %v3567 = vunpack.c.h.b16 %v3191
      %v3568 = vunpack.c.l.b16 %v3192
      %v3569 = vunpack.c.h.b16 %v3192
      %v3570 = vunpack.c.l.b16 %v3193
      %v3571 = vunpack.c.h.b16 %v3193
      %v3572 = vunpack.c.l.b16 %v3194
      %v3573 = vunpack.c.h.b16 %v3194
      %v3574 = vunpack.c.l.b16 %v3195
      %v3575 = vunpack.c.h.b16 %v3195
      %v3576 = vunpack.c.l.b16 %v3196
      %v3577 = vunpack.c.h.b16 %v3196
      %v3578 = vunpack.c.l.b16 %v3197
      %v3579 = vunpack.c.h.b16 %v3197
      %v3580 = vunpack.c.l.b16 %v3198
      %v3581 = vunpack.c.h.b16 %v3198
      %v3582 = vunpack.c.l.b16 %v3199
      %v3583 = vunpack.c.h.b16 %v3199
      %v3584 = vunpack.c.l.b16 %v3200
      %v3585 = vunpack.c.h.b16 %v3200
      %v3586 = vpack.c.b16 %v3400, %v3394
      %v3587 = vpack.c.b16 %v3401, %v3395
      %v3588 = vpack.c.b16 %v3402, %v3396
      %v3589 = vpack.c.b16 %v3403, %v3397
      %v3590 = vpack.c.b16 %v3404, %v3398
      %v3591 = vpack.c.b16 %v3405, %v3399
      %v3592 = vpack.c.b16 %v3412, %v3406
      %v3593 = vpack.c.b16 %v3413, %v3407
      %v3594 = vpack.c.b16 %v3414, %v3408
      %v3595 = vpack.c.b16 %v3415, %v3409
      %v3596 = vpack.c.b16 %v3416, %v3410
      %v3597 = vpack.c.b16 %v3417, %v3411
      %v3598 = vpack.c.b16 %v3424, %v3418
      %v3599 = vpack.c.b16 %v3425, %v3419
      %v3600 = vpack.c.b16 %v3426, %v3420
      %v3601 = vpack.c.b16 %v3427, %v3421
      %v3602 = vpack.c.b16 %v3428, %v3422
      %v3603 = vpack.c.b16 %v3429, %v3423
      %v3604 = vpack.c.b16 %v3436, %v3430
      %v3605 = vpack.c.b16 %v3437, %v3431
      %v3606 = vpack.c.b16 %v3438, %v3432
      %v3607 = vpack.c.b16 %v3439, %v3433
      %v3608 = vpack.c.b16 %v3440, %v3434
      %v3609 = vpack.c.b16 %v3441, %v3435
      %v3610 = vpack.c.b16 %v3448, %v3442
      %v3611 = vpack.c.b16 %v3449, %v3443
      %v3612 = vpack.c.b16 %v3450, %v3444
      %v3613 = vpack.c.b16 %v3451, %v3445
      %v3614 = vpack.c.b16 %v3452, %v3446
      %v3615 = vpack.c.b16 %v3453, %v3447
      %v3616 = vpack.c.b16 %v3460, %v3454
      %v3617 = vpack.c.b16 %v3461, %v3455
      %v3618 = vpack.c.b16 %v3462, %v3456
      %v3619 = vpack.c.b16 %v3463, %v3457
      %v3620 = vpack.c.b16 %v3464, %v3458
      %v3621 = vpack.c.b16 %v3465, %v3459
      %v3622 = vpack.c.b16 %v3472, %v3466
      %v3623 = vpack.c.b16 %v3473, %v3467
      %v3624 = vpack.c.b16 %v3474, %v3468
      %v3625 = vpack.c.b16 %v3475, %v3469
      %v3626 = vpack.c.b16 %v3476, %v3470
      %v3627 = vpack.c.b16 %v3477, %v3471
      %v3628 = vpack.c.b16 %v3484, %v3478
      %v3629 = vpack.c.b16 %v3485, %v3479
      %v3630 = vpack.c.b16 %v3486, %v3480
      %v3631 = vpack.c.b16 %v3487, %v3481
      %v3632 = vpack.c.b16 %v3488, %v3482
      %v3633 = vpack.c.b16 %v3489, %v3483
      %v3634 = vpack.c.b16 %v3496, %v3490
      %v3635 = vpack.c.b16 %v3497, %v3491
      %v3636 = vpack.c.b16 %v3498, %v3492
      %v3637 = vpack.c.b16 %v3499, %v3493
      %v3638 = vpack.c.b16 %v3500, %v3494
      %v3639 = vpack.c.b16 %v3501, %v3495
      %v3640 = vpack.c.b16 %v3508, %v3502
      %v3641 = vpack.c.b16 %v3509, %v3503
      %v3642 = vpack.c.b16 %v3510, %v3504
      %v3643 = vpack.c.b16 %v3511, %v3505
      %v3644 = vpack.c.b16 %v3512, %v3506
      %v3645 = vpack.c.b16 %v3513, %v3507
      %v3646 = vpack.c.b16 %v3520, %v3514
      %v3647 = vpack.c.b16 %v3521, %v3515
      %v3648 = vpack.c.b16 %v3522, %v3516
      %v3649 = vpack.c.b16 %v3523, %v3517
      %v3650 = vpack.c.b16 %v3524, %v3518
      %v3651 = vpack.c.b16 %v3525, %v3519
      %v3652 = vpack.c.b16 %v3532, %v3526
      %v3653 = vpack.c.b16 %v3533, %v3527
      %v3654 = vpack.c.b16 %v3534, %v3528
      %v3655 = vpack.c.b16 %v3535, %v3529
      %v3656 = vpack.c.b16 %v3536, %v3530
      %v3657 = vpack.c.b16 %v3537, %v3531
      %v3658 = vpack.c.b16 %v3544, %v3538
      %v3659 = vpack.c.b16 %v3545, %v3539
      %v3660 = vpack.c.b16 %v3546, %v3540
      %v3661 = vpack.c.b16 %v3547, %v3541
      %v3662 = vpack.c.b16 %v3548, %v3542
      %v3663 = vpack.c.b16 %v3549, %v3543
      %v3664 = vpack.c.b16 %v3556, %v3550
      %v3665 = vpack.c.b16 %v3557, %v3551
      %v3666 = vpack.c.b16 %v3558, %v3552
      %v3667 = vpack.c.b16 %v3559, %v3553
      %v3668 = vpack.c.b16 %v3560, %v3554
      %v3669 = vpack.c.b16 %v3561, %v3555
      %v3670 = vpack.c.b16 %v3568, %v3562
      %v3671 = vpack.c.b16 %v3569, %v3563
      %v3672 = vpack.c.b16 %v3570, %v3564
      %v3673 = vpack.c.b16 %v3571, %v3565
      %v3674 = vpack.c.b16 %v3572, %v3566
      %v3675 = vpack.c.b16 %v3573, %v3567
      %v3676 = vpack.c.b16 %v3580, %v3574
      %v3677 = vpack.c.b16 %v3581, %v3575
      %v3678 = vpack.c.b16 %v3582, %v3576
      %v3679 = vpack.c.b16 %v3583, %v3577
      %v3680 = vpack.c.b16 %v3584, %v3578
      %v3681 = vpack.c.b16 %v3585, %v3579
      %v3874 = vunpack.c.l.b16 %v3202
      %v3875 = vunpack.c.l.b16 %v3203
      %v3876 = vunpack.c.l.b16 %v3204
      %v3877 = vunpack.c.l.b16 %v3205
      %v3878 = vunpack.c.l.b16 %v3206
      %v3879 = vunpack.c.l.b16 %v3207
      %v3880 = vunpack.c.l.b16 %v3208
      %v3881 = vunpack.c.l.b16 %v3209
      %v3882 = vunpack.c.l.b16 %v3210
      %v3883 = vunpack.c.l.b16 %v3211
      %v3884 = vunpack.c.l.b16 %v3212
      %v3885 = vunpack.c.l.b16 %v3213
      %v3886 = vunpack.c.l.b16 %v3214
      %v3887 = vunpack.c.l.b16 %v3215
      %v3888 = vunpack.c.l.b16 %v3216
      %v3889 = vunpack.c.l.b16 %v3217
      %v3890 = vunpack.c.l.b16 %v3218
      %v3891 = vunpack.c.l.b16 %v3219
      %v3892 = vunpack.c.l.b16 %v3220
      %v3893 = vunpack.c.l.b16 %v3221
      %v3894 = vunpack.c.l.b16 %v3222
      %v3895 = vunpack.c.l.b16 %v3223
      %v3896 = vunpack.c.l.b16 %v3224
      %v3897 = vunpack.c.l.b16 %v3225
      %v3898 = vunpack.c.l.b16 %v3226
      %v3899 = vunpack.c.l.b16 %v3227
      %v3900 = vunpack.c.l.b16 %v3228
      %v3901 = vunpack.c.l.b16 %v3229
      %v3902 = vunpack.c.l.b16 %v3230
      %v3903 = vunpack.c.l.b16 %v3231
      %v3904 = vunpack.c.l.b16 %v3232
      %v3905 = vunpack.c.l.b16 %v3233
      %v3906 = vunpack.c.l.b16 %v3234
      %v3907 = vunpack.c.l.b16 %v3235
      %v3908 = vunpack.c.l.b16 %v3236
      %v3909 = vunpack.c.l.b16 %v3237
      %v3910 = vunpack.c.l.b16 %v3238
      %v3911 = vunpack.c.l.b16 %v3239
      %v3912 = vunpack.c.l.b16 %v3240
      %v3913 = vunpack.c.l.b16 %v3241
      %v3914 = vunpack.c.l.b16 %v3242
      %v3915 = vunpack.c.l.b16 %v3243
      %v3916 = vunpack.c.l.b16 %v3244
      %v3917 = vunpack.c.l.b16 %v3245
      %v3918 = vunpack.c.l.b16 %v3246
      %v3919 = vunpack.c.l.b16 %v3247
      %v3920 = vunpack.c.l.b16 %v3248
      %v3921 = vunpack.c.l.b16 %v3249
      %v3922 = vunpack.c.l.b16 %v3250
      %v3923 = vunpack.c.l.b16 %v3251
      %v3924 = vunpack.c.l.b16 %v3252
      %v3925 = vunpack.c.l.b16 %v3253
      %v3926 = vunpack.c.l.b16 %v3254
      %v3927 = vunpack.c.l.b16 %v3255
      %v3928 = vunpack.c.l.b16 %v3256
      %v3929 = vunpack.c.l.b16 %v3257
      %v3930 = vunpack.c.l.b16 %v3258
      %v3931 = vunpack.c.l.b16 %v3259
      %v3932 = vunpack.c.l.b16 %v3260
      %v3933 = vunpack.c.l.b16 %v3261
      %v3934 = vunpack.c.l.b16 %v3262
      %v3935 = vunpack.c.l.b16 %v3263
      %v3936 = vunpack.c.l.b16 %v3264
      %v3937 = vunpack.c.l.b16 %v3265
      %v3938 = vunpack.c.l.b16 %v3266
      %v3939 = vunpack.c.l.b16 %v3267
      %v3940 = vunpack.c.l.b16 %v3268
      %v3941 = vunpack.c.l.b16 %v3269
      %v3942 = vunpack.c.l.b16 %v3270
      %v3943 = vunpack.c.l.b16 %v3271
      %v3944 = vunpack.c.l.b16 %v3272
      %v3945 = vunpack.c.l.b16 %v3273
      %v3946 = vunpack.c.l.b16 %v3274
      %v3947 = vunpack.c.l.b16 %v3275
      %v3948 = vunpack.c.l.b16 %v3276
      %v3949 = vunpack.c.l.b16 %v3277
      %v3950 = vunpack.c.l.b16 %v3278
      %v3951 = vunpack.c.l.b16 %v3279
      %v3952 = vunpack.c.l.b16 %v3280
      %v3953 = vunpack.c.l.b16 %v3281
      %v3954 = vunpack.c.l.b16 %v3282
      %v3955 = vunpack.c.l.b16 %v3283
      %v3956 = vunpack.c.l.b16 %v3284
      %v3957 = vunpack.c.l.b16 %v3285
      %v3958 = vunpack.c.l.b16 %v3286
      %v3959 = vunpack.c.l.b16 %v3287
      %v3960 = vunpack.c.l.b16 %v3288
      %v3961 = vunpack.c.l.b16 %v3289
      %v3962 = vunpack.c.l.b16 %v3290
      %v3963 = vunpack.c.l.b16 %v3291
      %v3964 = vunpack.c.l.b16 %v3292
      %v3965 = vunpack.c.l.b16 %v3293
      %v3966 = vunpack.c.l.b16 %v3294
      %v3967 = vunpack.c.l.b16 %v3295
      %v3968 = vunpack.c.l.b16 %v3296
      %v3969 = vunpack.c.l.b16 %v3297
      %v3970 = vpack.c.b16 %v3875, %v3874
      %v3971 = vpack.c.b16 %v3877, %v3876
      %v3972 = vpack.c.b16 %v3879, %v3878
      %v3973 = vpack.c.b16 %v3881, %v3880
      %v3974 = vpack.c.b16 %v3883, %v3882
      %v3975 = vpack.c.b16 %v3885, %v3884
      %v3976 = vpack.c.b16 %v3887, %v3886
      %v3977 = vpack.c.b16 %v3889, %v3888
      %v3978 = vpack.c.b16 %v3891, %v3890
      %v3979 = vpack.c.b16 %v3893, %v3892
      %v3980 = vpack.c.b16 %v3895, %v3894
      %v3981 = vpack.c.b16 %v3897, %v3896
      %v3982 = vpack.c.b16 %v3899, %v3898
      %v3983 = vpack.c.b16 %v3901, %v3900
      %v3984 = vpack.c.b16 %v3903, %v3902
      %v3985 = vpack.c.b16 %v3905, %v3904
      %v3986 = vpack.c.b16 %v3907, %v3906
      %v3987 = vpack.c.b16 %v3909, %v3908
      %v3988 = vpack.c.b16 %v3911, %v3910
      %v3989 = vpack.c.b16 %v3913, %v3912
      %v3990 = vpack.c.b16 %v3915, %v3914
      %v3991 = vpack.c.b16 %v3917, %v3916
      %v3992 = vpack.c.b16 %v3919, %v3918
      %v3993 = vpack.c.b16 %v3921, %v3920
      %v3994 = vpack.c.b16 %v3923, %v3922
      %v3995 = vpack.c.b16 %v3925, %v3924
      %v3996 = vpack.c.b16 %v3927, %v3926
      %v3997 = vpack.c.b16 %v3929, %v3928
      %v3998 = vpack.c.b16 %v3931, %v3930
      %v3999 = vpack.c.b16 %v3933, %v3932
      %v4000 = vpack.c.b16 %v3935, %v3934
      %v4001 = vpack.c.b16 %v3937, %v3936
      %v4002 = vpack.c.b16 %v3939, %v3938
      %v4003 = vpack.c.b16 %v3941, %v3940
      %v4004 = vpack.c.b16 %v3943, %v3942
      %v4005 = vpack.c.b16 %v3945, %v3944
      %v4006 = vpack.c.b16 %v3947, %v3946
      %v4007 = vpack.c.b16 %v3949, %v3948
      %v4008 = vpack.c.b16 %v3951, %v3950
      %v4009 = vpack.c.b16 %v3953, %v3952
      %v4010 = vpack.c.b16 %v3955, %v3954
      %v4011 = vpack.c.b16 %v3957, %v3956
      %v4012 = vpack.c.b16 %v3959, %v3958
      %v4013 = vpack.c.b16 %v3961, %v3960
      %v4014 = vpack.c.b16 %v3963, %v3962
      %v4015 = vpack.c.b16 %v3965, %v3964
      %v4016 = vpack.c.b16 %v3967, %v3966
      %v4017 = vpack.c.b16 %v3969, %v3968
      %4066 = vmatprep.subr.bf16.mxu0 0
      %4067 = vmatpush1.bf16.msra.mxu0 %v3970
      %4068 = vmatprep.subr.bf16.mxu0 0
      %4069 = vmatpush1.bf16.msra.mxu0 %v3971
      %4070 = vmatprep.subr.bf16.mxu0 0
      %4071 = vmatpush1.bf16.msra.mxu0 %v3972
      %4072 = vmatprep.subr.bf16.mxu0 0
      %4073 = vmatpush1.bf16.msra.mxu0 %v3973
      %4074 = vmatprep.subr.bf16.mxu0 0
      %4075 = vmatpush1.bf16.msra.mxu0 %v3974
      %4076 = vmatprep.subr.bf16.mxu0 0
      %4077 = vmatpush1.bf16.msra.mxu0 %v3975
      %4078 = vmatprep.subr.bf16.mxu0 0
      %4079 = vmatpush1.bf16.msra.mxu0 %v3976
      %4080 = vmatprep.subr.bf16.mxu0 0
      %4081 = vmatpush1.bf16.msra.mxu0 %v3977
      %4082 = vmatprep.subr.bf16.mxu0 0
      %4083 = vmatpush1.bf16.msra.mxu0 %v3978
      %4084 = vmatprep.subr.bf16.mxu0 0
      %4085 = vmatpush1.bf16.msra.mxu0 %v3979
      %4086 = vmatprep.subr.bf16.mxu0 0
      %4087 = vmatpush1.bf16.msra.mxu0 %v3980
      %4088 = vmatprep.subr.bf16.mxu0 0
      %4089 = vmatpush1.bf16.msra.mxu0 %v3981
      %4090 = vmatprep.subr.bf16.mxu0 0
      %4091 = vmatpush1.bf16.msra.mxu0 %v3982
      %4092 = vmatprep.subr.bf16.mxu0 0
      %4093 = vmatpush1.bf16.msra.mxu0 %v3983
      %4094 = vmatprep.subr.bf16.mxu0 0
      %4095 = vmatpush1.bf16.msra.mxu0 %v3984
      %4096 = vmatprep.subr.bf16.mxu0 0
      %4097 = vmatpush1.bf16.msra.mxu0 %v3985
      %4098 = vmatprep.mubr.bf16.mxu0 %v3587
      %4099 = vmatmul.mubr.bf16.gmra.mrb[0].mxu0 %v3586
      %v4100 = vpop.f32.mrb[0].mxu0
      %v4101 = vadd.f32 0.0, %v4100
      %v4102 = vpop.f32.mrb[0].mxu0
      %v4103 = vpop.f32.mrb[0].mxu0
      %v4104 = vadd.f32 0.0, %v4103
      %v4105 = vpop.f32.mrb[0].mxu0
      %4106 = vmatprep.mubr.bf16.mxu0 %v3593
      %4107 = vmatmul.mubr.bf16.gmra.mrb[0].mxu0 %v3592
      %v4108 = vpop.f32.mrb[0].mxu0
      %v4109 = vadd.f32 0.0, %v4108
      %v4110 = vpop.f32.mrb[0].mxu0
      %v4111 = vpop.f32.mrb[0].mxu0
      %v4112 = vadd.f32 0.0, %v4111
      %v4113 = vpop.f32.mrb[0].mxu0
      %4114 = vmatprep.mubr.bf16.mxu0 %v3599
      %4115 = vmatmul.mubr.bf16.gmra.mrb[0].mxu0 %v3598
      %v4116 = vpop.f32.mrb[0].mxu0
      %v4117 = vadd.f32 0.0, %v4116
      %v4118 = vpop.f32.mrb[0].mxu0
      %v4119 = vpop.f32.mrb[0].mxu0
      %v4120 = vadd.f32 0.0, %v4119
      %v4121 = vpop.f32.mrb[0].mxu0
      %4122 = vmatprep.mubr.bf16.mxu0 %v3605
      %4123 = vmatmul.mubr.bf16.gmra.mrb[0].mxu0 %v3604
      %v4124 = vpop.f32.mrb[0].mxu0
      %v4125 = vadd.f32 0.0, %v4124
      %v4126 = vpop.f32.mrb[0].mxu0
      %v4127 = vpop.f32.mrb[0].mxu0
      %v4128 = vadd.f32 0.0, %v4127
      %v4129 = vpop.f32.mrb[0].mxu0
      %4130 = vmatprep.mubr.bf16.mxu0 %v3611
      %4131 = vmatmul.mubr.bf16.gmra.mrb[0].mxu0 %v3610
      %v4132 = vpop.f32.mrb[0].mxu0
      %v4133 = vadd.f32 0.0, %v4132
      %v4134 = vpop.f32.mrb[0].mxu0
      %v4135 = vpop.f32.mrb[0].mxu0
      %v4136 = vadd.f32 0.0, %v4135
      %v4137 = vpop.f32.mrb[0].mxu0
      %4138 = vmatprep.mubr.bf16.mxu0 %v3617
      %4139 = vmatmul.mubr.bf16.gmra.mrb[0].mxu0 %v3616
      %v4140 = vpop.f32.mrb[0].mxu0
      %v4141 = vadd.f32 0.0, %v4140
      %v4142 = vpop.f32.mrb[0].mxu0
      %v4143 = vpop.f32.mrb[0].mxu0
      %v4144 = vadd.f32 0.0, %v4143
      %v4145 = vpop.f32.mrb[0].mxu0
      %4146 = vmatprep.mubr.bf16.mxu0 %v3623
      %4147 = vmatmul.mubr.bf16.gmra.mrb[0].mxu0 %v3622
      %v4148 = vpop.f32.mrb[0].mxu0
      %v4149 = vadd.f32 0.0, %v4148
      %v4150 = vpop.f32.mrb[0].mxu0
      %v4151 = vpop.f32.mrb[0].mxu0
      %v4152 = vadd.f32 0.0, %v4151
      %v4153 = vpop.f32.mrb[0].mxu0
      %4154 = vmatprep.mubr.bf16.mxu0 %v3629
      %4155 = vmatmul.mubr.bf16.gmra.mrb[0].mxu0 %v3628
      %v4156 = vpop.f32.mrb[0].mxu0
      %v4157 = vadd.f32 0.0, %v4156
      %v4158 = vpop.f32.mrb[0].mxu0
      %v4159 = vpop.f32.mrb[0].mxu0
      %v4160 = vadd.f32 0.0, %v4159
      %v4161 = vpop.f32.mrb[0].mxu0
      %4162 = vmatprep.mubr.bf16.mxu0 %v3635
      %4163 = vmatmul.mubr.bf16.gmra.mrb[0].mxu0 %v3634
      %v4164 = vpop.f32.mrb[0].mxu0
      %v4165 = vadd.f32 0.0, %v4164
      %v4166 = vpop.f32.mrb[0].mxu0
      %v4167 = vpop.f32.mrb[0].mxu0
      %v4168 = vadd.f32 0.0, %v4167
      %v4169 = vpop.f32.mrb[0].mxu0
      %4170 = vmatprep.mubr.bf16.mxu0 %v3641
      %4171 = vmatmul.mubr.bf16.gmra.mrb[0].mxu0 %v3640
      %v4172 = vpop.f32.mrb[0].mxu0
      %v4173 = vadd.f32 0.0, %v4172
      %v4174 = vpop.f32.mrb[0].mxu0
      %v4175 = vpop.f32.mrb[0].mxu0
      %v4176 = vadd.f32 0.0, %v4175
      %v4177 = vpop.f32.mrb[0].mxu0
      %4178 = vmatprep.mubr.bf16.mxu0 %v3647
      %4179 = vmatmul.mubr.bf16.gmra.mrb[0].mxu0 %v3646
      %v4180 = vpop.f32.mrb[0].mxu0
      %v4181 = vadd.f32 0.0, %v4180
      %v4182 = vpop.f32.mrb[0].mxu0
      %v4183 = vpop.f32.mrb[0].mxu0
      %v4184 = vadd.f32 0.0, %v4183
      %v4185 = vpop.f32.mrb[0].mxu0
      %4186 = vmatprep.mubr.bf16.mxu0 %v3653
      %4187 = vmatmul.mubr.bf16.gmra.mrb[0].mxu0 %v3652
      %v4188 = vpop.f32.mrb[0].mxu0
      %v4189 = vadd.f32 0.0, %v4188
      %v4190 = vpop.f32.mrb[0].mxu0
      %v4191 = vpop.f32.mrb[0].mxu0
      %v4192 = vadd.f32 0.0, %v4191
      %v4193 = vpop.f32.mrb[0].mxu0
      %4194 = vmatprep.mubr.bf16.mxu0 %v3659
      %4195 = vmatmul.mubr.bf16.gmra.mrb[0].mxu0 %v3658
      %v4196 = vpop.f32.mrb[0].mxu0
      %v4197 = vadd.f32 0.0, %v4196
      %v4198 = vpop.f32.mrb[0].mxu0
      %v4199 = vpop.f32.mrb[0].mxu0
      %v4200 = vadd.f32 0.0, %v4199
      %v4201 = vpop.f32.mrb[0].mxu0
      %4202 = vmatprep.mubr.bf16.mxu0 %v3665
      %4203 = vmatmul.mubr.bf16.gmra.mrb[0].mxu0 %v3664
      %v4204 = vpop.f32.mrb[0].mxu0
      %v4205 = vadd.f32 0.0, %v4204
      %v4206 = vpop.f32.mrb[0].mxu0
      %v4207 = vpop.f32.mrb[0].mxu0
      %v4208 = vadd.f32 0.0, %v4207
      %v4209 = vpop.f32.mrb[0].mxu0
      %4210 = vmatprep.mubr.bf16.mxu0 %v3671
      %4211 = vmatmul.mubr.bf16.gmra.mrb[0].mxu0 %v3670
      %v4212 = vpop.f32.mrb[0].mxu0
      %v4213 = vadd.f32 0.0, %v4212
      %v4214 = vpop.f32.mrb[0].mxu0
      %v4215 = vpop.f32.mrb[0].mxu0
      %v4216 = vadd.f32 0.0, %v4215
      %v4217 = vpop.f32.mrb[0].mxu0
      %4218 = vmatprep.mubr.bf16.mxu0 %v3677
      %4219 = vmatmul.mubr.bf16.gmra.mrb[0].mxu0 %v3676
      %v4220 = vpop.f32.mrb[0].mxu0
      %v4221 = vadd.f32 0.0, %v4220
      %v4222 = vpop.f32.mrb[0].mxu0
      %v4223 = vpop.f32.mrb[0].mxu0
      %v4224 = vadd.f32 0.0, %v4223
      %v4225 = vpop.f32.mrb[0].mxu0
      %4226 = vdwg.mxu0
      %4227 = vmatprep.subr.bf16.mxu0 0
      %4228 = vmatpush1.bf16.msra.mxu0 %v3986
      %4229 = vmatprep.subr.bf16.mxu0 0
      %4230 = vmatpush1.bf16.msra.mxu0 %v3987
      %4231 = vmatprep.subr.bf16.mxu0 0
      %4232 = vmatpush1.bf16.msra.mxu0 %v3988
      %4233 = vmatprep.subr.bf16.mxu0 0
      %4234 = vmatpush1.bf16.msra.mxu0 %v3989
      %4235 = vmatprep.subr.bf16.mxu0 0
      %4236 = vmatpush1.bf16.msra.mxu0 %v3990
      %4237 = vmatprep.subr.bf16.mxu0 0
      %4238 = vmatpush1.bf16.msra.mxu0 %v3991
      %4239 = vmatprep.subr.bf16.mxu0 0
      %4240 = vmatpush1.bf16.msra.mxu0 %v3992
      %4241 = vmatprep.subr.bf16.mxu0 0
      %4242 = vmatpush1.bf16.msra.mxu0 %v3993
      %4243 = vmatprep.subr.bf16.mxu0 0
      %4244 = vmatpush1.bf16.msra.mxu0 %v3994
      %4245 = vmatprep.subr.bf16.mxu0 0
      %4246 = vmatpush1.bf16.msra.mxu0 %v3995
      %4247 = vmatprep.subr.bf16.mxu0 0
      %4248 = vmatpush1.bf16.msra.mxu0 %v3996
      %4249 = vmatprep.subr.bf16.mxu0 0
      %4250 = vmatpush1.bf16.msra.mxu0 %v3997
      %4251 = vmatprep.subr.bf16.mxu0 0
      %4252 = vmatpush1.bf16.msra.mxu0 %v3998
      %4253 = vmatprep.subr.bf16.mxu0 0
      %4254 = vmatpush1.bf16.msra.mxu0 %v3999
      %4255 = vmatprep.subr.bf16.mxu0 0
      %4256 = vmatpush1.bf16.msra.mxu0 %v4000
      %4257 = vmatprep.subr.bf16.mxu0 0
      %4258 = vmatpush1.bf16.msra.mxu0 %v4001
      %4259 = vmatprep.mubr.bf16.mxu0 %v3589
      %4260 = vmatmul.mubr.bf16.gmra.mrb[0].mxu0 %v3588
      %v4261 = vpop.f32.mrb[0].mxu0
      %v4262 = vadd.f32 %v4101, %v4261
      %v4263 = vpop.f32.mrb[0].mxu0
      %v4264 = vpop.f32.mrb[0].mxu0
      %v4265 = vadd.f32 %v4104, %v4264
      %v4266 = vpop.f32.mrb[0].mxu0
      %4267 = vmatprep.mubr.bf16.mxu0 %v3595
      %4268 = vmatmul.mubr.bf16.gmra.mrb[0].mxu0 %v3594
      %v4269 = vpop.f32.mrb[0].mxu0
      %v4270 = vadd.f32 %v4109, %v4269
      %v4271 = vpop.f32.mrb[0].mxu0
      %v4272 = vpop.f32.mrb[0].mxu0
      %v4273 = vadd.f32 %v4112, %v4272
      %v4274 = vpop.f32.mrb[0].mxu0
      %4275 = vmatprep.mubr.bf16.mxu0 %v3601
      %4276 = vmatmul.mubr.bf16.gmra.mrb[0].mxu0 %v3600
      %v4277 = vpop.f32.mrb[0].mxu0
      %v4278 = vadd.f32 %v4117, %v4277
      %v4279 = vpop.f32.mrb[0].mxu0
      %v4280 = vpop.f32.mrb[0].mxu0
      %v4281 = vadd.f32 %v4120, %v4280
      %v4282 = vpop.f32.mrb[0].mxu0
      %4283 = vmatprep.mubr.bf16.mxu0 %v3607
      %4284 = vmatmul.mubr.bf16.gmra.mrb[0].mxu0 %v3606
      %v4285 = vpop.f32.mrb[0].mxu0
      %v4286 = vadd.f32 %v4125, %v4285
      %v4287 = vpop.f32.mrb[0].mxu0
      %v4288 = vpop.f32.mrb[0].mxu0
      %v4289 = vadd.f32 %v4128, %v4288
      %v4290 = vpop.f32.mrb[0].mxu0
      %4291 = vmatprep.mubr.bf16.mxu0 %v3613
      %4292 = vmatmul.mubr.bf16.gmra.mrb[0].mxu0 %v3612
      %v4293 = vpop.f32.mrb[0].mxu0
      %v4294 = vadd.f32 %v4133, %v4293
      %v4295 = vpop.f32.mrb[0].mxu0
      %v4296 = vpop.f32.mrb[0].mxu0
      %v4297 = vadd.f32 %v4136, %v4296
      %v4298 = vpop.f32.mrb[0].mxu0
      %4299 = vmatprep.mubr.bf16.mxu0 %v3619
      %4300 = vmatmul.mubr.bf16.gmra.mrb[0].mxu0 %v3618
      %v4301 = vpop.f32.mrb[0].mxu0
      %v4302 = vadd.f32 %v4141, %v4301
      %v4303 = vpop.f32.mrb[0].mxu0
      %v4304 = vpop.f32.mrb[0].mxu0
      %v4305 = vadd.f32 %v4144, %v4304
      %v4306 = vpop.f32.mrb[0].mxu0
      %4307 = vmatprep.mubr.bf16.mxu0 %v3625
      %4308 = vmatmul.mubr.bf16.gmra.mrb[0].mxu0 %v3624
      %v4309 = vpop.f32.mrb[0].mxu0
      %v4310 = vadd.f32 %v4149, %v4309
      %v4311 = vpop.f32.mrb[0].mxu0
      %v4312 = vpop.f32.mrb[0].mxu0
      %v4313 = vadd.f32 %v4152, %v4312
      %v4314 = vpop.f32.mrb[0].mxu0
      %4315 = vmatprep.mubr.bf16.mxu0 %v3631
      %4316 = vmatmul.mubr.bf16.gmra.mrb[0].mxu0 %v3630
      %v4317 = vpop.f32.mrb[0].mxu0
      %v4318 = vadd.f32 %v4157, %v4317
      %v4319 = vpop.f32.mrb[0].mxu0
      %v4320 = vpop.f32.mrb[0].mxu0
      %v4321 = vadd.f32 %v4160, %v4320
      %v4322 = vpop.f32.mrb[0].mxu0
      %4323 = vmatprep.mubr.bf16.mxu0 %v3637
      %4324 = vmatmul.mubr.bf16.gmra.mrb[0].mxu0 %v3636
      %v4325 = vpop.f32.mrb[0].mxu0
      %v4326 = vadd.f32 %v4165, %v4325
      %v4327 = vpop.f32.mrb[0].mxu0
      %v4328 = vpop.f32.mrb[0].mxu0
      %v4329 = vadd.f32 %v4168, %v4328
      %v4330 = vpop.f32.mrb[0].mxu0
      %4331 = vmatprep.mubr.bf16.mxu0 %v3643
      %4332 = vmatmul.mubr.bf16.gmra.mrb[0].mxu0 %v3642
      %v4333 = vpop.f32.mrb[0].mxu0
      %v4334 = vadd.f32 %v4173, %v4333
      %v4335 = vpop.f32.mrb[0].mxu0
      %v4336 = vpop.f32.mrb[0].mxu0
      %v4337 = vadd.f32 %v4176, %v4336
      %v4338 = vpop.f32.mrb[0].mxu0
      %4339 = vmatprep.mubr.bf16.mxu0 %v3649
      %4340 = vmatmul.mubr.bf16.gmra.mrb[0].mxu0 %v3648
      %v4341 = vpop.f32.mrb[0].mxu0
      %v4342 = vadd.f32 %v4181, %v4341
      %v4343 = vpop.f32.mrb[0].mxu0
      %v4344 = vpop.f32.mrb[0].mxu0
      %v4345 = vadd.f32 %v4184, %v4344
      %v4346 = vpop.f32.mrb[0].mxu0
      %4347 = vmatprep.mubr.bf16.mxu0 %v3655
      %4348 = vmatmul.mubr.bf16.gmra.mrb[0].mxu0 %v3654
      %v4349 = vpop.f32.mrb[0].mxu0
      %v4350 = vadd.f32 %v4189, %v4349
      %v4351 = vpop.f32.mrb[0].mxu0
      %v4352 = vpop.f32.mrb[0].mxu0
      %v4353 = vadd.f32 %v4192, %v4352
      %v4354 = vpop.f32.mrb[0].mxu0
      %4355 = vmatprep.mubr.bf16.mxu0 %v3661
      %4356 = vmatmul.mubr.bf16.gmra.mrb[0].mxu0 %v3660
      %v4357 = vpop.f32.mrb[0].mxu0
      %v4358 = vadd.f32 %v4197, %v4357
      %v4359 = vpop.f32.mrb[0].mxu0
      %v4360 = vpop.f32.mrb[0].mxu0
      %v4361 = vadd.f32 %v4200, %v4360
      %v4362 = vpop.f32.mrb[0].mxu0
      %4363 = vmatprep.mubr.bf16.mxu0 %v3667
      %4364 = vmatmul.mubr.bf16.gmra.mrb[0].mxu0 %v3666
      %v4365 = vpop.f32.mrb[0].mxu0
      %v4366 = vadd.f32 %v4205, %v4365
      %v4367 = vpop.f32.mrb[0].mxu0
      %v4368 = vpop.f32.mrb[0].mxu0
      %v4369 = vadd.f32 %v4208, %v4368
      %v4370 = vpop.f32.mrb[0].mxu0
      %4371 = vmatprep.mubr.bf16.mxu0 %v3673
      %4372 = vmatmul.mubr.bf16.gmra.mrb[0].mxu0 %v3672
      %v4373 = vpop.f32.mrb[0].mxu0
      %v4374 = vadd.f32 %v4213, %v4373
      %v4375 = vpop.f32.mrb[0].mxu0
      %v4376 = vpop.f32.mrb[0].mxu0
      %v4377 = vadd.f32 %v4216, %v4376
      %v4378 = vpop.f32.mrb[0].mxu0
      %4379 = vmatprep.mubr.bf16.mxu0 %v3679
      %4380 = vmatmul.mubr.bf16.gmra.mrb[0].mxu0 %v3678
      %v4381 = vpop.f32.mrb[0].mxu0
      %v4382 = vadd.f32 %v4221, %v4381
      %v4383 = vpop.f32.mrb[0].mxu0
      %v4384 = vpop.f32.mrb[0].mxu0
      %v4385 = vadd.f32 %v4224, %v4384
      %v4386 = vpop.f32.mrb[0].mxu0
      %4387 = vdwg.mxu0
      %4388 = vmatprep.subr.bf16.mxu0 0
      %4389 = vmatpush1.bf16.msra.mxu0 %v4002
      %4390 = vmatprep.subr.bf16.mxu0 0
      %4391 = vmatpush1.bf16.msra.mxu0 %v4003
      %4392 = vmatprep.subr.bf16.mxu0 0
      %4393 = vmatpush1.bf16.msra.mxu0 %v4004
      %4394 = vmatprep.subr.bf16.mxu0 0
      %4395 = vmatpush1.bf16.msra.mxu0 %v4005
      %4396 = vmatprep.subr.bf16.mxu0 0
      %4397 = vmatpush1.bf16.msra.mxu0 %v4006
      %4398 = vmatprep.subr.bf16.mxu0 0
      %4399 = vmatpush1.bf16.msra.mxu0 %v4007
      %4400 = vmatprep.subr.bf16.mxu0 0
      %4401 = vmatpush1.bf16.msra.mxu0 %v4008
      %4402 = vmatprep.subr.bf16.mxu0 0
      %4403 = vmatpush1.bf16.msra.mxu0 %v4009
      %4404 = vmatprep.subr.bf16.mxu0 0
      %4405 = vmatpush1.bf16.msra.mxu0 %v4010
      %4406 = vmatprep.subr.bf16.mxu0 0
      %4407 = vmatpush1.bf16.msra.mxu0 %v4011
      %4408 = vmatprep.subr.bf16.mxu0 0
      %4409 = vmatpush1.bf16.msra.mxu0 %v4012
      %4410 = vmatprep.subr.bf16.mxu0 0
      %4411 = vmatpush1.bf16.msra.mxu0 %v4013
      %4412 = vmatprep.subr.bf16.mxu0 0
      %4413 = vmatpush1.bf16.msra.mxu0 %v4014
      %4414 = vmatprep.subr.bf16.mxu0 0
      %4415 = vmatpush1.bf16.msra.mxu0 %v4015
      %4416 = vmatprep.subr.bf16.mxu0 0
      %4417 = vmatpush1.bf16.msra.mxu0 %v4016
      %4418 = vmatprep.subr.bf16.mxu0 0
      %4419 = vmatpush1.bf16.msra.mxu0 %v4017
      %4420 = vmatprep.mubr.bf16.mxu0 %v3591
      %4421 = vmatmul.mubr.bf16.gmra.mrb[0].mxu0 %v3590
      %v4422 = vpop.f32.mrb[0].mxu0
      %v4423 = vadd.f32 %v4262, %v4422
      %v4424 = vpop.f32.mrb[0].mxu0
      %v4425 = vpop.f32.mrb[0].mxu0
      %v4426 = vadd.f32 %v4265, %v4425
      %v4427 = vpop.f32.mrb[0].mxu0
      %4428 = vmatprep.mubr.bf16.mxu0 %v3597
      %4429 = vmatmul.mubr.bf16.gmra.mrb[0].mxu0 %v3596
      %v4430 = vpop.f32.mrb[0].mxu0
      %v4431 = vadd.f32 %v4270, %v4430
      %v4432 = vpop.f32.mrb[0].mxu0
      %v4433 = vpop.f32.mrb[0].mxu0
      %v4434 = vadd.f32 %v4273, %v4433
      %v4435 = vpop.f32.mrb[0].mxu0
      %4436 = vmatprep.mubr.bf16.mxu0 %v3603
      %4437 = vmatmul.mubr.bf16.gmra.mrb[0].mxu0 %v3602
      %v4438 = vpop.f32.mrb[0].mxu0
      %v4439 = vadd.f32 %v4278, %v4438
      %v4440 = vpop.f32.mrb[0].mxu0
      %v4441 = vpop.f32.mrb[0].mxu0
      %v4442 = vadd.f32 %v4281, %v4441
      %v4443 = vpop.f32.mrb[0].mxu0
      %4444 = vmatprep.mubr.bf16.mxu0 %v3609
      %4445 = vmatmul.mubr.bf16.gmra.mrb[0].mxu0 %v3608
      %v4446 = vpop.f32.mrb[0].mxu0
      %v4447 = vadd.f32 %v4286, %v4446
      %v4448 = vpop.f32.mrb[0].mxu0
      %v4449 = vpop.f32.mrb[0].mxu0
      %v4450 = vadd.f32 %v4289, %v4449
      %v4451 = vpop.f32.mrb[0].mxu0
      %4452 = vmatprep.mubr.bf16.mxu0 %v3615
      %4453 = vmatmul.mubr.bf16.gmra.mrb[0].mxu0 %v3614
      %v4454 = vpop.f32.mrb[0].mxu0
      %v4455 = vadd.f32 %v4294, %v4454
      %v4456 = vpop.f32.mrb[0].mxu0
      %v4457 = vpop.f32.mrb[0].mxu0
      %v4458 = vadd.f32 %v4297, %v4457
      %v4459 = vpop.f32.mrb[0].mxu0
      %4460 = vmatprep.mubr.bf16.mxu0 %v3621
      %4461 = vmatmul.mubr.bf16.gmra.mrb[0].mxu0 %v3620
      %v4462 = vpop.f32.mrb[0].mxu0
      %v4463 = vadd.f32 %v4302, %v4462
      %v4464 = vpop.f32.mrb[0].mxu0
      %v4465 = vpop.f32.mrb[0].mxu0
      %v4466 = vadd.f32 %v4305, %v4465
      %v4467 = vpop.f32.mrb[0].mxu0
      %4468 = vmatprep.mubr.bf16.mxu0 %v3627
      %4469 = vmatmul.mubr.bf16.gmra.mrb[0].mxu0 %v3626
      %v4470 = vpop.f32.mrb[0].mxu0
      %v4471 = vadd.f32 %v4310, %v4470
      %v4472 = vpop.f32.mrb[0].mxu0
      %v4473 = vpop.f32.mrb[0].mxu0
      %v4474 = vadd.f32 %v4313, %v4473
      %v4475 = vpop.f32.mrb[0].mxu0
      %4476 = vmatprep.mubr.bf16.mxu0 %v3633
      %4477 = vmatmul.mubr.bf16.gmra.mrb[0].mxu0 %v3632
      %v4478 = vpop.f32.mrb[0].mxu0
      %v4479 = vadd.f32 %v4318, %v4478
      %v4480 = vpop.f32.mrb[0].mxu0
      %v4481 = vpop.f32.mrb[0].mxu0
      %v4482 = vadd.f32 %v4321, %v4481
      %v4483 = vpop.f32.mrb[0].mxu0
      %4484 = vmatprep.mubr.bf16.mxu0 %v3639
      %4485 = vmatmul.mubr.bf16.gmra.mrb[0].mxu0 %v3638
      %v4486 = vpop.f32.mrb[0].mxu0
      %v4487 = vadd.f32 %v4326, %v4486
      %v4488 = vpop.f32.mrb[0].mxu0
      %v4489 = vpop.f32.mrb[0].mxu0
      %v4490 = vadd.f32 %v4329, %v4489
      %v4491 = vpop.f32.mrb[0].mxu0
      %4492 = vmatprep.mubr.bf16.mxu0 %v3645
      %4493 = vmatmul.mubr.bf16.gmra.mrb[0].mxu0 %v3644
      %v4494 = vpop.f32.mrb[0].mxu0
      %v4495 = vadd.f32 %v4334, %v4494
      %v4496 = vpop.f32.mrb[0].mxu0
      %v4497 = vpop.f32.mrb[0].mxu0
      %v4498 = vadd.f32 %v4337, %v4497
      %v4499 = vpop.f32.mrb[0].mxu0
      %4500 = vmatprep.mubr.bf16.mxu0 %v3651
      %4501 = vmatmul.mubr.bf16.gmra.mrb[0].mxu0 %v3650
      %v4502 = vpop.f32.mrb[0].mxu0
      %v4503 = vadd.f32 %v4342, %v4502
      %v4504 = vpop.f32.mrb[0].mxu0
      %v4505 = vpop.f32.mrb[0].mxu0
      %v4506 = vadd.f32 %v4345, %v4505
      %v4507 = vpop.f32.mrb[0].mxu0
      %4508 = vmatprep.mubr.bf16.mxu0 %v3657
      %4509 = vmatmul.mubr.bf16.gmra.mrb[0].mxu0 %v3656
      %v4510 = vpop.f32.mrb[0].mxu0
      %v4511 = vadd.f32 %v4350, %v4510
      %v4512 = vpop.f32.mrb[0].mxu0
      %v4513 = vpop.f32.mrb[0].mxu0
      %v4514 = vadd.f32 %v4353, %v4513
      %v4515 = vpop.f32.mrb[0].mxu0
      %4516 = vmatprep.mubr.bf16.mxu0 %v3663
      %4517 = vmatmul.mubr.bf16.gmra.mrb[0].mxu0 %v3662
      %v4518 = vpop.f32.mrb[0].mxu0
      %v4519 = vadd.f32 %v4358, %v4518
      %v4520 = vpop.f32.mrb[0].mxu0
      %v4521 = vpop.f32.mrb[0].mxu0
      %v4522 = vadd.f32 %v4361, %v4521
      %v4523 = vpop.f32.mrb[0].mxu0
      %4524 = vmatprep.mubr.bf16.mxu0 %v3669
      %4525 = vmatmul.mubr.bf16.gmra.mrb[0].mxu0 %v3668
      %v4526 = vpop.f32.mrb[0].mxu0
      %v4527 = vadd.f32 %v4366, %v4526
      %v4528 = vpop.f32.mrb[0].mxu0
      %v4529 = vpop.f32.mrb[0].mxu0
      %v4530 = vadd.f32 %v4369, %v4529
      %v4531 = vpop.f32.mrb[0].mxu0
      %4532 = vmatprep.mubr.bf16.mxu0 %v3675
      %4533 = vmatmul.mubr.bf16.gmra.mrb[0].mxu0 %v3674
      %v4534 = vpop.f32.mrb[0].mxu0
      %v4535 = vadd.f32 %v4374, %v4534
      %v4536 = vpop.f32.mrb[0].mxu0
      %v4537 = vpop.f32.mrb[0].mxu0
      %v4538 = vadd.f32 %v4377, %v4537
      %v4539 = vpop.f32.mrb[0].mxu0
      %4540 = vmatprep.mubr.bf16.mxu0 %v3681
      %4541 = vmatmul.mubr.bf16.gmra.mrb[0].mxu0 %v3680
      %v4542 = vpop.f32.mrb[0].mxu0
      %v4543 = vadd.f32 %v4382, %v4542
      %v4544 = vpop.f32.mrb[0].mxu0
      %v4545 = vpop.f32.mrb[0].mxu0
      %v4546 = vadd.f32 %v4385, %v4545
      %v4547 = vpop.f32.mrb[0].mxu0
      %4548 = vdwg.mxu0
      %v4549 = vadd.f32 %v2978, %v4423
      %v4550 = vadd.f32 %v2981, %v4426
      %v4551 = vadd.f32 %v2986, %v4431
      %v4552 = vadd.f32 %v2989, %v4434
      %v4553 = vadd.f32 %v2994, %v4439
      %v4554 = vadd.f32 %v2997, %v4442
      %v4555 = vadd.f32 %v3002, %v4447
      %v4556 = vadd.f32 %v3005, %v4450
      %v4557 = vadd.f32 %v3010, %v4455
      %v4558 = vadd.f32 %v3013, %v4458
      %v4559 = vadd.f32 %v3018, %v4463
      %v4560 = vadd.f32 %v3021, %v4466
      %v4561 = vadd.f32 %v3026, %v4471
      %v4562 = vadd.f32 %v3029, %v4474
      %v4563 = vadd.f32 %v3034, %v4479
      %v4564 = vadd.f32 %v3037, %v4482
      %v4565 = vadd.f32 %v3042, %v4487
      %v4566 = vadd.f32 %v3045, %v4490
      %v4567 = vadd.f32 %v3050, %v4495
      %v4568 = vadd.f32 %v3053, %v4498
      %v4569 = vadd.f32 %v3058, %v4503
      %v4570 = vadd.f32 %v3061, %v4506
      %v4571 = vadd.f32 %v3066, %v4511
      %v4572 = vadd.f32 %v3069, %v4514
      %v4573 = vadd.f32 %v3074, %v4519
      %v4574 = vadd.f32 %v3077, %v4522
      %v4575 = vadd.f32 %v3082, %v4527
      %v4576 = vadd.f32 %v3085, %v4530
      %v4577 = vadd.f32 %v3090, %v4535
      %v4578 = vadd.f32 %v3093, %v4538
      %v4579 = vadd.f32 %v3098, %v4543
      %v4580 = vadd.f32 %v3101, %v4546
      %v4581 = vadd.f32 %v4549, %v4550
      %v4582 = vadd.f32 %v4581, %v4551
      %v4583 = vadd.f32 %v4582, %v4552
      %v4584 = vadd.f32 %v4583, %v4553
      %v4585 = vadd.f32 %v4584, %v4554
      %v4586 = vadd.f32 %v4585, %v4555
      %v4587 = vadd.f32 %v4586, %v4556
      %v4588 = vadd.f32 %v4587, %v4557
      %v4589 = vadd.f32 %v4588, %v4558
      %v4590 = vadd.f32 %v4589, %v4559
      %v4591 = vadd.f32 %v4590, %v4560
      %v4592 = vadd.f32 %v4591, %v4561
      %v4593 = vadd.f32 %v4592, %v4562
      %v4594 = vadd.f32 %v4593, %v4563
      %v4595 = vadd.f32 %v4594, %v4564
      %v4596 = vadd.f32 %v4595, %v4565
      %v4597 = vadd.f32 %v4596, %v4566
      %v4598 = vadd.f32 %v4597, %v4567
      %v4599 = vadd.f32 %v4598, %v4568
      %v4600 = vadd.f32 %v4599, %v4569
      %v4601 = vadd.f32 %v4600, %v4570
      %v4602 = vadd.f32 %v4601, %v4571
      %v4603 = vadd.f32 %v4602, %v4572
      %v4604 = vadd.f32 %v4603, %v4573
      %v4605 = vadd.f32 %v4604, %v4574
      %v4606 = vadd.f32 %v4605, %v4575
      %v4607 = vadd.f32 %v4606, %v4576
      %v4608 = vadd.f32 %v4607, %v4577
      %v4609 = vadd.f32 %v4608, %v4578
      %v4610 = vadd.f32 %v4609, %v4579
      %v4611 = vadd.f32 %v4610, %v4580
      %v4612 = vrot.slane %v4611, 4
      %v4613 = vadd.f32 %v4611, %v4612
      %v4614 = vrot.slane %v4613, 2
      %v4615 = vadd.f32 %v4613, %v4614
      %v4616 = vrot.slane %v4615, 1
      %v4617 = vadd.f32 %v4615, %v4616
      %4618 = vst [vmem:[%s211] sm:$0x1] %v4617
      %v4619 = vmul.f32 %v4549, %v4549
      %v4620 = vmul.f32 %v4550, %v4550
      %v4621 = vmul.f32 %v4551, %v4551
      %v4622 = vmul.f32 %v4552, %v4552
      %v4623 = vmul.f32 %v4553, %v4553
      %v4624 = vmul.f32 %v4554, %v4554
      %v4625 = vmul.f32 %v4555, %v4555
      %v4626 = vmul.f32 %v4556, %v4556
      %v4627 = vmul.f32 %v4557, %v4557
      %v4628 = vmul.f32 %v4558, %v4558
      %v4629 = vmul.f32 %v4559, %v4559
      %v4630 = vmul.f32 %v4560, %v4560
      %v4631 = vmul.f32 %v4561, %v4561
      %v4632 = vmul.f32 %v4562, %v4562
      %v4633 = vmul.f32 %v4563, %v4563
      %v4634 = vmul.f32 %v4564, %v4564
      %v4635 = vmul.f32 %v4565, %v4565
      %v4636 = vmul.f32 %v4566, %v4566
      %v4637 = vmul.f32 %v4567, %v4567
      %v4638 = vmul.f32 %v4568, %v4568
      %v4639 = vmul.f32 %v4569, %v4569
      %v4640 = vmul.f32 %v4570, %v4570
      %v4641 = vmul.f32 %v4571, %v4571
      %v4642 = vmul.f32 %v4572, %v4572
      %v4643 = vmul.f32 %v4573, %v4573
      %v4644 = vmul.f32 %v4574, %v4574
      %v4645 = vmul.f32 %v4575, %v4575
      %v4646 = vmul.f32 %v4576, %v4576
      %v4647 = vmul.f32 %v4577, %v4577
      %v4648 = vmul.f32 %v4578, %v4578
      %v4649 = vmul.f32 %v4579, %v4579
      %v4650 = vmul.f32 %v4580, %v4580
      %v4651 = vadd.f32 %v4619, %v4620
      %v4652 = vadd.f32 %v4651, %v4621
      %v4653 = vadd.f32 %v4652, %v4622
      %v4654 = vadd.f32 %v4653, %v4623
      %v4655 = vadd.f32 %v4654, %v4624
      %v4656 = vadd.f32 %v4655, %v4625
      %v4657 = vadd.f32 %v4656, %v4626
      %v4658 = vadd.f32 %v4657, %v4627
      %v4659 = vadd.f32 %v4658, %v4628
      %v4660 = vadd.f32 %v4659, %v4629
      %v4661 = vadd.f32 %v4660, %v4630
      %v4662 = vadd.f32 %v4661, %v4631
      %v4663 = vadd.f32 %v4662, %v4632
      %v4664 = vadd.f32 %v4663, %v4633
      %v4665 = vadd.f32 %v4664, %v4634
      %v4666 = vadd.f32 %v4665, %v4635
      %v4667 = vadd.f32 %v4666, %v4636
      %v4668 = vadd.f32 %v4667, %v4637
      %v4669 = vadd.f32 %v4668, %v4638
      %v4670 = vadd.f32 %v4669, %v4639
      %v4671 = vadd.f32 %v4670, %v4640
      %v4672 = vadd.f32 %v4671, %v4641
      %v4673 = vadd.f32 %v4672, %v4642
      %v4674 = vadd.f32 %v4673, %v4643
      %v4675 = vadd.f32 %v4674, %v4644
      %v4676 = vadd.f32 %v4675, %v4645
      %v4677 = vadd.f32 %v4676, %v4646
      %v4678 = vadd.f32 %v4677, %v4647
      %v4679 = vadd.f32 %v4678, %v4648
      %v4680 = vadd.f32 %v4679, %v4649
      %v4681 = vadd.f32 %v4680, %v4650
      %v4682 = vrot.slane %v4681, 4
      %v4683 = vadd.f32 %v4681, %v4682
      %v4684 = vrot.slane %v4683, 2
      %v4685 = vadd.f32 %v4683, %v4684
      %v4686 = vrot.slane %v4685, 1
      %v4687 = vadd.f32 %v4685, %v4686
      %4688 = vst [vmem:[%s214] sm:$0x1] %v4687
      %v4689 = vpack.c.bf16 %v4550, %v4549
      %v4690 = vpack.c.bf16 %v4552, %v4551
      %v4691 = vpack.c.bf16 %v4554, %v4553
      %v4692 = vpack.c.bf16 %v4556, %v4555
      %v4693 = vpack.c.bf16 %v4558, %v4557
      %v4694 = vpack.c.bf16 %v4560, %v4559
      %v4695 = vpack.c.bf16 %v4562, %v4561
      %v4696 = vpack.c.bf16 %v4564, %v4563
      %v4697 = vpack.c.bf16 %v4566, %v4565
      %v4698 = vpack.c.bf16 %v4568, %v4567
      %v4699 = vpack.c.bf16 %v4570, %v4569
      %v4700 = vpack.c.bf16 %v4572, %v4571
      %v4701 = vpack.c.bf16 %v4574, %v4573
      %v4702 = vpack.c.bf16 %v4576, %v4575
      %v4703 = vpack.c.bf16 %v4578, %v4577
      %v4704 = vpack.c.bf16 %v4580, %v4579
      %v4721 = vunpack.c.l.b16 %v4689
      %v4722 = vunpack.c.h.b16 %v4689
      %v4723 = vunpack.c.l.b16 %v4690
      %v4724 = vunpack.c.h.b16 %v4690
      %v4725 = vunpack.c.l.b16 %v4691
      %v4726 = vunpack.c.h.b16 %v4691
      %v4727 = vunpack.c.l.b16 %v4692
      %v4728 = vunpack.c.h.b16 %v4692
      %v4729 = vunpack.c.l.b16 %v4693
      %v4730 = vunpack.c.h.b16 %v4693
      %v4731 = vunpack.c.l.b16 %v4694
      %v4732 = vunpack.c.h.b16 %v4694
      %v4733 = vunpack.c.l.b16 %v4695
      %v4734 = vunpack.c.h.b16 %v4695
      %v4735 = vunpack.c.l.b16 %v4696
      %v4736 = vunpack.c.h.b16 %v4696
      %v4737 = vunpack.c.l.b16 %v4697
      %v4738 = vunpack.c.h.b16 %v4697
      %v4739 = vunpack.c.l.b16 %v4698
      %v4740 = vunpack.c.h.b16 %v4698
      %v4741 = vunpack.c.l.b16 %v4699
      %v4742 = vunpack.c.h.b16 %v4699
      %v4743 = vunpack.c.l.b16 %v4700
      %v4744 = vunpack.c.h.b16 %v4700
      %v4745 = vunpack.c.l.b16 %v4701
      %v4746 = vunpack.c.h.b16 %v4701
      %v4747 = vunpack.c.l.b16 %v4702
      %v4748 = vunpack.c.h.b16 %v4702
      %v4749 = vunpack.c.l.b16 %v4703
      %v4750 = vunpack.c.h.b16 %v4703
      %v4751 = vunpack.c.l.b16 %v4704
      %v4752 = vunpack.c.h.b16 %v4704
      %v4753 = vpack.c.b16 %v4721, %v4721
      %v4754 = vpack.c.b16 %v4722, %v4722
      %v4755 = vpack.c.b16 %v4723, %v4723
      %v4756 = vpack.c.b16 %v4724, %v4724
      %v4757 = vpack.c.b16 %v4725, %v4725
      %v4758 = vpack.c.b16 %v4726, %v4726
      %v4759 = vpack.c.b16 %v4727, %v4727
      %v4760 = vpack.c.b16 %v4728, %v4728
      %v4761 = vpack.c.b16 %v4729, %v4729
      %v4762 = vpack.c.b16 %v4730, %v4730
      %v4763 = vpack.c.b16 %v4731, %v4731
      %v4764 = vpack.c.b16 %v4732, %v4732
      %v4765 = vpack.c.b16 %v4733, %v4733
      %v4766 = vpack.c.b16 %v4734, %v4734
      %v4767 = vpack.c.b16 %v4735, %v4735
      %v4768 = vpack.c.b16 %v4736, %v4736
      %v4769 = vpack.c.b16 %v4737, %v4737
      %v4770 = vpack.c.b16 %v4738, %v4738
      %v4771 = vpack.c.b16 %v4739, %v4739
      %v4772 = vpack.c.b16 %v4740, %v4740
      %v4773 = vpack.c.b16 %v4741, %v4741
      %v4774 = vpack.c.b16 %v4742, %v4742
      %v4775 = vpack.c.b16 %v4743, %v4743
      %v4776 = vpack.c.b16 %v4744, %v4744
      %v4777 = vpack.c.b16 %v4745, %v4745
      %v4778 = vpack.c.b16 %v4746, %v4746
      %v4779 = vpack.c.b16 %v4747, %v4747
      %v4780 = vpack.c.b16 %v4748, %v4748
      %v4781 = vpack.c.b16 %v4749, %v4749
      %v4782 = vpack.c.b16 %v4750, %v4750
      %v4783 = vpack.c.b16 %v4751, %v4751
      %v4784 = vpack.c.b16 %v4752, %v4752
      %4817 = vst [vmem:[%s208] sm:$0xf] %v4753
      %4818 = vst [vmem:[%s208 + $0x4] sm:$0xf] %v4754
      %4819 = vst [vmem:[%s208 + $0x8] sm:$0xf] %v4755
      %4820 = vst [vmem:[%s208 + $0xc] sm:$0xf] %v4756
      %4821 = vst [vmem:[%s208 + $0x10] sm:$0xf] %v4757
      %4822 = vst [vmem:[%s208 + $0x14] sm:$0xf] %v4758
      %4823 = vst [vmem:[%s208 + $0x18] sm:$0xf] %v4759
      %4824 = vst [vmem:[%s208 + $0x1c] sm:$0xf] %v4760
      %4825 = vst [vmem:[%s208 + $0x20] sm:$0xf] %v4761
      %4826 = vst [vmem:[%s208 + $0x24] sm:$0xf] %v4762
      %4827 = vst [vmem:[%s208 + $0x28] sm:$0xf] %v4763
      %4828 = vst [vmem:[%s208 + $0x2c] sm:$0xf] %v4764
      %4829 = vst [vmem:[%s208 + $0x30] sm:$0xf] %v4765
      %4830 = vst [vmem:[%s208 + $0x34] sm:$0xf] %v4766
      %4831 = vst [vmem:[%s208 + $0x38] sm:$0xf] %v4767
      %4832 = vst [vmem:[%s208 + $0x3c] sm:$0xf] %v4768
      %4833 = vst [vmem:[%s208 + $0x40] sm:$0xf] %v4769
      %4834 = vst [vmem:[%s208 + $0x44] sm:$0xf] %v4770
      %4835 = vst [vmem:[%s208 + $0x48] sm:$0xf] %v4771
      %4836 = vst [vmem:[%s208 + $0x4c] sm:$0xf] %v4772
      %4837 = vst [vmem:[%s208 + $0x50] sm:$0xf] %v4773
      %4838 = vst [vmem:[%s208 + $0x54] sm:$0xf] %v4774
      %4839 = vst [vmem:[%s208 + $0x58] sm:$0xf] %v4775
      %4840 = vst [vmem:[%s208 + $0x5c] sm:$0xf] %v4776
      %4841 = vst [vmem:[%s208 + $0x60] sm:$0xf] %v4777
      %4842 = vst [vmem:[%s208 + $0x64] sm:$0xf] %v4778
      %4843 = vst [vmem:[%s208 + $0x68] sm:$0xf] %v4779
      %4844 = vst [vmem:[%s208 + $0x6c] sm:$0xf] %v4780
      %4845 = vst [vmem:[%s208 + $0x70] sm:$0xf] %v4781
      %4846 = vst [vmem:[%s208 + $0x74] sm:$0xf] %v4782
      %4847 = vst [vmem:[%s208 + $0x78] sm:$0xf] %v4783
      %4848 = vst [vmem:[%s208 + $0x7c] sm:$0xf] %v4784
      %p4849 = scmp.lt.s32.totalorder %s16, 1
      %s4850 = scalar_select %p4849, %s16, 1
      %s4851 = smul.addr %s4850, 32
      %s4852 = smul.addr %s4851, 4
      %s4853 = scalar_lea.vmem %s2, %s4852
      %p4854 = scmp.lt.s32.totalorder %s16, 1
      %s4855 = scalar_select %p4854, %s16, 1
      %s4856 = scalar_lea.vmem %s3, %s4855
      %p4857 = scmp.lt.s32.totalorder %s16, 1
      %s4858 = scalar_select %p4857, %s16, 1
      %s4859 = scalar_lea.vmem %s4, %s4858
      // Predicated region
      $region29: #{unet_up_block_forward.8} parent=27 // pred_check
        %p4860 = pneg %p81
      $region30: #{unet_up_block_forward.8} parent=27 // pred_check_branch
        %4862 = sbr.rel (%p4860) target = $region32
      $region31: #{unet_up_block_forward.8} parent=27 // pred_region
        _
      $region32: #{unet_up_block_forward.8} parent=27 // pred_fallthru
        _
      // Predicated region
      $region33: #{unet_up_block_forward.8} parent=27 // pred_check
        %p4863 = pneg %p107
      $region34: #{unet_up_block_forward.8} parent=27 // pred_check_branch
        %4865 = sbr.rel (%p4863) target = $region36
      $region35: #{unet_up_block_forward.8} parent=27 // pred_region
        _
      $region36: #{unet_up_block_forward.8} parent=27 // pred_fallthru
        _
      // Predicated region
      $region37: #{unet_up_block_forward.8} parent=27 // pred_check
        %p4866 = pneg %p133
      $region38: #{unet_up_block_forward.8} parent=27 // pred_check_branch
        %4868 = sbr.rel (%p4866) target = $region40
      $region39: #{unet_up_block_forward.8} parent=27 // pred_region
        _
      $region40: #{unet_up_block_forward.8} parent=27 // pred_fallthru
        _
    $region28: #{unet_up_block_forward.8} parent=5 // pred_fallthru
      _
    %p4869 = scmp.le.s32.totalorder 2, %s11
    // Predicated region
    $region41: #{unet_up_block_forward.8} parent=5 // pred_check
      %p4870 = pneg %p4869
    $region42: #{unet_up_block_forward.8} parent=5 // pred_check_branch
      %4872 = sbr.rel (%p4870) target = $region44
    $region43: #{unet_up_block_forward.8} parent=5 // pred_region
      %s4873 = ssub.s32 %s11, 2
      // Predicated region
      $region45: #{unet_up_block_forward.8} parent=43 // pred_check
        %p4874 = pneg %p87
      $region46: #{unet_up_block_forward.8} parent=43 // pred_check_branch
        %4876 = sbr.rel (%p4874) target = $region48
      $region47: #{unet_up_block_forward.8} parent=43 // pred_region
        %p4877 = scmp.lt.s32.totalorder %s17, 1
        %s4878 = scalar_select %p4877, %s17, 1
        %s4879 = smul.addr %s4878, 32
        %s4880 = smul.addr %s4879, 4
        %s4881 = scalar_lea.vmem %s2, %s4880
      $region48: #{unet_up_block_forward.8} parent=43 // pred_fallthru
        _
      // Predicated region
      $region49: #{unet_up_block_forward.8} parent=43 // pred_check
        %p4882 = pneg %p113
      $region50: #{unet_up_block_forward.8} parent=43 // pred_check_branch
        %4884 = sbr.rel (%p4882) target = $region52
      $region51: #{unet_up_block_forward.8} parent=43 // pred_region
        %p4885 = scmp.lt.s32.totalorder %s17, 1
        %s4886 = scalar_select %p4885, %s17, 1
        %s4887 = scalar_lea.vmem %s3, %s4886
      $region52: #{unet_up_block_forward.8} parent=43 // pred_fallthru
        _
      // Predicated region
      $region53: #{unet_up_block_forward.8} parent=43 // pred_check
        %p4888 = pneg %p139
      $region54: #{unet_up_block_forward.8} parent=43 // pred_check_branch
        %4890 = sbr.rel (%p4888) target = $region56
      $region55: #{unet_up_block_forward.8} parent=43 // pred_region
        %p4891 = scmp.lt.s32.totalorder %s17, 1
        %s4892 = scalar_select %p4891, %s17, 1
        %s4893 = scalar_lea.vmem %s4, %s4892
      $region56: #{unet_up_block_forward.8} parent=43 // pred_fallthru
        _
    $region44: #{unet_up_block_forward.8} parent=5 // pred_fallthru
      _
  $region6: #{unet_up_block_forward.8} parent=0 // loop_footer
    %s15 = sadd.s32 1, %s11
  $region7: #{unet_up_block_forward.8} parent=0 // loop_footer_branch
    %10 = sbr.rel target = $region3
  $region8: #{unet_up_block_forward.8} parent=0 // loop_exit
    _

// kernel: unet_up_block_forward.10
$region0: #{unet_up_block_forward.10}
  #allocation0 [shape = 'u32[]', space=smem, size = 0x4, offset = 0x4, fixed_abs, tag = 'smem constant byte address 0x4 - core index']
  #allocation1 [shape = 'u32[144,128]{1,0:T(1,128)}', space=vmem, size = 0x12000, scoped, tag = 'internal scratch']
  %s0 = inlined_call_operand.vmem [shape: bf16[2,18,16,384], index: 0, kind: input, shape index: {}]
  %s1 = inlined_call_operand.vmem [shape: bf16[3,384,128], index: 1, kind: input, shape index: {}]
  %s2 = inlined_call_operand.vmem [shape: bf16[2,16,16,128], index: 2, kind: output, shape index: {0}]
  %s3 = inlined_call_operand.vmem [shape: f32[2,1,128], index: 3, kind: output, shape index: {1}]
  %s4 = inlined_call_operand.vmem [shape: f32[2,1,128], index: 4, kind: output, shape index: {2}]
  %5 = xla_tuple %s2, %s3, %s4
  %s6 = sld [smem:[#allocation0]]
  $region57: #{unet_up_block_forward.10} parent=0
    _
  %s8 = ssub.s32 1, %s6
  %s9 = scalar_select 0, %s8, %s6
  loop: start=0, step=1, limit=4
  $region2: #{unet_up_block_forward.10} parent=0 // loop_pre_header
    _
  $region3: #{unet_up_block_forward.10} parent=0 // loop_header
    %s11 = sphi 0, %s15
    %p12 = scmp.ge.s32.totalorder %s11, 4
    %s21 = sphi 0, %s23
    %s24 = sphi 0, %s21
    %s25 = sphi 0, %s24
    %s41 = sphi 0, %s25
    %s45 = sphi 0, %s45
    %s47 = sphi 0, %s45
    %s48 = sphi 0, %s47
    %s62 = sphi 0, %s48
    %s68 = sphi 0, %s70
    %s71 = sphi 0, %s68
    %s72 = sphi 0, %s71
    %s88 = sphi 0, %s72
    %s94 = sphi 0, %s96
    %s97 = sphi 0, %s94
    %s98 = sphi 0, %s97
    %s114 = sphi 0, %s98
    %s120 = sphi 0, %s122
    %s123 = sphi 0, %s120
    %s124 = sphi 0, %s123
    %s140 = sphi 0, %s124
  $region4: #{unet_up_block_forward.10} parent=0 // loop_header_branch
    %14 = sbr.rel (%p12) target = $region8
  $region5: #{unet_up_block_forward.10} parent=0 // loop_body
    %s16 = ssub.s32 %s11, 1
    %s17 = ssub.s32 %s11, 2
    %s18 = sadd.s32 %s11, 1
    %s19 = ssub.s32 %s11, %s18
    %p20 = scmp.eq.s32.totalorder %s19, 0
    %s22 = sadd.s32 %s21, 1
    %s23 = scalar_select %p20, %s21, %s22
    %p26 = pneg %p20
    %p27 = scmp.eq.s32.totalorder %s11, 1
    %p28 = por %p26, %p27
    %p29 = scmp.ne.s32.totalorder %s21, %s24
    %p30 = scmp.eq.s32.totalorder %s11, 0
    %p31 = por %p29, %p30
    %p32 = scmp.ne.s32.totalorder %s21, %s24
    %p33 = scmp.eq.s32.totalorder %s16, 1
    %p34 = por %p32, %p33
    %p35 = scmp.ne.s32.totalorder %s24, %s25
    %p36 = scmp.eq.s32.totalorder %s16, 0
    %p37 = por %p35, %p36
    %p38 = scmp.ne.s32.totalorder %s24, %s25
    %p39 = scmp.eq.s32.totalorder %s17, 1
    %p40 = por %p38, %p39
    %p42 = scmp.ne.s32.totalorder %s25, %s41
    %p43 = scmp.eq.s32.totalorder %s17, 0
    %p44 = por %p42, %p43
    %s46 = sadd.s32 %s45, 1
    %p49 = scmp.eq.s32.totalorder %s11, 1
    %p50 = scmp.ne.s32.totalorder %s45, %s47
    %p51 = scmp.eq.s32.totalorder %s11, 0
    %p52 = por %p50, %p51
    %p53 = scmp.ne.s32.totalorder %s45, %s47
    %p54 = scmp.eq.s32.totalorder %s16, 1
    %p55 = por %p53, %p54
    %p56 = scmp.ne.s32.totalorder %s47, %s48
    %p57 = scmp.eq.s32.totalorder %s16, 0
    %p58 = por %p56, %p57
    %p59 = scmp.ne.s32.totalorder %s47, %s48
    %p60 = scmp.eq.s32.totalorder %s17, 1
    %p61 = por %p59, %p60
    %p63 = scmp.ne.s32.totalorder %s48, %s62
    %p64 = scmp.eq.s32.totalorder %s17, 0
    %p65 = por %p63, %p64
    %s66 = ssub.s32 %s11, %s18
    %p67 = scmp.eq.s32.totalorder %s66, 0
    %s69 = sadd.s32 %s68, 1
    %s70 = scalar_select %p67, %s68, %s69
    %p73 = pneg %p67
    %p74 = scmp.eq.s32.totalorder %s11, 1
    %p75 = por %p73, %p74
    %p76 = scmp.ne.s32.totalorder %s68, %s71
    %p77 = scmp.eq.s32.totalorder %s11, 0
    %p78 = por %p76, %p77
    %p79 = scmp.ne.s32.totalorder %s68, %s71
    %p80 = scmp.eq.s32.totalorder %s16, 1
    %p81 = por %p79, %p80
    %p82 = scmp.ne.s32.totalorder %s71, %s72
    %p83 = scmp.eq.s32.totalorder %s16, 0
    %p84 = por %p82, %p83
    %p85 = scmp.ne.s32.totalorder %s71, %s72
    %p86 = scmp.eq.s32.totalorder %s17, 1
    %p87 = por %p85, %p86
    %p89 = scmp.ne.s32.totalorder %s72, %s88
    %p90 = scmp.eq.s32.totalorder %s17, 0
    %p91 = por %p89, %p90
    %s92 = ssub.s32 %s11, %s18
    %p93 = scmp.eq.s32.totalorder %s92, 0
    %s95 = sadd.s32 %s94, 1
    %s96 = scalar_select %p93, %s94, %s95
    %p99 = pneg %p93
    %p100 = scmp.eq.s32.totalorder %s11, 1
    %p101 = por %p99, %p100
    %p102 = scmp.ne.s32.totalorder %s94, %s97
    %p103 = scmp.eq.s32.totalorder %s11, 0
    %p104 = por %p102, %p103
    %p105 = scmp.ne.s32.totalorder %s94, %s97
    %p106 = scmp.eq.s32.totalorder %s16, 1
    %p107 = por %p105, %p106
    %p108 = scmp.ne.s32.totalorder %s97, %s98
    %p109 = scmp.eq.s32.totalorder %s16, 0
    %p110 = por %p108, %p109
    %p111 = scmp.ne.s32.totalorder %s97, %s98
    %p112 = scmp.eq.s32.totalorder %s17, 1
    %p113 = por %p111, %p112
    %p115 = scmp.ne.s32.totalorder %s98, %s114
    %p116 = scmp.eq.s32.totalorder %s17, 0
    %p117 = por %p115, %p116
    %s118 = ssub.s32 %s11, %s18
    %p119 = scmp.eq.s32.totalorder %s118, 0
    %s121 = sadd.s32 %s120, 1
    %s122 = scalar_select %p119, %s120, %s121
    %p125 = pneg %p119
    %p126 = scmp.eq.s32.totalorder %s11, 1
    %p127 = por %p125, %p126
    %p128 = scmp.ne.s32.totalorder %s120, %s123
    %p129 = scmp.eq.s32.totalorder %s11, 0
    %p130 = por %p128, %p129
    %p131 = scmp.ne.s32.totalorder %s120, %s123
    %p132 = scmp.eq.s32.totalorder %s16, 1
    %p133 = por %p131, %p132
    %p134 = scmp.ne.s32.totalorder %s123, %s124
    %p135 = scmp.eq.s32.totalorder %s16, 0
    %p136 = por %p134, %p135
    %p137 = scmp.ne.s32.totalorder %s123, %s124
    %p138 = scmp.eq.s32.totalorder %s17, 1
    %p139 = por %p137, %p138
    %p141 = scmp.ne.s32.totalorder %s124, %s140
    %p142 = scmp.eq.s32.totalorder %s17, 0
    %p143 = por %p141, %p142
    %p144 = scmp.le.s32.totalorder 1, %s11
    %p145 = scmp.lt.s32.totalorder %s11, 3
    %p146 = pnand %p144, %p145
    %p147 = pneg %p146
    // Predicated region
    $region9: #{unet_up_block_forward.10} parent=5 // pred_check
      _
    $region10: #{unet_up_block_forward.10} parent=5 // pred_check_branch
      %149 = sbr.rel (%p146) target = $region12
    $region11: #{unet_up_block_forward.10} parent=5 // pred_region
      %s150 = ssub.s32 %s11, 1
      // Predicated region
      $region13: #{unet_up_block_forward.10} parent=11 // pred_check
        %p151 = pneg %p58
      $region14: #{unet_up_block_forward.10} parent=11 // pred_check_branch
        %153 = sbr.rel (%p151) target = $region16
      $region15: #{unet_up_block_forward.10} parent=11 // pred_region
        _
      $region16: #{unet_up_block_forward.10} parent=11 // pred_fallthru
        _
    $region12: #{unet_up_block_forward.10} parent=5 // pred_fallthru
      _
    %p154 = scmp.lt.s32.totalorder %s11, 2
    // Predicated region
    $region17: #{unet_up_block_forward.10} parent=5 // pred_check
      %p155 = pneg %p154
    $region18: #{unet_up_block_forward.10} parent=5 // pred_check_branch
      %157 = sbr.rel (%p155) target = $region20
    $region19: #{unet_up_block_forward.10} parent=5 // pred_region
      // Predicated region
      $region21: #{unet_up_block_forward.10} parent=19 // pred_check
        %p158 = pneg %p31
      $region22: #{unet_up_block_forward.10} parent=19 // pred_check_branch
        %160 = sbr.rel (%p158) target = $region24
      $region23: #{unet_up_block_forward.10} parent=19 // pred_region
        %p161 = scmp.lt.s32.totalorder %s11, 1
        %s162 = scalar_select %p161, %s11, 1
        %s163 = smul.addr %s162, 108
        %s164 = smul.addr %s163, 4
        %s165 = scalar_lea.vmem %s0, %s164
      $region24: #{unet_up_block_forward.10} parent=19 // pred_fallthru
        _
    $region20: #{unet_up_block_forward.10} parent=5 // pred_fallthru
      _
    %p166 = scmp.le.s32.totalorder 1, %s11
    %p167 = scmp.lt.s32.totalorder %s11, 3
    %p168 = pnand %p166, %p167
    %p169 = pneg %p168
    // Predicated region
    $region25: #{unet_up_block_forward.10} parent=5 // pred_check
      _
    $region26: #{unet_up_block_forward.10} parent=5 // pred_check_branch
      %171 = sbr.rel (%p168) target = $region28
    $region27: #{unet_up_block_forward.10} parent=5 // pred_region
      %s172 = ssub.s32 %s11, 1
      %p173 = scmp.lt.s32.totalorder %s16, 1
      %s174 = scalar_select %p173, %s16, 1
      %s175 = smul.addr %s174, 108
      %s176 = smul.addr %s175, 4
      %s177 = scalar_lea.vmem %s0, %s176
      %p178 = pneg %p37
      %p179 = pneg %p34
      %p180 = pneg %p58
      %p181 = pneg %p55
      %p182 = pneg %p84
      %p183 = pneg %p81
      %p184 = scmp.lt.s32.totalorder %s16, 1
      %s185 = scalar_select %p184, %s16, 1
      %s186 = smul.addr %s185, 32
      %s187 = smul.addr %s186, 4
      %s188 = scalar_lea.vmem %s2, %s187
      %p189 = pneg %p110
      %p190 = pneg %p107
      %p191 = scmp.lt.s32.totalorder %s16, 1
      %s192 = scalar_select %p191, %s16, 1
      %s193 = scalar_lea.vmem %s3, %s192
      %p194 = pneg %p136
      %p195 = pneg %p133
      %p196 = scmp.lt.s32.totalorder %s16, 1
      %s197 = scalar_select %p196, %s16, 1
      %s198 = scalar_lea.vmem %s4, %s197
      %p199 = scmp.lt.s32.totalorder %s16, 1
      %s200 = scalar_select %p199, %s16, 1
      %s201 = smul.addr %s200, 108
      %s202 = smul.addr %s201, 4
      %s203 = scalar_lea.vmem %s0, %s202
      %p204 = scmp.lt.s32.totalorder %s16, 1
      %s205 = scalar_select %p204, %s16, 1
      %s206 = smul.addr %s205, 32
      %s207 = smul.addr %s206, 4
      %s208 = scalar_lea.vmem %s2, %s207
      %p209 = scmp.lt.s32.totalorder %s16, 1
      %s210 = scalar_select %p209, %s16, 1
      %s211 = scalar_lea.vmem %s3, %s210
      %p212 = scmp.lt.s32.totalorder %s16, 1
      %s213 = scalar_select %p212, %s16, 1
      %s214 = scalar_lea.vmem %s4, %s213
      %v216 = vld [vmem:[%s203] sm:$0xff]
      %v217 = vld [vmem:[%s203 + $0x8] sm:$0xf]
      %v218 = vld [vmem:[%s203 + $0xc] sm:$0xff]
      %v219 = vld [vmem:[%s203 + $0x14] sm:$0xf]
      %v220 = vld [vmem:[%s203 + $0x18] sm:$0xff]
      %v221 = vld [vmem:[%s203 + $0x20] sm:$0xf]
      %v222 = vld [vmem:[%s203 + $0x24] sm:$0xff]
      %v223 = vld [vmem:[%s203 + $0x2c] sm:$0xf]
      %v224 = vld [vmem:[%s203 + $0x30] sm:$0xff]
      %v225 = vld [vmem:[%s203 + $0x38] sm:$0xf]
      %v226 = vld [vmem:[%s203 + $0x3c] sm:$0xff]
      %v227 = vld [vmem:[%s203 + $0x44] sm:$0xf]
      %v228 = vld [vmem:[%s203 + $0x48] sm:$0xff]
      %v229 = vld [vmem:[%s203 + $0x50] sm:$0xf]
      %v230 = vld [vmem:[%s203 + $0x54] sm:$0xff]
      %v231 = vld [vmem:[%s203 + $0x5c] sm:$0xf]
      %v232 = vld [vmem:[%s203 + $0x60] sm:$0xff]
      %v233 = vld [vmem:[%s203 + $0x68] sm:$0xf]
      %v234 = vld [vmem:[%s203 + $0x6c] sm:$0xff]
      %v235 = vld [vmem:[%s203 + $0x74] sm:$0xf]
      %v236 = vld [vmem:[%s203 + $0x78] sm:$0xff]
      %v237 = vld [vmem:[%s203 + $0x80] sm:$0xf]
      %v238 = vld [vmem:[%s203 + $0x84] sm:$0xff]
      %v239 = vld [vmem:[%s203 + $0x8c] sm:$0xf]
      %v240 = vld [vmem:[%s203 + $0x90] sm:$0xff]
      %v241 = vld [vmem:[%s203 + $0x98] sm:$0xf]
      %v242 = vld [vmem:[%s203 + $0x9c] sm:$0xff]
      %v243 = vld [vmem:[%s203 + $0xa4] sm:$0xf]
      %v244 = vld [vmem:[%s203 + $0xa8] sm:$0xff]
      %v245 = vld [vmem:[%s203 + $0xb0] sm:$0xf]
      %v246 = vld [vmem:[%s203 + $0xb4] sm:$0xff]
      %v247 = vld [vmem:[%s203 + $0xbc] sm:$0xf]
      %v248 = vld [vmem:[%s203 + $0xc0] sm:$0xff]
      %v249 = vld [vmem:[%s203 + $0xc8] sm:$0xf]
      %v250 = vld [vmem:[%s203 + $0xcc] sm:$0xff]
      %v251 = vld [vmem:[%s203 + $0xd4] sm:$0xf]
      %v252 = vld [vmem:[%s203 + $0xd8] sm:$0xff]
      %v253 = vld [vmem:[%s203 + $0xe0] sm:$0xf]
      %v254 = vld [vmem:[%s203 + $0xe4] sm:$0xff]
      %v255 = vld [vmem:[%s203 + $0xec] sm:$0xf]
      %v256 = vld [vmem:[%s203 + $0xf0] sm:$0xff]
      %v257 = vld [vmem:[%s203 + $0xf8] sm:$0xf]
      %v258 = vld [vmem:[%s203 + $0xfc] sm:$0xff]
      %v259 = vld [vmem:[%s203 + $0x104] sm:$0xf]
      %v260 = vld [vmem:[%s203 + $0x108] sm:$0xff]
      %v261 = vld [vmem:[%s203 + $0x110] sm:$0xf]
      %v262 = vld [vmem:[%s203 + $0x114] sm:$0xff]
      %v263 = vld [vmem:[%s203 + $0x11c] sm:$0xf]
      %v264 = vld [vmem:[%s203 + $0x120] sm:$0xff]
      %v265 = vld [vmem:[%s203 + $0x128] sm:$0xf]
      %v266 = vld [vmem:[%s203 + $0x12c] sm:$0xff]
      %v267 = vld [vmem:[%s203 + $0x134] sm:$0xf]
      %v268 = vld [vmem:[%s203 + $0x138] sm:$0xff]
      %v269 = vld [vmem:[%s203 + $0x140] sm:$0xf]
      %v270 = vld [vmem:[%s203 + $0x144] sm:$0xff]
      %v271 = vld [vmem:[%s203 + $0x14c] sm:$0xf]
      %v272 = vld [vmem:[%s203 + $0x150] sm:$0xff]
      %v273 = vld [vmem:[%s203 + $0x158] sm:$0xf]
      %v274 = vld [vmem:[%s203 + $0x15c] sm:$0xff]
      %v275 = vld [vmem:[%s203 + $0x164] sm:$0xf]
      %v276 = vld [vmem:[%s203 + $0x168] sm:$0xff]
      %v277 = vld [vmem:[%s203 + $0x170] sm:$0xf]
      %v278 = vld [vmem:[%s203 + $0x174] sm:$0xff]
      %v279 = vld [vmem:[%s203 + $0x17c] sm:$0xf]
      %v280 = vld [vmem:[%s1] sm:$0xf]
      %v281 = vld [vmem:[%s1 + $0x4] sm:$0xf]
      %v282 = vld [vmem:[%s1 + $0x8] sm:$0xf]
      %v283 = vld [vmem:[%s1 + $0xc] sm:$0xf]
      %v284 = vld [vmem:[%s1 + $0x10] sm:$0xf]
      %v285 = vld [vmem:[%s1 + $0x14] sm:$0xf]
      %v286 = vld [vmem:[%s1 + $0x18] sm:$0xf]
      %v287 = vld [vmem:[%s1 + $0x1c] sm:$0xf]
      %v288 = vld [vmem:[%s1 + $0x20] sm:$0xf]
      %v289 = vld [vmem:[%s1 + $0x24] sm:$0xf]
      %v290 = vld [vmem:[%s1 + $0x28] sm:$0xf]
      %v291 = vld [vmem:[%s1 + $0x2c] sm:$0xf]
      %v292 = vld [vmem:[%s1 + $0x30] sm:$0xf]
      %v293 = vld [vmem:[%s1 + $0x34] sm:$0xf]
      %v294 = vld [vmem:[%s1 + $0x38] sm:$0xf]
      %v295 = vld [vmem:[%s1 + $0x3c] sm:$0xf]
      %v296 = vld [vmem:[%s1 + $0x40] sm:$0xf]
      %v297 = vld [vmem:[%s1 + $0x44] sm:$0xf]
      %v298 = vld [vmem:[%s1 + $0x48] sm:$0xf]
      %v299 = vld [vmem:[%s1 + $0x4c] sm:$0xf]
      %v300 = vld [vmem:[%s1 + $0x50] sm:$0xf]
      %v301 = vld [vmem:[%s1 + $0x54] sm:$0xf]
      %v302 = vld [vmem:[%s1 + $0x58] sm:$0xf]
      %v303 = vld [vmem:[%s1 + $0x5c] sm:$0xf]
      %v304 = vld [vmem:[%s1 + $0x60] sm:$0xf]
      %v305 = vld [vmem:[%s1 + $0x64] sm:$0xf]
      %v306 = vld [vmem:[%s1 + $0x68] sm:$0xf]
      %v307 = vld [vmem:[%s1 + $0x6c] sm:$0xf]
      %v308 = vld [vmem:[%s1 + $0x70] sm:$0xf]
      %v309 = vld [vmem:[%s1 + $0x74] sm:$0xf]
      %v310 = vld [vmem:[%s1 + $0x78] sm:$0xf]
      %v311 = vld [vmem:[%s1 + $0x7c] sm:$0xf]
      %v312 = vld [vmem:[%s1 + $0x80] sm:$0xf]
      %v313 = vld [vmem:[%s1 + $0x84] sm:$0xf]
      %v314 = vld [vmem:[%s1 + $0x88] sm:$0xf]
      %v315 = vld [vmem:[%s1 + $0x8c] sm:$0xf]
      %v316 = vld [vmem:[%s1 + $0x90] sm:$0xf]
      %v317 = vld [vmem:[%s1 + $0x94] sm:$0xf]
      %v318 = vld [vmem:[%s1 + $0x98] sm:$0xf]
      %v319 = vld [vmem:[%s1 + $0x9c] sm:$0xf]
      %v320 = vld [vmem:[%s1 + $0xa0] sm:$0xf]
      %v321 = vld [vmem:[%s1 + $0xa4] sm:$0xf]
      %v322 = vld [vmem:[%s1 + $0xa8] sm:$0xf]
      %v323 = vld [vmem:[%s1 + $0xac] sm:$0xf]
      %v324 = vld [vmem:[%s1 + $0xb0] sm:$0xf]
      %v325 = vld [vmem:[%s1 + $0xb4] sm:$0xf]
      %v326 = vld [vmem:[%s1 + $0xb8] sm:$0xf]
      %v327 = vld [vmem:[%s1 + $0xbc] sm:$0xf]
      %s328 = scalar_lea.vmem %s203, 24
      %v329 = vld [vmem:[%s328] sm:$0xff]
      %v330 = vld [vmem:[%s328 + $0x8] sm:$0xf]
      %v331 = vld [vmem:[%s328 + $0xc] sm:$0xff]
      %v332 = vld [vmem:[%s328 + $0x14] sm:$0xf]
      %v333 = vld [vmem:[%s328 + $0x18] sm:$0xff]
      %v334 = vld [vmem:[%s328 + $0x20] sm:$0xf]
      %v335 = vld [vmem:[%s328 + $0x24] sm:$0xff]
      %v336 = vld [vmem:[%s328 + $0x2c] sm:$0xf]
      %v337 = vld [vmem:[%s328 + $0x30] sm:$0xff]
      %v338 = vld [vmem:[%s328 + $0x38] sm:$0xf]
      %v339 = vld [vmem:[%s328 + $0x3c] sm:$0xff]
      %v340 = vld [vmem:[%s328 + $0x44] sm:$0xf]
      %v341 = vld [vmem:[%s328 + $0x48] sm:$0xff]
      %v342 = vld [vmem:[%s328 + $0x50] sm:$0xf]
      %v343 = vld [vmem:[%s328 + $0x54] sm:$0xff]
      %v344 = vld [vmem:[%s328 + $0x5c] sm:$0xf]
      %v345 = vld [vmem:[%s328 + $0x60] sm:$0xff]
      %v346 = vld [vmem:[%s328 + $0x68] sm:$0xf]
      %v347 = vld [vmem:[%s328 + $0x6c] sm:$0xff]
      %v348 = vld [vmem:[%s328 + $0x74] sm:$0xf]
      %v349 = vld [vmem:[%s328 + $0x78] sm:$0xff]
      %v350 = vld [vmem:[%s328 + $0x80] sm:$0xf]
      %v351 = vld [vmem:[%s328 + $0x84] sm:$0xff]
      %v352 = vld [vmem:[%s328 + $0x8c] sm:$0xf]
      %v353 = vld [vmem:[%s328 + $0x90] sm:$0xff]
      %v354 = vld [vmem:[%s328 + $0x98] sm:$0xf]
      %v355 = vld [vmem:[%s328 + $0x9c] sm:$0xff]
      %v356 = vld [vmem:[%s328 + $0xa4] sm:$0xf]
      %v357 = vld [vmem:[%s328 + $0xa8] sm:$0xff]
      %v358 = vld [vmem:[%s328 + $0xb0] sm:$0xf]
      %v359 = vld [vmem:[%s328 + $0xb4] sm:$0xff]
      %v360 = vld [vmem:[%s328 + $0xbc] sm:$0xf]
      %v361 = vld [vmem:[%s328 + $0xc0] sm:$0xff]
      %v362 = vld [vmem:[%s328 + $0xc8] sm:$0xf]
      %v363 = vld [vmem:[%s328 + $0xcc] sm:$0xff]
      %v364 = vld [vmem:[%s328 + $0xd4] sm:$0xf]
      %v365 = vld [vmem:[%s328 + $0xd8] sm:$0xff]
      %v366 = vld [vmem:[%s328 + $0xe0] sm:$0xf]
      %v367 = vld [vmem:[%s328 + $0xe4] sm:$0xff]
      %v368 = vld [vmem:[%s328 + $0xec] sm:$0xf]
      %v369 = vld [vmem:[%s328 + $0xf0] sm:$0xff]
      %v370 = vld [vmem:[%s328 + $0xf8] sm:$0xf]
      %v371 = vld [vmem:[%s328 + $0xfc] sm:$0xff]
      %v372 = vld [vmem:[%s328 + $0x104] sm:$0xf]
      %v373 = vld [vmem:[%s328 + $0x108] sm:$0xff]
      %v374 = vld [vmem:[%s328 + $0x110] sm:$0xf]
      %v375 = vld [vmem:[%s328 + $0x114] sm:$0xff]
      %v376 = vld [vmem:[%s328 + $0x11c] sm:$0xf]
      %v377 = vld [vmem:[%s328 + $0x120] sm:$0xff]
      %v378 = vld [vmem:[%s328 + $0x128] sm:$0xf]
      %v379 = vld [vmem:[%s328 + $0x12c] sm:$0xff]
      %v380 = vld [vmem:[%s328 + $0x134] sm:$0xf]
      %v381 = vld [vmem:[%s328 + $0x138] sm:$0xff]
      %v382 = vld [vmem:[%s328 + $0x140] sm:$0xf]
      %v383 = vld [vmem:[%s328 + $0x144] sm:$0xff]
      %v384 = vld [vmem:[%s328 + $0x14c] sm:$0xf]
      %v385 = vld [vmem:[%s328 + $0x150] sm:$0xff]
      %v386 = vld [vmem:[%s328 + $0x158] sm:$0xf]
      %v387 = vld [vmem:[%s328 + $0x15c] sm:$0xff]
      %v388 = vld [vmem:[%s328 + $0x164] sm:$0xf]
      %v389 = vld [vmem:[%s328 + $0x168] sm:$0xff]
      %v390 = vld [vmem:[%s328 + $0x170] sm:$0xf]
      %v391 = vld [vmem:[%s328 + $0x174] sm:$0xff]
      %v392 = vld [vmem:[%s328 + $0x17c] sm:$0xf]
      %s393 = scalar_lea.vmem %s1, 192
      %v394 = vld [vmem:[%s393] sm:$0xf]
      %v395 = vld [vmem:[%s393 + $0x4] sm:$0xf]
      %v396 = vld [vmem:[%s393 + $0x8] sm:$0xf]
      %v397 = vld [vmem:[%s393 + $0xc] sm:$0xf]
      %v398 = vld [vmem:[%s393 + $0x10] sm:$0xf]
      %v399 = vld [vmem:[%s393 + $0x14] sm:$0xf]
      %v400 = vld [vmem:[%s393 + $0x18] sm:$0xf]
      %v401 = vld [vmem:[%s393 + $0x1c] sm:$0xf]
      %v402 = vld [vmem:[%s393 + $0x20] sm:$0xf]
      %v403 = vld [vmem:[%s393 + $0x24] sm:$0xf]
      %v404 = vld [vmem:[%s393 + $0x28] sm:$0xf]
      %v405 = vld [vmem:[%s393 + $0x2c] sm:$0xf]
      %v406 = vld [vmem:[%s393 + $0x30] sm:$0xf]
      %v407 = vld [vmem:[%s393 + $0x34] sm:$0xf]
      %v408 = vld [vmem:[%s393 + $0x38] sm:$0xf]
      %v409 = vld [vmem:[%s393 + $0x3c] sm:$0xf]
      %v410 = vld [vmem:[%s393 + $0x40] sm:$0xf]
      %v411 = vld [vmem:[%s393 + $0x44] sm:$0xf]
      %v412 = vld [vmem:[%s393 + $0x48] sm:$0xf]
      %v413 = vld [vmem:[%s393 + $0x4c] sm:$0xf]
      %v414 = vld [vmem:[%s393 + $0x50] sm:$0xf]
      %v415 = vld [vmem:[%s393 + $0x54] sm:$0xf]
      %v416 = vld [vmem:[%s393 + $0x58] sm:$0xf]
      %v417 = vld [vmem:[%s393 + $0x5c] sm:$0xf]
      %v418 = vld [vmem:[%s393 + $0x60] sm:$0xf]
      %v419 = vld [vmem:[%s393 + $0x64] sm:$0xf]
      %v420 = vld [vmem:[%s393 + $0x68] sm:$0xf]
      %v421 = vld [vmem:[%s393 + $0x6c] sm:$0xf]
      %v422 = vld [vmem:[%s393 + $0x70] sm:$0xf]
      %v423 = vld [vmem:[%s393 + $0x74] sm:$0xf]
      %v424 = vld [vmem:[%s393 + $0x78] sm:$0xf]
      %v425 = vld [vmem:[%s393 + $0x7c] sm:$0xf]
      %v426 = vld [vmem:[%s393 + $0x80] sm:$0xf]
      %v427 = vld [vmem:[%s393 + $0x84] sm:$0xf]
      %v428 = vld [vmem:[%s393 + $0x88] sm:$0xf]
      %v429 = vld [vmem:[%s393 + $0x8c] sm:$0xf]
      %v430 = vld [vmem:[%s393 + $0x90] sm:$0xf]
      %v431 = vld [vmem:[%s393 + $0x94] sm:$0xf]
      %v432 = vld [vmem:[%s393 + $0x98] sm:$0xf]
      %v433 = vld [vmem:[%s393 + $0x9c] sm:$0xf]
      %v434 = vld [vmem:[%s393 + $0xa0] sm:$0xf]
      %v435 = vld [vmem:[%s393 + $0xa4] sm:$0xf]
      %v436 = vld [vmem:[%s393 + $0xa8] sm:$0xf]
      %v437 = vld [vmem:[%s393 + $0xac] sm:$0xf]
      %v438 = vld [vmem:[%s393 + $0xb0] sm:$0xf]
      %v439 = vld [vmem:[%s393 + $0xb4] sm:$0xf]
      %v440 = vld [vmem:[%s393 + $0xb8] sm:$0xf]
      %v441 = vld [vmem:[%s393 + $0xbc] sm:$0xf]
      %v506 = vunpack.c.l.b16 %v329
      %v507 = vunpack.c.h.b16 %v329
      %v508 = vunpack.c.l.b16 %v330
      %v509 = vunpack.c.l.b16 %v331
      %v510 = vunpack.c.h.b16 %v331
      %v511 = vunpack.c.l.b16 %v332
      %v512 = vunpack.c.l.b16 %v333
      %v513 = vunpack.c.h.b16 %v333
      %v514 = vunpack.c.l.b16 %v334
      %v515 = vunpack.c.l.b16 %v335
      %v516 = vunpack.c.h.b16 %v335
      %v517 = vunpack.c.l.b16 %v336
      %v518 = vunpack.c.l.b16 %v337
      %v519 = vunpack.c.h.b16 %v337
      %v520 = vunpack.c.l.b16 %v338
      %v521 = vunpack.c.l.b16 %v339
      %v522 = vunpack.c.h.b16 %v339
      %v523 = vunpack.c.l.b16 %v340
      %v524 = vunpack.c.l.b16 %v341
      %v525 = vunpack.c.h.b16 %v341
      %v526 = vunpack.c.l.b16 %v342
      %v527 = vunpack.c.l.b16 %v343
      %v528 = vunpack.c.h.b16 %v343
      %v529 = vunpack.c.l.b16 %v344
      %v530 = vunpack.c.l.b16 %v345
      %v531 = vunpack.c.h.b16 %v345
      %v532 = vunpack.c.l.b16 %v346
      %v533 = vunpack.c.l.b16 %v347
      %v534 = vunpack.c.h.b16 %v347
      %v535 = vunpack.c.l.b16 %v348
      %v536 = vunpack.c.l.b16 %v349
      %v537 = vunpack.c.h.b16 %v349
      %v538 = vunpack.c.l.b16 %v350
      %v539 = vunpack.c.l.b16 %v351
      %v540 = vunpack.c.h.b16 %v351
      %v541 = vunpack.c.l.b16 %v352
      %v542 = vunpack.c.l.b16 %v353
      %v543 = vunpack.c.h.b16 %v353
      %v544 = vunpack.c.l.b16 %v354
      %v545 = vunpack.c.l.b16 %v355
      %v546 = vunpack.c.h.b16 %v355
      %v547 = vunpack.c.l.b16 %v356
      %v548 = vunpack.c.l.b16 %v357
      %v549 = vunpack.c.h.b16 %v357
      %v550 = vunpack.c.l.b16 %v358
      %v551 = vunpack.c.l.b16 %v359
      %v552 = vunpack.c.h.b16 %v359
      %v553 = vunpack.c.l.b16 %v360
      %v554 = vunpack.c.l.b16 %v361
      %v555 = vunpack.c.h.b16 %v361
      %v556 = vunpack.c.l.b16 %v362
      %v557 = vunpack.c.l.b16 %v363
      %v558 = vunpack.c.h.b16 %v363
      %v559 = vunpack.c.l.b16 %v364
      %v560 = vunpack.c.l.b16 %v365
      %v561 = vunpack.c.h.b16 %v365
      %v562 = vunpack.c.l.b16 %v366
      %v563 = vunpack.c.l.b16 %v367
      %v564 = vunpack.c.h.b16 %v367
      %v565 = vunpack.c.l.b16 %v368
      %v566 = vunpack.c.l.b16 %v369
      %v567 = vunpack.c.h.b16 %v369
      %v568 = vunpack.c.l.b16 %v370
      %v569 = vunpack.c.l.b16 %v371
      %v570 = vunpack.c.h.b16 %v371
      %v571 = vunpack.c.l.b16 %v372
      %v572 = vunpack.c.l.b16 %v373
      %v573 = vunpack.c.h.b16 %v373
      %v574 = vunpack.c.l.b16 %v374
      %v575 = vunpack.c.l.b16 %v375
      %v576 = vunpack.c.h.b16 %v375
      %v577 = vunpack.c.l.b16 %v376
      %v578 = vunpack.c.l.b16 %v377
      %v579 = vunpack.c.h.b16 %v377
      %v580 = vunpack.c.l.b16 %v378
      %v581 = vunpack.c.l.b16 %v379
      %v582 = vunpack.c.h.b16 %v379
      %v583 = vunpack.c.l.b16 %v380
      %v584 = vunpack.c.l.b16 %v381
      %v585 = vunpack.c.h.b16 %v381
      %v586 = vunpack.c.l.b16 %v382
      %v587 = vunpack.c.l.b16 %v383
      %v588 = vunpack.c.h.b16 %v383
      %v589 = vunpack.c.l.b16 %v384
      %v590 = vunpack.c.l.b16 %v385
      %v591 = vunpack.c.h.b16 %v385
      %v592 = vunpack.c.l.b16 %v386
      %v593 = vunpack.c.l.b16 %v387
      %v594 = vunpack.c.h.b16 %v387
      %v595 = vunpack.c.l.b16 %v388
      %v596 = vunpack.c.l.b16 %v389
      %v597 = vunpack.c.h.b16 %v389
      %v598 = vunpack.c.l.b16 %v390
      %v599 = vunpack.c.l.b16 %v391
      %v600 = vunpack.c.h.b16 %v391
      %v601 = vunpack.c.l.b16 %v392
      %v602 = vpack.c.b16 %v509, %v506
      %v603 = vpack.c.b16 %v510, %v507
      %v604 = vpack.c.b16 %v511, %v508
      %v605 = vpack.c.b16 %v515, %v512
      %v606 = vpack.c.b16 %v516, %v513
      %v607 = vpack.c.b16 %v517, %v514
      %v608 = vpack.c.b16 %v521, %v518
      %v609 = vpack.c.b16 %v522, %v519
      %v610 = vpack.c.b16 %v523, %v520
      %v611 = vpack.c.b16 %v527, %v524
      %v612 = vpack.c.b16 %v528, %v525
      %v613 = vpack.c.b16 %v529, %v526
      %v614 = vpack.c.b16 %v533, %v530
      %v615 = vpack.c.b16 %v534, %v531
      %v616 = vpack.c.b16 %v535, %v532
      %v617 = vpack.c.b16 %v539, %v536
      %v618 = vpack.c.b16 %v540, %v537
      %v619 = vpack.c.b16 %v541, %v538
      %v620 = vpack.c.b16 %v545, %v542
      %v621 = vpack.c.b16 %v546, %v543
      %v622 = vpack.c.b16 %v547, %v544
      %v623 = vpack.c.b16 %v551, %v548
      %v624 = vpack.c.b16 %v552, %v549
      %v625 = vpack.c.b16 %v553, %v550
      %v626 = vpack.c.b16 %v557, %v554
      %v627 = vpack.c.b16 %v558, %v555
      %v628 = vpack.c.b16 %v559, %v556
      %v629 = vpack.c.b16 %v563, %v560
      %v630 = vpack.c.b16 %v564, %v561
      %v631 = vpack.c.b16 %v565, %v562
      %v632 = vpack.c.b16 %v569, %v566
      %v633 = vpack.c.b16 %v570, %v567
      %v634 = vpack.c.b16 %v571, %v568
      %v635 = vpack.c.b16 %v575, %v572
      %v636 = vpack.c.b16 %v576, %v573
      %v637 = vpack.c.b16 %v577, %v574
      %v638 = vpack.c.b16 %v581, %v578
      %v639 = vpack.c.b16 %v582, %v579
      %v640 = vpack.c.b16 %v583, %v580
      %v641 = vpack.c.b16 %v587, %v584
      %v642 = vpack.c.b16 %v588, %v585
      %v643 = vpack.c.b16 %v589, %v586
      %v644 = vpack.c.b16 %v593, %v590
      %v645 = vpack.c.b16 %v594, %v591
      %v646 = vpack.c.b16 %v595, %v592
      %v647 = vpack.c.b16 %v599, %v596
      %v648 = vpack.c.b16 %v600, %v597
      %v649 = vpack.c.b16 %v601, %v598
      %v746 = vunpack.c.l.b16 %v394
      %v747 = vunpack.c.l.b16 %v395
      %v748 = vunpack.c.l.b16 %v396
      %v749 = vunpack.c.l.b16 %v397
      %v750 = vunpack.c.l.b16 %v398
      %v751 = vunpack.c.l.b16 %v399
      %v752 = vunpack.c.l.b16 %v400
      %v753 = vunpack.c.l.b16 %v401
      %v754 = vunpack.c.l.b16 %v402
      %v755 = vunpack.c.l.b16 %v403
      %v756 = vunpack.c.l.b16 %v404
      %v757 = vunpack.c.l.b16 %v405
      %v758 = vunpack.c.l.b16 %v406
      %v759 = vunpack.c.l.b16 %v407
      %v760 = vunpack.c.l.b16 %v408
      %v761 = vunpack.c.l.b16 %v409
      %v762 = vunpack.c.l.b16 %v410
      %v763 = vunpack.c.l.b16 %v411
      %v764 = vunpack.c.l.b16 %v412
      %v765 = vunpack.c.l.b16 %v413
      %v766 = vunpack.c.l.b16 %v414
      %v767 = vunpack.c.l.b16 %v415
      %v768 = vunpack.c.l.b16 %v416
      %v769 = vunpack.c.l.b16 %v417
      %v770 = vunpack.c.l.b16 %v418
      %v771 = vunpack.c.l.b16 %v419
      %v772 = vunpack.c.l.b16 %v420
      %v773 = vunpack.c.l.b16 %v421
      %v774 = vunpack.c.l.b16 %v422
      %v775 = vunpack.c.l.b16 %v423
      %v776 = vunpack.c.l.b16 %v424
      %v777 = vunpack.c.l.b16 %v425
      %v778 = vunpack.c.l.b16 %v426
      %v779 = vunpack.c.l.b16 %v427
      %v780 = vunpack.c.l.b16 %v428
      %v781 = vunpack.c.l.b16 %v429
      %v782 = vunpack.c.l.b16 %v430
      %v783 = vunpack.c.l.b16 %v431
      %v784 = vunpack.c.l.b16 %v432
      %v785 = vunpack.c.l.b16 %v433
      %v786 = vunpack.c.l.b16 %v434
      %v787 = vunpack.c.l.b16 %v435
      %v788 = vunpack.c.l.b16 %v436
      %v789 = vunpack.c.l.b16 %v437
      %v790 = vunpack.c.l.b16 %v438
      %v791 = vunpack.c.l.b16 %v439
      %v792 = vunpack.c.l.b16 %v440
      %v793 = vunpack.c.l.b16 %v441
      %v794 = vpack.c.b16 %v747, %v746
      %v795 = vpack.c.b16 %v749, %v748
      %v796 = vpack.c.b16 %v751, %v750
      %v797 = vpack.c.b16 %v753, %v752
      %v798 = vpack.c.b16 %v755, %v754
      %v799 = vpack.c.b16 %v757, %v756
      %v800 = vpack.c.b16 %v759, %v758
      %v801 = vpack.c.b16 %v761, %v760
      %v802 = vpack.c.b16 %v763, %v762
      %v803 = vpack.c.b16 %v765, %v764
      %v804 = vpack.c.b16 %v767, %v766
      %v805 = vpack.c.b16 %v769, %v768
      %v806 = vpack.c.b16 %v771, %v770
      %v807 = vpack.c.b16 %v773, %v772
      %v808 = vpack.c.b16 %v775, %v774
      %v809 = vpack.c.b16 %v777, %v776
      %v810 = vpack.c.b16 %v779, %v778
      %v811 = vpack.c.b16 %v781, %v780
      %v812 = vpack.c.b16 %v783, %v782
      %v813 = vpack.c.b16 %v785, %v784
      %v814 = vpack.c.b16 %v787, %v786
      %v815 = vpack.c.b16 %v789, %v788
      %v816 = vpack.c.b16 %v791, %v790
      %v817 = vpack.c.b16 %v793, %v792
      %842 = vmatprep.subr.bf16.mxu0 0
      %843 = vmatpush1.bf16.msra.mxu0 %v794
      %844 = vmatprep.subr.bf16.mxu0 0
      %845 = vmatpush1.bf16.msra.mxu0 %v795
      %846 = vmatprep.subr.bf16.mxu0 0
      %847 = vmatpush1.bf16.msra.mxu0 %v796
      %848 = vmatprep.subr.bf16.mxu0 0
      %849 = vmatpush1.bf16.msra.mxu0 %v797
      %850 = vmatprep.subr.bf16.mxu0 0
      %851 = vmatpush1.bf16.msra.mxu0 %v798
      %852 = vmatprep.subr.bf16.mxu0 0
      %853 = vmatpush1.bf16.msra.mxu0 %v799
      %854 = vmatprep.subr.bf16.mxu0 0
      %855 = vmatpush1.bf16.msra.mxu0 %v800
      %856 = vmatprep.subr.bf16.mxu0 0
      %857 = vmatpush1.bf16.msra.mxu0 %v801
      %858 = vmatprep.subr.bf16.mxu0 0
      %859 = vmatpush1.bf16.msra.mxu0 %v802
      %860 = vmatprep.subr.bf16.mxu0 0
      %861 = vmatpush1.bf16.msra.mxu0 %v803
      %862 = vmatprep.subr.bf16.mxu0 0
      %863 = vmatpush1.bf16.msra.mxu0 %v804
      %864 = vmatprep.subr.bf16.mxu0 0
      %865 = vmatpush1.bf16.msra.mxu0 %v805
      %866 = vmatprep.subr.bf16.mxu0 0
      %867 = vmatpush1.bf16.msra.mxu0 %v806
      %868 = vmatprep.subr.bf16.mxu0 0
      %869 = vmatpush1.bf16.msra.mxu0 %v807
      %870 = vmatprep.subr.bf16.mxu0 0
      %871 = vmatpush1.bf16.msra.mxu0 %v808
      %872 = vmatprep.subr.bf16.mxu0 0
      %873 = vmatpush1.bf16.msra.mxu0 %v809
      %874 = vmatprep.mubr.bf16.mxu0 %v603
      %875 = vmatmul.mubr.bf16.gmra.mrb[0].mxu0 %v602
      %v876 = vpop.f32.mrb[0].mxu0
      %v877 = vadd.f32 0.0, %v876
      %v878 = vpop.f32.mrb[0].mxu0
      %v879 = vpop.f32.mrb[0].mxu0
      %v880 = vadd.f32 0.0, %v879
      %v881 = vpop.f32.mrb[0].mxu0
      %882 = vmatprep.mubr.bf16.mxu0 %v606
      %883 = vmatmul.mubr.bf16.gmra.mrb[0].mxu0 %v605
      %v884 = vpop.f32.mrb[0].mxu0
      %v885 = vadd.f32 0.0, %v884
      %v886 = vpop.f32.mrb[0].mxu0
      %v887 = vpop.f32.mrb[0].mxu0
      %v888 = vadd.f32 0.0, %v887
      %v889 = vpop.f32.mrb[0].mxu0
      %890 = vmatprep.mubr.bf16.mxu0 %v609
      %891 = vmatmul.mubr.bf16.gmra.mrb[0].mxu0 %v608
      %v892 = vpop.f32.mrb[0].mxu0
      %v893 = vadd.f32 0.0, %v892
      %v894 = vpop.f32.mrb[0].mxu0
      %v895 = vpop.f32.mrb[0].mxu0
      %v896 = vadd.f32 0.0, %v895
      %v897 = vpop.f32.mrb[0].mxu0
      %898 = vmatprep.mubr.bf16.mxu0 %v612
      %899 = vmatmul.mubr.bf16.gmra.mrb[0].mxu0 %v611
      %v900 = vpop.f32.mrb[0].mxu0
      %v901 = vadd.f32 0.0, %v900
      %v902 = vpop.f32.mrb[0].mxu0
      %v903 = vpop.f32.mrb[0].mxu0
      %v904 = vadd.f32 0.0, %v903
      %v905 = vpop.f32.mrb[0].mxu0
      %906 = vmatprep.mubr.bf16.mxu0 %v615
      %907 = vmatmul.mubr.bf16.gmra.mrb[0].mxu0 %v614
      %v908 = vpop.f32.mrb[0].mxu0
      %v909 = vadd.f32 0.0, %v908
      %v910 = vpop.f32.mrb[0].mxu0
      %v911 = vpop.f32.mrb[0].mxu0
      %v912 = vadd.f32 0.0, %v911
      %v913 = vpop.f32.mrb[0].mxu0
      %914 = vmatprep.mubr.bf16.mxu0 %v618
      %915 = vmatmul.mubr.bf16.gmra.mrb[0].mxu0 %v617
      %v916 = vpop.f32.mrb[0].mxu0
      %v917 = vadd.f32 0.0, %v916
      %v918 = vpop.f32.mrb[0].mxu0
      %v919 = vpop.f32.mrb[0].mxu0
      %v920 = vadd.f32 0.0, %v919
      %v921 = vpop.f32.mrb[0].mxu0
      %922 = vmatprep.mubr.bf16.mxu0 %v621
      %923 = vmatmul.mubr.bf16.gmra.mrb[0].mxu0 %v620
      %v924 = vpop.f32.mrb[0].mxu0
      %v925 = vadd.f32 0.0, %v924
      %v926 = vpop.f32.mrb[0].mxu0
      %v927 = vpop.f32.mrb[0].mxu0
      %v928 = vadd.f32 0.0, %v927
      %v929 = vpop.f32.mrb[0].mxu0
      %930 = vmatprep.mubr.bf16.mxu0 %v624
      %931 = vmatmul.mubr.bf16.gmra.mrb[0].mxu0 %v623
      %v932 = vpop.f32.mrb[0].mxu0
      %v933 = vadd.f32 0.0, %v932
      %v934 = vpop.f32.mrb[0].mxu0
      %v935 = vpop.f32.mrb[0].mxu0
      %v936 = vadd.f32 0.0, %v935
      %v937 = vpop.f32.mrb[0].mxu0
      %938 = vmatprep.mubr.bf16.mxu0 %v627
      %939 = vmatmul.mubr.bf16.gmra.mrb[0].mxu0 %v626
      %v940 = vpop.f32.mrb[0].mxu0
      %v941 = vadd.f32 0.0, %v940
      %v942 = vpop.f32.mrb[0].mxu0
      %v943 = vpop.f32.mrb[0].mxu0
      %v944 = vadd.f32 0.0, %v943
      %v945 = vpop.f32.mrb[0].mxu0
      %946 = vmatprep.mubr.bf16.mxu0 %v630
      %947 = vmatmul.mubr.bf16.gmra.mrb[0].mxu0 %v629
      %v948 = vpop.f32.mrb[0].mxu0
      %v949 = vadd.f32 0.0, %v948
      %v950 = vpop.f32.mrb[0].mxu0
      %v951 = vpop.f32.mrb[0].mxu0
      %v952 = vadd.f32 0.0, %v951
      %v953 = vpop.f32.mrb[0].mxu0
      %954 = vmatprep.mubr.bf16.mxu0 %v633
      %955 = vmatmul.mubr.bf16.gmra.mrb[0].mxu0 %v632
      %v956 = vpop.f32.mrb[0].mxu0
      %v957 = vadd.f32 0.0, %v956
      %v958 = vpop.f32.mrb[0].mxu0
      %v959 = vpop.f32.mrb[0].mxu0
      %v960 = vadd.f32 0.0, %v959
      %v961 = vpop.f32.mrb[0].mxu0
      %962 = vmatprep.mubr.bf16.mxu0 %v636
      %963 = vmatmul.mubr.bf16.gmra.mrb[0].mxu0 %v635
      %v964 = vpop.f32.mrb[0].mxu0
      %v965 = vadd.f32 0.0, %v964
      %v966 = vpop.f32.mrb[0].mxu0
      %v967 = vpop.f32.mrb[0].mxu0
      %v968 = vadd.f32 0.0, %v967
      %v969 = vpop.f32.mrb[0].mxu0
      %970 = vmatprep.mubr.bf16.mxu0 %v639
      %971 = vmatmul.mubr.bf16.gmra.mrb[0].mxu0 %v638
      %v972 = vpop.f32.mrb[0].mxu0
      %v973 = vadd.f32 0.0, %v972
      %v974 = vpop.f32.mrb[0].mxu0
      %v975 = vpop.f32.mrb[0].mxu0
      %v976 = vadd.f32 0.0, %v975
      %v977 = vpop.f32.mrb[0].mxu0
      %978 = vmatprep.mubr.bf16.mxu0 %v642
      %979 = vmatmul.mubr.bf16.gmra.mrb[0].mxu0 %v641
      %v980 = vpop.f32.mrb[0].mxu0
      %v981 = vadd.f32 0.0, %v980
      %v982 = vpop.f32.mrb[0].mxu0
      %v983 = vpop.f32.mrb[0].mxu0
      %v984 = vadd.f32 0.0, %v983
      %v985 = vpop.f32.mrb[0].mxu0
      %986 = vmatprep.mubr.bf16.mxu0 %v645
      %987 = vmatmul.mubr.bf16.gmra.mrb[0].mxu0 %v644
      %v988 = vpop.f32.mrb[0].mxu0
      %v989 = vadd.f32 0.0, %v988
      %v990 = vpop.f32.mrb[0].mxu0
      %v991 = vpop.f32.mrb[0].mxu0
      %v992 = vadd.f32 0.0, %v991
      %v993 = vpop.f32.mrb[0].mxu0
      %994 = vmatprep.mubr.bf16.mxu0 %v648
      %995 = vmatmul.mubr.bf16.gmra.mrb[0].mxu0 %v647
      %v996 = vpop.f32.mrb[0].mxu0
      %v997 = vadd.f32 0.0, %v996
      %v998 = vpop.f32.mrb[0].mxu0
      %v999 = vpop.f32.mrb[0].mxu0
      %v1000 = vadd.f32 0.0, %v999
      %v1001 = vpop.f32.mrb[0].mxu0
      %1002 = vdwg.mxu0
      %1003 = vmatprep.subr.bf16.mxu0 0
      %1004 = vmatpush1.bf16.msra.mxu0 %v810
      %1005 = vmatprep.subr.bf16.mxu0 0
      %1006 = vmatpush1.bf16.msra.mxu0 %v811
      %1007 = vmatprep.subr.bf16.mxu0 0
      %1008 = vmatpush1.bf16.msra.mxu0 %v812
      %1009 = vmatprep.subr.bf16.mxu0 0
      %1010 = vmatpush1.bf16.msra.mxu0 %v813
      %1011 = vmatprep.subr.bf16.mxu0 0
      %1012 = vmatpush1.bf16.msra.mxu0 %v814
      %1013 = vmatprep.subr.bf16.mxu0 0
      %1014 = vmatpush1.bf16.msra.mxu0 %v815
      %1015 = vmatprep.subr.bf16.mxu0 0
      %1016 = vmatpush1.bf16.msra.mxu0 %v816
      %1017 = vmatprep.subr.bf16.mxu0 0
      %1018 = vmatpush1.bf16.msra.mxu0 %v817
      %1019 = vmatprep.subr.bf16.mxu0 0
      %1020 = vmatpush1.bf16.msra.mxu0 0
      %1021 = vmatprep.subr.bf16.mxu0 0
      %1022 = vmatpush1.bf16.msra.mxu0 0
      %1023 = vmatprep.subr.bf16.mxu0 0
      %1024 = vmatpush1.bf16.msra.mxu0 0
      %1025 = vmatprep.subr.bf16.mxu0 0
      %1026 = vmatpush1.bf16.msra.mxu0 0
      %1027 = vmatprep.subr.bf16.mxu0 0
      %1028 = vmatpush1.bf16.msra.mxu0 0
      %1029 = vmatprep.subr.bf16.mxu0 0
      %1030 = vmatpush1.bf16.msra.mxu0 0
      %1031 = vmatprep.subr.bf16.mxu0 0
      %1032 = vmatpush1.bf16.msra.mxu0 0
      %1033 = vmatprep.subr.bf16.mxu0 0
      %1034 = vmatpush1.bf16.msra.mxu0 0
      %1035 = vmatprep.mubr.bf16.mxu0 0
      %1036 = vmatmul.mubr.bf16.gmra.mrb[0].mxu0 %v604
      %v1037 = vpop.f32.mrb[0].mxu0
      %v1038 = vadd.f32 %v877, %v1037
      %v1039 = vpop.f32.mrb[0].mxu0
      %v1040 = vpop.f32.mrb[0].mxu0
      %v1041 = vadd.f32 %v880, %v1040
      %v1042 = vpop.f32.mrb[0].mxu0
      %1043 = vmatprep.mubr.bf16.mxu0 0
      %1044 = vmatmul.mubr.bf16.gmra.mrb[0].mxu0 %v607
      %v1045 = vpop.f32.mrb[0].mxu0
      %v1046 = vadd.f32 %v885, %v1045
      %v1047 = vpop.f32.mrb[0].mxu0
      %v1048 = vpop.f32.mrb[0].mxu0
      %v1049 = vadd.f32 %v888, %v1048
      %v1050 = vpop.f32.mrb[0].mxu0
      %1051 = vmatprep.mubr.bf16.mxu0 0
      %1052 = vmatmul.mubr.bf16.gmra.mrb[0].mxu0 %v610
      %v1053 = vpop.f32.mrb[0].mxu0
      %v1054 = vadd.f32 %v893, %v1053
      %v1055 = vpop.f32.mrb[0].mxu0
      %v1056 = vpop.f32.mrb[0].mxu0
      %v1057 = vadd.f32 %v896, %v1056
      %v1058 = vpop.f32.mrb[0].mxu0
      %1059 = vmatprep.mubr.bf16.mxu0 0
      %1060 = vmatmul.mubr.bf16.gmra.mrb[0].mxu0 %v613
      %v1061 = vpop.f32.mrb[0].mxu0
      %v1062 = vadd.f32 %v901, %v1061
      %v1063 = vpop.f32.mrb[0].mxu0
      %v1064 = vpop.f32.mrb[0].mxu0
      %v1065 = vadd.f32 %v904, %v1064
      %v1066 = vpop.f32.mrb[0].mxu0
      %1067 = vmatprep.mubr.bf16.mxu0 0
      %1068 = vmatmul.mubr.bf16.gmra.mrb[0].mxu0 %v616
      %v1069 = vpop.f32.mrb[0].mxu0
      %v1070 = vadd.f32 %v909, %v1069
      %v1071 = vpop.f32.mrb[0].mxu0
      %v1072 = vpop.f32.mrb[0].mxu0
      %v1073 = vadd.f32 %v912, %v1072
      %v1074 = vpop.f32.mrb[0].mxu0
      %1075 = vmatprep.mubr.bf16.mxu0 0
      %1076 = vmatmul.mubr.bf16.gmra.mrb[0].mxu0 %v619
      %v1077 = vpop.f32.mrb[0].mxu0
      %v1078 = vadd.f32 %v917, %v1077
      %v1079 = vpop.f32.mrb[0].mxu0
      %v1080 = vpop.f32.mrb[0].mxu0
      %v1081 = vadd.f32 %v920, %v1080
      %v1082 = vpop.f32.mrb[0].mxu0
      %1083 = vmatprep.mubr.bf16.mxu0 0
      %1084 = vmatmul.mubr.bf16.gmra.mrb[0].mxu0 %v622
      %v1085 = vpop.f32.mrb[0].mxu0
      %v1086 = vadd.f32 %v925, %v1085
      %v1087 = vpop.f32.mrb[0].mxu0
      %v1088 = vpop.f32.mrb[0].mxu0
      %v1089 = vadd.f32 %v928, %v1088
      %v1090 = vpop.f32.mrb[0].mxu0
      %1091 = vmatprep.mubr.bf16.mxu0 0
      %1092 = vmatmul.mubr.bf16.gmra.mrb[0].mxu0 %v625
      %v1093 = vpop.f32.mrb[0].mxu0
      %v1094 = vadd.f32 %v933, %v1093
      %v1095 = vpop.f32.mrb[0].mxu0
      %v1096 = vpop.f32.mrb[0].mxu0
      %v1097 = vadd.f32 %v936, %v1096
      %v1098 = vpop.f32.mrb[0].mxu0
      %1099 = vmatprep.mubr.bf16.mxu0 0
      %1100 = vmatmul.mubr.bf16.gmra.mrb[0].mxu0 %v628
      %v1101 = vpop.f32.mrb[0].mxu0
      %v1102 = vadd.f32 %v941, %v1101
      %v1103 = vpop.f32.mrb[0].mxu0
      %v1104 = vpop.f32.mrb[0].mxu0
      %v1105 = vadd.f32 %v944, %v1104
      %v1106 = vpop.f32.mrb[0].mxu0
      %1107 = vmatprep.mubr.bf16.mxu0 0
      %1108 = vmatmul.mubr.bf16.gmra.mrb[0].mxu0 %v631
      %v1109 = vpop.f32.mrb[0].mxu0
      %v1110 = vadd.f32 %v949, %v1109
      %v1111 = vpop.f32.mrb[0].mxu0
      %v1112 = vpop.f32.mrb[0].mxu0
      %v1113 = vadd.f32 %v952, %v1112
      %v1114 = vpop.f32.mrb[0].mxu0
      %1115 = vmatprep.mubr.bf16.mxu0 0
      %1116 = vmatmul.mubr.bf16.gmra.mrb[0].mxu0 %v634
      %v1117 = vpop.f32.mrb[0].mxu0
      %v1118 = vadd.f32 %v957, %v1117
      %v1119 = vpop.f32.mrb[0].mxu0
      %v1120 = vpop.f32.mrb[0].mxu0
      %v1121 = vadd.f32 %v960, %v1120
      %v1122 = vpop.f32.mrb[0].mxu0
      %1123 = vmatprep.mubr.bf16.mxu0 0
      %1124 = vmatmul.mubr.bf16.gmra.mrb[0].mxu0 %v637
      %v1125 = vpop.f32.mrb[0].mxu0
      %v1126 = vadd.f32 %v965, %v1125
      %v1127 = vpop.f32.mrb[0].mxu0
      %v1128 = vpop.f32.mrb[0].mxu0
      %v1129 = vadd.f32 %v968, %v1128
      %v1130 = vpop.f32.mrb[0].mxu0
      %1131 = vmatprep.mubr.bf16.mxu0 0
      %1132 = vmatmul.mubr.bf16.gmra.mrb[0].mxu0 %v640
      %v1133 = vpop.f32.mrb[0].mxu0
      %v1134 = vadd.f32 %v973, %v1133
      %v1135 = vpop.f32.mrb[0].mxu0
      %v1136 = vpop.f32.mrb[0].mxu0
      %v1137 = vadd.f32 %v976, %v1136
      %v1138 = vpop.f32.mrb[0].mxu0
      %1139 = vmatprep.mubr.bf16.mxu0 0
      %1140 = vmatmul.mubr.bf16.gmra.mrb[0].mxu0 %v643
      %v1141 = vpop.f32.mrb[0].mxu0
      %v1142 = vadd.f32 %v981, %v1141
      %v1143 = vpop.f32.mrb[0].mxu0
      %v1144 = vpop.f32.mrb[0].mxu0
      %v1145 = vadd.f32 %v984, %v1144
      %v1146 = vpop.f32.mrb[0].mxu0
      %1147 = vmatprep.mubr.bf16.mxu0 0
      %1148 = vmatmul.mubr.bf16.gmra.mrb[0].mxu0 %v646
      %v1149 = vpop.f32.mrb[0].mxu0
      %v1150 = vadd.f32 %v989, %v1149
      %v1151 = vpop.f32.mrb[0].mxu0
      %v1152 = vpop.f32.mrb[0].mxu0
      %v1153 = vadd.f32 %v992, %v1152
      %v1154 = vpop.f32.mrb[0].mxu0
      %1155 = vmatprep.mubr.bf16.mxu0 0
      %1156 = vmatmul.mubr.bf16.gmra.mrb[0].mxu0 %v649
      %v1157 = vpop.f32.mrb[0].mxu0
      %v1158 = vadd.f32 %v997, %v1157
      %v1159 = vpop.f32.mrb[0].mxu0
      %v1160 = vpop.f32.mrb[0].mxu0
      %v1161 = vadd.f32 %v1000, %v1160
      %v1162 = vpop.f32.mrb[0].mxu0
      %1163 = vdwg.mxu0
      %v1228 = vunpack.c.l.b16 %v216
      %v1229 = vunpack.c.h.b16 %v216
      %v1230 = vunpack.c.l.b16 %v217
      %v1231 = vunpack.c.l.b16 %v218
      %v1232 = vunpack.c.h.b16 %v218
      %v1233 = vunpack.c.l.b16 %v219
      %v1234 = vunpack.c.l.b16 %v220
      %v1235 = vunpack.c.h.b16 %v220
      %v1236 = vunpack.c.l.b16 %v221
      %v1237 = vunpack.c.l.b16 %v222
      %v1238 = vunpack.c.h.b16 %v222
      %v1239 = vunpack.c.l.b16 %v223
      %v1240 = vunpack.c.l.b16 %v224
      %v1241 = vunpack.c.h.b16 %v224
      %v1242 = vunpack.c.l.b16 %v225
      %v1243 = vunpack.c.l.b16 %v226
      %v1244 = vunpack.c.h.b16 %v226
      %v1245 = vunpack.c.l.b16 %v227
      %v1246 = vunpack.c.l.b16 %v228
      %v1247 = vunpack.c.h.b16 %v228
      %v1248 = vunpack.c.l.b16 %v229
      %v1249 = vunpack.c.l.b16 %v230
      %v1250 = vunpack.c.h.b16 %v230
      %v1251 = vunpack.c.l.b16 %v231
      %v1252 = vunpack.c.l.b16 %v232
      %v1253 = vunpack.c.h.b16 %v232
      %v1254 = vunpack.c.l.b16 %v233
      %v1255 = vunpack.c.l.b16 %v234
      %v1256 = vunpack.c.h.b16 %v234
      %v1257 = vunpack.c.l.b16 %v235
      %v1258 = vunpack.c.l.b16 %v236
      %v1259 = vunpack.c.h.b16 %v236
      %v1260 = vunpack.c.l.b16 %v237
      %v1261 = vunpack.c.l.b16 %v238
      %v1262 = vunpack.c.h.b16 %v238
      %v1263 = vunpack.c.l.b16 %v239
      %v1264 = vunpack.c.l.b16 %v240
      %v1265 = vunpack.c.h.b16 %v240
      %v1266 = vunpack.c.l.b16 %v241
      %v1267 = vunpack.c.l.b16 %v242
      %v1268 = vunpack.c.h.b16 %v242
      %v1269 = vunpack.c.l.b16 %v243
      %v1270 = vunpack.c.l.b16 %v244
      %v1271 = vunpack.c.h.b16 %v244
      %v1272 = vunpack.c.l.b16 %v245
      %v1273 = vunpack.c.l.b16 %v246
      %v1274 = vunpack.c.h.b16 %v246
      %v1275 = vunpack.c.l.b16 %v247
      %v1276 = vunpack.c.l.b16 %v248
      %v1277 = vunpack.c.h.b16 %v248
      %v1278 = vunpack.c.l.b16 %v249
      %v1279 = vunpack.c.l.b16 %v250
      %v1280 = vunpack.c.h.b16 %v250
      %v1281 = vunpack.c.l.b16 %v251
      %v1282 = vunpack.c.l.b16 %v252
      %v1283 = vunpack.c.h.b16 %v252
      %v1284 = vunpack.c.l.b16 %v253
      %v1285 = vunpack.c.l.b16 %v254
      %v1286 = vunpack.c.h.b16 %v254
      %v1287 = vunpack.c.l.b16 %v255
      %v1288 = vunpack.c.l.b16 %v256
      %v1289 = vunpack.c.h.b16 %v256
      %v1290 = vunpack.c.l.b16 %v257
      %v1291 = vunpack.c.l.b16 %v258
      %v1292 = vunpack.c.h.b16 %v258
      %v1293 = vunpack.c.l.b16 %v259
      %v1294 = vunpack.c.l.b16 %v260
      %v1295 = vunpack.c.h.b16 %v260
      %v1296 = vunpack.c.l.b16 %v261
      %v1297 = vunpack.c.l.b16 %v262
      %v1298 = vunpack.c.h.b16 %v262
      %v1299 = vunpack.c.l.b16 %v263
      %v1300 = vunpack.c.l.b16 %v264
      %v1301 = vunpack.c.h.b16 %v264
      %v1302 = vunpack.c.l.b16 %v265
      %v1303 = vunpack.c.l.b16 %v266
      %v1304 = vunpack.c.h.b16 %v266
      %v1305 = vunpack.c.l.b16 %v267
      %v1306 = vunpack.c.l.b16 %v268
      %v1307 = vunpack.c.h.b16 %v268
      %v1308 = vunpack.c.l.b16 %v269
      %v1309 = vunpack.c.l.b16 %v270
      %v1310 = vunpack.c.h.b16 %v270
      %v1311 = vunpack.c.l.b16 %v271
      %v1312 = vunpack.c.l.b16 %v272
      %v1313 = vunpack.c.h.b16 %v272
      %v1314 = vunpack.c.l.b16 %v273
      %v1315 = vunpack.c.l.b16 %v274
      %v1316 = vunpack.c.h.b16 %v274
      %v1317 = vunpack.c.l.b16 %v275
      %v1318 = vunpack.c.l.b16 %v276
      %v1319 = vunpack.c.h.b16 %v276
      %v1320 = vunpack.c.l.b16 %v277
      %v1321 = vunpack.c.l.b16 %v278
      %v1322 = vunpack.c.h.b16 %v278
      %v1323 = vunpack.c.l.b16 %v279
      %v1324 = vpack.c.b16 %v1231, %v1228
      %v1325 = vpack.c.b16 %v1232, %v1229
      %v1326 = vpack.c.b16 %v1233, %v1230
      %v1327 = vpack.c.b16 %v1237, %v1234
      %v1328 = vpack.c.b16 %v1238, %v1235
      %v1329 = vpack.c.b16 %v1239, %v1236
      %v1330 = vpack.c.b16 %v1243, %v1240
      %v1331 = vpack.c.b16 %v1244, %v1241
      %v1332 = vpack.c.b16 %v1245, %v1242
      %v1333 = vpack.c.b16 %v1249, %v1246
      %v1334 = vpack.c.b16 %v1250, %v1247
      %v1335 = vpack.c.b16 %v1251, %v1248
      %v1336 = vpack.c.b16 %v1255, %v1252
      %v1337 = vpack.c.b16 %v1256, %v1253
      %v1338 = vpack.c.b16 %v1257, %v1254
      %v1339 = vpack.c.b16 %v1261, %v1258
      %v1340 = vpack.c.b16 %v1262, %v1259
      %v1341 = vpack.c.b16 %v1263, %v1260
      %v1342 = vpack.c.b16 %v1267, %v1264
      %v1343 = vpack.c.b16 %v1268, %v1265
      %v1344 = vpack.c.b16 %v1269, %v1266
      %v1345 = vpack.c.b16 %v1273, %v1270
      %v1346 = vpack.c.b16 %v1274, %v1271
      %v1347 = vpack.c.b16 %v1275, %v1272
      %v1348 = vpack.c.b16 %v1279, %v1276
      %v1349 = vpack.c.b16 %v1280, %v1277
      %v1350 = vpack.c.b16 %v1281, %v1278
      %v1351 = vpack.c.b16 %v1285, %v1282
      %v1352 = vpack.c.b16 %v1286, %v1283
      %v1353 = vpack.c.b16 %v1287, %v1284
      %v1354 = vpack.c.b16 %v1291, %v1288
      %v1355 = vpack.c.b16 %v1292, %v1289
      %v1356 = vpack.c.b16 %v1293, %v1290
      %v1357 = vpack.c.b16 %v1297, %v1294
      %v1358 = vpack.c.b16 %v1298, %v1295
      %v1359 = vpack.c.b16 %v1299, %v1296
      %v1360 = vpack.c.b16 %v1303, %v1300
      %v1361 = vpack.c.b16 %v1304, %v1301
      %v1362 = vpack.c.b16 %v1305, %v1302
      %v1363 = vpack.c.b16 %v1309, %v1306
      %v1364 = vpack.c.b16 %v1310, %v1307
      %v1365 = vpack.c.b16 %v1311, %v1308
      %v1366 = vpack.c.b16 %v1315, %v1312
      %v1367 = vpack.c.b16 %v1316, %v1313
      %v1368 = vpack.c.b16 %v1317, %v1314
      %v1369 = vpack.c.b16 %v1321, %v1318
      %v1370 = vpack.c.b16 %v1322, %v1319
      %v1371 = vpack.c.b16 %v1323, %v1320
      %v1468 = vunpack.c.l.b16 %v280
      %v1469 = vunpack.c.l.b16 %v281
      %v1470 = vunpack.c.l.b16 %v282
      %v1471 = vunpack.c.l.b16 %v283
      %v1472 = vunpack.c.l.b16 %v284
      %v1473 = vunpack.c.l.b16 %v285
      %v1474 = vunpack.c.l.b16 %v286
      %v1475 = vunpack.c.l.b16 %v287
      %v1476 = vunpack.c.l.b16 %v288
      %v1477 = vunpack.c.l.b16 %v289
      %v1478 = vunpack.c.l.b16 %v290
      %v1479 = vunpack.c.l.b16 %v291
      %v1480 = vunpack.c.l.b16 %v292
      %v1481 = vunpack.c.l.b16 %v293
      %v1482 = vunpack.c.l.b16 %v294
      %v1483 = vunpack.c.l.b16 %v295
      %v1484 = vunpack.c.l.b16 %v296
      %v1485 = vunpack.c.l.b16 %v297
      %v1486 = vunpack.c.l.b16 %v298
      %v1487 = vunpack.c.l.b16 %v299
      %v1488 = vunpack.c.l.b16 %v300
      %v1489 = vunpack.c.l.b16 %v301
      %v1490 = vunpack.c.l.b16 %v302
      %v1491 = vunpack.c.l.b16 %v303
      %v1492 = vunpack.c.l.b16 %v304
      %v1493 = vunpack.c.l.b16 %v305
      %v1494 = vunpack.c.l.b16 %v306
      %v1495 = vunpack.c.l.b16 %v307
      %v1496 = vunpack.c.l.b16 %v308
      %v1497 = vunpack.c.l.b16 %v309
      %v1498 = vunpack.c.l.b16 %v310
      %v1499 = vunpack.c.l.b16 %v311
      %v1500 = vunpack.c.l.b16 %v312
      %v1501 = vunpack.c.l.b16 %v313
      %v1502 = vunpack.c.l.b16 %v314
      %v1503 = vunpack.c.l.b16 %v315
      %v1504 = vunpack.c.l.b16 %v316
      %v1505 = vunpack.c.l.b16 %v317
      %v1506 = vunpack.c.l.b16 %v318
      %v1507 = vunpack.c.l.b16 %v319
      %v1508 = vunpack.c.l.b16 %v320
      %v1509 = vunpack.c.l.b16 %v321
      %v1510 = vunpack.c.l.b16 %v322
      %v1511 = vunpack.c.l.b16 %v323
      %v1512 = vunpack.c.l.b16 %v324
      %v1513 = vunpack.c.l.b16 %v325
      %v1514 = vunpack.c.l.b16 %v326
      %v1515 = vunpack.c.l.b16 %v327
      %v1516 = vpack.c.b16 %v1469, %v1468
      %v1517 = vpack.c.b16 %v1471, %v1470
      %v1518 = vpack.c.b16 %v1473, %v1472
      %v1519 = vpack.c.b16 %v1475, %v1474
      %v1520 = vpack.c.b16 %v1477, %v1476
      %v1521 = vpack.c.b16 %v1479, %v1478
      %v1522 = vpack.c.b16 %v1481, %v1480
      %v1523 = vpack.c.b16 %v1483, %v1482
      %v1524 = vpack.c.b16 %v1485, %v1484
      %v1525 = vpack.c.b16 %v1487, %v1486
      %v1526 = vpack.c.b16 %v1489, %v1488
      %v1527 = vpack.c.b16 %v1491, %v1490
      %v1528 = vpack.c.b16 %v1493, %v1492
      %v1529 = vpack.c.b16 %v1495, %v1494
      %v1530 = vpack.c.b16 %v1497, %v1496
      %v1531 = vpack.c.b16 %v1499, %v1498
      %v1532 = vpack.c.b16 %v1501, %v1500
      %v1533 = vpack.c.b16 %v1503, %v1502
      %v1534 = vpack.c.b16 %v1505, %v1504
      %v1535 = vpack.c.b16 %v1507, %v1506
      %v1536 = vpack.c.b16 %v1509, %v1508
      %v1537 = vpack.c.b16 %v1511, %v1510
      %v1538 = vpack.c.b16 %v1513, %v1512
      %v1539 = vpack.c.b16 %v1515, %v1514
      %1564 = vmatprep.subr.bf16.mxu0 0
      %1565 = vmatpush1.bf16.msra.mxu0 %v1516
      %1566 = vmatprep.subr.bf16.mxu0 0
      %1567 = vmatpush1.bf16.msra.mxu0 %v1517
      %1568 = vmatprep.subr.bf16.mxu0 0
      %1569 = vmatpush1.bf16.msra.mxu0 %v1518
      %1570 = vmatprep.subr.bf16.mxu0 0
      %1571 = vmatpush1.bf16.msra.mxu0 %v1519
      %1572 = vmatprep.subr.bf16.mxu0 0
      %1573 = vmatpush1.bf16.msra.mxu0 %v1520
      %1574 = vmatprep.subr.bf16.mxu0 0
      %1575 = vmatpush1.bf16.msra.mxu0 %v1521
      %1576 = vmatprep.subr.bf16.mxu0 0
      %1577 = vmatpush1.bf16.msra.mxu0 %v1522
      %1578 = vmatprep.subr.bf16.mxu0 0
      %1579 = vmatpush1.bf16.msra.mxu0 %v1523
      %1580 = vmatprep.subr.bf16.mxu0 0
      %1581 = vmatpush1.bf16.msra.mxu0 %v1524
      %1582 = vmatprep.subr.bf16.mxu0 0
      %1583 = vmatpush1.bf16.msra.mxu0 %v1525
      %1584 = vmatprep.subr.bf16.mxu0 0
      %1585 = vmatpush1.bf16.msra.mxu0 %v1526
      %1586 = vmatprep.subr.bf16.mxu0 0
      %1587 = vmatpush1.bf16.msra.mxu0 %v1527
      %1588 = vmatprep.subr.bf16.mxu0 0
      %1589 = vmatpush1.bf16.msra.mxu0 %v1528
      %1590 = vmatprep.subr.bf16.mxu0 0
      %1591 = vmatpush1.bf16.msra.mxu0 %v1529
      %1592 = vmatprep.subr.bf16.mxu0 0
      %1593 = vmatpush1.bf16.msra.mxu0 %v1530
      %1594 = vmatprep.subr.bf16.mxu0 0
      %1595 = vmatpush1.bf16.msra.mxu0 %v1531
      %1596 = vmatprep.mubr.bf16.mxu0 %v1325
      %1597 = vmatmul.mubr.bf16.gmra.mrb[0].mxu0 %v1324
      %v1598 = vpop.f32.mrb[0].mxu0
      %v1599 = vadd.f32 %v1038, %v1598
      %v1600 = vpop.f32.mrb[0].mxu0
      %v1601 = vpop.f32.mrb[0].mxu0
      %v1602 = vadd.f32 %v1041, %v1601
      %v1603 = vpop.f32.mrb[0].mxu0
      %1604 = vmatprep.mubr.bf16.mxu0 %v1328
      %1605 = vmatmul.mubr.bf16.gmra.mrb[0].mxu0 %v1327
      %v1606 = vpop.f32.mrb[0].mxu0
      %v1607 = vadd.f32 %v1046, %v1606
      %v1608 = vpop.f32.mrb[0].mxu0
      %v1609 = vpop.f32.mrb[0].mxu0
      %v1610 = vadd.f32 %v1049, %v1609
      %v1611 = vpop.f32.mrb[0].mxu0
      %1612 = vmatprep.mubr.bf16.mxu0 %v1331
      %1613 = vmatmul.mubr.bf16.gmra.mrb[0].mxu0 %v1330
      %v1614 = vpop.f32.mrb[0].mxu0
      %v1615 = vadd.f32 %v1054, %v1614
      %v1616 = vpop.f32.mrb[0].mxu0
      %v1617 = vpop.f32.mrb[0].mxu0
      %v1618 = vadd.f32 %v1057, %v1617
      %v1619 = vpop.f32.mrb[0].mxu0
      %1620 = vmatprep.mubr.bf16.mxu0 %v1334
      %1621 = vmatmul.mubr.bf16.gmra.mrb[0].mxu0 %v1333
      %v1622 = vpop.f32.mrb[0].mxu0
      %v1623 = vadd.f32 %v1062, %v1622
      %v1624 = vpop.f32.mrb[0].mxu0
      %v1625 = vpop.f32.mrb[0].mxu0
      %v1626 = vadd.f32 %v1065, %v1625
      %v1627 = vpop.f32.mrb[0].mxu0
      %1628 = vmatprep.mubr.bf16.mxu0 %v1337
      %1629 = vmatmul.mubr.bf16.gmra.mrb[0].mxu0 %v1336
      %v1630 = vpop.f32.mrb[0].mxu0
      %v1631 = vadd.f32 %v1070, %v1630
      %v1632 = vpop.f32.mrb[0].mxu0
      %v1633 = vpop.f32.mrb[0].mxu0
      %v1634 = vadd.f32 %v1073, %v1633
      %v1635 = vpop.f32.mrb[0].mxu0
      %1636 = vmatprep.mubr.bf16.mxu0 %v1340
      %1637 = vmatmul.mubr.bf16.gmra.mrb[0].mxu0 %v1339
      %v1638 = vpop.f32.mrb[0].mxu0
      %v1639 = vadd.f32 %v1078, %v1638
      %v1640 = vpop.f32.mrb[0].mxu0
      %v1641 = vpop.f32.mrb[0].mxu0
      %v1642 = vadd.f32 %v1081, %v1641
      %v1643 = vpop.f32.mrb[0].mxu0
      %1644 = vmatprep.mubr.bf16.mxu0 %v1343
      %1645 = vmatmul.mubr.bf16.gmra.mrb[0].mxu0 %v1342
      %v1646 = vpop.f32.mrb[0].mxu0
      %v1647 = vadd.f32 %v1086, %v1646
      %v1648 = vpop.f32.mrb[0].mxu0
      %v1649 = vpop.f32.mrb[0].mxu0
      %v1650 = vadd.f32 %v1089, %v1649
      %v1651 = vpop.f32.mrb[0].mxu0
      %1652 = vmatprep.mubr.bf16.mxu0 %v1346
      %1653 = vmatmul.mubr.bf16.gmra.mrb[0].mxu0 %v1345
      %v1654 = vpop.f32.mrb[0].mxu0
      %v1655 = vadd.f32 %v1094, %v1654
      %v1656 = vpop.f32.mrb[0].mxu0
      %v1657 = vpop.f32.mrb[0].mxu0
      %v1658 = vadd.f32 %v1097, %v1657
      %v1659 = vpop.f32.mrb[0].mxu0
      %1660 = vmatprep.mubr.bf16.mxu0 %v1349
      %1661 = vmatmul.mubr.bf16.gmra.mrb[0].mxu0 %v1348
      %v1662 = vpop.f32.mrb[0].mxu0
      %v1663 = vadd.f32 %v1102, %v1662
      %v1664 = vpop.f32.mrb[0].mxu0
      %v1665 = vpop.f32.mrb[0].mxu0
      %v1666 = vadd.f32 %v1105, %v1665
      %v1667 = vpop.f32.mrb[0].mxu0
      %1668 = vmatprep.mubr.bf16.mxu0 %v1352
      %1669 = vmatmul.mubr.bf16.gmra.mrb[0].mxu0 %v1351
      %v1670 = vpop.f32.mrb[0].mxu0
      %v1671 = vadd.f32 %v1110, %v1670
      %v1672 = vpop.f32.mrb[0].mxu0
      %v1673 = vpop.f32.mrb[0].mxu0
      %v1674 = vadd.f32 %v1113, %v1673
      %v1675 = vpop.f32.mrb[0].mxu0
      %1676 = vmatprep.mubr.bf16.mxu0 %v1355
      %1677 = vmatmul.mubr.bf16.gmra.mrb[0].mxu0 %v1354
      %v1678 = vpop.f32.mrb[0].mxu0
      %v1679 = vadd.f32 %v1118, %v1678
      %v1680 = vpop.f32.mrb[0].mxu0
      %v1681 = vpop.f32.mrb[0].mxu0
      %v1682 = vadd.f32 %v1121, %v1681
      %v1683 = vpop.f32.mrb[0].mxu0
      %1684 = vmatprep.mubr.bf16.mxu0 %v1358
      %1685 = vmatmul.mubr.bf16.gmra.mrb[0].mxu0 %v1357
      %v1686 = vpop.f32.mrb[0].mxu0
      %v1687 = vadd.f32 %v1126, %v1686
      %v1688 = vpop.f32.mrb[0].mxu0
      %v1689 = vpop.f32.mrb[0].mxu0
      %v1690 = vadd.f32 %v1129, %v1689
      %v1691 = vpop.f32.mrb[0].mxu0
      %1692 = vmatprep.mubr.bf16.mxu0 %v1361
      %1693 = vmatmul.mubr.bf16.gmra.mrb[0].mxu0 %v1360
      %v1694 = vpop.f32.mrb[0].mxu0
      %v1695 = vadd.f32 %v1134, %v1694
      %v1696 = vpop.f32.mrb[0].mxu0
      %v1697 = vpop.f32.mrb[0].mxu0
      %v1698 = vadd.f32 %v1137, %v1697
      %v1699 = vpop.f32.mrb[0].mxu0
      %1700 = vmatprep.mubr.bf16.mxu0 %v1364
      %1701 = vmatmul.mubr.bf16.gmra.mrb[0].mxu0 %v1363
      %v1702 = vpop.f32.mrb[0].mxu0
      %v1703 = vadd.f32 %v1142, %v1702
      %v1704 = vpop.f32.mrb[0].mxu0
      %v1705 = vpop.f32.mrb[0].mxu0
      %v1706 = vadd.f32 %v1145, %v1705
      %v1707 = vpop.f32.mrb[0].mxu0
      %1708 = vmatprep.mubr.bf16.mxu0 %v1367
      %1709 = vmatmul.mubr.bf16.gmra.mrb[0].mxu0 %v1366
      %v1710 = vpop.f32.mrb[0].mxu0
      %v1711 = vadd.f32 %v1150, %v1710
      %v1712 = vpop.f32.mrb[0].mxu0
      %v1713 = vpop.f32.mrb[0].mxu0
      %v1714 = vadd.f32 %v1153, %v1713
      %v1715 = vpop.f32.mrb[0].mxu0
      %1716 = vmatprep.mubr.bf16.mxu0 %v1370
      %1717 = vmatmul.mubr.bf16.gmra.mrb[0].mxu0 %v1369
      %v1718 = vpop.f32.mrb[0].mxu0
      %v1719 = vadd.f32 %v1158, %v1718
      %v1720 = vpop.f32.mrb[0].mxu0
      %v1721 = vpop.f32.mrb[0].mxu0
      %v1722 = vadd.f32 %v1161, %v1721
      %v1723 = vpop.f32.mrb[0].mxu0
      %1724 = vdwg.mxu0
      %1725 = vmatprep.subr.bf16.mxu0 0
      %1726 = vmatpush1.bf16.msra.mxu0 %v1532
      %1727 = vmatprep.subr.bf16.mxu0 0
      %1728 = vmatpush1.bf16.msra.mxu0 %v1533
      %1729 = vmatprep.subr.bf16.mxu0 0
      %1730 = vmatpush1.bf16.msra.mxu0 %v1534
      %1731 = vmatprep.subr.bf16.mxu0 0
      %1732 = vmatpush1.bf16.msra.mxu0 %v1535
      %1733 = vmatprep.subr.bf16.mxu0 0
      %1734 = vmatpush1.bf16.msra.mxu0 %v1536
      %1735 = vmatprep.subr.bf16.mxu0 0
      %1736 = vmatpush1.bf16.msra.mxu0 %v1537
      %1737 = vmatprep.subr.bf16.mxu0 0
      %1738 = vmatpush1.bf16.msra.mxu0 %v1538
      %1739 = vmatprep.subr.bf16.mxu0 0
      %1740 = vmatpush1.bf16.msra.mxu0 %v1539
      %1741 = vmatprep.subr.bf16.mxu0 0
      %1742 = vmatpush1.bf16.msra.mxu0 0
      %1743 = vmatprep.subr.bf16.mxu0 0
      %1744 = vmatpush1.bf16.msra.mxu0 0
      %1745 = vmatprep.subr.bf16.mxu0 0
      %1746 = vmatpush1.bf16.msra.mxu0 0
      %1747 = vmatprep.subr.bf16.mxu0 0
      %1748 = vmatpush1.bf16.msra.mxu0 0
      %1749 = vmatprep.subr.bf16.mxu0 0
      %1750 = vmatpush1.bf16.msra.mxu0 0
      %1751 = vmatprep.subr.bf16.mxu0 0
      %1752 = vmatpush1.bf16.msra.mxu0 0
      %1753 = vmatprep.subr.bf16.mxu0 0
      %1754 = vmatpush1.bf16.msra.mxu0 0
      %1755 = vmatprep.subr.bf16.mxu0 0
      %1756 = vmatpush1.bf16.msra.mxu0 0
      %1757 = vmatprep.mubr.bf16.mxu0 0
      %1758 = vmatmul.mubr.bf16.gmra.mrb[0].mxu0 %v1326
      %v1759 = vpop.f32.mrb[0].mxu0
      %v1760 = vadd.f32 %v1599, %v1759
      %v1761 = vpop.f32.mrb[0].mxu0
      %v1762 = vpop.f32.mrb[0].mxu0
      %v1763 = vadd.f32 %v1602, %v1762
      %v1764 = vpop.f32.mrb[0].mxu0
      %1765 = vmatprep.mubr.bf16.mxu0 0
      %1766 = vmatmul.mubr.bf16.gmra.mrb[0].mxu0 %v1329
      %v1767 = vpop.f32.mrb[0].mxu0
      %v1768 = vadd.f32 %v1607, %v1767
      %v1769 = vpop.f32.mrb[0].mxu0
      %v1770 = vpop.f32.mrb[0].mxu0
      %v1771 = vadd.f32 %v1610, %v1770
      %v1772 = vpop.f32.mrb[0].mxu0
      %1773 = vmatprep.mubr.bf16.mxu0 0
      %1774 = vmatmul.mubr.bf16.gmra.mrb[0].mxu0 %v1332
      %v1775 = vpop.f32.mrb[0].mxu0
      %v1776 = vadd.f32 %v1615, %v1775
      %v1777 = vpop.f32.mrb[0].mxu0
      %v1778 = vpop.f32.mrb[0].mxu0
      %v1779 = vadd.f32 %v1618, %v1778
      %v1780 = vpop.f32.mrb[0].mxu0
      %1781 = vmatprep.mubr.bf16.mxu0 0
      %1782 = vmatmul.mubr.bf16.gmra.mrb[0].mxu0 %v1335
      %v1783 = vpop.f32.mrb[0].mxu0
      %v1784 = vadd.f32 %v1623, %v1783
      %v1785 = vpop.f32.mrb[0].mxu0
      %v1786 = vpop.f32.mrb[0].mxu0
      %v1787 = vadd.f32 %v1626, %v1786
      %v1788 = vpop.f32.mrb[0].mxu0
      %1789 = vmatprep.mubr.bf16.mxu0 0
      %1790 = vmatmul.mubr.bf16.gmra.mrb[0].mxu0 %v1338
      %v1791 = vpop.f32.mrb[0].mxu0
      %v1792 = vadd.f32 %v1631, %v1791
      %v1793 = vpop.f32.mrb[0].mxu0
      %v1794 = vpop.f32.mrb[0].mxu0
      %v1795 = vadd.f32 %v1634, %v1794
      %v1796 = vpop.f32.mrb[0].mxu0
      %1797 = vmatprep.mubr.bf16.mxu0 0
      %1798 = vmatmul.mubr.bf16.gmra.mrb[0].mxu0 %v1341
      %v1799 = vpop.f32.mrb[0].mxu0
      %v1800 = vadd.f32 %v1639, %v1799
      %v1801 = vpop.f32.mrb[0].mxu0
      %v1802 = vpop.f32.mrb[0].mxu0
      %v1803 = vadd.f32 %v1642, %v1802
      %v1804 = vpop.f32.mrb[0].mxu0
      %1805 = vmatprep.mubr.bf16.mxu0 0
      %1806 = vmatmul.mubr.bf16.gmra.mrb[0].mxu0 %v1344
      %v1807 = vpop.f32.mrb[0].mxu0
      %v1808 = vadd.f32 %v1647, %v1807
      %v1809 = vpop.f32.mrb[0].mxu0
      %v1810 = vpop.f32.mrb[0].mxu0
      %v1811 = vadd.f32 %v1650, %v1810
      %v1812 = vpop.f32.mrb[0].mxu0
      %1813 = vmatprep.mubr.bf16.mxu0 0
      %1814 = vmatmul.mubr.bf16.gmra.mrb[0].mxu0 %v1347
      %v1815 = vpop.f32.mrb[0].mxu0
      %v1816 = vadd.f32 %v1655, %v1815
      %v1817 = vpop.f32.mrb[0].mxu0
      %v1818 = vpop.f32.mrb[0].mxu0
      %v1819 = vadd.f32 %v1658, %v1818
      %v1820 = vpop.f32.mrb[0].mxu0
      %1821 = vmatprep.mubr.bf16.mxu0 0
      %1822 = vmatmul.mubr.bf16.gmra.mrb[0].mxu0 %v1350
      %v1823 = vpop.f32.mrb[0].mxu0
      %v1824 = vadd.f32 %v1663, %v1823
      %v1825 = vpop.f32.mrb[0].mxu0
      %v1826 = vpop.f32.mrb[0].mxu0
      %v1827 = vadd.f32 %v1666, %v1826
      %v1828 = vpop.f32.mrb[0].mxu0
      %1829 = vmatprep.mubr.bf16.mxu0 0
      %1830 = vmatmul.mubr.bf16.gmra.mrb[0].mxu0 %v1353
      %v1831 = vpop.f32.mrb[0].mxu0
      %v1832 = vadd.f32 %v1671, %v1831
      %v1833 = vpop.f32.mrb[0].mxu0
      %v1834 = vpop.f32.mrb[0].mxu0
      %v1835 = vadd.f32 %v1674, %v1834
      %v1836 = vpop.f32.mrb[0].mxu0
      %1837 = vmatprep.mubr.bf16.mxu0 0
      %1838 = vmatmul.mubr.bf16.gmra.mrb[0].mxu0 %v1356
      %v1839 = vpop.f32.mrb[0].mxu0
      %v1840 = vadd.f32 %v1679, %v1839
      %v1841 = vpop.f32.mrb[0].mxu0
      %v1842 = vpop.f32.mrb[0].mxu0
      %v1843 = vadd.f32 %v1682, %v1842
      %v1844 = vpop.f32.mrb[0].mxu0
      %1845 = vmatprep.mubr.bf16.mxu0 0
      %1846 = vmatmul.mubr.bf16.gmra.mrb[0].mxu0 %v1359
      %v1847 = vpop.f32.mrb[0].mxu0
      %v1848 = vadd.f32 %v1687, %v1847
      %v1849 = vpop.f32.mrb[0].mxu0
      %v1850 = vpop.f32.mrb[0].mxu0
      %v1851 = vadd.f32 %v1690, %v1850
      %v1852 = vpop.f32.mrb[0].mxu0
      %1853 = vmatprep.mubr.bf16.mxu0 0
      %1854 = vmatmul.mubr.bf16.gmra.mrb[0].mxu0 %v1362
      %v1855 = vpop.f32.mrb[0].mxu0
      %v1856 = vadd.f32 %v1695, %v1855
      %v1857 = vpop.f32.mrb[0].mxu0
      %v1858 = vpop.f32.mrb[0].mxu0
      %v1859 = vadd.f32 %v1698, %v1858
      %v1860 = vpop.f32.mrb[0].mxu0
      %1861 = vmatprep.mubr.bf16.mxu0 0
      %1862 = vmatmul.mubr.bf16.gmra.mrb[0].mxu0 %v1365
      %v1863 = vpop.f32.mrb[0].mxu0
      %v1864 = vadd.f32 %v1703, %v1863
      %v1865 = vpop.f32.mrb[0].mxu0
      %v1866 = vpop.f32.mrb[0].mxu0
      %v1867 = vadd.f32 %v1706, %v1866
      %v1868 = vpop.f32.mrb[0].mxu0
      %1869 = vmatprep.mubr.bf16.mxu0 0
      %1870 = vmatmul.mubr.bf16.gmra.mrb[0].mxu0 %v1368
      %v1871 = vpop.f32.mrb[0].mxu0
      %v1872 = vadd.f32 %v1711, %v1871
      %v1873 = vpop.f32.mrb[0].mxu0
      %v1874 = vpop.f32.mrb[0].mxu0
      %v1875 = vadd.f32 %v1714, %v1874
      %v1876 = vpop.f32.mrb[0].mxu0
      %1877 = vmatprep.mubr.bf16.mxu0 0
      %1878 = vmatmul.mubr.bf16.gmra.mrb[0].mxu0 %v1371
      %v1879 = vpop.f32.mrb[0].mxu0
      %v1880 = vadd.f32 %v1719, %v1879
      %v1881 = vpop.f32.mrb[0].mxu0
      %v1882 = vpop.f32.mrb[0].mxu0
      %v1883 = vadd.f32 %v1722, %v1882
      %v1884 = vpop.f32.mrb[0].mxu0
      %1885 = vdwg.mxu0
      %s1886 = scalar_lea.vmem %s203, 48
      %v1887 = vld [vmem:[%s1886] sm:$0xff]
      %v1888 = vld [vmem:[%s1886 + $0x8] sm:$0xf]
      %v1889 = vld [vmem:[%s1886 + $0xc] sm:$0xff]
      %v1890 = vld [vmem:[%s1886 + $0x14] sm:$0xf]
      %v1891 = vld [vmem:[%s1886 + $0x18] sm:$0xff]
      %v1892 = vld [vmem:[%s1886 + $0x20] sm:$0xf]
      %v1893 = vld [vmem:[%s1886 + $0x24] sm:$0xff]
      %v1894 = vld [vmem:[%s1886 + $0x2c] sm:$0xf]
      %v1895 = vld [vmem:[%s1886 + $0x30] sm:$0xff]
      %v1896 = vld [vmem:[%s1886 + $0x38] sm:$0xf]
      %v1897 = vld [vmem:[%s1886 + $0x3c] sm:$0xff]
      %v1898 = vld [vmem:[%s1886 + $0x44] sm:$0xf]
      %v1899 = vld [vmem:[%s1886 + $0x48] sm:$0xff]
      %v1900 = vld [vmem:[%s1886 + $0x50] sm:$0xf]
      %v1901 = vld [vmem:[%s1886 + $0x54] sm:$0xff]
      %v1902 = vld [vmem:[%s1886 + $0x5c] sm:$0xf]
      %v1903 = vld [vmem:[%s1886 + $0x60] sm:$0xff]
      %v1904 = vld [vmem:[%s1886 + $0x68] sm:$0xf]
      %v1905 = vld [vmem:[%s1886 + $0x6c] sm:$0xff]
      %v1906 = vld [vmem:[%s1886 + $0x74] sm:$0xf]
      %v1907 = vld [vmem:[%s1886 + $0x78] sm:$0xff]
      %v1908 = vld [vmem:[%s1886 + $0x80] sm:$0xf]
      %v1909 = vld [vmem:[%s1886 + $0x84] sm:$0xff]
      %v1910 = vld [vmem:[%s1886 + $0x8c] sm:$0xf]
      %v1911 = vld [vmem:[%s1886 + $0x90] sm:$0xff]
      %v1912 = vld [vmem:[%s1886 + $0x98] sm:$0xf]
      %v1913 = vld [vmem:[%s1886 + $0x9c] sm:$0xff]
      %v1914 = vld [vmem:[%s1886 + $0xa4] sm:$0xf]
      %v1915 = vld [vmem:[%s1886 + $0xa8] sm:$0xff]
      %v1916 = vld [vmem:[%s1886 + $0xb0] sm:$0xf]
      %v1917 = vld [vmem:[%s1886 + $0xb4] sm:$0xff]
      %v1918 = vld [vmem:[%s1886 + $0xbc] sm:$0xf]
      %v1919 = vld [vmem:[%s1886 + $0xc0] sm:$0xff]
      %v1920 = vld [vmem:[%s1886 + $0xc8] sm:$0xf]
      %v1921 = vld [vmem:[%s1886 + $0xcc] sm:$0xff]
      %v1922 = vld [vmem:[%s1886 + $0xd4] sm:$0xf]
      %v1923 = vld [vmem:[%s1886 + $0xd8] sm:$0xff]
      %v1924 = vld [vmem:[%s1886 + $0xe0] sm:$0xf]
      %v1925 = vld [vmem:[%s1886 + $0xe4] sm:$0xff]
      %v1926 = vld [vmem:[%s1886 + $0xec] sm:$0xf]
      %v1927 = vld [vmem:[%s1886 + $0xf0] sm:$0xff]
      %v1928 = vld [vmem:[%s1886 + $0xf8] sm:$0xf]
      %v1929 = vld [vmem:[%s1886 + $0xfc] sm:$0xff]
      %v1930 = vld [vmem:[%s1886 + $0x104] sm:$0xf]
      %v1931 = vld [vmem:[%s1886 + $0x108] sm:$0xff]
      %v1932 = vld [vmem:[%s1886 + $0x110] sm:$0xf]
      %v1933 = vld [vmem:[%s1886 + $0x114] sm:$0xff]
      %v1934 = vld [vmem:[%s1886 + $0x11c] sm:$0xf]
      %v1935 = vld [vmem:[%s1886 + $0x120] sm:$0xff]
      %v1936 = vld [vmem:[%s1886 + $0x128] sm:$0xf]
      %v1937 = vld [vmem:[%s1886 + $0x12c] sm:$0xff]
      %v1938 = vld [vmem:[%s1886 + $0x134] sm:$0xf]
      %v1939 = vld [vmem:[%s1886 + $0x138] sm:$0xff]
      %v1940 = vld [vmem:[%s1886 + $0x140] sm:$0xf]
      %v1941 = vld [vmem:[%s1886 + $0x144] sm:$0xff]
      %v1942 = vld [vmem:[%s1886 + $0x14c] sm:$0xf]
      %v1943 = vld [vmem:[%s1886 + $0x150] sm:$0xff]
      %v1944 = vld [vmem:[%s1886 + $0x158] sm:$0xf]
      %v1945 = vld [vmem:[%s1886 + $0x15c] sm:$0xff]
      %v1946 = vld [vmem:[%s1886 + $0x164] sm:$0xf]
      %v1947 = vld [vmem:[%s1886 + $0x168] sm:$0xff]
      %v1948 = vld [vmem:[%s1886 + $0x170] sm:$0xf]
      %v1949 = vld [vmem:[%s1886 + $0x174] sm:$0xff]
      %v1950 = vld [vmem:[%s1886 + $0x17c] sm:$0xf]
      %s1951 = scalar_lea.vmem %s1, 384
      %v1952 = vld [vmem:[%s1951] sm:$0xf]
      %v1953 = vld [vmem:[%s1951 + $0x4] sm:$0xf]
      %v1954 = vld [vmem:[%s1951 + $0x8] sm:$0xf]
      %v1955 = vld [vmem:[%s1951 + $0xc] sm:$0xf]
      %v1956 = vld [vmem:[%s1951 + $0x10] sm:$0xf]
      %v1957 = vld [vmem:[%s1951 + $0x14] sm:$0xf]
      %v1958 = vld [vmem:[%s1951 + $0x18] sm:$0xf]
      %v1959 = vld [vmem:[%s1951 + $0x1c] sm:$0xf]
      %v1960 = vld [vmem:[%s1951 + $0x20] sm:$0xf]
      %v1961 = vld [vmem:[%s1951 + $0x24] sm:$0xf]
      %v1962 = vld [vmem:[%s1951 + $0x28] sm:$0xf]
      %v1963 = vld [vmem:[%s1951 + $0x2c] sm:$0xf]
      %v1964 = vld [vmem:[%s1951 + $0x30] sm:$0xf]
      %v1965 = vld [vmem:[%s1951 + $0x34] sm:$0xf]
      %v1966 = vld [vmem:[%s1951 + $0x38] sm:$0xf]
      %v1967 = vld [vmem:[%s1951 + $0x3c] sm:$0xf]
      %v1968 = vld [vmem:[%s1951 + $0x40] sm:$0xf]
      %v1969 = vld [vmem:[%s1951 + $0x44] sm:$0xf]
      %v1970 = vld [vmem:[%s1951 + $0x48] sm:$0xf]
      %v1971 = vld [vmem:[%s1951 + $0x4c] sm:$0xf]
      %v1972 = vld [vmem:[%s1951 + $0x50] sm:$0xf]
      %v1973 = vld [vmem:[%s1951 + $0x54] sm:$0xf]
      %v1974 = vld [vmem:[%s1951 + $0x58] sm:$0xf]
      %v1975 = vld [vmem:[%s1951 + $0x5c] sm:$0xf]
      %v1976 = vld [vmem:[%s1951 + $0x60] sm:$0xf]
      %v1977 = vld [vmem:[%s1951 + $0x64] sm:$0xf]
      %v1978 = vld [vmem:[%s1951 + $0x68] sm:$0xf]
      %v1979 = vld [vmem:[%s1951 + $0x6c] sm:$0xf]
      %v1980 = vld [vmem:[%s1951 + $0x70] sm:$0xf]
      %v1981 = vld [vmem:[%s1951 + $0x74] sm:$0xf]
      %v1982 = vld [vmem:[%s1951 + $0x78] sm:$0xf]
      %v1983 = vld [vmem:[%s1951 + $0x7c] sm:$0xf]
      %v1984 = vld [vmem:[%s1951 + $0x80] sm:$0xf]
      %v1985 = vld [vmem:[%s1951 + $0x84] sm:$0xf]
      %v1986 = vld [vmem:[%s1951 + $0x88] sm:$0xf]
      %v1987 = vld [vmem:[%s1951 + $0x8c] sm:$0xf]
      %v1988 = vld [vmem:[%s1951 + $0x90] sm:$0xf]
      %v1989 = vld [vmem:[%s1951 + $0x94] sm:$0xf]
      %v1990 = vld [vmem:[%s1951 + $0x98] sm:$0xf]
      %v1991 = vld [vmem:[%s1951 + $0x9c] sm:$0xf]
      %v1992 = vld [vmem:[%s1951 + $0xa0] sm:$0xf]
      %v1993 = vld [vmem:[%s1951 + $0xa4] sm:$0xf]
      %v1994 = vld [vmem:[%s1951 + $0xa8] sm:$0xf]
      %v1995 = vld [vmem:[%s1951 + $0xac] sm:$0xf]
      %v1996 = vld [vmem:[%s1951 + $0xb0] sm:$0xf]
      %v1997 = vld [vmem:[%s1951 + $0xb4] sm:$0xf]
      %v1998 = vld [vmem:[%s1951 + $0xb8] sm:$0xf]
      %v1999 = vld [vmem:[%s1951 + $0xbc] sm:$0xf]
      %v2064 = vunpack.c.l.b16 %v1887
      %v2065 = vunpack.c.h.b16 %v1887
      %v2066 = vunpack.c.l.b16 %v1888
      %v2067 = vunpack.c.l.b16 %v1889
      %v2068 = vunpack.c.h.b16 %v1889
      %v2069 = vunpack.c.l.b16 %v1890
      %v2070 = vunpack.c.l.b16 %v1891
      %v2071 = vunpack.c.h.b16 %v1891
      %v2072 = vunpack.c.l.b16 %v1892
      %v2073 = vunpack.c.l.b16 %v1893
      %v2074 = vunpack.c.h.b16 %v1893
      %v2075 = vunpack.c.l.b16 %v1894
      %v2076 = vunpack.c.l.b16 %v1895
      %v2077 = vunpack.c.h.b16 %v1895
      %v2078 = vunpack.c.l.b16 %v1896
      %v2079 = vunpack.c.l.b16 %v1897
      %v2080 = vunpack.c.h.b16 %v1897
      %v2081 = vunpack.c.l.b16 %v1898
      %v2082 = vunpack.c.l.b16 %v1899
      %v2083 = vunpack.c.h.b16 %v1899
      %v2084 = vunpack.c.l.b16 %v1900
      %v2085 = vunpack.c.l.b16 %v1901
      %v2086 = vunpack.c.h.b16 %v1901
      %v2087 = vunpack.c.l.b16 %v1902
      %v2088 = vunpack.c.l.b16 %v1903
      %v2089 = vunpack.c.h.b16 %v1903
      %v2090 = vunpack.c.l.b16 %v1904
      %v2091 = vunpack.c.l.b16 %v1905
      %v2092 = vunpack.c.h.b16 %v1905
      %v2093 = vunpack.c.l.b16 %v1906
      %v2094 = vunpack.c.l.b16 %v1907
      %v2095 = vunpack.c.h.b16 %v1907
      %v2096 = vunpack.c.l.b16 %v1908
      %v2097 = vunpack.c.l.b16 %v1909
      %v2098 = vunpack.c.h.b16 %v1909
      %v2099 = vunpack.c.l.b16 %v1910
      %v2100 = vunpack.c.l.b16 %v1911
      %v2101 = vunpack.c.h.b16 %v1911
      %v2102 = vunpack.c.l.b16 %v1912
      %v2103 = vunpack.c.l.b16 %v1913
      %v2104 = vunpack.c.h.b16 %v1913
      %v2105 = vunpack.c.l.b16 %v1914
      %v2106 = vunpack.c.l.b16 %v1915
      %v2107 = vunpack.c.h.b16 %v1915
      %v2108 = vunpack.c.l.b16 %v1916
      %v2109 = vunpack.c.l.b16 %v1917
      %v2110 = vunpack.c.h.b16 %v1917
      %v2111 = vunpack.c.l.b16 %v1918
      %v2112 = vunpack.c.l.b16 %v1919
      %v2113 = vunpack.c.h.b16 %v1919
      %v2114 = vunpack.c.l.b16 %v1920
      %v2115 = vunpack.c.l.b16 %v1921
      %v2116 = vunpack.c.h.b16 %v1921
      %v2117 = vunpack.c.l.b16 %v1922
      %v2118 = vunpack.c.l.b16 %v1923
      %v2119 = vunpack.c.h.b16 %v1923
      %v2120 = vunpack.c.l.b16 %v1924
      %v2121 = vunpack.c.l.b16 %v1925
      %v2122 = vunpack.c.h.b16 %v1925
      %v2123 = vunpack.c.l.b16 %v1926
      %v2124 = vunpack.c.l.b16 %v1927
      %v2125 = vunpack.c.h.b16 %v1927
      %v2126 = vunpack.c.l.b16 %v1928
      %v2127 = vunpack.c.l.b16 %v1929
      %v2128 = vunpack.c.h.b16 %v1929
      %v2129 = vunpack.c.l.b16 %v1930
      %v2130 = vunpack.c.l.b16 %v1931
      %v2131 = vunpack.c.h.b16 %v1931
      %v2132 = vunpack.c.l.b16 %v1932
      %v2133 = vunpack.c.l.b16 %v1933
      %v2134 = vunpack.c.h.b16 %v1933
      %v2135 = vunpack.c.l.b16 %v1934
      %v2136 = vunpack.c.l.b16 %v1935
      %v2137 = vunpack.c.h.b16 %v1935
      %v2138 = vunpack.c.l.b16 %v1936
      %v2139 = vunpack.c.l.b16 %v1937
      %v2140 = vunpack.c.h.b16 %v1937
      %v2141 = vunpack.c.l.b16 %v1938
      %v2142 = vunpack.c.l.b16 %v1939
      %v2143 = vunpack.c.h.b16 %v1939
      %v2144 = vunpack.c.l.b16 %v1940
      %v2145 = vunpack.c.l.b16 %v1941
      %v2146 = vunpack.c.h.b16 %v1941
      %v2147 = vunpack.c.l.b16 %v1942
      %v2148 = vunpack.c.l.b16 %v1943
      %v2149 = vunpack.c.h.b16 %v1943
      %v2150 = vunpack.c.l.b16 %v1944
      %v2151 = vunpack.c.l.b16 %v1945
      %v2152 = vunpack.c.h.b16 %v1945
      %v2153 = vunpack.c.l.b16 %v1946
      %v2154 = vunpack.c.l.b16 %v1947
      %v2155 = vunpack.c.h.b16 %v1947
      %v2156 = vunpack.c.l.b16 %v1948
      %v2157 = vunpack.c.l.b16 %v1949
      %v2158 = vunpack.c.h.b16 %v1949
      %v2159 = vunpack.c.l.b16 %v1950
      %v2160 = vpack.c.b16 %v2067, %v2064
      %v2161 = vpack.c.b16 %v2068, %v2065
      %v2162 = vpack.c.b16 %v2069, %v2066
      %v2163 = vpack.c.b16 %v2073, %v2070
      %v2164 = vpack.c.b16 %v2074, %v2071
      %v2165 = vpack.c.b16 %v2075, %v2072
      %v2166 = vpack.c.b16 %v2079, %v2076
      %v2167 = vpack.c.b16 %v2080, %v2077
      %v2168 = vpack.c.b16 %v2081, %v2078
      %v2169 = vpack.c.b16 %v2085, %v2082
      %v2170 = vpack.c.b16 %v2086, %v2083
      %v2171 = vpack.c.b16 %v2087, %v2084
      %v2172 = vpack.c.b16 %v2091, %v2088
      %v2173 = vpack.c.b16 %v2092, %v2089
      %v2174 = vpack.c.b16 %v2093, %v2090
      %v2175 = vpack.c.b16 %v2097, %v2094
      %v2176 = vpack.c.b16 %v2098, %v2095
      %v2177 = vpack.c.b16 %v2099, %v2096
      %v2178 = vpack.c.b16 %v2103, %v2100
      %v2179 = vpack.c.b16 %v2104, %v2101
      %v2180 = vpack.c.b16 %v2105, %v2102
      %v2181 = vpack.c.b16 %v2109, %v2106
      %v2182 = vpack.c.b16 %v2110, %v2107
      %v2183 = vpack.c.b16 %v2111, %v2108
      %v2184 = vpack.c.b16 %v2115, %v2112
      %v2185 = vpack.c.b16 %v2116, %v2113
      %v2186 = vpack.c.b16 %v2117, %v2114
      %v2187 = vpack.c.b16 %v2121, %v2118
      %v2188 = vpack.c.b16 %v2122, %v2119
      %v2189 = vpack.c.b16 %v2123, %v2120
      %v2190 = vpack.c.b16 %v2127, %v2124
      %v2191 = vpack.c.b16 %v2128, %v2125
      %v2192 = vpack.c.b16 %v2129, %v2126
      %v2193 = vpack.c.b16 %v2133, %v2130
      %v2194 = vpack.c.b16 %v2134, %v2131
      %v2195 = vpack.c.b16 %v2135, %v2132
      %v2196 = vpack.c.b16 %v2139, %v2136
      %v2197 = vpack.c.b16 %v2140, %v2137
      %v2198 = vpack.c.b16 %v2141, %v2138
      %v2199 = vpack.c.b16 %v2145, %v2142
      %v2200 = vpack.c.b16 %v2146, %v2143
      %v2201 = vpack.c.b16 %v2147, %v2144
      %v2202 = vpack.c.b16 %v2151, %v2148
      %v2203 = vpack.c.b16 %v2152, %v2149
      %v2204 = vpack.c.b16 %v2153, %v2150
      %v2205 = vpack.c.b16 %v2157, %v2154
      %v2206 = vpack.c.b16 %v2158, %v2155
      %v2207 = vpack.c.b16 %v2159, %v2156
      %v2304 = vunpack.c.l.b16 %v1952
      %v2305 = vunpack.c.l.b16 %v1953
      %v2306 = vunpack.c.l.b16 %v1954
      %v2307 = vunpack.c.l.b16 %v1955
      %v2308 = vunpack.c.l.b16 %v1956
      %v2309 = vunpack.c.l.b16 %v1957
      %v2310 = vunpack.c.l.b16 %v1958
      %v2311 = vunpack.c.l.b16 %v1959
      %v2312 = vunpack.c.l.b16 %v1960
      %v2313 = vunpack.c.l.b16 %v1961
      %v2314 = vunpack.c.l.b16 %v1962
      %v2315 = vunpack.c.l.b16 %v1963
      %v2316 = vunpack.c.l.b16 %v1964
      %v2317 = vunpack.c.l.b16 %v1965
      %v2318 = vunpack.c.l.b16 %v1966
      %v2319 = vunpack.c.l.b16 %v1967
      %v2320 = vunpack.c.l.b16 %v1968
      %v2321 = vunpack.c.l.b16 %v1969
      %v2322 = vunpack.c.l.b16 %v1970
      %v2323 = vunpack.c.l.b16 %v1971
      %v2324 = vunpack.c.l.b16 %v1972
      %v2325 = vunpack.c.l.b16 %v1973
      %v2326 = vunpack.c.l.b16 %v1974
      %v2327 = vunpack.c.l.b16 %v1975
      %v2328 = vunpack.c.l.b16 %v1976
      %v2329 = vunpack.c.l.b16 %v1977
      %v2330 = vunpack.c.l.b16 %v1978
      %v2331 = vunpack.c.l.b16 %v1979
      %v2332 = vunpack.c.l.b16 %v1980
      %v2333 = vunpack.c.l.b16 %v1981
      %v2334 = vunpack.c.l.b16 %v1982
      %v2335 = vunpack.c.l.b16 %v1983
      %v2336 = vunpack.c.l.b16 %v1984
      %v2337 = vunpack.c.l.b16 %v1985
      %v2338 = vunpack.c.l.b16 %v1986
      %v2339 = vunpack.c.l.b16 %v1987
      %v2340 = vunpack.c.l.b16 %v1988
      %v2341 = vunpack.c.l.b16 %v1989
      %v2342 = vunpack.c.l.b16 %v1990
      %v2343 = vunpack.c.l.b16 %v1991
      %v2344 = vunpack.c.l.b16 %v1992
      %v2345 = vunpack.c.l.b16 %v1993
      %v2346 = vunpack.c.l.b16 %v1994
      %v2347 = vunpack.c.l.b16 %v1995
      %v2348 = vunpack.c.l.b16 %v1996
      %v2349 = vunpack.c.l.b16 %v1997
      %v2350 = vunpack.c.l.b16 %v1998
      %v2351 = vunpack.c.l.b16 %v1999
      %v2352 = vpack.c.b16 %v2305, %v2304
      %v2353 = vpack.c.b16 %v2307, %v2306
      %v2354 = vpack.c.b16 %v2309, %v2308
      %v2355 = vpack.c.b16 %v2311, %v2310
      %v2356 = vpack.c.b16 %v2313, %v2312
      %v2357 = vpack.c.b16 %v2315, %v2314
      %v2358 = vpack.c.b16 %v2317, %v2316
      %v2359 = vpack.c.b16 %v2319, %v2318
      %v2360 = vpack.c.b16 %v2321, %v2320
      %v2361 = vpack.c.b16 %v2323, %v2322
      %v2362 = vpack.c.b16 %v2325, %v2324
      %v2363 = vpack.c.b16 %v2327, %v2326
      %v2364 = vpack.c.b16 %v2329, %v2328
      %v2365 = vpack.c.b16 %v2331, %v2330
      %v2366 = vpack.c.b16 %v2333, %v2332
      %v2367 = vpack.c.b16 %v2335, %v2334
      %v2368 = vpack.c.b16 %v2337, %v2336
      %v2369 = vpack.c.b16 %v2339, %v2338
      %v2370 = vpack.c.b16 %v2341, %v2340
      %v2371 = vpack.c.b16 %v2343, %v2342
      %v2372 = vpack.c.b16 %v2345, %v2344
      %v2373 = vpack.c.b16 %v2347, %v2346
      %v2374 = vpack.c.b16 %v2349, %v2348
      %v2375 = vpack.c.b16 %v2351, %v2350
      %2400 = vmatprep.subr.bf16.mxu0 0
      %2401 = vmatpush1.bf16.msra.mxu0 %v2352
      %2402 = vmatprep.subr.bf16.mxu0 0
      %2403 = vmatpush1.bf16.msra.mxu0 %v2353
      %2404 = vmatprep.subr.bf16.mxu0 0
      %2405 = vmatpush1.bf16.msra.mxu0 %v2354
      %2406 = vmatprep.subr.bf16.mxu0 0
      %2407 = vmatpush1.bf16.msra.mxu0 %v2355
      %2408 = vmatprep.subr.bf16.mxu0 0
      %2409 = vmatpush1.bf16.msra.mxu0 %v2356
      %2410 = vmatprep.subr.bf16.mxu0 0
      %2411 = vmatpush1.bf16.msra.mxu0 %v2357
      %2412 = vmatprep.subr.bf16.mxu0 0
      %2413 = vmatpush1.bf16.msra.mxu0 %v2358
      %2414 = vmatprep.subr.bf16.mxu0 0
      %2415 = vmatpush1.bf16.msra.mxu0 %v2359
      %2416 = vmatprep.subr.bf16.mxu0 0
      %2417 = vmatpush1.bf16.msra.mxu0 %v2360
      %2418 = vmatprep.subr.bf16.mxu0 0
      %2419 = vmatpush1.bf16.msra.mxu0 %v2361
      %2420 = vmatprep.subr.bf16.mxu0 0
      %2421 = vmatpush1.bf16.msra.mxu0 %v2362
      %2422 = vmatprep.subr.bf16.mxu0 0
      %2423 = vmatpush1.bf16.msra.mxu0 %v2363
      %2424 = vmatprep.subr.bf16.mxu0 0
      %2425 = vmatpush1.bf16.msra.mxu0 %v2364
      %2426 = vmatprep.subr.bf16.mxu0 0
      %2427 = vmatpush1.bf16.msra.mxu0 %v2365
      %2428 = vmatprep.subr.bf16.mxu0 0
      %2429 = vmatpush1.bf16.msra.mxu0 %v2366
      %2430 = vmatprep.subr.bf16.mxu0 0
      %2431 = vmatpush1.bf16.msra.mxu0 %v2367
      %2432 = vmatprep.mubr.bf16.mxu0 %v2161
      %2433 = vmatmul.mubr.bf16.gmra.mrb[0].mxu0 %v2160
      %v2434 = vpop.f32.mrb[0].mxu0
      %v2435 = vadd.f32 0.0, %v2434
      %v2436 = vpop.f32.mrb[0].mxu0
      %v2437 = vpop.f32.mrb[0].mxu0
      %v2438 = vadd.f32 0.0, %v2437
      %v2439 = vpop.f32.mrb[0].mxu0
      %2440 = vmatprep.mubr.bf16.mxu0 %v2164
      %2441 = vmatmul.mubr.bf16.gmra.mrb[0].mxu0 %v2163
      %v2442 = vpop.f32.mrb[0].mxu0
      %v2443 = vadd.f32 0.0, %v2442
      %v2444 = vpop.f32.mrb[0].mxu0
      %v2445 = vpop.f32.mrb[0].mxu0
      %v2446 = vadd.f32 0.0, %v2445
      %v2447 = vpop.f32.mrb[0].mxu0
      %2448 = vmatprep.mubr.bf16.mxu0 %v2167
      %2449 = vmatmul.mubr.bf16.gmra.mrb[0].mxu0 %v2166
      %v2450 = vpop.f32.mrb[0].mxu0
      %v2451 = vadd.f32 0.0, %v2450
      %v2452 = vpop.f32.mrb[0].mxu0
      %v2453 = vpop.f32.mrb[0].mxu0
      %v2454 = vadd.f32 0.0, %v2453
      %v2455 = vpop.f32.mrb[0].mxu0
      %2456 = vmatprep.mubr.bf16.mxu0 %v2170
      %2457 = vmatmul.mubr.bf16.gmra.mrb[0].mxu0 %v2169
      %v2458 = vpop.f32.mrb[0].mxu0
      %v2459 = vadd.f32 0.0, %v2458
      %v2460 = vpop.f32.mrb[0].mxu0
      %v2461 = vpop.f32.mrb[0].mxu0
      %v2462 = vadd.f32 0.0, %v2461
      %v2463 = vpop.f32.mrb[0].mxu0
      %2464 = vmatprep.mubr.bf16.mxu0 %v2173
      %2465 = vmatmul.mubr.bf16.gmra.mrb[0].mxu0 %v2172
      %v2466 = vpop.f32.mrb[0].mxu0
      %v2467 = vadd.f32 0.0, %v2466
      %v2468 = vpop.f32.mrb[0].mxu0
      %v2469 = vpop.f32.mrb[0].mxu0
      %v2470 = vadd.f32 0.0, %v2469
      %v2471 = vpop.f32.mrb[0].mxu0
      %2472 = vmatprep.mubr.bf16.mxu0 %v2176
      %2473 = vmatmul.mubr.bf16.gmra.mrb[0].mxu0 %v2175
      %v2474 = vpop.f32.mrb[0].mxu0
      %v2475 = vadd.f32 0.0, %v2474
      %v2476 = vpop.f32.mrb[0].mxu0
      %v2477 = vpop.f32.mrb[0].mxu0
      %v2478 = vadd.f32 0.0, %v2477
      %v2479 = vpop.f32.mrb[0].mxu0
      %2480 = vmatprep.mubr.bf16.mxu0 %v2179
      %2481 = vmatmul.mubr.bf16.gmra.mrb[0].mxu0 %v2178
      %v2482 = vpop.f32.mrb[0].mxu0
      %v2483 = vadd.f32 0.0, %v2482
      %v2484 = vpop.f32.mrb[0].mxu0
      %v2485 = vpop.f32.mrb[0].mxu0
      %v2486 = vadd.f32 0.0, %v2485
      %v2487 = vpop.f32.mrb[0].mxu0
      %2488 = vmatprep.mubr.bf16.mxu0 %v2182
      %2489 = vmatmul.mubr.bf16.gmra.mrb[0].mxu0 %v2181
      %v2490 = vpop.f32.mrb[0].mxu0
      %v2491 = vadd.f32 0.0, %v2490
      %v2492 = vpop.f32.mrb[0].mxu0
      %v2493 = vpop.f32.mrb[0].mxu0
      %v2494 = vadd.f32 0.0, %v2493
      %v2495 = vpop.f32.mrb[0].mxu0
      %2496 = vmatprep.mubr.bf16.mxu0 %v2185
      %2497 = vmatmul.mubr.bf16.gmra.mrb[0].mxu0 %v2184
      %v2498 = vpop.f32.mrb[0].mxu0
      %v2499 = vadd.f32 0.0, %v2498
      %v2500 = vpop.f32.mrb[0].mxu0
      %v2501 = vpop.f32.mrb[0].mxu0
      %v2502 = vadd.f32 0.0, %v2501
      %v2503 = vpop.f32.mrb[0].mxu0
      %2504 = vmatprep.mubr.bf16.mxu0 %v2188
      %2505 = vmatmul.mubr.bf16.gmra.mrb[0].mxu0 %v2187
      %v2506 = vpop.f32.mrb[0].mxu0
      %v2507 = vadd.f32 0.0, %v2506
      %v2508 = vpop.f32.mrb[0].mxu0
      %v2509 = vpop.f32.mrb[0].mxu0
      %v2510 = vadd.f32 0.0, %v2509
      %v2511 = vpop.f32.mrb[0].mxu0
      %2512 = vmatprep.mubr.bf16.mxu0 %v2191
      %2513 = vmatmul.mubr.bf16.gmra.mrb[0].mxu0 %v2190
      %v2514 = vpop.f32.mrb[0].mxu0
      %v2515 = vadd.f32 0.0, %v2514
      %v2516 = vpop.f32.mrb[0].mxu0
      %v2517 = vpop.f32.mrb[0].mxu0
      %v2518 = vadd.f32 0.0, %v2517
      %v2519 = vpop.f32.mrb[0].mxu0
      %2520 = vmatprep.mubr.bf16.mxu0 %v2194
      %2521 = vmatmul.mubr.bf16.gmra.mrb[0].mxu0 %v2193
      %v2522 = vpop.f32.mrb[0].mxu0
      %v2523 = vadd.f32 0.0, %v2522
      %v2524 = vpop.f32.mrb[0].mxu0
      %v2525 = vpop.f32.mrb[0].mxu0
      %v2526 = vadd.f32 0.0, %v2525
      %v2527 = vpop.f32.mrb[0].mxu0
      %2528 = vmatprep.mubr.bf16.mxu0 %v2197
      %2529 = vmatmul.mubr.bf16.gmra.mrb[0].mxu0 %v2196
      %v2530 = vpop.f32.mrb[0].mxu0
      %v2531 = vadd.f32 0.0, %v2530
      %v2532 = vpop.f32.mrb[0].mxu0
      %v2533 = vpop.f32.mrb[0].mxu0
      %v2534 = vadd.f32 0.0, %v2533
      %v2535 = vpop.f32.mrb[0].mxu0
      %2536 = vmatprep.mubr.bf16.mxu0 %v2200
      %2537 = vmatmul.mubr.bf16.gmra.mrb[0].mxu0 %v2199
      %v2538 = vpop.f32.mrb[0].mxu0
      %v2539 = vadd.f32 0.0, %v2538
      %v2540 = vpop.f32.mrb[0].mxu0
      %v2541 = vpop.f32.mrb[0].mxu0
      %v2542 = vadd.f32 0.0, %v2541
      %v2543 = vpop.f32.mrb[0].mxu0
      %2544 = vmatprep.mubr.bf16.mxu0 %v2203
      %2545 = vmatmul.mubr.bf16.gmra.mrb[0].mxu0 %v2202
      %v2546 = vpop.f32.mrb[0].mxu0
      %v2547 = vadd.f32 0.0, %v2546
      %v2548 = vpop.f32.mrb[0].mxu0
      %v2549 = vpop.f32.mrb[0].mxu0
      %v2550 = vadd.f32 0.0, %v2549
      %v2551 = vpop.f32.mrb[0].mxu0
      %2552 = vmatprep.mubr.bf16.mxu0 %v2206
      %2553 = vmatmul.mubr.bf16.gmra.mrb[0].mxu0 %v2205
      %v2554 = vpop.f32.mrb[0].mxu0
      %v2555 = vadd.f32 0.0, %v2554
      %v2556 = vpop.f32.mrb[0].mxu0
      %v2557 = vpop.f32.mrb[0].mxu0
      %v2558 = vadd.f32 0.0, %v2557
      %v2559 = vpop.f32.mrb[0].mxu0
      %2560 = vdwg.mxu0
      %2561 = vmatprep.subr.bf16.mxu0 0
      %2562 = vmatpush1.bf16.msra.mxu0 %v2368
      %2563 = vmatprep.subr.bf16.mxu0 0
      %2564 = vmatpush1.bf16.msra.mxu0 %v2369
      %2565 = vmatprep.subr.bf16.mxu0 0
      %2566 = vmatpush1.bf16.msra.mxu0 %v2370
      %2567 = vmatprep.subr.bf16.mxu0 0
      %2568 = vmatpush1.bf16.msra.mxu0 %v2371
      %2569 = vmatprep.subr.bf16.mxu0 0
      %2570 = vmatpush1.bf16.msra.mxu0 %v2372
      %2571 = vmatprep.subr.bf16.mxu0 0
      %2572 = vmatpush1.bf16.msra.mxu0 %v2373
      %2573 = vmatprep.subr.bf16.mxu0 0
      %2574 = vmatpush1.bf16.msra.mxu0 %v2374
      %2575 = vmatprep.subr.bf16.mxu0 0
      %2576 = vmatpush1.bf16.msra.mxu0 %v2375
      %2577 = vmatprep.subr.bf16.mxu0 0
      %2578 = vmatpush1.bf16.msra.mxu0 0
      %2579 = vmatprep.subr.bf16.mxu0 0
      %2580 = vmatpush1.bf16.msra.mxu0 0
      %2581 = vmatprep.subr.bf16.mxu0 0
      %2582 = vmatpush1.bf16.msra.mxu0 0
      %2583 = vmatprep.subr.bf16.mxu0 0
      %2584 = vmatpush1.bf16.msra.mxu0 0
      %2585 = vmatprep.subr.bf16.mxu0 0
      %2586 = vmatpush1.bf16.msra.mxu0 0
      %2587 = vmatprep.subr.bf16.mxu0 0
      %2588 = vmatpush1.bf16.msra.mxu0 0
      %2589 = vmatprep.subr.bf16.mxu0 0
      %2590 = vmatpush1.bf16.msra.mxu0 0
      %2591 = vmatprep.subr.bf16.mxu0 0
      %2592 = vmatpush1.bf16.msra.mxu0 0
      %2593 = vmatprep.mubr.bf16.mxu0 0
      %2594 = vmatmul.mubr.bf16.gmra.mrb[0].mxu0 %v2162
      %v2595 = vpop.f32.mrb[0].mxu0
      %v2596 = vadd.f32 %v2435, %v2595
      %v2597 = vpop.f32.mrb[0].mxu0
      %v2598 = vpop.f32.mrb[0].mxu0
      %v2599 = vadd.f32 %v2438, %v2598
      %v2600 = vpop.f32.mrb[0].mxu0
      %2601 = vmatprep.mubr.bf16.mxu0 0
      %2602 = vmatmul.mubr.bf16.gmra.mrb[0].mxu0 %v2165
      %v2603 = vpop.f32.mrb[0].mxu0
      %v2604 = vadd.f32 %v2443, %v2603
      %v2605 = vpop.f32.mrb[0].mxu0
      %v2606 = vpop.f32.mrb[0].mxu0
      %v2607 = vadd.f32 %v2446, %v2606
      %v2608 = vpop.f32.mrb[0].mxu0
      %2609 = vmatprep.mubr.bf16.mxu0 0
      %2610 = vmatmul.mubr.bf16.gmra.mrb[0].mxu0 %v2168
      %v2611 = vpop.f32.mrb[0].mxu0
      %v2612 = vadd.f32 %v2451, %v2611
      %v2613 = vpop.f32.mrb[0].mxu0
      %v2614 = vpop.f32.mrb[0].mxu0
      %v2615 = vadd.f32 %v2454, %v2614
      %v2616 = vpop.f32.mrb[0].mxu0
      %2617 = vmatprep.mubr.bf16.mxu0 0
      %2618 = vmatmul.mubr.bf16.gmra.mrb[0].mxu0 %v2171
      %v2619 = vpop.f32.mrb[0].mxu0
      %v2620 = vadd.f32 %v2459, %v2619
      %v2621 = vpop.f32.mrb[0].mxu0
      %v2622 = vpop.f32.mrb[0].mxu0
      %v2623 = vadd.f32 %v2462, %v2622
      %v2624 = vpop.f32.mrb[0].mxu0
      %2625 = vmatprep.mubr.bf16.mxu0 0
      %2626 = vmatmul.mubr.bf16.gmra.mrb[0].mxu0 %v2174
      %v2627 = vpop.f32.mrb[0].mxu0
      %v2628 = vadd.f32 %v2467, %v2627
      %v2629 = vpop.f32.mrb[0].mxu0
      %v2630 = vpop.f32.mrb[0].mxu0
      %v2631 = vadd.f32 %v2470, %v2630
      %v2632 = vpop.f32.mrb[0].mxu0
      %2633 = vmatprep.mubr.bf16.mxu0 0
      %2634 = vmatmul.mubr.bf16.gmra.mrb[0].mxu0 %v2177
      %v2635 = vpop.f32.mrb[0].mxu0
      %v2636 = vadd.f32 %v2475, %v2635
      %v2637 = vpop.f32.mrb[0].mxu0
      %v2638 = vpop.f32.mrb[0].mxu0
      %v2639 = vadd.f32 %v2478, %v2638
      %v2640 = vpop.f32.mrb[0].mxu0
      %2641 = vmatprep.mubr.bf16.mxu0 0
      %2642 = vmatmul.mubr.bf16.gmra.mrb[0].mxu0 %v2180
      %v2643 = vpop.f32.mrb[0].mxu0
      %v2644 = vadd.f32 %v2483, %v2643
      %v2645 = vpop.f32.mrb[0].mxu0
      %v2646 = vpop.f32.mrb[0].mxu0
      %v2647 = vadd.f32 %v2486, %v2646
      %v2648 = vpop.f32.mrb[0].mxu0
      %2649 = vmatprep.mubr.bf16.mxu0 0
      %2650 = vmatmul.mubr.bf16.gmra.mrb[0].mxu0 %v2183
      %v2651 = vpop.f32.mrb[0].mxu0
      %v2652 = vadd.f32 %v2491, %v2651
      %v2653 = vpop.f32.mrb[0].mxu0
      %v2654 = vpop.f32.mrb[0].mxu0
      %v2655 = vadd.f32 %v2494, %v2654
      %v2656 = vpop.f32.mrb[0].mxu0
      %2657 = vmatprep.mubr.bf16.mxu0 0
      %2658 = vmatmul.mubr.bf16.gmra.mrb[0].mxu0 %v2186
      %v2659 = vpop.f32.mrb[0].mxu0
      %v2660 = vadd.f32 %v2499, %v2659
      %v2661 = vpop.f32.mrb[0].mxu0
      %v2662 = vpop.f32.mrb[0].mxu0
      %v2663 = vadd.f32 %v2502, %v2662
      %v2664 = vpop.f32.mrb[0].mxu0
      %2665 = vmatprep.mubr.bf16.mxu0 0
      %2666 = vmatmul.mubr.bf16.gmra.mrb[0].mxu0 %v2189
      %v2667 = vpop.f32.mrb[0].mxu0
      %v2668 = vadd.f32 %v2507, %v2667
      %v2669 = vpop.f32.mrb[0].mxu0
      %v2670 = vpop.f32.mrb[0].mxu0
      %v2671 = vadd.f32 %v2510, %v2670
      %v2672 = vpop.f32.mrb[0].mxu0
      %2673 = vmatprep.mubr.bf16.mxu0 0
      %2674 = vmatmul.mubr.bf16.gmra.mrb[0].mxu0 %v2192
      %v2675 = vpop.f32.mrb[0].mxu0
      %v2676 = vadd.f32 %v2515, %v2675
      %v2677 = vpop.f32.mrb[0].mxu0
      %v2678 = vpop.f32.mrb[0].mxu0
      %v2679 = vadd.f32 %v2518, %v2678
      %v2680 = vpop.f32.mrb[0].mxu0
      %2681 = vmatprep.mubr.bf16.mxu0 0
      %2682 = vmatmul.mubr.bf16.gmra.mrb[0].mxu0 %v2195
      %v2683 = vpop.f32.mrb[0].mxu0
      %v2684 = vadd.f32 %v2523, %v2683
      %v2685 = vpop.f32.mrb[0].mxu0
      %v2686 = vpop.f32.mrb[0].mxu0
      %v2687 = vadd.f32 %v2526, %v2686
      %v2688 = vpop.f32.mrb[0].mxu0
      %2689 = vmatprep.mubr.bf16.mxu0 0
      %2690 = vmatmul.mubr.bf16.gmra.mrb[0].mxu0 %v2198
      %v2691 = vpop.f32.mrb[0].mxu0
      %v2692 = vadd.f32 %v2531, %v2691
      %v2693 = vpop.f32.mrb[0].mxu0
      %v2694 = vpop.f32.mrb[0].mxu0
      %v2695 = vadd.f32 %v2534, %v2694
      %v2696 = vpop.f32.mrb[0].mxu0
      %2697 = vmatprep.mubr.bf16.mxu0 0
      %2698 = vmatmul.mubr.bf16.gmra.mrb[0].mxu0 %v2201
      %v2699 = vpop.f32.mrb[0].mxu0
      %v2700 = vadd.f32 %v2539, %v2699
      %v2701 = vpop.f32.mrb[0].mxu0
      %v2702 = vpop.f32.mrb[0].mxu0
      %v2703 = vadd.f32 %v2542, %v2702
      %v2704 = vpop.f32.mrb[0].mxu0
      %2705 = vmatprep.mubr.bf16.mxu0 0
      %2706 = vmatmul.mubr.bf16.gmra.mrb[0].mxu0 %v2204
      %v2707 = vpop.f32.mrb[0].mxu0
      %v2708 = vadd.f32 %v2547, %v2707
      %v2709 = vpop.f32.mrb[0].mxu0
      %v2710 = vpop.f32.mrb[0].mxu0
      %v2711 = vadd.f32 %v2550, %v2710
      %v2712 = vpop.f32.mrb[0].mxu0
      %2713 = vmatprep.mubr.bf16.mxu0 0
      %2714 = vmatmul.mubr.bf16.gmra.mrb[0].mxu0 %v2207
      %v2715 = vpop.f32.mrb[0].mxu0
      %v2716 = vadd.f32 %v2555, %v2715
      %v2717 = vpop.f32.mrb[0].mxu0
      %v2718 = vpop.f32.mrb[0].mxu0
      %v2719 = vadd.f32 %v2558, %v2718
      %v2720 = vpop.f32.mrb[0].mxu0
      %2721 = vdwg.mxu0
      %v2722 = vadd.f32 %v1760, %v2596
      %v2723 = vadd.f32 %v1763, %v2599
      %v2724 = vadd.f32 %v1768, %v2604
      %v2725 = vadd.f32 %v1771, %v2607
      %v2726 = vadd.f32 %v1776, %v2612
      %v2727 = vadd.f32 %v1779, %v2615
      %v2728 = vadd.f32 %v1784, %v2620
      %v2729 = vadd.f32 %v1787, %v2623
      %v2730 = vadd.f32 %v1792, %v2628
      %v2731 = vadd.f32 %v1795, %v2631
      %v2732 = vadd.f32 %v1800, %v2636
      %v2733 = vadd.f32 %v1803, %v2639
      %v2734 = vadd.f32 %v1808, %v2644
      %v2735 = vadd.f32 %v1811, %v2647
      %v2736 = vadd.f32 %v1816, %v2652
      %v2737 = vadd.f32 %v1819, %v2655
      %v2738 = vadd.f32 %v1824, %v2660
      %v2739 = vadd.f32 %v1827, %v2663
      %v2740 = vadd.f32 %v1832, %v2668
      %v2741 = vadd.f32 %v1835, %v2671
      %v2742 = vadd.f32 %v1840, %v2676
      %v2743 = vadd.f32 %v1843, %v2679
      %v2744 = vadd.f32 %v1848, %v2684
      %v2745 = vadd.f32 %v1851, %v2687
      %v2746 = vadd.f32 %v1856, %v2692
      %v2747 = vadd.f32 %v1859, %v2695
      %v2748 = vadd.f32 %v1864, %v2700
      %v2749 = vadd.f32 %v1867, %v2703
      %v2750 = vadd.f32 %v1872, %v2708
      %v2751 = vadd.f32 %v1875, %v2711
      %v2752 = vadd.f32 %v1880, %v2716
      %v2753 = vadd.f32 %v1883, %v2719
      %v2754 = vadd.f32 %v2722, %v2723
      %v2755 = vadd.f32 %v2754, %v2724
      %v2756 = vadd.f32 %v2755, %v2725
      %v2757 = vadd.f32 %v2756, %v2726
      %v2758 = vadd.f32 %v2757, %v2727
      %v2759 = vadd.f32 %v2758, %v2728
      %v2760 = vadd.f32 %v2759, %v2729
      %v2761 = vadd.f32 %v2760, %v2730
      %v2762 = vadd.f32 %v2761, %v2731
      %v2763 = vadd.f32 %v2762, %v2732
      %v2764 = vadd.f32 %v2763, %v2733
      %v2765 = vadd.f32 %v2764, %v2734
      %v2766 = vadd.f32 %v2765, %v2735
      %v2767 = vadd.f32 %v2766, %v2736
      %v2768 = vadd.f32 %v2767, %v2737
      %v2769 = vadd.f32 %v2768, %v2738
      %v2770 = vadd.f32 %v2769, %v2739
      %v2771 = vadd.f32 %v2770, %v2740
      %v2772 = vadd.f32 %v2771, %v2741
      %v2773 = vadd.f32 %v2772, %v2742
      %v2774 = vadd.f32 %v2773, %v2743
      %v2775 = vadd.f32 %v2774, %v2744
      %v2776 = vadd.f32 %v2775, %v2745
      %v2777 = vadd.f32 %v2776, %v2746
      %v2778 = vadd.f32 %v2777, %v2747
      %v2779 = vadd.f32 %v2778, %v2748
      %v2780 = vadd.f32 %v2779, %v2749
      %v2781 = vadd.f32 %v2780, %v2750
      %v2782 = vadd.f32 %v2781, %v2751
      %v2783 = vadd.f32 %v2782, %v2752
      %v2784 = vadd.f32 %v2783, %v2753
      %v2785 = vrot.slane %v2784, 4
      %v2786 = vadd.f32 %v2784, %v2785
      %v2787 = vrot.slane %v2786, 2
      %v2788 = vadd.f32 %v2786, %v2787
      %v2789 = vrot.slane %v2788, 1
      %v2790 = vadd.f32 %v2788, %v2789
      %2791 = vst [vmem:[%s211] sm:$0x1] %v2790
      %v2792 = vmul.f32 %v2722, %v2722
      %v2793 = vmul.f32 %v2723, %v2723
      %v2794 = vmul.f32 %v2724, %v2724
      %v2795 = vmul.f32 %v2725, %v2725
      %v2796 = vmul.f32 %v2726, %v2726
      %v2797 = vmul.f32 %v2727, %v2727
      %v2798 = vmul.f32 %v2728, %v2728
      %v2799 = vmul.f32 %v2729, %v2729
      %v2800 = vmul.f32 %v2730, %v2730
      %v2801 = vmul.f32 %v2731, %v2731
      %v2802 = vmul.f32 %v2732, %v2732
      %v2803 = vmul.f32 %v2733, %v2733
      %v2804 = vmul.f32 %v2734, %v2734
      %v2805 = vmul.f32 %v2735, %v2735
      %v2806 = vmul.f32 %v2736, %v2736
      %v2807 = vmul.f32 %v2737, %v2737
      %v2808 = vmul.f32 %v2738, %v2738
      %v2809 = vmul.f32 %v2739, %v2739
      %v2810 = vmul.f32 %v2740, %v2740
      %v2811 = vmul.f32 %v2741, %v2741
      %v2812 = vmul.f32 %v2742, %v2742
      %v2813 = vmul.f32 %v2743, %v2743
      %v2814 = vmul.f32 %v2744, %v2744
      %v2815 = vmul.f32 %v2745, %v2745
      %v2816 = vmul.f32 %v2746, %v2746
      %v2817 = vmul.f32 %v2747, %v2747
      %v2818 = vmul.f32 %v2748, %v2748
      %v2819 = vmul.f32 %v2749, %v2749
      %v2820 = vmul.f32 %v2750, %v2750
      %v2821 = vmul.f32 %v2751, %v2751
      %v2822 = vmul.f32 %v2752, %v2752
      %v2823 = vmul.f32 %v2753, %v2753
      %v2824 = vadd.f32 %v2792, %v2793
      %v2825 = vadd.f32 %v2824, %v2794
      %v2826 = vadd.f32 %v2825, %v2795
      %v2827 = vadd.f32 %v2826, %v2796
      %v2828 = vadd.f32 %v2827, %v2797
      %v2829 = vadd.f32 %v2828, %v2798
      %v2830 = vadd.f32 %v2829, %v2799
      %v2831 = vadd.f32 %v2830, %v2800
      %v2832 = vadd.f32 %v2831, %v2801
      %v2833 = vadd.f32 %v2832, %v2802
      %v2834 = vadd.f32 %v2833, %v2803
      %v2835 = vadd.f32 %v2834, %v2804
      %v2836 = vadd.f32 %v2835, %v2805
      %v2837 = vadd.f32 %v2836, %v2806
      %v2838 = vadd.f32 %v2837, %v2807
      %v2839 = vadd.f32 %v2838, %v2808
      %v2840 = vadd.f32 %v2839, %v2809
      %v2841 = vadd.f32 %v2840, %v2810
      %v2842 = vadd.f32 %v2841, %v2811
      %v2843 = vadd.f32 %v2842, %v2812
      %v2844 = vadd.f32 %v2843, %v2813
      %v2845 = vadd.f32 %v2844, %v2814
      %v2846 = vadd.f32 %v2845, %v2815
      %v2847 = vadd.f32 %v2846, %v2816
      %v2848 = vadd.f32 %v2847, %v2817
      %v2849 = vadd.f32 %v2848, %v2818
      %v2850 = vadd.f32 %v2849, %v2819
      %v2851 = vadd.f32 %v2850, %v2820
      %v2852 = vadd.f32 %v2851, %v2821
      %v2853 = vadd.f32 %v2852, %v2822
      %v2854 = vadd.f32 %v2853, %v2823
      %v2855 = vrot.slane %v2854, 4
      %v2856 = vadd.f32 %v2854, %v2855
      %v2857 = vrot.slane %v2856, 2
      %v2858 = vadd.f32 %v2856, %v2857
      %v2859 = vrot.slane %v2858, 1
      %v2860 = vadd.f32 %v2858, %v2859
      %2861 = vst [vmem:[%s214] sm:$0x1] %v2860
      %v2862 = vpack.c.bf16 %v2723, %v2722
      %v2863 = vpack.c.bf16 %v2725, %v2724
      %v2864 = vpack.c.bf16 %v2727, %v2726
      %v2865 = vpack.c.bf16 %v2729, %v2728
      %v2866 = vpack.c.bf16 %v2731, %v2730
      %v2867 = vpack.c.bf16 %v2733, %v2732
      %v2868 = vpack.c.bf16 %v2735, %v2734
      %v2869 = vpack.c.bf16 %v2737, %v2736
      %v2870 = vpack.c.bf16 %v2739, %v2738
      %v2871 = vpack.c.bf16 %v2741, %v2740
      %v2872 = vpack.c.bf16 %v2743, %v2742
      %v2873 = vpack.c.bf16 %v2745, %v2744
      %v2874 = vpack.c.bf16 %v2747, %v2746
      %v2875 = vpack.c.bf16 %v2749, %v2748
      %v2876 = vpack.c.bf16 %v2751, %v2750
      %v2877 = vpack.c.bf16 %v2753, %v2752
      %v2894 = vunpack.c.l.b16 %v2862
      %v2895 = vunpack.c.h.b16 %v2862
      %v2896 = vunpack.c.l.b16 %v2863
      %v2897 = vunpack.c.h.b16 %v2863
      %v2898 = vunpack.c.l.b16 %v2864
      %v2899 = vunpack.c.h.b16 %v2864
      %v2900 = vunpack.c.l.b16 %v2865
      %v2901 = vunpack.c.h.b16 %v2865
      %v2902 = vunpack.c.l.b16 %v2866
      %v2903 = vunpack.c.h.b16 %v2866
      %v2904 = vunpack.c.l.b16 %v2867
      %v2905 = vunpack.c.h.b16 %v2867
      %v2906 = vunpack.c.l.b16 %v2868
      %v2907 = vunpack.c.h.b16 %v2868
      %v2908 = vunpack.c.l.b16 %v2869
      %v2909 = vunpack.c.h.b16 %v2869
      %v2910 = vunpack.c.l.b16 %v2870
      %v2911 = vunpack.c.h.b16 %v2870
      %v2912 = vunpack.c.l.b16 %v2871
      %v2913 = vunpack.c.h.b16 %v2871
      %v2914 = vunpack.c.l.b16 %v2872
      %v2915 = vunpack.c.h.b16 %v2872
      %v2916 = vunpack.c.l.b16 %v2873
      %v2917 = vunpack.c.h.b16 %v2873
      %v2918 = vunpack.c.l.b16 %v2874
      %v2919 = vunpack.c.h.b16 %v2874
      %v2920 = vunpack.c.l.b16 %v2875
      %v2921 = vunpack.c.h.b16 %v2875
      %v2922 = vunpack.c.l.b16 %v2876
      %v2923 = vunpack.c.h.b16 %v2876
      %v2924 = vunpack.c.l.b16 %v2877
      %v2925 = vunpack.c.h.b16 %v2877
      %v2926 = vpack.c.b16 %v2894, %v2894
      %v2927 = vpack.c.b16 %v2895, %v2895
      %v2928 = vpack.c.b16 %v2896, %v2896
      %v2929 = vpack.c.b16 %v2897, %v2897
      %v2930 = vpack.c.b16 %v2898, %v2898
      %v2931 = vpack.c.b16 %v2899, %v2899
      %v2932 = vpack.c.b16 %v2900, %v2900
      %v2933 = vpack.c.b16 %v2901, %v2901
      %v2934 = vpack.c.b16 %v2902, %v2902
      %v2935 = vpack.c.b16 %v2903, %v2903
      %v2936 = vpack.c.b16 %v2904, %v2904
      %v2937 = vpack.c.b16 %v2905, %v2905
      %v2938 = vpack.c.b16 %v2906, %v2906
      %v2939 = vpack.c.b16 %v2907, %v2907
      %v2940 = vpack.c.b16 %v2908, %v2908
      %v2941 = vpack.c.b16 %v2909, %v2909
      %v2942 = vpack.c.b16 %v2910, %v2910
      %v2943 = vpack.c.b16 %v2911, %v2911
      %v2944 = vpack.c.b16 %v2912, %v2912
      %v2945 = vpack.c.b16 %v2913, %v2913
      %v2946 = vpack.c.b16 %v2914, %v2914
      %v2947 = vpack.c.b16 %v2915, %v2915
      %v2948 = vpack.c.b16 %v2916, %v2916
      %v2949 = vpack.c.b16 %v2917, %v2917
      %v2950 = vpack.c.b16 %v2918, %v2918
      %v2951 = vpack.c.b16 %v2919, %v2919
      %v2952 = vpack.c.b16 %v2920, %v2920
      %v2953 = vpack.c.b16 %v2921, %v2921
      %v2954 = vpack.c.b16 %v2922, %v2922
      %v2955 = vpack.c.b16 %v2923, %v2923
      %v2956 = vpack.c.b16 %v2924, %v2924
      %v2957 = vpack.c.b16 %v2925, %v2925
      %2990 = vst [vmem:[%s208] sm:$0xf] %v2926
      %2991 = vst [vmem:[%s208 + $0x4] sm:$0xf] %v2927
      %2992 = vst [vmem:[%s208 + $0x8] sm:$0xf] %v2928
      %2993 = vst [vmem:[%s208 + $0xc] sm:$0xf] %v2929
      %2994 = vst [vmem:[%s208 + $0x10] sm:$0xf] %v2930
      %2995 = vst [vmem:[%s208 + $0x14] sm:$0xf] %v2931
      %2996 = vst [vmem:[%s208 + $0x18] sm:$0xf] %v2932
      %2997 = vst [vmem:[%s208 + $0x1c] sm:$0xf] %v2933
      %2998 = vst [vmem:[%s208 + $0x20] sm:$0xf] %v2934
      %2999 = vst [vmem:[%s208 + $0x24] sm:$0xf] %v2935
      %3000 = vst [vmem:[%s208 + $0x28] sm:$0xf] %v2936
      %3001 = vst [vmem:[%s208 + $0x2c] sm:$0xf] %v2937
      %3002 = vst [vmem:[%s208 + $0x30] sm:$0xf] %v2938
      %3003 = vst [vmem:[%s208 + $0x34] sm:$0xf] %v2939
      %3004 = vst [vmem:[%s208 + $0x38] sm:$0xf] %v2940
      %3005 = vst [vmem:[%s208 + $0x3c] sm:$0xf] %v2941
      %3006 = vst [vmem:[%s208 + $0x40] sm:$0xf] %v2942
      %3007 = vst [vmem:[%s208 + $0x44] sm:$0xf] %v2943
      %3008 = vst [vmem:[%s208 + $0x48] sm:$0xf] %v2944
      %3009 = vst [vmem:[%s208 + $0x4c] sm:$0xf] %v2945
      %3010 = vst [vmem:[%s208 + $0x50] sm:$0xf] %v2946
      %3011 = vst [vmem:[%s208 + $0x54] sm:$0xf] %v2947
      %3012 = vst [vmem:[%s208 + $0x58] sm:$0xf] %v2948
      %3013 = vst [vmem:[%s208 + $0x5c] sm:$0xf] %v2949
      %3014 = vst [vmem:[%s208 + $0x60] sm:$0xf] %v2950
      %3015 = vst [vmem:[%s208 + $0x64] sm:$0xf] %v2951
      %3016 = vst [vmem:[%s208 + $0x68] sm:$0xf] %v2952
      %3017 = vst [vmem:[%s208 + $0x6c] sm:$0xf] %v2953
      %3018 = vst [vmem:[%s208 + $0x70] sm:$0xf] %v2954
      %3019 = vst [vmem:[%s208 + $0x74] sm:$0xf] %v2955
      %3020 = vst [vmem:[%s208 + $0x78] sm:$0xf] %v2956
      %3021 = vst [vmem:[%s208 + $0x7c] sm:$0xf] %v2957
      %p3022 = scmp.lt.s32.totalorder %s16, 1
      %s3023 = scalar_select %p3022, %s16, 1
      %s3024 = smul.addr %s3023, 32
      %s3025 = smul.addr %s3024, 4
      %s3026 = scalar_lea.vmem %s2, %s3025
      %p3027 = scmp.lt.s32.totalorder %s16, 1
      %s3028 = scalar_select %p3027, %s16, 1
      %s3029 = scalar_lea.vmem %s3, %s3028
      %p3030 = scmp.lt.s32.totalorder %s16, 1
      %s3031 = scalar_select %p3030, %s16, 1
      %s3032 = scalar_lea.vmem %s4, %s3031
      // Predicated region
      $region29: #{unet_up_block_forward.10} parent=27 // pred_check
        %p3033 = pneg %p81
      $region30: #{unet_up_block_forward.10} parent=27 // pred_check_branch
        %3035 = sbr.rel (%p3033) target = $region32
      $region31: #{unet_up_block_forward.10} parent=27 // pred_region
        _
      $region32: #{unet_up_block_forward.10} parent=27 // pred_fallthru
        _
      // Predicated region
      $region33: #{unet_up_block_forward.10} parent=27 // pred_check
        %p3036 = pneg %p107
      $region34: #{unet_up_block_forward.10} parent=27 // pred_check_branch
        %3038 = sbr.rel (%p3036) target = $region36
      $region35: #{unet_up_block_forward.10} parent=27 // pred_region
        _
      $region36: #{unet_up_block_forward.10} parent=27 // pred_fallthru
        _
      // Predicated region
      $region37: #{unet_up_block_forward.10} parent=27 // pred_check
        %p3039 = pneg %p133
      $region38: #{unet_up_block_forward.10} parent=27 // pred_check_branch
        %3041 = sbr.rel (%p3039) target = $region40
      $region39: #{unet_up_block_forward.10} parent=27 // pred_region
        _
      $region40: #{unet_up_block_forward.10} parent=27 // pred_fallthru
        _
    $region28: #{unet_up_block_forward.10} parent=5 // pred_fallthru
      _
    %p3042 = scmp.le.s32.totalorder 2, %s11
    // Predicated region
    $region41: #{unet_up_block_forward.10} parent=5 // pred_check
      %p3043 = pneg %p3042
    $region42: #{unet_up_block_forward.10} parent=5 // pred_check_branch
      %3045 = sbr.rel (%p3043) target = $region44
    $region43: #{unet_up_block_forward.10} parent=5 // pred_region
      %s3046 = ssub.s32 %s11, 2
      // Predicated region
      $region45: #{unet_up_block_forward.10} parent=43 // pred_check
        %p3047 = pneg %p87
      $region46: #{unet_up_block_forward.10} parent=43 // pred_check_branch
        %3049 = sbr.rel (%p3047) target = $region48
      $region47: #{unet_up_block_forward.10} parent=43 // pred_region
        %p3050 = scmp.lt.s32.totalorder %s17, 1
        %s3051 = scalar_select %p3050, %s17, 1
        %s3052 = smul.addr %s3051, 32
        %s3053 = smul.addr %s3052, 4
        %s3054 = scalar_lea.vmem %s2, %s3053
      $region48: #{unet_up_block_forward.10} parent=43 // pred_fallthru
        _
      // Predicated region
      $region49: #{unet_up_block_forward.10} parent=43 // pred_check
        %p3055 = pneg %p113
      $region50: #{unet_up_block_forward.10} parent=43 // pred_check_branch
        %3057 = sbr.rel (%p3055) target = $region52
      $region51: #{unet_up_block_forward.10} parent=43 // pred_region
        %p3058 = scmp.lt.s32.totalorder %s17, 1
        %s3059 = scalar_select %p3058, %s17, 1
        %s3060 = scalar_lea.vmem %s3, %s3059
      $region52: #{unet_up_block_forward.10} parent=43 // pred_fallthru
        _
      // Predicated region
      $region53: #{unet_up_block_forward.10} parent=43 // pred_check
        %p3061 = pneg %p139
      $region54: #{unet_up_block_forward.10} parent=43 // pred_check_branch
        %3063 = sbr.rel (%p3061) target = $region56
      $region55: #{unet_up_block_forward.10} parent=43 // pred_region
        %p3064 = scmp.lt.s32.totalorder %s17, 1
        %s3065 = scalar_select %p3064, %s17, 1
        %s3066 = scalar_lea.vmem %s4, %s3065
      $region56: #{unet_up_block_forward.10} parent=43 // pred_fallthru
        _
    $region44: #{unet_up_block_forward.10} parent=5 // pred_fallthru
      _
  $region6: #{unet_up_block_forward.10} parent=0 // loop_footer
    %s15 = sadd.s32 1, %s11
  $region7: #{unet_up_block_forward.10} parent=0 // loop_footer_branch
    %10 = sbr.rel target = $region3
  $region8: #{unet_up_block_forward.10} parent=0 // loop_exit
    _

</llo_original>
